<compile_context>
chip_gen: v7x
topology: tpu7x:2x2x1
jax: 0.10.0
libtpu: 0.0.40
codegen_flags: <defaults>
</compile_context>

<pallas_src>
import functools

import jax
import jax.numpy as jnp
from jax import lax
from jax.experimental import pallas as pl
from jax.experimental.pallas import tpu as pltpu


def _keep_scale_mask(shape, head_idx, seed, p_drop):
    """Per-element dropout weight (1/(1-p) if kept else 0) from integer ops only.

    Stateless counter-based hash (murmur3 fmix32 finalizer of flat_index ^ salt);
    no hardware PRNG, no extra HBM-resident random tensor.
    """
    rows, cols = shape
    row = lax.broadcasted_iota(jnp.int32, shape, 0)
    col = lax.broadcasted_iota(jnp.int32, shape, 1)
    idx = (row * cols + col).astype(jnp.uint32)

    seed_c = jnp.uint32((int(seed) * 0x9E3779B1) & 0xFFFFFFFF)
    salt = seed_c ^ (head_idx.astype(jnp.uint32) * jnp.uint32(0x85EBCA77))

    x = idx ^ salt
    x = x ^ (x >> 16)
    x = x * jnp.uint32(0x85EBCA6B)
    x = x ^ (x >> 13)
    x = x * jnp.uint32(0xC2B2AE35)
    x = x ^ (x >> 16)

    # Integer-threshold decision on the low 24 bits (signed compare), then a
    # single select producing the pre-scaled keep weight.
    bits = (x & jnp.uint32(0x00FFFFFF)).astype(jnp.int32)
    threshold = jnp.int32(int(round(float(p_drop) * float(1 << 24))))
    scale = jnp.float32(1.0 / (1.0 - float(p_drop)))
    return jnp.where(bits >= threshold, scale, jnp.float32(0.0))


def _softmax_dropout_matmul_kernel(s_ref, v_ref, o_ref, *, p_drop, training, seed,
                                   heads_per_block):
    # s_ref: (hb, S, S)  v_ref: (hb, S, D)  o_ref: (hb, S, D)
    base_head = pl.program_id(0) * heads_per_block
    for h in range(heads_per_block):                      # static unrolled loop
        s = s_ref[h].astype(jnp.float32)                  # [S, S]
        m = jnp.max(s, axis=-1, keepdims=True)
        e = jnp.exp(s - m)                                # unnormalized softmax
        denom = jnp.sum(e, axis=-1, keepdims=True)        # [S, 1] f32

        if training and p_drop > 0.0:
            w = _keep_scale_mask(e.shape, base_head + h, seed, p_drop)
            e = e * w                                     # one VPU pass over [S,S]

        # bf16 operands on the MXU, f32 accumulation; normalization deferred
        # past the matmul so it acts on [S,D] instead of [S,S].
        acc = jnp.dot(e.astype(jnp.bfloat16), v_ref[h].astype(jnp.bfloat16),
                      preferred_element_type=jnp.float32)         # [S, D]
        acc = acc * pl.reciprocal(denom, approx=True)              # EUP vrcp
        o_ref[h] = acc.astype(o_ref.dtype)


def softmax_dropout_matmul(scores, values, *, p_drop=0.1, training=True, seed=0):
    """scores: [B, H, S, S] f32, values: [B, H, S, D] f32 -> [B, H, S, D] f32."""
    B, H, S, S2 = scores.shape
    assert S == S2, "scores must be [B, H, S, S]"
    Bv, Hv, Sv, D = values.shape
    assert (Bv, Hv, Sv) == (B, H, S)
    BH = B * H
    heads_per_block = 2 if BH % 2 == 0 else 1   # amortize per-step overhead
    scores_f = scores.reshape(BH, S, S)
    values_f = values.reshape(BH, S, D)
    # TODO(synk): if the upstream producer can emit bf16 scores, accept them
    # directly here (halves the dominant HBM read) instead of f32.

    kernel = functools.partial(
        _softmax_dropout_matmul_kernel,
        p_drop=float(p_drop), training=bool(training), seed=int(seed),
        heads_per_block=heads_per_block)

    out = pl.pallas_call(
        kernel,
        out_shape=jax.ShapeDtypeStruct((BH, S, D), scores.dtype),
        grid=(BH // heads_per_block,),
        in_specs=[
            pl.BlockSpec((heads_per_block, S, S), lambda i: (i, 0, 0)),
            pl.BlockSpec((heads_per_block, S, D), lambda i: (i, 0, 0)),
        ],
        out_specs=pl.BlockSpec((heads_per_block, S, D), lambda i: (i, 0, 0)),
        compiler_params=pltpu.CompilerParams(
            # Dropout hash is stateless -> grid steps are independent; lets
            # v7x shard the steps across its two TensorCores (no-op on v5e/v6e).
            dimension_semantics=("parallel",),
        ),
    )(scores_f, values_f)
    return out.reshape(B, H, S, D)


if __name__ == "__main__":
    key = jax.random.PRNGKey(0)
    k1, k2 = jax.random.split(key)
    B, H, S, D = 1, 4, 384, 64
    x514 = jax.random.normal(k1, (B, H, S, S), dtype=jnp.float32)  # attention scores
    x504 = jax.random.normal(k2, (B, H, S, D), dtype=jnp.float32)  # values

    # Training path (softmax -> dropout(p=0.1) -> matmul), as in the module.
    out = softmax_dropout_matmul(x514, x504, p_drop=0.1, training=True, seed=1234)
    out = jax.block_until_ready(out)
    assert out.shape == (B, H, S, D)
    assert bool(jnp.all(jnp.isfinite(out)))

    # Eval path (dropout = identity) against a pure-JAX reference; tolerance is
    # loosened for the bf16 MXU operands + approx reciprocal.
    out_eval = jax.block_until_ready(
        softmax_dropout_matmul(x514, x504, p_drop=0.1, training=False))
    ref = jnp.einsum("bhqk,bhkd->bhqd", jax.nn.softmax(x514, axis=-1), x504)
    assert jnp.allclose(out_eval, ref, atol=2e-2, rtol=2e-2)

    # Dropout should actually perturb the result in training mode.
    assert not bool(jnp.allclose(out, out_eval, atol=1e-4, rtol=1e-4))

    print("KERNEL_OK")
</pallas_src>

<mosaic_0001>
module attributes {stable_mosaic.version = 11 : i64} {
  func.func @_softmax_dropout_matmul_kernel(%arg0: i32, %arg1: memref<2x384x384xf32, #tpu.memory_space<vmem>>, %arg2: memref<2x384x64xf32, #tpu.memory_space<vmem>>, %arg3: memref<2x384x64xf32, #tpu.memory_space<vmem>>) attributes {dimension_semantics = [#tpu.dimension_semantics<parallel>], iteration_bounds = array<i64: 2>, scalar_prefetch = 0 : i64, scratch_operands = 0 : i64, tpu.core_type = #tpu.core_type<tc>, window_params = [{transform_indices = @transform_0, window_bounds = array<i64: 2, 384, 384>}, {transform_indices = @transform_1, window_bounds = array<i64: 2, 384, 64>}, {transform_indices = @transform_2, window_bounds = array<i64: 2, 384, 64>}]} {
    %c2_i32 = arith.constant 2 : i32
    %0 = arith.muli %arg0, %c2_i32 : i32
    %c0 = arith.constant 0 : index
    %c0_0 = arith.constant 0 : index
    %c0_1 = arith.constant 0 : index
    %1 = vector.load %arg1[%c0, %c0_0, %c0_1] : memref<2x384x384xf32, #tpu.memory_space<vmem>>, vector<1x384x384xf32>
    %2 = vector.shape_cast %1 : vector<1x384x384xf32> to vector<384x384xf32>
    %cst = arith.constant dense<0xFF800000> : vector<384xf32>
    %3 = vector.multi_reduction <maximumf>, %2, %cst [1] : vector<384x384xf32> to vector<384xf32>
    %4 = vector.shape_cast %3 : vector<384xf32> to vector<384x1xf32>
    %5 = vector.broadcast %4 : vector<384x1xf32> to vector<384x384xf32>
    %6 = arith.subf %2, %5 : vector<384x384xf32>
    %7 = math.exp %6 : vector<384x384xf32>
    %cst_2 = arith.constant dense<0.000000e+00> : vector<384xf32>
    %8 = vector.multi_reduction <add>, %7, %cst_2 [1] : vector<384x384xf32> to vector<384xf32>
    %9 = vector.shape_cast %8 : vector<384xf32> to vector<384x1xf32>
    %c0_i32 = arith.constant 0 : i32
    %10 = arith.addi %0, %c0_i32 : i32
    %11 = tpu.iota {dimensions = array<i32: 0>} : vector<384x384xi32>
    %12 = tpu.iota {dimensions = array<i32: 1>} : vector<384x384xi32>
    %c384_i32 = arith.constant 384 : i32
    %13 = vector.broadcast %c384_i32 : i32 to vector<384x384xi32>
    %14 = arith.muli %11, %13 : vector<384x384xi32>
    %15 = arith.addi %14, %12 : vector<384x384xi32>
    %c-2048144777_i32 = arith.constant -2048144777 : i32
    %16 = arith.muli %10, %c-2048144777_i32 : i32
    %c-1486317774_i32 = arith.constant -1486317774 : i32
    %17 = arith.xori %c-1486317774_i32, %16 : i32
    %18 = vector.broadcast %17 : i32 to vector<384x384xi32>
    %19 = arith.xori %15, %18 : vector<384x384xi32>
    %c16_i32 = arith.constant 16 : i32
    %20 = vector.broadcast %c16_i32 : i32 to vector<384x384xi32>
    %21 = arith.shrui %19, %20 : vector<384x384xi32>
    %22 = arith.xori %19, %21 : vector<384x384xi32>
    %c-2048144789_i32 = arith.constant -2048144789 : i32
    %23 = vector.broadcast %c-2048144789_i32 : i32 to vector<384x384xi32>
    %24 = arith.muli %22, %23 : vector<384x384xi32>
    %c13_i32 = arith.constant 13 : i32
    %25 = vector.broadcast %c13_i32 : i32 to vector<384x384xi32>
    %26 = arith.shrui %24, %25 : vector<384x384xi32>
    %27 = arith.xori %24, %26 : vector<384x384xi32>
    %c-1028477387_i32 = arith.constant -1028477387 : i32
    %28 = vector.broadcast %c-1028477387_i32 : i32 to vector<384x384xi32>
    %29 = arith.muli %27, %28 : vector<384x384xi32>
    %c16_i32_3 = arith.constant 16 : i32
    %30 = vector.broadcast %c16_i32_3 : i32 to vector<384x384xi32>
    %31 = arith.shrui %29, %30 : vector<384x384xi32>
    %32 = arith.xori %29, %31 : vector<384x384xi32>
    %c16777215_i32 = arith.constant 16777215 : i32
    %33 = vector.broadcast %c16777215_i32 : i32 to vector<384x384xi32>
    %34 = arith.andi %32, %33 : vector<384x384xi32>
    %c1677722_i32 = arith.constant 1677722 : i32
    %35 = vector.broadcast %c1677722_i32 : i32 to vector<384x384xi32>
    %36 = arith.cmpi sge, %34, %35 : vector<384x384xi32>
    %cst_4 = arith.constant 1.11111116 : f32
    %cst_5 = arith.constant 0.000000e+00 : f32
    %37 = vector.broadcast %cst_4 : f32 to vector<384x384xf32>
    %38 = vector.broadcast %cst_5 : f32 to vector<384x384xf32>
    %39 = arith.select %36, %37, %38 : vector<384x384xi1>, vector<384x384xf32>
    %40 = arith.mulf %7, %39 : vector<384x384xf32>
    %41 = arith.truncf %40 : vector<384x384xf32> to vector<384x384xbf16>
    %c0_6 = arith.constant 0 : index
    %c0_7 = arith.constant 0 : index
    %c0_8 = arith.constant 0 : index
    %42 = vector.load %arg2[%c0_6, %c0_7, %c0_8] : memref<2x384x64xf32, #tpu.memory_space<vmem>>, vector<1x384x64xf32>
    %43 = vector.shape_cast %42 : vector<1x384x64xf32> to vector<384x64xf32>
    %44 = arith.truncf %43 : vector<384x64xf32> to vector<384x64xbf16>
    %cst_9 = arith.constant dense<0.000000e+00> : vector<384x64xf32>
    %45 = tpu.matmul %41, %44, %cst_9 {dimension_numbers = #tpu.dot_dimension_numbers<[1], [0], [0], [1], [0, 0, 1, 1], [], []>} : vector<384x384xbf16>, vector<384x64xbf16>, vector<384x64xf32> -> vector<384x64xf32>
    %46 = tpu.reciprocal %9 {approx = true} : vector<384x1xf32> -> vector<384x1xf32>
    %47 = vector.broadcast %46 : vector<384x1xf32> to vector<384x64xf32>
    %48 = arith.mulf %45, %47 : vector<384x64xf32>
    %c0_10 = arith.constant 0 : index
    %c0_11 = arith.constant 0 : index
    %c0_12 = arith.constant 0 : index
    %49 = vector.load %arg3[%c0_10, %c0_11, %c0_12] : memref<2x384x64xf32, #tpu.memory_space<vmem>>, vector<1x384x64xf32>
    %50 = vector.shape_cast %49 : vector<1x384x64xf32> to vector<384x64xf32>
    %51 = vector.shape_cast %48 : vector<384x64xf32> to vector<1x384x64xf32>
    tpu.vector_store %arg3[%c0_10, %c0_11, %c0_12], %51 {strides = array<i32>} : memref<2x384x64xf32, #tpu.memory_space<vmem>>, vector<1x384x64xf32>,
    %c1 = arith.constant 1 : index
    %c0_13 = arith.constant 0 : index
    %c0_14 = arith.constant 0 : index
    %52 = vector.load %arg1[%c1, %c0_13, %c0_14] : memref<2x384x384xf32, #tpu.memory_space<vmem>>, vector<1x384x384xf32>
    %53 = vector.shape_cast %52 : vector<1x384x384xf32> to vector<384x384xf32>
    %cst_15 = arith.constant dense<0xFF800000> : vector<384xf32>
    %54 = vector.multi_reduction <maximumf>, %53, %cst_15 [1] : vector<384x384xf32> to vector<384xf32>
    %55 = vector.shape_cast %54 : vector<384xf32> to vector<384x1xf32>
    %56 = vector.broadcast %55 : vector<384x1xf32> to vector<384x384xf32>
    %57 = arith.subf %53, %56 : vector<384x384xf32>
    %58 = math.exp %57 : vector<384x384xf32>
    %cst_16 = arith.constant dense<0.000000e+00> : vector<384xf32>
    %59 = vector.multi_reduction <add>, %58, %cst_16 [1] : vector<384x384xf32> to vector<384xf32>
    %60 = vector.shape_cast %59 : vector<384xf32> to vector<384x1xf32>
    %c1_i32 = arith.constant 1 : i32
    %61 = arith.addi %0, %c1_i32 : i32
    %62 = tpu.iota {dimensions = array<i32: 0>} : vector<384x384xi32>
    %63 = tpu.iota {dimensions = array<i32: 1>} : vector<384x384xi32>
    %c384_i32_17 = arith.constant 384 : i32
    %64 = vector.broadcast %c384_i32_17 : i32 to vector<384x384xi32>
    %65 = arith.muli %62, %64 : vector<384x384xi32>
    %66 = arith.addi %65, %63 : vector<384x384xi32>
    %c-2048144777_i32_18 = arith.constant -2048144777 : i32
    %67 = arith.muli %61, %c-2048144777_i32_18 : i32
    %c-1486317774_i32_19 = arith.constant -1486317774 : i32
    %68 = arith.xori %c-1486317774_i32_19, %67 : i32
    %69 = vector.broadcast %68 : i32 to vector<384x384xi32>
    %70 = arith.xori %66, %69 : vector<384x384xi32>
    %c16_i32_20 = arith.constant 16 : i32
    %71 = vector.broadcast %c16_i32_20 : i32 to vector<384x384xi32>
    %72 = arith.shrui %70, %71 : vector<384x384xi32>
    %73 = arith.xori %70, %72 : vector<384x384xi32>
    %c-2048144789_i32_21 = arith.constant -2048144789 : i32
    %74 = vector.broadcast %c-2048144789_i32_21 : i32 to vector<384x384xi32>
    %75 = arith.muli %73, %74 : vector<384x384xi32>
    %c13_i32_22 = arith.constant 13 : i32
    %76 = vector.broadcast %c13_i32_22 : i32 to vector<384x384xi32>
    %77 = arith.shrui %75, %76 : vector<384x384xi32>
    %78 = arith.xori %75, %77 : vector<384x384xi32>
    %c-1028477387_i32_23 = arith.constant -1028477387 : i32
    %79 = vector.broadcast %c-1028477387_i32_23 : i32 to vector<384x384xi32>
    %80 = arith.muli %78, %79 : vector<384x384xi32>
    %c16_i32_24 = arith.constant 16 : i32
    %81 = vector.broadcast %c16_i32_24 : i32 to vector<384x384xi32>
    %82 = arith.shrui %80, %81 : vector<384x384xi32>
    %83 = arith.xori %80, %82 : vector<384x384xi32>
    %c16777215_i32_25 = arith.constant 16777215 : i32
    %84 = vector.broadcast %c16777215_i32_25 : i32 to vector<384x384xi32>
    %85 = arith.andi %83, %84 : vector<384x384xi32>
    %c1677722_i32_26 = arith.constant 1677722 : i32
    %86 = vector.broadcast %c1677722_i32_26 : i32 to vector<384x384xi32>
    %87 = arith.cmpi sge, %85, %86 : vector<384x384xi32>
    %cst_27 = arith.constant 1.11111116 : f32
    %cst_28 = arith.constant 0.000000e+00 : f32
    %88 = vector.broadcast %cst_27 : f32 to vector<384x384xf32>
    %89 = vector.broadcast %cst_28 : f32 to vector<384x384xf32>
    %90 = arith.select %87, %88, %89 : vector<384x384xi1>, vector<384x384xf32>
    %91 = arith.mulf %58, %90 : vector<384x384xf32>
    %92 = arith.truncf %91 : vector<384x384xf32> to vector<384x384xbf16>
    %c1_29 = arith.constant 1 : index
    %c0_30 = arith.constant 0 : index
    %c0_31 = arith.constant 0 : index
    %93 = vector.load %arg2[%c1_29, %c0_30, %c0_31] : memref<2x384x64xf32, #tpu.memory_space<vmem>>, vector<1x384x64xf32>
    %94 = vector.shape_cast %93 : vector<1x384x64xf32> to vector<384x64xf32>
    %95 = arith.truncf %94 : vector<384x64xf32> to vector<384x64xbf16>
    %cst_32 = arith.constant dense<0.000000e+00> : vector<384x64xf32>
    %96 = tpu.matmul %92, %95, %cst_32 {dimension_numbers = #tpu.dot_dimension_numbers<[1], [0], [0], [1], [0, 0, 1, 1], [], []>} : vector<384x384xbf16>, vector<384x64xbf16>, vector<384x64xf32> -> vector<384x64xf32>
    %97 = tpu.reciprocal %60 {approx = true} : vector<384x1xf32> -> vector<384x1xf32>
    %98 = vector.broadcast %97 : vector<384x1xf32> to vector<384x64xf32>
    %99 = arith.mulf %96, %98 : vector<384x64xf32>
    %c1_33 = arith.constant 1 : index
    %c0_34 = arith.constant 0 : index
    %c0_35 = arith.constant 0 : index
    %100 = vector.load %arg3[%c1_33, %c0_34, %c0_35] : memref<2x384x64xf32, #tpu.memory_space<vmem>>, vector<1x384x64xf32>
    %101 = vector.shape_cast %100 : vector<1x384x64xf32> to vector<384x64xf32>
    %102 = vector.shape_cast %99 : vector<384x64xf32> to vector<1x384x64xf32>
    tpu.vector_store %arg3[%c1_33, %c0_34, %c0_35], %102 {strides = array<i32>} : memref<2x384x64xf32, #tpu.memory_space<vmem>>, vector<1x384x64xf32>,
    return
  }
  func.func @transform_0(%arg0: i32) -> (i32, i32, i32) {
    %c0_i32 = arith.constant 0 : i32
    %c0_i32_0 = arith.constant 0 : i32
    %c0_i32_1 = arith.constant 0 : i32
    return %arg0, %c0_i32, %c0_i32_0 : i32, i32, i32
  }
  func.func @transform_1(%arg0: i32) -> (i32, i32, i32) {
    %c0_i32 = arith.constant 0 : i32
    %c0_i32_0 = arith.constant 0 : i32
    %c0_i32_1 = arith.constant 0 : i32
    return %arg0, %c0_i32, %c0_i32_0 : i32, i32, i32
  }
  func.func @transform_2(%arg0: i32) -> (i32, i32, i32) {
    %c0_i32 = arith.constant 0 : i32
    %c0_i32_0 = arith.constant 0 : i32
    %c0_i32_1 = arith.constant 0 : i32
    return %arg0, %c0_i32, %c0_i32_0 : i32, i32, i32
  }
}

</mosaic_0001>

<llo_original>
// kernel: tpu_custom_call.1
$region0: #{tpu_custom_call.1}
  #allocation0 [shape = 'u32[]', space=smem, size = 0x4, offset = 0x4, fixed_abs, tag = 'smem constant byte address 0x4 - core index']
  #allocation1 [shape = 'u32[144,128]{1,0:T(1,128)}', space=vmem, size = 0x12000, scoped, tag = 'internal scratch']
  %s0 = inlined_call_operand.hbm [shape: f32[4,384,384], index: 0, kind: input, shape index: {}]
  %s1 = inlined_call_operand.vmem [shape: f32[4,384,64], index: 1, kind: input, shape index: {}]
  %s2 = inlined_call_operand.vmem [shape: f32[4,384,64], index: 2, kind: output, shape index: {}]
  %s3 = sld [smem:[#allocation0]]
  $region45: #{tpu_custom_call.1} parent=0
    _
  %s5 = ssub.s32 1, %s3
  %s6 = scalar_select 0, %s5, %s3
  $region1: #{tpu_custom_call.1} parent=0
    #allocation2 [shape = 'u8[2359296]{0}', space=vmem, size = 0x240000, scoped, tag = 'input window, operand 0']
    #allocation3 [shape = 's32[2]{0}', space=sflag, size = 0x8, scoped, tag = 'scoped memory for tpu_custom_call.1']
    %7 = vsyncpa [#allocation3], 0
    %s8 = scalar_lea.sflag [#allocation3], 1
    %9 = vsyncpa %s8, 0
    loop: start=0, step=1, limit=4
    $region2: #{tpu_custom_call.1} parent=1 // loop_pre_header
      _
    $region3: #{tpu_custom_call.1} parent=1 // loop_header
      %s11 = sphi 0, %s15
      %p12 = scmp.ge.s32.totalorder %s11, 4
      %s21 = sphi 0, %s23
      %s24 = sphi 0, %s21
      %s25 = sphi 0, %s24
      %s41 = sphi 0, %s25
      %s47 = sphi 0, %s49
      %s50 = sphi 0, %s47
      %s51 = sphi 0, %s50
      %s67 = sphi 0, %s51
      %s73 = sphi 0, %s75
      %s76 = sphi 0, %s73
      %s77 = sphi 0, %s76
      %s93 = sphi 0, %s77
    $region4: #{tpu_custom_call.1} parent=1 // loop_header_branch
      %14 = sbr.rel (%p12) target = $region8
    $region5: #{tpu_custom_call.1} parent=1 // loop_body
      %s16 = ssub.s32 %s11, 1
      %s17 = ssub.s32 %s11, 2
      %s18 = sadd.s32 %s11, 1
      %s19 = ssub.s32 %s11, %s18
      %p20 = scmp.eq.s32.totalorder %s19, 0
      %s22 = sadd.s32 %s21, 1
      %s23 = scalar_select %p20, %s21, %s22
      %p26 = pneg %p20
      %p27 = scmp.eq.s32.totalorder %s11, 1
      %p28 = por %p26, %p27
      %p29 = scmp.ne.s32.totalorder %s21, %s24
      %p30 = scmp.eq.s32.totalorder %s11, 0
      %p31 = por %p29, %p30
      %p32 = scmp.ne.s32.totalorder %s21, %s24
      %p33 = scmp.eq.s32.totalorder %s16, 1
      %p34 = por %p32, %p33
      %p35 = scmp.ne.s32.totalorder %s24, %s25
      %p36 = scmp.eq.s32.totalorder %s16, 0
      %p37 = por %p35, %p36
      %p38 = scmp.ne.s32.totalorder %s24, %s25
      %p39 = scmp.eq.s32.totalorder %s17, 1
      %p40 = por %p38, %p39
      %p42 = scmp.ne.s32.totalorder %s25, %s41
      %p43 = scmp.eq.s32.totalorder %s17, 0
      %p44 = por %p42, %p43
      %s45 = ssub.s32 %s11, %s18
      %p46 = scmp.eq.s32.totalorder %s45, 0
      %s48 = sadd.s32 %s47, 1
      %s49 = scalar_select %p46, %s47, %s48
      %p52 = pneg %p46
      %p53 = scmp.eq.s32.totalorder %s11, 1
      %p54 = por %p52, %p53
      %p55 = scmp.ne.s32.totalorder %s47, %s50
      %p56 = scmp.eq.s32.totalorder %s11, 0
      %p57 = por %p55, %p56
      %p58 = scmp.ne.s32.totalorder %s47, %s50
      %p59 = scmp.eq.s32.totalorder %s16, 1
      %p60 = por %p58, %p59
      %p61 = scmp.ne.s32.totalorder %s50, %s51
      %p62 = scmp.eq.s32.totalorder %s16, 0
      %p63 = por %p61, %p62
      %p64 = scmp.ne.s32.totalorder %s50, %s51
      %p65 = scmp.eq.s32.totalorder %s17, 1
      %p66 = por %p64, %p65
      %p68 = scmp.ne.s32.totalorder %s51, %s67
      %p69 = scmp.eq.s32.totalorder %s17, 0
      %p70 = por %p68, %p69
      %s71 = ssub.s32 %s11, %s18
      %p72 = scmp.eq.s32.totalorder %s71, 0
      %s74 = sadd.s32 %s73, 1
      %s75 = scalar_select %p72, %s73, %s74
      %p78 = pneg %p72
      %p79 = scmp.eq.s32.totalorder %s11, 1
      %p80 = por %p78, %p79
      %p81 = scmp.ne.s32.totalorder %s73, %s76
      %p82 = scmp.eq.s32.totalorder %s11, 0
      %p83 = por %p81, %p82
      %p84 = scmp.ne.s32.totalorder %s73, %s76
      %p85 = scmp.eq.s32.totalorder %s16, 1
      %p86 = por %p84, %p85
      %p87 = scmp.ne.s32.totalorder %s76, %s77
      %p88 = scmp.eq.s32.totalorder %s16, 0
      %p89 = por %p87, %p88
      %p90 = scmp.ne.s32.totalorder %s76, %s77
      %p91 = scmp.eq.s32.totalorder %s17, 1
      %p92 = por %p90, %p91
      %p94 = scmp.ne.s32.totalorder %s77, %s93
      %p95 = scmp.eq.s32.totalorder %s17, 0
      %p96 = por %p94, %p95
      %p97 = scmp.le.s32.totalorder 1, %s11
      %p98 = scmp.lt.s32.totalorder %s11, 3
      %p99 = pnand %p97, %p98
      %p100 = pneg %p99
      // Predicated region
      $region9: #{tpu_custom_call.1} parent=5 // pred_check
        _
      $region10: #{tpu_custom_call.1} parent=5 // pred_check_branch
        %102 = sbr.rel (%p99) target = $region12
      $region11: #{tpu_custom_call.1} parent=5 // pred_region
        %s103 = ssub.s32 %s11, 1
      $region12: #{tpu_custom_call.1} parent=5 // pred_fallthru
        _
      %p104 = scmp.lt.s32.totalorder %s11, 2
      // Predicated region
      $region13: #{tpu_custom_call.1} parent=5 // pred_check
        %p105 = pneg %p104
      $region14: #{tpu_custom_call.1} parent=5 // pred_check_branch
        %107 = sbr.rel (%p105) target = $region16
      $region15: #{tpu_custom_call.1} parent=5 // pred_region
        // Predicated region
        $region17: #{tpu_custom_call.1} parent=15 // pred_check
          %p108 = pneg %p31
        $region18: #{tpu_custom_call.1} parent=15 // pred_check_branch
          %110 = sbr.rel (%p108) target = $region20
        $region19: #{tpu_custom_call.1} parent=15 // pred_region
          %s111 = sand.u32 %s21, 1
          %s112 = scalar_lea.sflag [#allocation3], %s111
          %s113 = sand.u32 %s21, 1
          %s114 = smul.addr %s113, 2304
          %s115 = scalar_lea.vmem [#allocation2], %s114
          %s116 = smul.u32 2, %s11
          %s118 = ssub.s32 36864, 36864
          %119 = vsyncadd %s112, %s118
          %s120 = smul.addr %s116, 144
          %s121 = smul.addr %s120, 128
          %s122 = scalar_lea.hbm %s0, %s121
          %s123 = sshll.u32 %s115, 4
          %s124 = int_to_ptr.vmem [resolvable:$true] %s123
          %129 = dma.hbm_to_vmem [thread:$0]  %s122, 36864, %s124, %s112, 384, 384, 24
        $region20: #{tpu_custom_call.1} parent=15 // pred_fallthru
          _
        // Predicated region
        $region21: #{tpu_custom_call.1} parent=15 // pred_check
          %p130 = pneg %p57
        $region22: #{tpu_custom_call.1} parent=15 // pred_check_branch
          %132 = sbr.rel (%p130) target = $region24
        $region23: #{tpu_custom_call.1} parent=15 // pred_region
          %s133 = smul.u32 2, %s11
          %p134 = scmp.lt.s32.totalorder %s133, 3
          %s135 = scalar_select %p134, %s133, 3
          %s136 = smul.addr %s135, 48
          %s137 = smul.addr %s136, 8
          %s138 = scalar_lea.vmem %s1, %s137
          %s139 = smul.u32 2, %s11
        $region24: #{tpu_custom_call.1} parent=15 // pred_fallthru
          _
      $region16: #{tpu_custom_call.1} parent=5 // pred_fallthru
        _
      %p140 = scmp.le.s32.totalorder 1, %s11
      %p141 = scmp.lt.s32.totalorder %s11, 3
      %p142 = pnand %p140, %p141
      %p143 = pneg %p142
      // Predicated region
      $region25: #{tpu_custom_call.1} parent=5 // pred_check
        _
      $region26: #{tpu_custom_call.1} parent=5 // pred_check_branch
        %145 = sbr.rel (%p142) target = $region28
      $region27: #{tpu_custom_call.1} parent=5 // pred_region
        %s146 = ssub.s32 %s11, 1
        %s147 = sand.u32 %s24, 1
        %s148 = scalar_lea.sflag [#allocation3], %s147
        %s149 = sand.u32 %s24, 1
        %s150 = smul.addr %s149, 2304
        %s151 = scalar_lea.vmem [#allocation2], %s150
        // Predicated region
        $region29: #{tpu_custom_call.1} parent=27 // pred_check
          %p152 = pneg %p37
        $region30: #{tpu_custom_call.1} parent=27 // pred_check_branch
          %154 = sbr.rel (%p152) target = $region32
        $region31: #{tpu_custom_call.1} parent=27 // pred_region
          %155 = dma.done %s148, 36864
        $region32: #{tpu_custom_call.1} parent=27 // pred_fallthru
          _
        %s156 = sand.u32 %s24, 1
        %s157 = scalar_lea.sflag [#allocation3], %s156
        %s158 = sand.u32 %s24, 1
        %s159 = smul.addr %s158, 2304
        %s160 = scalar_lea.vmem [#allocation2], %s159
        %p161 = pneg %p37
        %p162 = pneg %p34
        %s163 = smul.u32 2, %s16
        %p164 = scmp.lt.s32.totalorder %s163, 3
        %s165 = scalar_select %p164, %s163, 3
        %s166 = smul.addr %s165, 48
        %s167 = smul.addr %s166, 8
        %s168 = scalar_lea.vmem %s1, %s167
        %p169 = pneg %p63
        %p170 = pneg %p60
        %p171 = pneg %p89
        %p172 = pneg %p86
        %s173 = smul.u32 2, %s16
        %p174 = scmp.lt.s32.totalorder %s173, 3
        %s175 = scalar_select %p174, %s173, 3
        %s176 = smul.addr %s175, 48
        %s177 = smul.addr %s176, 8
        %s178 = scalar_lea.vmem %s2, %s177
        %s179 = smul.u32 2, %s16
        %s180 = smul.u32 2, %s16
        %p181 = scmp.lt.s32.totalorder %s180, 3
        %s182 = scalar_select %p181, %s180, 3
        %s183 = smul.addr %s182, 48
        %s184 = smul.addr %s183, 8
        %s185 = scalar_lea.vmem %s1, %s184
        %s186 = smul.u32 2, %s16
        %s187 = smul.u32 2, %s16
        %p188 = scmp.lt.s32.totalorder %s187, 3
        %s189 = scalar_select %p188, %s187, 3
        %s190 = smul.addr %s189, 48
        %s191 = smul.addr %s190, 8
        %s192 = scalar_lea.vmem %s2, %s191
        %s193 = smul.u32 2, %s16
        %s195 = smul.u32 %s16, 2
        %v196 = vld [vmem:[%s151] sm:$0xff]
        %v197 = vld [vmem:[%s151 + $0x8] sm:$0xff]
        %v198 = vld [vmem:[%s151 + $0x10] sm:$0xff]
        %v199 = vld [vmem:[%s151 + $0x18] sm:$0xff]
        %v200 = vld [vmem:[%s151 + $0x20] sm:$0xff]
        %v201 = vld [vmem:[%s151 + $0x28] sm:$0xff]
        %v202 = vld [vmem:[%s151 + $0x30] sm:$0xff]
        %v203 = vld [vmem:[%s151 + $0x38] sm:$0xff]
        %v204 = vld [vmem:[%s151 + $0x40] sm:$0xff]
        %v205 = vld [vmem:[%s151 + $0x48] sm:$0xff]
        %v206 = vld [vmem:[%s151 + $0x50] sm:$0xff]
        %v207 = vld [vmem:[%s151 + $0x58] sm:$0xff]
        %v208 = vld [vmem:[%s151 + $0x60] sm:$0xff]
        %v209 = vld [vmem:[%s151 + $0x68] sm:$0xff]
        %v210 = vld [vmem:[%s151 + $0x70] sm:$0xff]
        %v211 = vld [vmem:[%s151 + $0x78] sm:$0xff]
        %v212 = vld [vmem:[%s151 + $0x80] sm:$0xff]
        %v213 = vld [vmem:[%s151 + $0x88] sm:$0xff]
        %v214 = vld [vmem:[%s151 + $0x90] sm:$0xff]
        %v215 = vld [vmem:[%s151 + $0x98] sm:$0xff]
        %v216 = vld [vmem:[%s151 + $0xa0] sm:$0xff]
        %v217 = vld [vmem:[%s151 + $0xa8] sm:$0xff]
        %v218 = vld [vmem:[%s151 + $0xb0] sm:$0xff]
        %v219 = vld [vmem:[%s151 + $0xb8] sm:$0xff]
        %v220 = vld [vmem:[%s151 + $0xc0] sm:$0xff]
        %v221 = vld [vmem:[%s151 + $0xc8] sm:$0xff]
        %v222 = vld [vmem:[%s151 + $0xd0] sm:$0xff]
        %v223 = vld [vmem:[%s151 + $0xd8] sm:$0xff]
        %v224 = vld [vmem:[%s151 + $0xe0] sm:$0xff]
        %v225 = vld [vmem:[%s151 + $0xe8] sm:$0xff]
        %v226 = vld [vmem:[%s151 + $0xf0] sm:$0xff]
        %v227 = vld [vmem:[%s151 + $0xf8] sm:$0xff]
        %v228 = vld [vmem:[%s151 + $0x100] sm:$0xff]
        %v229 = vld [vmem:[%s151 + $0x108] sm:$0xff]
        %v230 = vld [vmem:[%s151 + $0x110] sm:$0xff]
        %v231 = vld [vmem:[%s151 + $0x118] sm:$0xff]
        %v232 = vld [vmem:[%s151 + $0x120] sm:$0xff]
        %v233 = vld [vmem:[%s151 + $0x128] sm:$0xff]
        %v234 = vld [vmem:[%s151 + $0x130] sm:$0xff]
        %v235 = vld [vmem:[%s151 + $0x138] sm:$0xff]
        %v236 = vld [vmem:[%s151 + $0x140] sm:$0xff]
        %v237 = vld [vmem:[%s151 + $0x148] sm:$0xff]
        %v238 = vld [vmem:[%s151 + $0x150] sm:$0xff]
        %v239 = vld [vmem:[%s151 + $0x158] sm:$0xff]
        %v240 = vld [vmem:[%s151 + $0x160] sm:$0xff]
        %v241 = vld [vmem:[%s151 + $0x168] sm:$0xff]
        %v242 = vld [vmem:[%s151 + $0x170] sm:$0xff]
        %v243 = vld [vmem:[%s151 + $0x178] sm:$0xff]
        %v244 = vld [vmem:[%s151 + $0x180] sm:$0xff]
        %v245 = vld [vmem:[%s151 + $0x188] sm:$0xff]
        %v246 = vld [vmem:[%s151 + $0x190] sm:$0xff]
        %v247 = vld [vmem:[%s151 + $0x198] sm:$0xff]
        %v248 = vld [vmem:[%s151 + $0x1a0] sm:$0xff]
        %v249 = vld [vmem:[%s151 + $0x1a8] sm:$0xff]
        %v250 = vld [vmem:[%s151 + $0x1b0] sm:$0xff]
        %v251 = vld [vmem:[%s151 + $0x1b8] sm:$0xff]
        %v252 = vld [vmem:[%s151 + $0x1c0] sm:$0xff]
        %v253 = vld [vmem:[%s151 + $0x1c8] sm:$0xff]
        %v254 = vld [vmem:[%s151 + $0x1d0] sm:$0xff]
        %v255 = vld [vmem:[%s151 + $0x1d8] sm:$0xff]
        %v256 = vld [vmem:[%s151 + $0x1e0] sm:$0xff]
        %v257 = vld [vmem:[%s151 + $0x1e8] sm:$0xff]
        %v258 = vld [vmem:[%s151 + $0x1f0] sm:$0xff]
        %v259 = vld [vmem:[%s151 + $0x1f8] sm:$0xff]
        %v260 = vld [vmem:[%s151 + $0x200] sm:$0xff]
        %v261 = vld [vmem:[%s151 + $0x208] sm:$0xff]
        %v262 = vld [vmem:[%s151 + $0x210] sm:$0xff]
        %v263 = vld [vmem:[%s151 + $0x218] sm:$0xff]
        %v264 = vld [vmem:[%s151 + $0x220] sm:$0xff]
        %v265 = vld [vmem:[%s151 + $0x228] sm:$0xff]
        %v266 = vld [vmem:[%s151 + $0x230] sm:$0xff]
        %v267 = vld [vmem:[%s151 + $0x238] sm:$0xff]
        %v268 = vld [vmem:[%s151 + $0x240] sm:$0xff]
        %v269 = vld [vmem:[%s151 + $0x248] sm:$0xff]
        %v270 = vld [vmem:[%s151 + $0x250] sm:$0xff]
        %v271 = vld [vmem:[%s151 + $0x258] sm:$0xff]
        %v272 = vld [vmem:[%s151 + $0x260] sm:$0xff]
        %v273 = vld [vmem:[%s151 + $0x268] sm:$0xff]
        %v274 = vld [vmem:[%s151 + $0x270] sm:$0xff]
        %v275 = vld [vmem:[%s151 + $0x278] sm:$0xff]
        %v276 = vld [vmem:[%s151 + $0x280] sm:$0xff]
        %v277 = vld [vmem:[%s151 + $0x288] sm:$0xff]
        %v278 = vld [vmem:[%s151 + $0x290] sm:$0xff]
        %v279 = vld [vmem:[%s151 + $0x298] sm:$0xff]
        %v280 = vld [vmem:[%s151 + $0x2a0] sm:$0xff]
        %v281 = vld [vmem:[%s151 + $0x2a8] sm:$0xff]
        %v282 = vld [vmem:[%s151 + $0x2b0] sm:$0xff]
        %v283 = vld [vmem:[%s151 + $0x2b8] sm:$0xff]
        %v284 = vld [vmem:[%s151 + $0x2c0] sm:$0xff]
        %v285 = vld [vmem:[%s151 + $0x2c8] sm:$0xff]
        %v286 = vld [vmem:[%s151 + $0x2d0] sm:$0xff]
        %v287 = vld [vmem:[%s151 + $0x2d8] sm:$0xff]
        %v288 = vld [vmem:[%s151 + $0x2e0] sm:$0xff]
        %v289 = vld [vmem:[%s151 + $0x2e8] sm:$0xff]
        %v290 = vld [vmem:[%s151 + $0x2f0] sm:$0xff]
        %v291 = vld [vmem:[%s151 + $0x2f8] sm:$0xff]
        %v292 = vld [vmem:[%s151 + $0x300] sm:$0xff]
        %v293 = vld [vmem:[%s151 + $0x308] sm:$0xff]
        %v294 = vld [vmem:[%s151 + $0x310] sm:$0xff]
        %v295 = vld [vmem:[%s151 + $0x318] sm:$0xff]
        %v296 = vld [vmem:[%s151 + $0x320] sm:$0xff]
        %v297 = vld [vmem:[%s151 + $0x328] sm:$0xff]
        %v298 = vld [vmem:[%s151 + $0x330] sm:$0xff]
        %v299 = vld [vmem:[%s151 + $0x338] sm:$0xff]
        %v300 = vld [vmem:[%s151 + $0x340] sm:$0xff]
        %v301 = vld [vmem:[%s151 + $0x348] sm:$0xff]
        %v302 = vld [vmem:[%s151 + $0x350] sm:$0xff]
        %v303 = vld [vmem:[%s151 + $0x358] sm:$0xff]
        %v304 = vld [vmem:[%s151 + $0x360] sm:$0xff]
        %v305 = vld [vmem:[%s151 + $0x368] sm:$0xff]
        %v306 = vld [vmem:[%s151 + $0x370] sm:$0xff]
        %v307 = vld [vmem:[%s151 + $0x378] sm:$0xff]
        %v308 = vld [vmem:[%s151 + $0x380] sm:$0xff]
        %v309 = vld [vmem:[%s151 + $0x388] sm:$0xff]
        %v310 = vld [vmem:[%s151 + $0x390] sm:$0xff]
        %v311 = vld [vmem:[%s151 + $0x398] sm:$0xff]
        %v312 = vld [vmem:[%s151 + $0x3a0] sm:$0xff]
        %v313 = vld [vmem:[%s151 + $0x3a8] sm:$0xff]
        %v314 = vld [vmem:[%s151 + $0x3b0] sm:$0xff]
        %v315 = vld [vmem:[%s151 + $0x3b8] sm:$0xff]
        %v316 = vld [vmem:[%s151 + $0x3c0] sm:$0xff]
        %v317 = vld [vmem:[%s151 + $0x3c8] sm:$0xff]
        %v318 = vld [vmem:[%s151 + $0x3d0] sm:$0xff]
        %v319 = vld [vmem:[%s151 + $0x3d8] sm:$0xff]
        %v320 = vld [vmem:[%s151 + $0x3e0] sm:$0xff]
        %v321 = vld [vmem:[%s151 + $0x3e8] sm:$0xff]
        %v322 = vld [vmem:[%s151 + $0x3f0] sm:$0xff]
        %v323 = vld [vmem:[%s151 + $0x3f8] sm:$0xff]
        %v324 = vld [vmem:[%s151 + $0x400] sm:$0xff]
        %v325 = vld [vmem:[%s151 + $0x408] sm:$0xff]
        %v326 = vld [vmem:[%s151 + $0x410] sm:$0xff]
        %v327 = vld [vmem:[%s151 + $0x418] sm:$0xff]
        %v328 = vld [vmem:[%s151 + $0x420] sm:$0xff]
        %v329 = vld [vmem:[%s151 + $0x428] sm:$0xff]
        %v330 = vld [vmem:[%s151 + $0x430] sm:$0xff]
        %v331 = vld [vmem:[%s151 + $0x438] sm:$0xff]
        %v332 = vld [vmem:[%s151 + $0x440] sm:$0xff]
        %v333 = vld [vmem:[%s151 + $0x448] sm:$0xff]
        %v334 = vld [vmem:[%s151 + $0x450] sm:$0xff]
        %v335 = vld [vmem:[%s151 + $0x458] sm:$0xff]
        %v336 = vld [vmem:[%s151 + $0x460] sm:$0xff]
        %v337 = vld [vmem:[%s151 + $0x468] sm:$0xff]
        %v338 = vld [vmem:[%s151 + $0x470] sm:$0xff]
        %v339 = vld [vmem:[%s151 + $0x478] sm:$0xff]
        %v340 = vmax.f32 %v196, %v197
        %v341 = vmax.f32 %v340, %v198
        %342 = vmax.xlane.f32.xlu0 %v341
        %v343 = vpop.xlane.xlu0 %342
        %v344 = vmax.f32 %v199, %v200
        %v345 = vmax.f32 %v344, %v201
        %346 = vmax.xlane.f32.xlu0 %v345
        %v347 = vpop.xlane.xlu0 %346
        %v348 = vmax.f32 %v202, %v203
        %v349 = vmax.f32 %v348, %v204
        %350 = vmax.xlane.f32.xlu0 %v349
        %v351 = vpop.xlane.xlu0 %350
        %v352 = vmax.f32 %v205, %v206
        %v353 = vmax.f32 %v352, %v207
        %354 = vmax.xlane.f32.xlu0 %v353
        %v355 = vpop.xlane.xlu0 %354
        %v356 = vmax.f32 %v208, %v209
        %v357 = vmax.f32 %v356, %v210
        %358 = vmax.xlane.f32.xlu0 %v357
        %v359 = vpop.xlane.xlu0 %358
        %v360 = vmax.f32 %v211, %v212
        %v361 = vmax.f32 %v360, %v213
        %362 = vmax.xlane.f32.xlu0 %v361
        %v363 = vpop.xlane.xlu0 %362
        %v364 = vmax.f32 %v214, %v215
        %v365 = vmax.f32 %v364, %v216
        %366 = vmax.xlane.f32.xlu0 %v365
        %v367 = vpop.xlane.xlu0 %366
        %v368 = vmax.f32 %v217, %v218
        %v369 = vmax.f32 %v368, %v219
        %370 = vmax.xlane.f32.xlu0 %v369
        %v371 = vpop.xlane.xlu0 %370
        %v372 = vmax.f32 %v220, %v221
        %v373 = vmax.f32 %v372, %v222
        %374 = vmax.xlane.f32.xlu0 %v373
        %v375 = vpop.xlane.xlu0 %374
        %v376 = vmax.f32 %v223, %v224
        %v377 = vmax.f32 %v376, %v225
        %378 = vmax.xlane.f32.xlu0 %v377
        %v379 = vpop.xlane.xlu0 %378
        %v380 = vmax.f32 %v226, %v227
        %v381 = vmax.f32 %v380, %v228
        %382 = vmax.xlane.f32.xlu0 %v381
        %v383 = vpop.xlane.xlu0 %382
        %v384 = vmax.f32 %v229, %v230
        %v385 = vmax.f32 %v384, %v231
        %386 = vmax.xlane.f32.xlu0 %v385
        %v387 = vpop.xlane.xlu0 %386
        %v388 = vmax.f32 %v232, %v233
        %v389 = vmax.f32 %v388, %v234
        %390 = vmax.xlane.f32.xlu0 %v389
        %v391 = vpop.xlane.xlu0 %390
        %v392 = vmax.f32 %v235, %v236
        %v393 = vmax.f32 %v392, %v237
        %394 = vmax.xlane.f32.xlu0 %v393
        %v395 = vpop.xlane.xlu0 %394
        %v396 = vmax.f32 %v238, %v239
        %v397 = vmax.f32 %v396, %v240
        %398 = vmax.xlane.f32.xlu0 %v397
        %v399 = vpop.xlane.xlu0 %398
        %v400 = vmax.f32 %v241, %v242
        %v401 = vmax.f32 %v400, %v243
        %402 = vmax.xlane.f32.xlu0 %v401
        %v403 = vpop.xlane.xlu0 %402
        %v404 = vmax.f32 %v244, %v245
        %v405 = vmax.f32 %v404, %v246
        %406 = vmax.xlane.f32.xlu0 %v405
        %v407 = vpop.xlane.xlu0 %406
        %v408 = vmax.f32 %v247, %v248
        %v409 = vmax.f32 %v408, %v249
        %410 = vmax.xlane.f32.xlu0 %v409
        %v411 = vpop.xlane.xlu0 %410
        %v412 = vmax.f32 %v250, %v251
        %v413 = vmax.f32 %v412, %v252
        %414 = vmax.xlane.f32.xlu0 %v413
        %v415 = vpop.xlane.xlu0 %414
        %v416 = vmax.f32 %v253, %v254
        %v417 = vmax.f32 %v416, %v255
        %418 = vmax.xlane.f32.xlu0 %v417
        %v419 = vpop.xlane.xlu0 %418
        %v420 = vmax.f32 %v256, %v257
        %v421 = vmax.f32 %v420, %v258
        %422 = vmax.xlane.f32.xlu0 %v421
        %v423 = vpop.xlane.xlu0 %422
        %v424 = vmax.f32 %v259, %v260
        %v425 = vmax.f32 %v424, %v261
        %426 = vmax.xlane.f32.xlu0 %v425
        %v427 = vpop.xlane.xlu0 %426
        %v428 = vmax.f32 %v262, %v263
        %v429 = vmax.f32 %v428, %v264
        %430 = vmax.xlane.f32.xlu0 %v429
        %v431 = vpop.xlane.xlu0 %430
        %v432 = vmax.f32 %v265, %v266
        %v433 = vmax.f32 %v432, %v267
        %434 = vmax.xlane.f32.xlu0 %v433
        %v435 = vpop.xlane.xlu0 %434
        %v436 = vmax.f32 %v268, %v269
        %v437 = vmax.f32 %v436, %v270
        %438 = vmax.xlane.f32.xlu0 %v437
        %v439 = vpop.xlane.xlu0 %438
        %v440 = vmax.f32 %v271, %v272
        %v441 = vmax.f32 %v440, %v273
        %442 = vmax.xlane.f32.xlu0 %v441
        %v443 = vpop.xlane.xlu0 %442
        %v444 = vmax.f32 %v274, %v275
        %v445 = vmax.f32 %v444, %v276
        %446 = vmax.xlane.f32.xlu0 %v445
        %v447 = vpop.xlane.xlu0 %446
        %v448 = vmax.f32 %v277, %v278
        %v449 = vmax.f32 %v448, %v279
        %450 = vmax.xlane.f32.xlu0 %v449
        %v451 = vpop.xlane.xlu0 %450
        %v452 = vmax.f32 %v280, %v281
        %v453 = vmax.f32 %v452, %v282
        %454 = vmax.xlane.f32.xlu0 %v453
        %v455 = vpop.xlane.xlu0 %454
        %v456 = vmax.f32 %v283, %v284
        %v457 = vmax.f32 %v456, %v285
        %458 = vmax.xlane.f32.xlu0 %v457
        %v459 = vpop.xlane.xlu0 %458
        %v460 = vmax.f32 %v286, %v287
        %v461 = vmax.f32 %v460, %v288
        %462 = vmax.xlane.f32.xlu0 %v461
        %v463 = vpop.xlane.xlu0 %462
        %v464 = vmax.f32 %v289, %v290
        %v465 = vmax.f32 %v464, %v291
        %466 = vmax.xlane.f32.xlu0 %v465
        %v467 = vpop.xlane.xlu0 %466
        %v468 = vmax.f32 %v292, %v293
        %v469 = vmax.f32 %v468, %v294
        %470 = vmax.xlane.f32.xlu0 %v469
        %v471 = vpop.xlane.xlu0 %470
        %v472 = vmax.f32 %v295, %v296
        %v473 = vmax.f32 %v472, %v297
        %474 = vmax.xlane.f32.xlu0 %v473
        %v475 = vpop.xlane.xlu0 %474
        %v476 = vmax.f32 %v298, %v299
        %v477 = vmax.f32 %v476, %v300
        %478 = vmax.xlane.f32.xlu0 %v477
        %v479 = vpop.xlane.xlu0 %478
        %v480 = vmax.f32 %v301, %v302
        %v481 = vmax.f32 %v480, %v303
        %482 = vmax.xlane.f32.xlu0 %v481
        %v483 = vpop.xlane.xlu0 %482
        %v484 = vmax.f32 %v304, %v305
        %v485 = vmax.f32 %v484, %v306
        %486 = vmax.xlane.f32.xlu0 %v485
        %v487 = vpop.xlane.xlu0 %486
        %v488 = vmax.f32 %v307, %v308
        %v489 = vmax.f32 %v488, %v309
        %490 = vmax.xlane.f32.xlu0 %v489
        %v491 = vpop.xlane.xlu0 %490
        %v492 = vmax.f32 %v310, %v311
        %v493 = vmax.f32 %v492, %v312
        %494 = vmax.xlane.f32.xlu0 %v493
        %v495 = vpop.xlane.xlu0 %494
        %v496 = vmax.f32 %v313, %v314
        %v497 = vmax.f32 %v496, %v315
        %498 = vmax.xlane.f32.xlu0 %v497
        %v499 = vpop.xlane.xlu0 %498
        %v500 = vmax.f32 %v316, %v317
        %v501 = vmax.f32 %v500, %v318
        %502 = vmax.xlane.f32.xlu0 %v501
        %v503 = vpop.xlane.xlu0 %502
        %v504 = vmax.f32 %v319, %v320
        %v505 = vmax.f32 %v504, %v321
        %506 = vmax.xlane.f32.xlu0 %v505
        %v507 = vpop.xlane.xlu0 %506
        %v508 = vmax.f32 %v322, %v323
        %v509 = vmax.f32 %v508, %v324
        %510 = vmax.xlane.f32.xlu0 %v509
        %v511 = vpop.xlane.xlu0 %510
        %v512 = vmax.f32 %v325, %v326
        %v513 = vmax.f32 %v512, %v327
        %514 = vmax.xlane.f32.xlu0 %v513
        %v515 = vpop.xlane.xlu0 %514
        %v516 = vmax.f32 %v328, %v329
        %v517 = vmax.f32 %v516, %v330
        %518 = vmax.xlane.f32.xlu0 %v517
        %v519 = vpop.xlane.xlu0 %518
        %v520 = vmax.f32 %v331, %v332
        %v521 = vmax.f32 %v520, %v333
        %522 = vmax.xlane.f32.xlu0 %v521
        %v523 = vpop.xlane.xlu0 %522
        %v524 = vmax.f32 %v334, %v335
        %v525 = vmax.f32 %v524, %v336
        %526 = vmax.xlane.f32.xlu0 %v525
        %v527 = vpop.xlane.xlu0 %526
        %v528 = vmax.f32 %v337, %v338
        %v529 = vmax.f32 %v528, %v339
        %530 = vmax.xlane.f32.xlu0 %v529
        %v531 = vpop.xlane.xlu0 %530
        %v532 = vsub.f32 %v196, %v343
        %v533 = vsub.f32 %v197, %v343
        %v534 = vsub.f32 %v198, %v343
        %v535 = vsub.f32 %v199, %v347
        %v536 = vsub.f32 %v200, %v347
        %v537 = vsub.f32 %v201, %v347
        %v538 = vsub.f32 %v202, %v351
        %v539 = vsub.f32 %v203, %v351
        %v540 = vsub.f32 %v204, %v351
        %v541 = vsub.f32 %v205, %v355
        %v542 = vsub.f32 %v206, %v355
        %v543 = vsub.f32 %v207, %v355
        %v544 = vsub.f32 %v208, %v359
        %v545 = vsub.f32 %v209, %v359
        %v546 = vsub.f32 %v210, %v359
        %v547 = vsub.f32 %v211, %v363
        %v548 = vsub.f32 %v212, %v363
        %v549 = vsub.f32 %v213, %v363
        %v550 = vsub.f32 %v214, %v367
        %v551 = vsub.f32 %v215, %v367
        %v552 = vsub.f32 %v216, %v367
        %v553 = vsub.f32 %v217, %v371
        %v554 = vsub.f32 %v218, %v371
        %v555 = vsub.f32 %v219, %v371
        %v556 = vsub.f32 %v220, %v375
        %v557 = vsub.f32 %v221, %v375
        %v558 = vsub.f32 %v222, %v375
        %v559 = vsub.f32 %v223, %v379
        %v560 = vsub.f32 %v224, %v379
        %v561 = vsub.f32 %v225, %v379
        %v562 = vsub.f32 %v226, %v383
        %v563 = vsub.f32 %v227, %v383
        %v564 = vsub.f32 %v228, %v383
        %v565 = vsub.f32 %v229, %v387
        %v566 = vsub.f32 %v230, %v387
        %v567 = vsub.f32 %v231, %v387
        %v568 = vsub.f32 %v232, %v391
        %v569 = vsub.f32 %v233, %v391
        %v570 = vsub.f32 %v234, %v391
        %v571 = vsub.f32 %v235, %v395
        %v572 = vsub.f32 %v236, %v395
        %v573 = vsub.f32 %v237, %v395
        %v574 = vsub.f32 %v238, %v399
        %v575 = vsub.f32 %v239, %v399
        %v576 = vsub.f32 %v240, %v399
        %v577 = vsub.f32 %v241, %v403
        %v578 = vsub.f32 %v242, %v403
        %v579 = vsub.f32 %v243, %v403
        %v580 = vsub.f32 %v244, %v407
        %v581 = vsub.f32 %v245, %v407
        %v582 = vsub.f32 %v246, %v407
        %v583 = vsub.f32 %v247, %v411
        %v584 = vsub.f32 %v248, %v411
        %v585 = vsub.f32 %v249, %v411
        %v586 = vsub.f32 %v250, %v415
        %v587 = vsub.f32 %v251, %v415
        %v588 = vsub.f32 %v252, %v415
        %v589 = vsub.f32 %v253, %v419
        %v590 = vsub.f32 %v254, %v419
        %v591 = vsub.f32 %v255, %v419
        %v592 = vsub.f32 %v256, %v423
        %v593 = vsub.f32 %v257, %v423
        %v594 = vsub.f32 %v258, %v423
        %v595 = vsub.f32 %v259, %v427
        %v596 = vsub.f32 %v260, %v427
        %v597 = vsub.f32 %v261, %v427
        %v598 = vsub.f32 %v262, %v431
        %v599 = vsub.f32 %v263, %v431
        %v600 = vsub.f32 %v264, %v431
        %v601 = vsub.f32 %v265, %v435
        %v602 = vsub.f32 %v266, %v435
        %v603 = vsub.f32 %v267, %v435
        %v604 = vsub.f32 %v268, %v439
        %v605 = vsub.f32 %v269, %v439
        %v606 = vsub.f32 %v270, %v439
        %v607 = vsub.f32 %v271, %v443
        %v608 = vsub.f32 %v272, %v443
        %v609 = vsub.f32 %v273, %v443
        %v610 = vsub.f32 %v274, %v447
        %v611 = vsub.f32 %v275, %v447
        %v612 = vsub.f32 %v276, %v447
        %v613 = vsub.f32 %v277, %v451
        %v614 = vsub.f32 %v278, %v451
        %v615 = vsub.f32 %v279, %v451
        %v616 = vsub.f32 %v280, %v455
        %v617 = vsub.f32 %v281, %v455
        %v618 = vsub.f32 %v282, %v455
        %v619 = vsub.f32 %v283, %v459
        %v620 = vsub.f32 %v284, %v459
        %v621 = vsub.f32 %v285, %v459
        %v622 = vsub.f32 %v286, %v463
        %v623 = vsub.f32 %v287, %v463
        %v624 = vsub.f32 %v288, %v463
        %v625 = vsub.f32 %v289, %v467
        %v626 = vsub.f32 %v290, %v467
        %v627 = vsub.f32 %v291, %v467
        %v628 = vsub.f32 %v292, %v471
        %v629 = vsub.f32 %v293, %v471
        %v630 = vsub.f32 %v294, %v471
        %v631 = vsub.f32 %v295, %v475
        %v632 = vsub.f32 %v296, %v475
        %v633 = vsub.f32 %v297, %v475
        %v634 = vsub.f32 %v298, %v479
        %v635 = vsub.f32 %v299, %v479
        %v636 = vsub.f32 %v300, %v479
        %v637 = vsub.f32 %v301, %v483
        %v638 = vsub.f32 %v302, %v483
        %v639 = vsub.f32 %v303, %v483
        %v640 = vsub.f32 %v304, %v487
        %v641 = vsub.f32 %v305, %v487
        %v642 = vsub.f32 %v306, %v487
        %v643 = vsub.f32 %v307, %v491
        %v644 = vsub.f32 %v308, %v491
        %v645 = vsub.f32 %v309, %v491
        %v646 = vsub.f32 %v310, %v495
        %v647 = vsub.f32 %v311, %v495
        %v648 = vsub.f32 %v312, %v495
        %v649 = vsub.f32 %v313, %v499
        %v650 = vsub.f32 %v314, %v499
        %v651 = vsub.f32 %v315, %v499
        %v652 = vsub.f32 %v316, %v503
        %v653 = vsub.f32 %v317, %v503
        %v654 = vsub.f32 %v318, %v503
        %v655 = vsub.f32 %v319, %v507
        %v656 = vsub.f32 %v320, %v507
        %v657 = vsub.f32 %v321, %v507
        %v658 = vsub.f32 %v322, %v511
        %v659 = vsub.f32 %v323, %v511
        %v660 = vsub.f32 %v324, %v511
        %v661 = vsub.f32 %v325, %v515
        %v662 = vsub.f32 %v326, %v515
        %v663 = vsub.f32 %v327, %v515
        %v664 = vsub.f32 %v328, %v519
        %v665 = vsub.f32 %v329, %v519
        %v666 = vsub.f32 %v330, %v519
        %v667 = vsub.f32 %v331, %v523
        %v668 = vsub.f32 %v332, %v523
        %v669 = vsub.f32 %v333, %v523
        %v670 = vsub.f32 %v334, %v527
        %v671 = vsub.f32 %v335, %v527
        %v672 = vsub.f32 %v336, %v527
        %v673 = vsub.f32 %v337, %v531
        %v674 = vsub.f32 %v338, %v531
        %v675 = vsub.f32 %v339, %v531
        %v676 = vmul.f32 %v532, 1.442695
        %v677 = vpow.pop %v676
        %v678 = vmul.f32 %v533, 1.442695
        %v679 = vpow.pop %v678
        %v680 = vmul.f32 %v534, 1.442695
        %v681 = vpow.pop %v680
        %v682 = vmul.f32 %v535, 1.442695
        %v683 = vpow.pop %v682
        %v684 = vmul.f32 %v536, 1.442695
        %v685 = vpow.pop %v684
        %v686 = vmul.f32 %v537, 1.442695
        %v687 = vpow.pop %v686
        %v688 = vmul.f32 %v538, 1.442695
        %v689 = vpow.pop %v688
        %v690 = vmul.f32 %v539, 1.442695
        %v691 = vpow.pop %v690
        %v692 = vmul.f32 %v540, 1.442695
        %v693 = vpow.pop %v692
        %v694 = vmul.f32 %v541, 1.442695
        %v695 = vpow.pop %v694
        %v696 = vmul.f32 %v542, 1.442695
        %v697 = vpow.pop %v696
        %v698 = vmul.f32 %v543, 1.442695
        %v699 = vpow.pop %v698
        %v700 = vmul.f32 %v544, 1.442695
        %v701 = vpow.pop %v700
        %v702 = vmul.f32 %v545, 1.442695
        %v703 = vpow.pop %v702
        %v704 = vmul.f32 %v546, 1.442695
        %v705 = vpow.pop %v704
        %v706 = vmul.f32 %v547, 1.442695
        %v707 = vpow.pop %v706
        %v708 = vmul.f32 %v548, 1.442695
        %v709 = vpow.pop %v708
        %v710 = vmul.f32 %v549, 1.442695
        %v711 = vpow.pop %v710
        %v712 = vmul.f32 %v550, 1.442695
        %v713 = vpow.pop %v712
        %v714 = vmul.f32 %v551, 1.442695
        %v715 = vpow.pop %v714
        %v716 = vmul.f32 %v552, 1.442695
        %v717 = vpow.pop %v716
        %v718 = vmul.f32 %v553, 1.442695
        %v719 = vpow.pop %v718
        %v720 = vmul.f32 %v554, 1.442695
        %v721 = vpow.pop %v720
        %v722 = vmul.f32 %v555, 1.442695
        %v723 = vpow.pop %v722
        %v724 = vmul.f32 %v556, 1.442695
        %v725 = vpow.pop %v724
        %v726 = vmul.f32 %v557, 1.442695
        %v727 = vpow.pop %v726
        %v728 = vmul.f32 %v558, 1.442695
        %v729 = vpow.pop %v728
        %v730 = vmul.f32 %v559, 1.442695
        %v731 = vpow.pop %v730
        %v732 = vmul.f32 %v560, 1.442695
        %v733 = vpow.pop %v732
        %v734 = vmul.f32 %v561, 1.442695
        %v735 = vpow.pop %v734
        %v736 = vmul.f32 %v562, 1.442695
        %v737 = vpow.pop %v736
        %v738 = vmul.f32 %v563, 1.442695
        %v739 = vpow.pop %v738
        %v740 = vmul.f32 %v564, 1.442695
        %v741 = vpow.pop %v740
        %v742 = vmul.f32 %v565, 1.442695
        %v743 = vpow.pop %v742
        %v744 = vmul.f32 %v566, 1.442695
        %v745 = vpow.pop %v744
        %v746 = vmul.f32 %v567, 1.442695
        %v747 = vpow.pop %v746
        %v748 = vmul.f32 %v568, 1.442695
        %v749 = vpow.pop %v748
        %v750 = vmul.f32 %v569, 1.442695
        %v751 = vpow.pop %v750
        %v752 = vmul.f32 %v570, 1.442695
        %v753 = vpow.pop %v752
        %v754 = vmul.f32 %v571, 1.442695
        %v755 = vpow.pop %v754
        %v756 = vmul.f32 %v572, 1.442695
        %v757 = vpow.pop %v756
        %v758 = vmul.f32 %v573, 1.442695
        %v759 = vpow.pop %v758
        %v760 = vmul.f32 %v574, 1.442695
        %v761 = vpow.pop %v760
        %v762 = vmul.f32 %v575, 1.442695
        %v763 = vpow.pop %v762
        %v764 = vmul.f32 %v576, 1.442695
        %v765 = vpow.pop %v764
        %v766 = vmul.f32 %v577, 1.442695
        %v767 = vpow.pop %v766
        %v768 = vmul.f32 %v578, 1.442695
        %v769 = vpow.pop %v768
        %v770 = vmul.f32 %v579, 1.442695
        %v771 = vpow.pop %v770
        %v772 = vmul.f32 %v580, 1.442695
        %v773 = vpow.pop %v772
        %v774 = vmul.f32 %v581, 1.442695
        %v775 = vpow.pop %v774
        %v776 = vmul.f32 %v582, 1.442695
        %v777 = vpow.pop %v776
        %v778 = vmul.f32 %v583, 1.442695
        %v779 = vpow.pop %v778
        %v780 = vmul.f32 %v584, 1.442695
        %v781 = vpow.pop %v780
        %v782 = vmul.f32 %v585, 1.442695
        %v783 = vpow.pop %v782
        %v784 = vmul.f32 %v586, 1.442695
        %v785 = vpow.pop %v784
        %v786 = vmul.f32 %v587, 1.442695
        %v787 = vpow.pop %v786
        %v788 = vmul.f32 %v588, 1.442695
        %v789 = vpow.pop %v788
        %v790 = vmul.f32 %v589, 1.442695
        %v791 = vpow.pop %v790
        %v792 = vmul.f32 %v590, 1.442695
        %v793 = vpow.pop %v792
        %v794 = vmul.f32 %v591, 1.442695
        %v795 = vpow.pop %v794
        %v796 = vmul.f32 %v592, 1.442695
        %v797 = vpow.pop %v796
        %v798 = vmul.f32 %v593, 1.442695
        %v799 = vpow.pop %v798
        %v800 = vmul.f32 %v594, 1.442695
        %v801 = vpow.pop %v800
        %v802 = vmul.f32 %v595, 1.442695
        %v803 = vpow.pop %v802
        %v804 = vmul.f32 %v596, 1.442695
        %v805 = vpow.pop %v804
        %v806 = vmul.f32 %v597, 1.442695
        %v807 = vpow.pop %v806
        %v808 = vmul.f32 %v598, 1.442695
        %v809 = vpow.pop %v808
        %v810 = vmul.f32 %v599, 1.442695
        %v811 = vpow.pop %v810
        %v812 = vmul.f32 %v600, 1.442695
        %v813 = vpow.pop %v812
        %v814 = vmul.f32 %v601, 1.442695
        %v815 = vpow.pop %v814
        %v816 = vmul.f32 %v602, 1.442695
        %v817 = vpow.pop %v816
        %v818 = vmul.f32 %v603, 1.442695
        %v819 = vpow.pop %v818
        %v820 = vmul.f32 %v604, 1.442695
        %v821 = vpow.pop %v820
        %v822 = vmul.f32 %v605, 1.442695
        %v823 = vpow.pop %v822
        %v824 = vmul.f32 %v606, 1.442695
        %v825 = vpow.pop %v824
        %v826 = vmul.f32 %v607, 1.442695
        %v827 = vpow.pop %v826
        %v828 = vmul.f32 %v608, 1.442695
        %v829 = vpow.pop %v828
        %v830 = vmul.f32 %v609, 1.442695
        %v831 = vpow.pop %v830
        %v832 = vmul.f32 %v610, 1.442695
        %v833 = vpow.pop %v832
        %v834 = vmul.f32 %v611, 1.442695
        %v835 = vpow.pop %v834
        %v836 = vmul.f32 %v612, 1.442695
        %v837 = vpow.pop %v836
        %v838 = vmul.f32 %v613, 1.442695
        %v839 = vpow.pop %v838
        %v840 = vmul.f32 %v614, 1.442695
        %v841 = vpow.pop %v840
        %v842 = vmul.f32 %v615, 1.442695
        %v843 = vpow.pop %v842
        %v844 = vmul.f32 %v616, 1.442695
        %v845 = vpow.pop %v844
        %v846 = vmul.f32 %v617, 1.442695
        %v847 = vpow.pop %v846
        %v848 = vmul.f32 %v618, 1.442695
        %v849 = vpow.pop %v848
        %v850 = vmul.f32 %v619, 1.442695
        %v851 = vpow.pop %v850
        %v852 = vmul.f32 %v620, 1.442695
        %v853 = vpow.pop %v852
        %v854 = vmul.f32 %v621, 1.442695
        %v855 = vpow.pop %v854
        %v856 = vmul.f32 %v622, 1.442695
        %v857 = vpow.pop %v856
        %v858 = vmul.f32 %v623, 1.442695
        %v859 = vpow.pop %v858
        %v860 = vmul.f32 %v624, 1.442695
        %v861 = vpow.pop %v860
        %v862 = vmul.f32 %v625, 1.442695
        %v863 = vpow.pop %v862
        %v864 = vmul.f32 %v626, 1.442695
        %v865 = vpow.pop %v864
        %v866 = vmul.f32 %v627, 1.442695
        %v867 = vpow.pop %v866
        %v868 = vmul.f32 %v628, 1.442695
        %v869 = vpow.pop %v868
        %v870 = vmul.f32 %v629, 1.442695
        %v871 = vpow.pop %v870
        %v872 = vmul.f32 %v630, 1.442695
        %v873 = vpow.pop %v872
        %v874 = vmul.f32 %v631, 1.442695
        %v875 = vpow.pop %v874
        %v876 = vmul.f32 %v632, 1.442695
        %v877 = vpow.pop %v876
        %v878 = vmul.f32 %v633, 1.442695
        %v879 = vpow.pop %v878
        %v880 = vmul.f32 %v634, 1.442695
        %v881 = vpow.pop %v880
        %v882 = vmul.f32 %v635, 1.442695
        %v883 = vpow.pop %v882
        %v884 = vmul.f32 %v636, 1.442695
        %v885 = vpow.pop %v884
        %v886 = vmul.f32 %v637, 1.442695
        %v887 = vpow.pop %v886
        %v888 = vmul.f32 %v638, 1.442695
        %v889 = vpow.pop %v888
        %v890 = vmul.f32 %v639, 1.442695
        %v891 = vpow.pop %v890
        %v892 = vmul.f32 %v640, 1.442695
        %v893 = vpow.pop %v892
        %v894 = vmul.f32 %v641, 1.442695
        %v895 = vpow.pop %v894
        %v896 = vmul.f32 %v642, 1.442695
        %v897 = vpow.pop %v896
        %v898 = vmul.f32 %v643, 1.442695
        %v899 = vpow.pop %v898
        %v900 = vmul.f32 %v644, 1.442695
        %v901 = vpow.pop %v900
        %v902 = vmul.f32 %v645, 1.442695
        %v903 = vpow.pop %v902
        %v904 = vmul.f32 %v646, 1.442695
        %v905 = vpow.pop %v904
        %v906 = vmul.f32 %v647, 1.442695
        %v907 = vpow.pop %v906
        %v908 = vmul.f32 %v648, 1.442695
        %v909 = vpow.pop %v908
        %v910 = vmul.f32 %v649, 1.442695
        %v911 = vpow.pop %v910
        %v912 = vmul.f32 %v650, 1.442695
        %v913 = vpow.pop %v912
        %v914 = vmul.f32 %v651, 1.442695
        %v915 = vpow.pop %v914
        %v916 = vmul.f32 %v652, 1.442695
        %v917 = vpow.pop %v916
        %v918 = vmul.f32 %v653, 1.442695
        %v919 = vpow.pop %v918
        %v920 = vmul.f32 %v654, 1.442695
        %v921 = vpow.pop %v920
        %v922 = vmul.f32 %v655, 1.442695
        %v923 = vpow.pop %v922
        %v924 = vmul.f32 %v656, 1.442695
        %v925 = vpow.pop %v924
        %v926 = vmul.f32 %v657, 1.442695
        %v927 = vpow.pop %v926
        %v928 = vmul.f32 %v658, 1.442695
        %v929 = vpow.pop %v928
        %v930 = vmul.f32 %v659, 1.442695
        %v931 = vpow.pop %v930
        %v932 = vmul.f32 %v660, 1.442695
        %v933 = vpow.pop %v932
        %v934 = vmul.f32 %v661, 1.442695
        %v935 = vpow.pop %v934
        %v936 = vmul.f32 %v662, 1.442695
        %v937 = vpow.pop %v936
        %v938 = vmul.f32 %v663, 1.442695
        %v939 = vpow.pop %v938
        %v940 = vmul.f32 %v664, 1.442695
        %v941 = vpow.pop %v940
        %v942 = vmul.f32 %v665, 1.442695
        %v943 = vpow.pop %v942
        %v944 = vmul.f32 %v666, 1.442695
        %v945 = vpow.pop %v944
        %v946 = vmul.f32 %v667, 1.442695
        %v947 = vpow.pop %v946
        %v948 = vmul.f32 %v668, 1.442695
        %v949 = vpow.pop %v948
        %v950 = vmul.f32 %v669, 1.442695
        %v951 = vpow.pop %v950
        %v952 = vmul.f32 %v670, 1.442695
        %v953 = vpow.pop %v952
        %v954 = vmul.f32 %v671, 1.442695
        %v955 = vpow.pop %v954
        %v956 = vmul.f32 %v672, 1.442695
        %v957 = vpow.pop %v956
        %v958 = vmul.f32 %v673, 1.442695
        %v959 = vpow.pop %v958
        %v960 = vmul.f32 %v674, 1.442695
        %v961 = vpow.pop %v960
        %v962 = vmul.f32 %v675, 1.442695
        %v963 = vpow.pop %v962
        %v964 = vadd.f32 %v677, %v679
        %v965 = vadd.f32 %v964, %v681
        %966 = vadd.xlane.f32.xlu0 %v965
        %v967 = vpop.xlane.xlu0 %966
        %v968 = vadd.f32 %v683, %v685
        %v969 = vadd.f32 %v968, %v687
        %970 = vadd.xlane.f32.xlu0 %v969
        %v971 = vpop.xlane.xlu0 %970
        %v972 = vadd.f32 %v689, %v691
        %v973 = vadd.f32 %v972, %v693
        %974 = vadd.xlane.f32.xlu0 %v973
        %v975 = vpop.xlane.xlu0 %974
        %v976 = vadd.f32 %v695, %v697
        %v977 = vadd.f32 %v976, %v699
        %978 = vadd.xlane.f32.xlu0 %v977
        %v979 = vpop.xlane.xlu0 %978
        %v980 = vadd.f32 %v701, %v703
        %v981 = vadd.f32 %v980, %v705
        %982 = vadd.xlane.f32.xlu0 %v981
        %v983 = vpop.xlane.xlu0 %982
        %v984 = vadd.f32 %v707, %v709
        %v985 = vadd.f32 %v984, %v711
        %986 = vadd.xlane.f32.xlu0 %v985
        %v987 = vpop.xlane.xlu0 %986
        %v988 = vadd.f32 %v713, %v715
        %v989 = vadd.f32 %v988, %v717
        %990 = vadd.xlane.f32.xlu0 %v989
        %v991 = vpop.xlane.xlu0 %990
        %v992 = vadd.f32 %v719, %v721
        %v993 = vadd.f32 %v992, %v723
        %994 = vadd.xlane.f32.xlu0 %v993
        %v995 = vpop.xlane.xlu0 %994
        %v996 = vadd.f32 %v725, %v727
        %v997 = vadd.f32 %v996, %v729
        %998 = vadd.xlane.f32.xlu0 %v997
        %v999 = vpop.xlane.xlu0 %998
        %v1000 = vadd.f32 %v731, %v733
        %v1001 = vadd.f32 %v1000, %v735
        %1002 = vadd.xlane.f32.xlu0 %v1001
        %v1003 = vpop.xlane.xlu0 %1002
        %v1004 = vadd.f32 %v737, %v739
        %v1005 = vadd.f32 %v1004, %v741
        %1006 = vadd.xlane.f32.xlu0 %v1005
        %v1007 = vpop.xlane.xlu0 %1006
        %v1008 = vadd.f32 %v743, %v745
        %v1009 = vadd.f32 %v1008, %v747
        %1010 = vadd.xlane.f32.xlu0 %v1009
        %v1011 = vpop.xlane.xlu0 %1010
        %v1012 = vadd.f32 %v749, %v751
        %v1013 = vadd.f32 %v1012, %v753
        %1014 = vadd.xlane.f32.xlu0 %v1013
        %v1015 = vpop.xlane.xlu0 %1014
        %v1016 = vadd.f32 %v755, %v757
        %v1017 = vadd.f32 %v1016, %v759
        %1018 = vadd.xlane.f32.xlu0 %v1017
        %v1019 = vpop.xlane.xlu0 %1018
        %v1020 = vadd.f32 %v761, %v763
        %v1021 = vadd.f32 %v1020, %v765
        %1022 = vadd.xlane.f32.xlu0 %v1021
        %v1023 = vpop.xlane.xlu0 %1022
        %v1024 = vadd.f32 %v767, %v769
        %v1025 = vadd.f32 %v1024, %v771
        %1026 = vadd.xlane.f32.xlu0 %v1025
        %v1027 = vpop.xlane.xlu0 %1026
        %v1028 = vadd.f32 %v773, %v775
        %v1029 = vadd.f32 %v1028, %v777
        %1030 = vadd.xlane.f32.xlu0 %v1029
        %v1031 = vpop.xlane.xlu0 %1030
        %v1032 = vadd.f32 %v779, %v781
        %v1033 = vadd.f32 %v1032, %v783
        %1034 = vadd.xlane.f32.xlu0 %v1033
        %v1035 = vpop.xlane.xlu0 %1034
        %v1036 = vadd.f32 %v785, %v787
        %v1037 = vadd.f32 %v1036, %v789
        %1038 = vadd.xlane.f32.xlu0 %v1037
        %v1039 = vpop.xlane.xlu0 %1038
        %v1040 = vadd.f32 %v791, %v793
        %v1041 = vadd.f32 %v1040, %v795
        %1042 = vadd.xlane.f32.xlu0 %v1041
        %v1043 = vpop.xlane.xlu0 %1042
        %v1044 = vadd.f32 %v797, %v799
        %v1045 = vadd.f32 %v1044, %v801
        %1046 = vadd.xlane.f32.xlu0 %v1045
        %v1047 = vpop.xlane.xlu0 %1046
        %v1048 = vadd.f32 %v803, %v805
        %v1049 = vadd.f32 %v1048, %v807
        %1050 = vadd.xlane.f32.xlu0 %v1049
        %v1051 = vpop.xlane.xlu0 %1050
        %v1052 = vadd.f32 %v809, %v811
        %v1053 = vadd.f32 %v1052, %v813
        %1054 = vadd.xlane.f32.xlu0 %v1053
        %v1055 = vpop.xlane.xlu0 %1054
        %v1056 = vadd.f32 %v815, %v817
        %v1057 = vadd.f32 %v1056, %v819
        %1058 = vadd.xlane.f32.xlu0 %v1057
        %v1059 = vpop.xlane.xlu0 %1058
        %v1060 = vadd.f32 %v821, %v823
        %v1061 = vadd.f32 %v1060, %v825
        %1062 = vadd.xlane.f32.xlu0 %v1061
        %v1063 = vpop.xlane.xlu0 %1062
        %v1064 = vadd.f32 %v827, %v829
        %v1065 = vadd.f32 %v1064, %v831
        %1066 = vadd.xlane.f32.xlu0 %v1065
        %v1067 = vpop.xlane.xlu0 %1066
        %v1068 = vadd.f32 %v833, %v835
        %v1069 = vadd.f32 %v1068, %v837
        %1070 = vadd.xlane.f32.xlu0 %v1069
        %v1071 = vpop.xlane.xlu0 %1070
        %v1072 = vadd.f32 %v839, %v841
        %v1073 = vadd.f32 %v1072, %v843
        %1074 = vadd.xlane.f32.xlu0 %v1073
        %v1075 = vpop.xlane.xlu0 %1074
        %v1076 = vadd.f32 %v845, %v847
        %v1077 = vadd.f32 %v1076, %v849
        %1078 = vadd.xlane.f32.xlu0 %v1077
        %v1079 = vpop.xlane.xlu0 %1078
        %v1080 = vadd.f32 %v851, %v853
        %v1081 = vadd.f32 %v1080, %v855
        %1082 = vadd.xlane.f32.xlu0 %v1081
        %v1083 = vpop.xlane.xlu0 %1082
        %v1084 = vadd.f32 %v857, %v859
        %v1085 = vadd.f32 %v1084, %v861
        %1086 = vadd.xlane.f32.xlu0 %v1085
        %v1087 = vpop.xlane.xlu0 %1086
        %v1088 = vadd.f32 %v863, %v865
        %v1089 = vadd.f32 %v1088, %v867
        %1090 = vadd.xlane.f32.xlu0 %v1089
        %v1091 = vpop.xlane.xlu0 %1090
        %v1092 = vadd.f32 %v869, %v871
        %v1093 = vadd.f32 %v1092, %v873
        %1094 = vadd.xlane.f32.xlu0 %v1093
        %v1095 = vpop.xlane.xlu0 %1094
        %v1096 = vadd.f32 %v875, %v877
        %v1097 = vadd.f32 %v1096, %v879
        %1098 = vadd.xlane.f32.xlu0 %v1097
        %v1099 = vpop.xlane.xlu0 %1098
        %v1100 = vadd.f32 %v881, %v883
        %v1101 = vadd.f32 %v1100, %v885
        %1102 = vadd.xlane.f32.xlu0 %v1101
        %v1103 = vpop.xlane.xlu0 %1102
        %v1104 = vadd.f32 %v887, %v889
        %v1105 = vadd.f32 %v1104, %v891
        %1106 = vadd.xlane.f32.xlu0 %v1105
        %v1107 = vpop.xlane.xlu0 %1106
        %v1108 = vadd.f32 %v893, %v895
        %v1109 = vadd.f32 %v1108, %v897
        %1110 = vadd.xlane.f32.xlu0 %v1109
        %v1111 = vpop.xlane.xlu0 %1110
        %v1112 = vadd.f32 %v899, %v901
        %v1113 = vadd.f32 %v1112, %v903
        %1114 = vadd.xlane.f32.xlu0 %v1113
        %v1115 = vpop.xlane.xlu0 %1114
        %v1116 = vadd.f32 %v905, %v907
        %v1117 = vadd.f32 %v1116, %v909
        %1118 = vadd.xlane.f32.xlu0 %v1117
        %v1119 = vpop.xlane.xlu0 %1118
        %v1120 = vadd.f32 %v911, %v913
        %v1121 = vadd.f32 %v1120, %v915
        %1122 = vadd.xlane.f32.xlu0 %v1121
        %v1123 = vpop.xlane.xlu0 %1122
        %v1124 = vadd.f32 %v917, %v919
        %v1125 = vadd.f32 %v1124, %v921
        %1126 = vadd.xlane.f32.xlu0 %v1125
        %v1127 = vpop.xlane.xlu0 %1126
        %v1128 = vadd.f32 %v923, %v925
        %v1129 = vadd.f32 %v1128, %v927
        %1130 = vadd.xlane.f32.xlu0 %v1129
        %v1131 = vpop.xlane.xlu0 %1130
        %v1132 = vadd.f32 %v929, %v931
        %v1133 = vadd.f32 %v1132, %v933
        %1134 = vadd.xlane.f32.xlu0 %v1133
        %v1135 = vpop.xlane.xlu0 %1134
        %v1136 = vadd.f32 %v935, %v937
        %v1137 = vadd.f32 %v1136, %v939
        %1138 = vadd.xlane.f32.xlu0 %v1137
        %v1139 = vpop.xlane.xlu0 %1138
        %v1140 = vadd.f32 %v941, %v943
        %v1141 = vadd.f32 %v1140, %v945
        %1142 = vadd.xlane.f32.xlu0 %v1141
        %v1143 = vpop.xlane.xlu0 %1142
        %v1144 = vadd.f32 %v947, %v949
        %v1145 = vadd.f32 %v1144, %v951
        %1146 = vadd.xlane.f32.xlu0 %v1145
        %v1147 = vpop.xlane.xlu0 %1146
        %v1148 = vadd.f32 %v953, %v955
        %v1149 = vadd.f32 %v1148, %v957
        %1150 = vadd.xlane.f32.xlu0 %v1149
        %v1151 = vpop.xlane.xlu0 %1150
        %v1152 = vadd.f32 %v959, %v961
        %v1153 = vadd.f32 %v1152, %v963
        %1154 = vadd.xlane.f32.xlu0 %v1153
        %v1155 = vpop.xlane.xlu0 %1154
        %v1156 = vlaneseq
        %v1157 = vshrl.u32 %v1156, 7
        %v1158 = vadd.s32 %v1157, 8
        %v1159 = vadd.s32 %v1157, 16
        %v1160 = vadd.s32 %v1157, 24
        %v1161 = vadd.s32 %v1157, 32
        %v1162 = vadd.s32 %v1157, 40
        %v1163 = vadd.s32 %v1157, 48
        %v1164 = vadd.s32 %v1157, 56
        %v1165 = vadd.s32 %v1157, 64
        %v1166 = vadd.s32 %v1157, 72
        %v1167 = vadd.s32 %v1157, 80
        %v1168 = vadd.s32 %v1157, 88
        %v1169 = vadd.s32 %v1157, 96
        %v1170 = vadd.s32 %v1157, 104
        %v1171 = vadd.s32 %v1157, 112
        %v1172 = vadd.s32 %v1157, 120
        %v1173 = vadd.s32 %v1157, 128
        %v1174 = vadd.s32 %v1157, 136
        %v1175 = vadd.s32 %v1157, 144
        %v1176 = vadd.s32 %v1157, 152
        %v1177 = vadd.s32 %v1157, 160
        %v1178 = vadd.s32 %v1157, 168
        %v1179 = vadd.s32 %v1157, 176
        %v1180 = vadd.s32 %v1157, 184
        %v1181 = vadd.s32 %v1157, 192
        %v1182 = vadd.s32 %v1157, 200
        %v1183 = vadd.s32 %v1157, 208
        %v1184 = vadd.s32 %v1157, 216
        %v1185 = vadd.s32 %v1157, 224
        %v1186 = vadd.s32 %v1157, 232
        %v1187 = vadd.s32 %v1157, 240
        %v1188 = vadd.s32 %v1157, 248
        %v1189 = vadd.s32 %v1157, 256
        %v1190 = vadd.s32 %v1157, 264
        %v1191 = vadd.s32 %v1157, 272
        %v1192 = vadd.s32 %v1157, 280
        %v1193 = vadd.s32 %v1157, 288
        %v1194 = vadd.s32 %v1157, 296
        %v1195 = vadd.s32 %v1157, 304
        %v1196 = vadd.s32 %v1157, 312
        %v1197 = vadd.s32 %v1157, 320
        %v1198 = vadd.s32 %v1157, 328
        %v1199 = vadd.s32 %v1157, 336
        %v1200 = vadd.s32 %v1157, 344
        %v1201 = vadd.s32 %v1157, 352
        %v1202 = vadd.s32 %v1157, 360
        %v1203 = vadd.s32 %v1157, 368
        %v1204 = vadd.s32 %v1157, 376
        %v1205 = vlaneseq
        %v1206 = vand.u32 %v1205, 127
        %v1207 = vadd.s32 %v1206, 128
        %v1208 = vadd.s32 %v1206, 256
        %v1209 = vmul.u32 %v1157, 384
        %v1210 = vmul.u32 %v1158, 384
        %v1211 = vmul.u32 %v1159, 384
        %v1212 = vmul.u32 %v1160, 384
        %v1213 = vmul.u32 %v1161, 384
        %v1214 = vmul.u32 %v1162, 384
        %v1215 = vmul.u32 %v1163, 384
        %v1216 = vmul.u32 %v1164, 384
        %v1217 = vmul.u32 %v1165, 384
        %v1218 = vmul.u32 %v1166, 384
        %v1219 = vmul.u32 %v1167, 384
        %v1220 = vmul.u32 %v1168, 384
        %v1221 = vmul.u32 %v1169, 384
        %v1222 = vmul.u32 %v1170, 384
        %v1223 = vmul.u32 %v1171, 384
        %v1224 = vmul.u32 %v1172, 384
        %v1225 = vmul.u32 %v1173, 384
        %v1226 = vmul.u32 %v1174, 384
        %v1227 = vmul.u32 %v1175, 384
        %v1228 = vmul.u32 %v1176, 384
        %v1229 = vmul.u32 %v1177, 384
        %v1230 = vmul.u32 %v1178, 384
        %v1231 = vmul.u32 %v1179, 384
        %v1232 = vmul.u32 %v1180, 384
        %v1233 = vmul.u32 %v1181, 384
        %v1234 = vmul.u32 %v1182, 384
        %v1235 = vmul.u32 %v1183, 384
        %v1236 = vmul.u32 %v1184, 384
        %v1237 = vmul.u32 %v1185, 384
        %v1238 = vmul.u32 %v1186, 384
        %v1239 = vmul.u32 %v1187, 384
        %v1240 = vmul.u32 %v1188, 384
        %v1241 = vmul.u32 %v1189, 384
        %v1242 = vmul.u32 %v1190, 384
        %v1243 = vmul.u32 %v1191, 384
        %v1244 = vmul.u32 %v1192, 384
        %v1245 = vmul.u32 %v1193, 384
        %v1246 = vmul.u32 %v1194, 384
        %v1247 = vmul.u32 %v1195, 384
        %v1248 = vmul.u32 %v1196, 384
        %v1249 = vmul.u32 %v1197, 384
        %v1250 = vmul.u32 %v1198, 384
        %v1251 = vmul.u32 %v1199, 384
        %v1252 = vmul.u32 %v1200, 384
        %v1253 = vmul.u32 %v1201, 384
        %v1254 = vmul.u32 %v1202, 384
        %v1255 = vmul.u32 %v1203, 384
        %v1256 = vmul.u32 %v1204, 384
        %v1257 = vadd.s32 %v1209, %v1206
        %v1258 = vadd.s32 %v1209, %v1207
        %v1259 = vadd.s32 %v1209, %v1208
        %v1260 = vadd.s32 %v1210, %v1206
        %v1261 = vadd.s32 %v1210, %v1207
        %v1262 = vadd.s32 %v1210, %v1208
        %v1263 = vadd.s32 %v1211, %v1206
        %v1264 = vadd.s32 %v1211, %v1207
        %v1265 = vadd.s32 %v1211, %v1208
        %v1266 = vadd.s32 %v1212, %v1206
        %v1267 = vadd.s32 %v1212, %v1207
        %v1268 = vadd.s32 %v1212, %v1208
        %v1269 = vadd.s32 %v1213, %v1206
        %v1270 = vadd.s32 %v1213, %v1207
        %v1271 = vadd.s32 %v1213, %v1208
        %v1272 = vadd.s32 %v1214, %v1206
        %v1273 = vadd.s32 %v1214, %v1207
        %v1274 = vadd.s32 %v1214, %v1208
        %v1275 = vadd.s32 %v1215, %v1206
        %v1276 = vadd.s32 %v1215, %v1207
        %v1277 = vadd.s32 %v1215, %v1208
        %v1278 = vadd.s32 %v1216, %v1206
        %v1279 = vadd.s32 %v1216, %v1207
        %v1280 = vadd.s32 %v1216, %v1208
        %v1281 = vadd.s32 %v1217, %v1206
        %v1282 = vadd.s32 %v1217, %v1207
        %v1283 = vadd.s32 %v1217, %v1208
        %v1284 = vadd.s32 %v1218, %v1206
        %v1285 = vadd.s32 %v1218, %v1207
        %v1286 = vadd.s32 %v1218, %v1208
        %v1287 = vadd.s32 %v1219, %v1206
        %v1288 = vadd.s32 %v1219, %v1207
        %v1289 = vadd.s32 %v1219, %v1208
        %v1290 = vadd.s32 %v1220, %v1206
        %v1291 = vadd.s32 %v1220, %v1207
        %v1292 = vadd.s32 %v1220, %v1208
        %v1293 = vadd.s32 %v1221, %v1206
        %v1294 = vadd.s32 %v1221, %v1207
        %v1295 = vadd.s32 %v1221, %v1208
        %v1296 = vadd.s32 %v1222, %v1206
        %v1297 = vadd.s32 %v1222, %v1207
        %v1298 = vadd.s32 %v1222, %v1208
        %v1299 = vadd.s32 %v1223, %v1206
        %v1300 = vadd.s32 %v1223, %v1207
        %v1301 = vadd.s32 %v1223, %v1208
        %v1302 = vadd.s32 %v1224, %v1206
        %v1303 = vadd.s32 %v1224, %v1207
        %v1304 = vadd.s32 %v1224, %v1208
        %v1305 = vadd.s32 %v1225, %v1206
        %v1306 = vadd.s32 %v1225, %v1207
        %v1307 = vadd.s32 %v1225, %v1208
        %v1308 = vadd.s32 %v1226, %v1206
        %v1309 = vadd.s32 %v1226, %v1207
        %v1310 = vadd.s32 %v1226, %v1208
        %v1311 = vadd.s32 %v1227, %v1206
        %v1312 = vadd.s32 %v1227, %v1207
        %v1313 = vadd.s32 %v1227, %v1208
        %v1314 = vadd.s32 %v1228, %v1206
        %v1315 = vadd.s32 %v1228, %v1207
        %v1316 = vadd.s32 %v1228, %v1208
        %v1317 = vadd.s32 %v1229, %v1206
        %v1318 = vadd.s32 %v1229, %v1207
        %v1319 = vadd.s32 %v1229, %v1208
        %v1320 = vadd.s32 %v1230, %v1206
        %v1321 = vadd.s32 %v1230, %v1207
        %v1322 = vadd.s32 %v1230, %v1208
        %v1323 = vadd.s32 %v1231, %v1206
        %v1324 = vadd.s32 %v1231, %v1207
        %v1325 = vadd.s32 %v1231, %v1208
        %v1326 = vadd.s32 %v1232, %v1206
        %v1327 = vadd.s32 %v1232, %v1207
        %v1328 = vadd.s32 %v1232, %v1208
        %v1329 = vadd.s32 %v1233, %v1206
        %v1330 = vadd.s32 %v1233, %v1207
        %v1331 = vadd.s32 %v1233, %v1208
        %v1332 = vadd.s32 %v1234, %v1206
        %v1333 = vadd.s32 %v1234, %v1207
        %v1334 = vadd.s32 %v1234, %v1208
        %v1335 = vadd.s32 %v1235, %v1206
        %v1336 = vadd.s32 %v1235, %v1207
        %v1337 = vadd.s32 %v1235, %v1208
        %v1338 = vadd.s32 %v1236, %v1206
        %v1339 = vadd.s32 %v1236, %v1207
        %v1340 = vadd.s32 %v1236, %v1208
        %v1341 = vadd.s32 %v1237, %v1206
        %v1342 = vadd.s32 %v1237, %v1207
        %v1343 = vadd.s32 %v1237, %v1208
        %v1344 = vadd.s32 %v1238, %v1206
        %v1345 = vadd.s32 %v1238, %v1207
        %v1346 = vadd.s32 %v1238, %v1208
        %v1347 = vadd.s32 %v1239, %v1206
        %v1348 = vadd.s32 %v1239, %v1207
        %v1349 = vadd.s32 %v1239, %v1208
        %v1350 = vadd.s32 %v1240, %v1206
        %v1351 = vadd.s32 %v1240, %v1207
        %v1352 = vadd.s32 %v1240, %v1208
        %v1353 = vadd.s32 %v1241, %v1206
        %v1354 = vadd.s32 %v1241, %v1207
        %v1355 = vadd.s32 %v1241, %v1208
        %v1356 = vadd.s32 %v1242, %v1206
        %v1357 = vadd.s32 %v1242, %v1207
        %v1358 = vadd.s32 %v1242, %v1208
        %v1359 = vadd.s32 %v1243, %v1206
        %v1360 = vadd.s32 %v1243, %v1207
        %v1361 = vadd.s32 %v1243, %v1208
        %v1362 = vadd.s32 %v1244, %v1206
        %v1363 = vadd.s32 %v1244, %v1207
        %v1364 = vadd.s32 %v1244, %v1208
        %v1365 = vadd.s32 %v1245, %v1206
        %v1366 = vadd.s32 %v1245, %v1207
        %v1367 = vadd.s32 %v1245, %v1208
        %v1368 = vadd.s32 %v1246, %v1206
        %v1369 = vadd.s32 %v1246, %v1207
        %v1370 = vadd.s32 %v1246, %v1208
        %v1371 = vadd.s32 %v1247, %v1206
        %v1372 = vadd.s32 %v1247, %v1207
        %v1373 = vadd.s32 %v1247, %v1208
        %v1374 = vadd.s32 %v1248, %v1206
        %v1375 = vadd.s32 %v1248, %v1207
        %v1376 = vadd.s32 %v1248, %v1208
        %v1377 = vadd.s32 %v1249, %v1206
        %v1378 = vadd.s32 %v1249, %v1207
        %v1379 = vadd.s32 %v1249, %v1208
        %v1380 = vadd.s32 %v1250, %v1206
        %v1381 = vadd.s32 %v1250, %v1207
        %v1382 = vadd.s32 %v1250, %v1208
        %v1383 = vadd.s32 %v1251, %v1206
        %v1384 = vadd.s32 %v1251, %v1207
        %v1385 = vadd.s32 %v1251, %v1208
        %v1386 = vadd.s32 %v1252, %v1206
        %v1387 = vadd.s32 %v1252, %v1207
        %v1388 = vadd.s32 %v1252, %v1208
        %v1389 = vadd.s32 %v1253, %v1206
        %v1390 = vadd.s32 %v1253, %v1207
        %v1391 = vadd.s32 %v1253, %v1208
        %v1392 = vadd.s32 %v1254, %v1206
        %v1393 = vadd.s32 %v1254, %v1207
        %v1394 = vadd.s32 %v1254, %v1208
        %v1395 = vadd.s32 %v1255, %v1206
        %v1396 = vadd.s32 %v1255, %v1207
        %v1397 = vadd.s32 %v1255, %v1208
        %v1398 = vadd.s32 %v1256, %v1206
        %v1399 = vadd.s32 %v1256, %v1207
        %v1400 = vadd.s32 %v1256, %v1208
        %s1401 = smul.u32 %s16, 198677742
        %s1402 = sxor.u32 %s1401, 2808649522
        %v1403 = vstv %s1402
        %v1404 = vxor.u32 %v1257, %v1403
        %v1405 = vxor.u32 %v1258, %v1403
        %v1406 = vxor.u32 %v1259, %v1403
        %v1407 = vxor.u32 %v1260, %v1403
        %v1408 = vxor.u32 %v1261, %v1403
        %v1409 = vxor.u32 %v1262, %v1403
        %v1410 = vxor.u32 %v1263, %v1403
        %v1411 = vxor.u32 %v1264, %v1403
        %v1412 = vxor.u32 %v1265, %v1403
        %v1413 = vxor.u32 %v1266, %v1403
        %v1414 = vxor.u32 %v1267, %v1403
        %v1415 = vxor.u32 %v1268, %v1403
        %v1416 = vxor.u32 %v1269, %v1403
        %v1417 = vxor.u32 %v1270, %v1403
        %v1418 = vxor.u32 %v1271, %v1403
        %v1419 = vxor.u32 %v1272, %v1403
        %v1420 = vxor.u32 %v1273, %v1403
        %v1421 = vxor.u32 %v1274, %v1403
        %v1422 = vxor.u32 %v1275, %v1403
        %v1423 = vxor.u32 %v1276, %v1403
        %v1424 = vxor.u32 %v1277, %v1403
        %v1425 = vxor.u32 %v1278, %v1403
        %v1426 = vxor.u32 %v1279, %v1403
        %v1427 = vxor.u32 %v1280, %v1403
        %v1428 = vxor.u32 %v1281, %v1403
        %v1429 = vxor.u32 %v1282, %v1403
        %v1430 = vxor.u32 %v1283, %v1403
        %v1431 = vxor.u32 %v1284, %v1403
        %v1432 = vxor.u32 %v1285, %v1403
        %v1433 = vxor.u32 %v1286, %v1403
        %v1434 = vxor.u32 %v1287, %v1403
        %v1435 = vxor.u32 %v1288, %v1403
        %v1436 = vxor.u32 %v1289, %v1403
        %v1437 = vxor.u32 %v1290, %v1403
        %v1438 = vxor.u32 %v1291, %v1403
        %v1439 = vxor.u32 %v1292, %v1403
        %v1440 = vxor.u32 %v1293, %v1403
        %v1441 = vxor.u32 %v1294, %v1403
        %v1442 = vxor.u32 %v1295, %v1403
        %v1443 = vxor.u32 %v1296, %v1403
        %v1444 = vxor.u32 %v1297, %v1403
        %v1445 = vxor.u32 %v1298, %v1403
        %v1446 = vxor.u32 %v1299, %v1403
        %v1447 = vxor.u32 %v1300, %v1403
        %v1448 = vxor.u32 %v1301, %v1403
        %v1449 = vxor.u32 %v1302, %v1403
        %v1450 = vxor.u32 %v1303, %v1403
        %v1451 = vxor.u32 %v1304, %v1403
        %v1452 = vxor.u32 %v1305, %v1403
        %v1453 = vxor.u32 %v1306, %v1403
        %v1454 = vxor.u32 %v1307, %v1403
        %v1455 = vxor.u32 %v1308, %v1403
        %v1456 = vxor.u32 %v1309, %v1403
        %v1457 = vxor.u32 %v1310, %v1403
        %v1458 = vxor.u32 %v1311, %v1403
        %v1459 = vxor.u32 %v1312, %v1403
        %v1460 = vxor.u32 %v1313, %v1403
        %v1461 = vxor.u32 %v1314, %v1403
        %v1462 = vxor.u32 %v1315, %v1403
        %v1463 = vxor.u32 %v1316, %v1403
        %v1464 = vxor.u32 %v1317, %v1403
        %v1465 = vxor.u32 %v1318, %v1403
        %v1466 = vxor.u32 %v1319, %v1403
        %v1467 = vxor.u32 %v1320, %v1403
        %v1468 = vxor.u32 %v1321, %v1403
        %v1469 = vxor.u32 %v1322, %v1403
        %v1470 = vxor.u32 %v1323, %v1403
        %v1471 = vxor.u32 %v1324, %v1403
        %v1472 = vxor.u32 %v1325, %v1403
        %v1473 = vxor.u32 %v1326, %v1403
        %v1474 = vxor.u32 %v1327, %v1403
        %v1475 = vxor.u32 %v1328, %v1403
        %v1476 = vxor.u32 %v1329, %v1403
        %v1477 = vxor.u32 %v1330, %v1403
        %v1478 = vxor.u32 %v1331, %v1403
        %v1479 = vxor.u32 %v1332, %v1403
        %v1480 = vxor.u32 %v1333, %v1403
        %v1481 = vxor.u32 %v1334, %v1403
        %v1482 = vxor.u32 %v1335, %v1403
        %v1483 = vxor.u32 %v1336, %v1403
        %v1484 = vxor.u32 %v1337, %v1403
        %v1485 = vxor.u32 %v1338, %v1403
        %v1486 = vxor.u32 %v1339, %v1403
        %v1487 = vxor.u32 %v1340, %v1403
        %v1488 = vxor.u32 %v1341, %v1403
        %v1489 = vxor.u32 %v1342, %v1403
        %v1490 = vxor.u32 %v1343, %v1403
        %v1491 = vxor.u32 %v1344, %v1403
        %v1492 = vxor.u32 %v1345, %v1403
        %v1493 = vxor.u32 %v1346, %v1403
        %v1494 = vxor.u32 %v1347, %v1403
        %v1495 = vxor.u32 %v1348, %v1403
        %v1496 = vxor.u32 %v1349, %v1403
        %v1497 = vxor.u32 %v1350, %v1403
        %v1498 = vxor.u32 %v1351, %v1403
        %v1499 = vxor.u32 %v1352, %v1403
        %v1500 = vxor.u32 %v1353, %v1403
        %v1501 = vxor.u32 %v1354, %v1403
        %v1502 = vxor.u32 %v1355, %v1403
        %v1503 = vxor.u32 %v1356, %v1403
        %v1504 = vxor.u32 %v1357, %v1403
        %v1505 = vxor.u32 %v1358, %v1403
        %v1506 = vxor.u32 %v1359, %v1403
        %v1507 = vxor.u32 %v1360, %v1403
        %v1508 = vxor.u32 %v1361, %v1403
        %v1509 = vxor.u32 %v1362, %v1403
        %v1510 = vxor.u32 %v1363, %v1403
        %v1511 = vxor.u32 %v1364, %v1403
        %v1512 = vxor.u32 %v1365, %v1403
        %v1513 = vxor.u32 %v1366, %v1403
        %v1514 = vxor.u32 %v1367, %v1403
        %v1515 = vxor.u32 %v1368, %v1403
        %v1516 = vxor.u32 %v1369, %v1403
        %v1517 = vxor.u32 %v1370, %v1403
        %v1518 = vxor.u32 %v1371, %v1403
        %v1519 = vxor.u32 %v1372, %v1403
        %v1520 = vxor.u32 %v1373, %v1403
        %v1521 = vxor.u32 %v1374, %v1403
        %v1522 = vxor.u32 %v1375, %v1403
        %v1523 = vxor.u32 %v1376, %v1403
        %v1524 = vxor.u32 %v1377, %v1403
        %v1525 = vxor.u32 %v1378, %v1403
        %v1526 = vxor.u32 %v1379, %v1403
        %v1527 = vxor.u32 %v1380, %v1403
        %v1528 = vxor.u32 %v1381, %v1403
        %v1529 = vxor.u32 %v1382, %v1403
        %v1530 = vxor.u32 %v1383, %v1403
        %v1531 = vxor.u32 %v1384, %v1403
        %v1532 = vxor.u32 %v1385, %v1403
        %v1533 = vxor.u32 %v1386, %v1403
        %v1534 = vxor.u32 %v1387, %v1403
        %v1535 = vxor.u32 %v1388, %v1403
        %v1536 = vxor.u32 %v1389, %v1403
        %v1537 = vxor.u32 %v1390, %v1403
        %v1538 = vxor.u32 %v1391, %v1403
        %v1539 = vxor.u32 %v1392, %v1403
        %v1540 = vxor.u32 %v1393, %v1403
        %v1541 = vxor.u32 %v1394, %v1403
        %v1542 = vxor.u32 %v1395, %v1403
        %v1543 = vxor.u32 %v1396, %v1403
        %v1544 = vxor.u32 %v1397, %v1403
        %v1545 = vxor.u32 %v1398, %v1403
        %v1546 = vxor.u32 %v1399, %v1403
        %v1547 = vxor.u32 %v1400, %v1403
        %v1548 = vshrl.u32 %v1404, 16
        %v1549 = vshrl.u32 %v1405, 16
        %v1550 = vshrl.u32 %v1406, 16
        %v1551 = vshrl.u32 %v1407, 16
        %v1552 = vshrl.u32 %v1408, 16
        %v1553 = vshrl.u32 %v1409, 16
        %v1554 = vshrl.u32 %v1410, 16
        %v1555 = vshrl.u32 %v1411, 16
        %v1556 = vshrl.u32 %v1412, 16
        %v1557 = vshrl.u32 %v1413, 16
        %v1558 = vshrl.u32 %v1414, 16
        %v1559 = vshrl.u32 %v1415, 16
        %v1560 = vshrl.u32 %v1416, 16
        %v1561 = vshrl.u32 %v1417, 16
        %v1562 = vshrl.u32 %v1418, 16
        %v1563 = vshrl.u32 %v1419, 16
        %v1564 = vshrl.u32 %v1420, 16
        %v1565 = vshrl.u32 %v1421, 16
        %v1566 = vshrl.u32 %v1422, 16
        %v1567 = vshrl.u32 %v1423, 16
        %v1568 = vshrl.u32 %v1424, 16
        %v1569 = vshrl.u32 %v1425, 16
        %v1570 = vshrl.u32 %v1426, 16
        %v1571 = vshrl.u32 %v1427, 16
        %v1572 = vshrl.u32 %v1428, 16
        %v1573 = vshrl.u32 %v1429, 16
        %v1574 = vshrl.u32 %v1430, 16
        %v1575 = vshrl.u32 %v1431, 16
        %v1576 = vshrl.u32 %v1432, 16
        %v1577 = vshrl.u32 %v1433, 16
        %v1578 = vshrl.u32 %v1434, 16
        %v1579 = vshrl.u32 %v1435, 16
        %v1580 = vshrl.u32 %v1436, 16
        %v1581 = vshrl.u32 %v1437, 16
        %v1582 = vshrl.u32 %v1438, 16
        %v1583 = vshrl.u32 %v1439, 16
        %v1584 = vshrl.u32 %v1440, 16
        %v1585 = vshrl.u32 %v1441, 16
        %v1586 = vshrl.u32 %v1442, 16
        %v1587 = vshrl.u32 %v1443, 16
        %v1588 = vshrl.u32 %v1444, 16
        %v1589 = vshrl.u32 %v1445, 16
        %v1590 = vshrl.u32 %v1446, 16
        %v1591 = vshrl.u32 %v1447, 16
        %v1592 = vshrl.u32 %v1448, 16
        %v1593 = vshrl.u32 %v1449, 16
        %v1594 = vshrl.u32 %v1450, 16
        %v1595 = vshrl.u32 %v1451, 16
        %v1596 = vshrl.u32 %v1452, 16
        %v1597 = vshrl.u32 %v1453, 16
        %v1598 = vshrl.u32 %v1454, 16
        %v1599 = vshrl.u32 %v1455, 16
        %v1600 = vshrl.u32 %v1456, 16
        %v1601 = vshrl.u32 %v1457, 16
        %v1602 = vshrl.u32 %v1458, 16
        %v1603 = vshrl.u32 %v1459, 16
        %v1604 = vshrl.u32 %v1460, 16
        %v1605 = vshrl.u32 %v1461, 16
        %v1606 = vshrl.u32 %v1462, 16
        %v1607 = vshrl.u32 %v1463, 16
        %v1608 = vshrl.u32 %v1464, 16
        %v1609 = vshrl.u32 %v1465, 16
        %v1610 = vshrl.u32 %v1466, 16
        %v1611 = vshrl.u32 %v1467, 16
        %v1612 = vshrl.u32 %v1468, 16
        %v1613 = vshrl.u32 %v1469, 16
        %v1614 = vshrl.u32 %v1470, 16
        %v1615 = vshrl.u32 %v1471, 16
        %v1616 = vshrl.u32 %v1472, 16
        %v1617 = vshrl.u32 %v1473, 16
        %v1618 = vshrl.u32 %v1474, 16
        %v1619 = vshrl.u32 %v1475, 16
        %v1620 = vshrl.u32 %v1476, 16
        %v1621 = vshrl.u32 %v1477, 16
        %v1622 = vshrl.u32 %v1478, 16
        %v1623 = vshrl.u32 %v1479, 16
        %v1624 = vshrl.u32 %v1480, 16
        %v1625 = vshrl.u32 %v1481, 16
        %v1626 = vshrl.u32 %v1482, 16
        %v1627 = vshrl.u32 %v1483, 16
        %v1628 = vshrl.u32 %v1484, 16
        %v1629 = vshrl.u32 %v1485, 16
        %v1630 = vshrl.u32 %v1486, 16
        %v1631 = vshrl.u32 %v1487, 16
        %v1632 = vshrl.u32 %v1488, 16
        %v1633 = vshrl.u32 %v1489, 16
        %v1634 = vshrl.u32 %v1490, 16
        %v1635 = vshrl.u32 %v1491, 16
        %v1636 = vshrl.u32 %v1492, 16
        %v1637 = vshrl.u32 %v1493, 16
        %v1638 = vshrl.u32 %v1494, 16
        %v1639 = vshrl.u32 %v1495, 16
        %v1640 = vshrl.u32 %v1496, 16
        %v1641 = vshrl.u32 %v1497, 16
        %v1642 = vshrl.u32 %v1498, 16
        %v1643 = vshrl.u32 %v1499, 16
        %v1644 = vshrl.u32 %v1500, 16
        %v1645 = vshrl.u32 %v1501, 16
        %v1646 = vshrl.u32 %v1502, 16
        %v1647 = vshrl.u32 %v1503, 16
        %v1648 = vshrl.u32 %v1504, 16
        %v1649 = vshrl.u32 %v1505, 16
        %v1650 = vshrl.u32 %v1506, 16
        %v1651 = vshrl.u32 %v1507, 16
        %v1652 = vshrl.u32 %v1508, 16
        %v1653 = vshrl.u32 %v1509, 16
        %v1654 = vshrl.u32 %v1510, 16
        %v1655 = vshrl.u32 %v1511, 16
        %v1656 = vshrl.u32 %v1512, 16
        %v1657 = vshrl.u32 %v1513, 16
        %v1658 = vshrl.u32 %v1514, 16
        %v1659 = vshrl.u32 %v1515, 16
        %v1660 = vshrl.u32 %v1516, 16
        %v1661 = vshrl.u32 %v1517, 16
        %v1662 = vshrl.u32 %v1518, 16
        %v1663 = vshrl.u32 %v1519, 16
        %v1664 = vshrl.u32 %v1520, 16
        %v1665 = vshrl.u32 %v1521, 16
        %v1666 = vshrl.u32 %v1522, 16
        %v1667 = vshrl.u32 %v1523, 16
        %v1668 = vshrl.u32 %v1524, 16
        %v1669 = vshrl.u32 %v1525, 16
        %v1670 = vshrl.u32 %v1526, 16
        %v1671 = vshrl.u32 %v1527, 16
        %v1672 = vshrl.u32 %v1528, 16
        %v1673 = vshrl.u32 %v1529, 16
        %v1674 = vshrl.u32 %v1530, 16
        %v1675 = vshrl.u32 %v1531, 16
        %v1676 = vshrl.u32 %v1532, 16
        %v1677 = vshrl.u32 %v1533, 16
        %v1678 = vshrl.u32 %v1534, 16
        %v1679 = vshrl.u32 %v1535, 16
        %v1680 = vshrl.u32 %v1536, 16
        %v1681 = vshrl.u32 %v1537, 16
        %v1682 = vshrl.u32 %v1538, 16
        %v1683 = vshrl.u32 %v1539, 16
        %v1684 = vshrl.u32 %v1540, 16
        %v1685 = vshrl.u32 %v1541, 16
        %v1686 = vshrl.u32 %v1542, 16
        %v1687 = vshrl.u32 %v1543, 16
        %v1688 = vshrl.u32 %v1544, 16
        %v1689 = vshrl.u32 %v1545, 16
        %v1690 = vshrl.u32 %v1546, 16
        %v1691 = vshrl.u32 %v1547, 16
        %v1692 = vxor.u32 %v1404, %v1548
        %v1693 = vxor.u32 %v1405, %v1549
        %v1694 = vxor.u32 %v1406, %v1550
        %v1695 = vxor.u32 %v1407, %v1551
        %v1696 = vxor.u32 %v1408, %v1552
        %v1697 = vxor.u32 %v1409, %v1553
        %v1698 = vxor.u32 %v1410, %v1554
        %v1699 = vxor.u32 %v1411, %v1555
        %v1700 = vxor.u32 %v1412, %v1556
        %v1701 = vxor.u32 %v1413, %v1557
        %v1702 = vxor.u32 %v1414, %v1558
        %v1703 = vxor.u32 %v1415, %v1559
        %v1704 = vxor.u32 %v1416, %v1560
        %v1705 = vxor.u32 %v1417, %v1561
        %v1706 = vxor.u32 %v1418, %v1562
        %v1707 = vxor.u32 %v1419, %v1563
        %v1708 = vxor.u32 %v1420, %v1564
        %v1709 = vxor.u32 %v1421, %v1565
        %v1710 = vxor.u32 %v1422, %v1566
        %v1711 = vxor.u32 %v1423, %v1567
        %v1712 = vxor.u32 %v1424, %v1568
        %v1713 = vxor.u32 %v1425, %v1569
        %v1714 = vxor.u32 %v1426, %v1570
        %v1715 = vxor.u32 %v1427, %v1571
        %v1716 = vxor.u32 %v1428, %v1572
        %v1717 = vxor.u32 %v1429, %v1573
        %v1718 = vxor.u32 %v1430, %v1574
        %v1719 = vxor.u32 %v1431, %v1575
        %v1720 = vxor.u32 %v1432, %v1576
        %v1721 = vxor.u32 %v1433, %v1577
        %v1722 = vxor.u32 %v1434, %v1578
        %v1723 = vxor.u32 %v1435, %v1579
        %v1724 = vxor.u32 %v1436, %v1580
        %v1725 = vxor.u32 %v1437, %v1581
        %v1726 = vxor.u32 %v1438, %v1582
        %v1727 = vxor.u32 %v1439, %v1583
        %v1728 = vxor.u32 %v1440, %v1584
        %v1729 = vxor.u32 %v1441, %v1585
        %v1730 = vxor.u32 %v1442, %v1586
        %v1731 = vxor.u32 %v1443, %v1587
        %v1732 = vxor.u32 %v1444, %v1588
        %v1733 = vxor.u32 %v1445, %v1589
        %v1734 = vxor.u32 %v1446, %v1590
        %v1735 = vxor.u32 %v1447, %v1591
        %v1736 = vxor.u32 %v1448, %v1592
        %v1737 = vxor.u32 %v1449, %v1593
        %v1738 = vxor.u32 %v1450, %v1594
        %v1739 = vxor.u32 %v1451, %v1595
        %v1740 = vxor.u32 %v1452, %v1596
        %v1741 = vxor.u32 %v1453, %v1597
        %v1742 = vxor.u32 %v1454, %v1598
        %v1743 = vxor.u32 %v1455, %v1599
        %v1744 = vxor.u32 %v1456, %v1600
        %v1745 = vxor.u32 %v1457, %v1601
        %v1746 = vxor.u32 %v1458, %v1602
        %v1747 = vxor.u32 %v1459, %v1603
        %v1748 = vxor.u32 %v1460, %v1604
        %v1749 = vxor.u32 %v1461, %v1605
        %v1750 = vxor.u32 %v1462, %v1606
        %v1751 = vxor.u32 %v1463, %v1607
        %v1752 = vxor.u32 %v1464, %v1608
        %v1753 = vxor.u32 %v1465, %v1609
        %v1754 = vxor.u32 %v1466, %v1610
        %v1755 = vxor.u32 %v1467, %v1611
        %v1756 = vxor.u32 %v1468, %v1612
        %v1757 = vxor.u32 %v1469, %v1613
        %v1758 = vxor.u32 %v1470, %v1614
        %v1759 = vxor.u32 %v1471, %v1615
        %v1760 = vxor.u32 %v1472, %v1616
        %v1761 = vxor.u32 %v1473, %v1617
        %v1762 = vxor.u32 %v1474, %v1618
        %v1763 = vxor.u32 %v1475, %v1619
        %v1764 = vxor.u32 %v1476, %v1620
        %v1765 = vxor.u32 %v1477, %v1621
        %v1766 = vxor.u32 %v1478, %v1622
        %v1767 = vxor.u32 %v1479, %v1623
        %v1768 = vxor.u32 %v1480, %v1624
        %v1769 = vxor.u32 %v1481, %v1625
        %v1770 = vxor.u32 %v1482, %v1626
        %v1771 = vxor.u32 %v1483, %v1627
        %v1772 = vxor.u32 %v1484, %v1628
        %v1773 = vxor.u32 %v1485, %v1629
        %v1774 = vxor.u32 %v1486, %v1630
        %v1775 = vxor.u32 %v1487, %v1631
        %v1776 = vxor.u32 %v1488, %v1632
        %v1777 = vxor.u32 %v1489, %v1633
        %v1778 = vxor.u32 %v1490, %v1634
        %v1779 = vxor.u32 %v1491, %v1635
        %v1780 = vxor.u32 %v1492, %v1636
        %v1781 = vxor.u32 %v1493, %v1637
        %v1782 = vxor.u32 %v1494, %v1638
        %v1783 = vxor.u32 %v1495, %v1639
        %v1784 = vxor.u32 %v1496, %v1640
        %v1785 = vxor.u32 %v1497, %v1641
        %v1786 = vxor.u32 %v1498, %v1642
        %v1787 = vxor.u32 %v1499, %v1643
        %v1788 = vxor.u32 %v1500, %v1644
        %v1789 = vxor.u32 %v1501, %v1645
        %v1790 = vxor.u32 %v1502, %v1646
        %v1791 = vxor.u32 %v1503, %v1647
        %v1792 = vxor.u32 %v1504, %v1648
        %v1793 = vxor.u32 %v1505, %v1649
        %v1794 = vxor.u32 %v1506, %v1650
        %v1795 = vxor.u32 %v1507, %v1651
        %v1796 = vxor.u32 %v1508, %v1652
        %v1797 = vxor.u32 %v1509, %v1653
        %v1798 = vxor.u32 %v1510, %v1654
        %v1799 = vxor.u32 %v1511, %v1655
        %v1800 = vxor.u32 %v1512, %v1656
        %v1801 = vxor.u32 %v1513, %v1657
        %v1802 = vxor.u32 %v1514, %v1658
        %v1803 = vxor.u32 %v1515, %v1659
        %v1804 = vxor.u32 %v1516, %v1660
        %v1805 = vxor.u32 %v1517, %v1661
        %v1806 = vxor.u32 %v1518, %v1662
        %v1807 = vxor.u32 %v1519, %v1663
        %v1808 = vxor.u32 %v1520, %v1664
        %v1809 = vxor.u32 %v1521, %v1665
        %v1810 = vxor.u32 %v1522, %v1666
        %v1811 = vxor.u32 %v1523, %v1667
        %v1812 = vxor.u32 %v1524, %v1668
        %v1813 = vxor.u32 %v1525, %v1669
        %v1814 = vxor.u32 %v1526, %v1670
        %v1815 = vxor.u32 %v1527, %v1671
        %v1816 = vxor.u32 %v1528, %v1672
        %v1817 = vxor.u32 %v1529, %v1673
        %v1818 = vxor.u32 %v1530, %v1674
        %v1819 = vxor.u32 %v1531, %v1675
        %v1820 = vxor.u32 %v1532, %v1676
        %v1821 = vxor.u32 %v1533, %v1677
        %v1822 = vxor.u32 %v1534, %v1678
        %v1823 = vxor.u32 %v1535, %v1679
        %v1824 = vxor.u32 %v1536, %v1680
        %v1825 = vxor.u32 %v1537, %v1681
        %v1826 = vxor.u32 %v1538, %v1682
        %v1827 = vxor.u32 %v1539, %v1683
        %v1828 = vxor.u32 %v1540, %v1684
        %v1829 = vxor.u32 %v1541, %v1685
        %v1830 = vxor.u32 %v1542, %v1686
        %v1831 = vxor.u32 %v1543, %v1687
        %v1832 = vxor.u32 %v1544, %v1688
        %v1833 = vxor.u32 %v1545, %v1689
        %v1834 = vxor.u32 %v1546, %v1690
        %v1835 = vxor.u32 %v1547, %v1691
        %v1836 = vmul.u32 %v1692, 2246822507
        %v1837 = vmul.u32 %v1693, 2246822507
        %v1838 = vmul.u32 %v1694, 2246822507
        %v1839 = vmul.u32 %v1695, 2246822507
        %v1840 = vmul.u32 %v1696, 2246822507
        %v1841 = vmul.u32 %v1697, 2246822507
        %v1842 = vmul.u32 %v1698, 2246822507
        %v1843 = vmul.u32 %v1699, 2246822507
        %v1844 = vmul.u32 %v1700, 2246822507
        %v1845 = vmul.u32 %v1701, 2246822507
        %v1846 = vmul.u32 %v1702, 2246822507
        %v1847 = vmul.u32 %v1703, 2246822507
        %v1848 = vmul.u32 %v1704, 2246822507
        %v1849 = vmul.u32 %v1705, 2246822507
        %v1850 = vmul.u32 %v1706, 2246822507
        %v1851 = vmul.u32 %v1707, 2246822507
        %v1852 = vmul.u32 %v1708, 2246822507
        %v1853 = vmul.u32 %v1709, 2246822507
        %v1854 = vmul.u32 %v1710, 2246822507
        %v1855 = vmul.u32 %v1711, 2246822507
        %v1856 = vmul.u32 %v1712, 2246822507
        %v1857 = vmul.u32 %v1713, 2246822507
        %v1858 = vmul.u32 %v1714, 2246822507
        %v1859 = vmul.u32 %v1715, 2246822507
        %v1860 = vmul.u32 %v1716, 2246822507
        %v1861 = vmul.u32 %v1717, 2246822507
        %v1862 = vmul.u32 %v1718, 2246822507
        %v1863 = vmul.u32 %v1719, 2246822507
        %v1864 = vmul.u32 %v1720, 2246822507
        %v1865 = vmul.u32 %v1721, 2246822507
        %v1866 = vmul.u32 %v1722, 2246822507
        %v1867 = vmul.u32 %v1723, 2246822507
        %v1868 = vmul.u32 %v1724, 2246822507
        %v1869 = vmul.u32 %v1725, 2246822507
        %v1870 = vmul.u32 %v1726, 2246822507
        %v1871 = vmul.u32 %v1727, 2246822507
        %v1872 = vmul.u32 %v1728, 2246822507
        %v1873 = vmul.u32 %v1729, 2246822507
        %v1874 = vmul.u32 %v1730, 2246822507
        %v1875 = vmul.u32 %v1731, 2246822507
        %v1876 = vmul.u32 %v1732, 2246822507
        %v1877 = vmul.u32 %v1733, 2246822507
        %v1878 = vmul.u32 %v1734, 2246822507
        %v1879 = vmul.u32 %v1735, 2246822507
        %v1880 = vmul.u32 %v1736, 2246822507
        %v1881 = vmul.u32 %v1737, 2246822507
        %v1882 = vmul.u32 %v1738, 2246822507
        %v1883 = vmul.u32 %v1739, 2246822507
        %v1884 = vmul.u32 %v1740, 2246822507
        %v1885 = vmul.u32 %v1741, 2246822507
        %v1886 = vmul.u32 %v1742, 2246822507
        %v1887 = vmul.u32 %v1743, 2246822507
        %v1888 = vmul.u32 %v1744, 2246822507
        %v1889 = vmul.u32 %v1745, 2246822507
        %v1890 = vmul.u32 %v1746, 2246822507
        %v1891 = vmul.u32 %v1747, 2246822507
        %v1892 = vmul.u32 %v1748, 2246822507
        %v1893 = vmul.u32 %v1749, 2246822507
        %v1894 = vmul.u32 %v1750, 2246822507
        %v1895 = vmul.u32 %v1751, 2246822507
        %v1896 = vmul.u32 %v1752, 2246822507
        %v1897 = vmul.u32 %v1753, 2246822507
        %v1898 = vmul.u32 %v1754, 2246822507
        %v1899 = vmul.u32 %v1755, 2246822507
        %v1900 = vmul.u32 %v1756, 2246822507
        %v1901 = vmul.u32 %v1757, 2246822507
        %v1902 = vmul.u32 %v1758, 2246822507
        %v1903 = vmul.u32 %v1759, 2246822507
        %v1904 = vmul.u32 %v1760, 2246822507
        %v1905 = vmul.u32 %v1761, 2246822507
        %v1906 = vmul.u32 %v1762, 2246822507
        %v1907 = vmul.u32 %v1763, 2246822507
        %v1908 = vmul.u32 %v1764, 2246822507
        %v1909 = vmul.u32 %v1765, 2246822507
        %v1910 = vmul.u32 %v1766, 2246822507
        %v1911 = vmul.u32 %v1767, 2246822507
        %v1912 = vmul.u32 %v1768, 2246822507
        %v1913 = vmul.u32 %v1769, 2246822507
        %v1914 = vmul.u32 %v1770, 2246822507
        %v1915 = vmul.u32 %v1771, 2246822507
        %v1916 = vmul.u32 %v1772, 2246822507
        %v1917 = vmul.u32 %v1773, 2246822507
        %v1918 = vmul.u32 %v1774, 2246822507
        %v1919 = vmul.u32 %v1775, 2246822507
        %v1920 = vmul.u32 %v1776, 2246822507
        %v1921 = vmul.u32 %v1777, 2246822507
        %v1922 = vmul.u32 %v1778, 2246822507
        %v1923 = vmul.u32 %v1779, 2246822507
        %v1924 = vmul.u32 %v1780, 2246822507
        %v1925 = vmul.u32 %v1781, 2246822507
        %v1926 = vmul.u32 %v1782, 2246822507
        %v1927 = vmul.u32 %v1783, 2246822507
        %v1928 = vmul.u32 %v1784, 2246822507
        %v1929 = vmul.u32 %v1785, 2246822507
        %v1930 = vmul.u32 %v1786, 2246822507
        %v1931 = vmul.u32 %v1787, 2246822507
        %v1932 = vmul.u32 %v1788, 2246822507
        %v1933 = vmul.u32 %v1789, 2246822507
        %v1934 = vmul.u32 %v1790, 2246822507
        %v1935 = vmul.u32 %v1791, 2246822507
        %v1936 = vmul.u32 %v1792, 2246822507
        %v1937 = vmul.u32 %v1793, 2246822507
        %v1938 = vmul.u32 %v1794, 2246822507
        %v1939 = vmul.u32 %v1795, 2246822507
        %v1940 = vmul.u32 %v1796, 2246822507
        %v1941 = vmul.u32 %v1797, 2246822507
        %v1942 = vmul.u32 %v1798, 2246822507
        %v1943 = vmul.u32 %v1799, 2246822507
        %v1944 = vmul.u32 %v1800, 2246822507
        %v1945 = vmul.u32 %v1801, 2246822507
        %v1946 = vmul.u32 %v1802, 2246822507
        %v1947 = vmul.u32 %v1803, 2246822507
        %v1948 = vmul.u32 %v1804, 2246822507
        %v1949 = vmul.u32 %v1805, 2246822507
        %v1950 = vmul.u32 %v1806, 2246822507
        %v1951 = vmul.u32 %v1807, 2246822507
        %v1952 = vmul.u32 %v1808, 2246822507
        %v1953 = vmul.u32 %v1809, 2246822507
        %v1954 = vmul.u32 %v1810, 2246822507
        %v1955 = vmul.u32 %v1811, 2246822507
        %v1956 = vmul.u32 %v1812, 2246822507
        %v1957 = vmul.u32 %v1813, 2246822507
        %v1958 = vmul.u32 %v1814, 2246822507
        %v1959 = vmul.u32 %v1815, 2246822507
        %v1960 = vmul.u32 %v1816, 2246822507
        %v1961 = vmul.u32 %v1817, 2246822507
        %v1962 = vmul.u32 %v1818, 2246822507
        %v1963 = vmul.u32 %v1819, 2246822507
        %v1964 = vmul.u32 %v1820, 2246822507
        %v1965 = vmul.u32 %v1821, 2246822507
        %v1966 = vmul.u32 %v1822, 2246822507
        %v1967 = vmul.u32 %v1823, 2246822507
        %v1968 = vmul.u32 %v1824, 2246822507
        %v1969 = vmul.u32 %v1825, 2246822507
        %v1970 = vmul.u32 %v1826, 2246822507
        %v1971 = vmul.u32 %v1827, 2246822507
        %v1972 = vmul.u32 %v1828, 2246822507
        %v1973 = vmul.u32 %v1829, 2246822507
        %v1974 = vmul.u32 %v1830, 2246822507
        %v1975 = vmul.u32 %v1831, 2246822507
        %v1976 = vmul.u32 %v1832, 2246822507
        %v1977 = vmul.u32 %v1833, 2246822507
        %v1978 = vmul.u32 %v1834, 2246822507
        %v1979 = vmul.u32 %v1835, 2246822507
        %v1980 = vshrl.u32 %v1836, 13
        %v1981 = vshrl.u32 %v1837, 13
        %v1982 = vshrl.u32 %v1838, 13
        %v1983 = vshrl.u32 %v1839, 13
        %v1984 = vshrl.u32 %v1840, 13
        %v1985 = vshrl.u32 %v1841, 13
        %v1986 = vshrl.u32 %v1842, 13
        %v1987 = vshrl.u32 %v1843, 13
        %v1988 = vshrl.u32 %v1844, 13
        %v1989 = vshrl.u32 %v1845, 13
        %v1990 = vshrl.u32 %v1846, 13
        %v1991 = vshrl.u32 %v1847, 13
        %v1992 = vshrl.u32 %v1848, 13
        %v1993 = vshrl.u32 %v1849, 13
        %v1994 = vshrl.u32 %v1850, 13
        %v1995 = vshrl.u32 %v1851, 13
        %v1996 = vshrl.u32 %v1852, 13
        %v1997 = vshrl.u32 %v1853, 13
        %v1998 = vshrl.u32 %v1854, 13
        %v1999 = vshrl.u32 %v1855, 13
        %v2000 = vshrl.u32 %v1856, 13
        %v2001 = vshrl.u32 %v1857, 13
        %v2002 = vshrl.u32 %v1858, 13
        %v2003 = vshrl.u32 %v1859, 13
        %v2004 = vshrl.u32 %v1860, 13
        %v2005 = vshrl.u32 %v1861, 13
        %v2006 = vshrl.u32 %v1862, 13
        %v2007 = vshrl.u32 %v1863, 13
        %v2008 = vshrl.u32 %v1864, 13
        %v2009 = vshrl.u32 %v1865, 13
        %v2010 = vshrl.u32 %v1866, 13
        %v2011 = vshrl.u32 %v1867, 13
        %v2012 = vshrl.u32 %v1868, 13
        %v2013 = vshrl.u32 %v1869, 13
        %v2014 = vshrl.u32 %v1870, 13
        %v2015 = vshrl.u32 %v1871, 13
        %v2016 = vshrl.u32 %v1872, 13
        %v2017 = vshrl.u32 %v1873, 13
        %v2018 = vshrl.u32 %v1874, 13
        %v2019 = vshrl.u32 %v1875, 13
        %v2020 = vshrl.u32 %v1876, 13
        %v2021 = vshrl.u32 %v1877, 13
        %v2022 = vshrl.u32 %v1878, 13
        %v2023 = vshrl.u32 %v1879, 13
        %v2024 = vshrl.u32 %v1880, 13
        %v2025 = vshrl.u32 %v1881, 13
        %v2026 = vshrl.u32 %v1882, 13
        %v2027 = vshrl.u32 %v1883, 13
        %v2028 = vshrl.u32 %v1884, 13
        %v2029 = vshrl.u32 %v1885, 13
        %v2030 = vshrl.u32 %v1886, 13
        %v2031 = vshrl.u32 %v1887, 13
        %v2032 = vshrl.u32 %v1888, 13
        %v2033 = vshrl.u32 %v1889, 13
        %v2034 = vshrl.u32 %v1890, 13
        %v2035 = vshrl.u32 %v1891, 13
        %v2036 = vshrl.u32 %v1892, 13
        %v2037 = vshrl.u32 %v1893, 13
        %v2038 = vshrl.u32 %v1894, 13
        %v2039 = vshrl.u32 %v1895, 13
        %v2040 = vshrl.u32 %v1896, 13
        %v2041 = vshrl.u32 %v1897, 13
        %v2042 = vshrl.u32 %v1898, 13
        %v2043 = vshrl.u32 %v1899, 13
        %v2044 = vshrl.u32 %v1900, 13
        %v2045 = vshrl.u32 %v1901, 13
        %v2046 = vshrl.u32 %v1902, 13
        %v2047 = vshrl.u32 %v1903, 13
        %v2048 = vshrl.u32 %v1904, 13
        %v2049 = vshrl.u32 %v1905, 13
        %v2050 = vshrl.u32 %v1906, 13
        %v2051 = vshrl.u32 %v1907, 13
        %v2052 = vshrl.u32 %v1908, 13
        %v2053 = vshrl.u32 %v1909, 13
        %v2054 = vshrl.u32 %v1910, 13
        %v2055 = vshrl.u32 %v1911, 13
        %v2056 = vshrl.u32 %v1912, 13
        %v2057 = vshrl.u32 %v1913, 13
        %v2058 = vshrl.u32 %v1914, 13
        %v2059 = vshrl.u32 %v1915, 13
        %v2060 = vshrl.u32 %v1916, 13
        %v2061 = vshrl.u32 %v1917, 13
        %v2062 = vshrl.u32 %v1918, 13
        %v2063 = vshrl.u32 %v1919, 13
        %v2064 = vshrl.u32 %v1920, 13
        %v2065 = vshrl.u32 %v1921, 13
        %v2066 = vshrl.u32 %v1922, 13
        %v2067 = vshrl.u32 %v1923, 13
        %v2068 = vshrl.u32 %v1924, 13
        %v2069 = vshrl.u32 %v1925, 13
        %v2070 = vshrl.u32 %v1926, 13
        %v2071 = vshrl.u32 %v1927, 13
        %v2072 = vshrl.u32 %v1928, 13
        %v2073 = vshrl.u32 %v1929, 13
        %v2074 = vshrl.u32 %v1930, 13
        %v2075 = vshrl.u32 %v1931, 13
        %v2076 = vshrl.u32 %v1932, 13
        %v2077 = vshrl.u32 %v1933, 13
        %v2078 = vshrl.u32 %v1934, 13
        %v2079 = vshrl.u32 %v1935, 13
        %v2080 = vshrl.u32 %v1936, 13
        %v2081 = vshrl.u32 %v1937, 13
        %v2082 = vshrl.u32 %v1938, 13
        %v2083 = vshrl.u32 %v1939, 13
        %v2084 = vshrl.u32 %v1940, 13
        %v2085 = vshrl.u32 %v1941, 13
        %v2086 = vshrl.u32 %v1942, 13
        %v2087 = vshrl.u32 %v1943, 13
        %v2088 = vshrl.u32 %v1944, 13
        %v2089 = vshrl.u32 %v1945, 13
        %v2090 = vshrl.u32 %v1946, 13
        %v2091 = vshrl.u32 %v1947, 13
        %v2092 = vshrl.u32 %v1948, 13
        %v2093 = vshrl.u32 %v1949, 13
        %v2094 = vshrl.u32 %v1950, 13
        %v2095 = vshrl.u32 %v1951, 13
        %v2096 = vshrl.u32 %v1952, 13
        %v2097 = vshrl.u32 %v1953, 13
        %v2098 = vshrl.u32 %v1954, 13
        %v2099 = vshrl.u32 %v1955, 13
        %v2100 = vshrl.u32 %v1956, 13
        %v2101 = vshrl.u32 %v1957, 13
        %v2102 = vshrl.u32 %v1958, 13
        %v2103 = vshrl.u32 %v1959, 13
        %v2104 = vshrl.u32 %v1960, 13
        %v2105 = vshrl.u32 %v1961, 13
        %v2106 = vshrl.u32 %v1962, 13
        %v2107 = vshrl.u32 %v1963, 13
        %v2108 = vshrl.u32 %v1964, 13
        %v2109 = vshrl.u32 %v1965, 13
        %v2110 = vshrl.u32 %v1966, 13
        %v2111 = vshrl.u32 %v1967, 13
        %v2112 = vshrl.u32 %v1968, 13
        %v2113 = vshrl.u32 %v1969, 13
        %v2114 = vshrl.u32 %v1970, 13
        %v2115 = vshrl.u32 %v1971, 13
        %v2116 = vshrl.u32 %v1972, 13
        %v2117 = vshrl.u32 %v1973, 13
        %v2118 = vshrl.u32 %v1974, 13
        %v2119 = vshrl.u32 %v1975, 13
        %v2120 = vshrl.u32 %v1976, 13
        %v2121 = vshrl.u32 %v1977, 13
        %v2122 = vshrl.u32 %v1978, 13
        %v2123 = vshrl.u32 %v1979, 13
        %v2124 = vxor.u32 %v1836, %v1980
        %v2125 = vxor.u32 %v1837, %v1981
        %v2126 = vxor.u32 %v1838, %v1982
        %v2127 = vxor.u32 %v1839, %v1983
        %v2128 = vxor.u32 %v1840, %v1984
        %v2129 = vxor.u32 %v1841, %v1985
        %v2130 = vxor.u32 %v1842, %v1986
        %v2131 = vxor.u32 %v1843, %v1987
        %v2132 = vxor.u32 %v1844, %v1988
        %v2133 = vxor.u32 %v1845, %v1989
        %v2134 = vxor.u32 %v1846, %v1990
        %v2135 = vxor.u32 %v1847, %v1991
        %v2136 = vxor.u32 %v1848, %v1992
        %v2137 = vxor.u32 %v1849, %v1993
        %v2138 = vxor.u32 %v1850, %v1994
        %v2139 = vxor.u32 %v1851, %v1995
        %v2140 = vxor.u32 %v1852, %v1996
        %v2141 = vxor.u32 %v1853, %v1997
        %v2142 = vxor.u32 %v1854, %v1998
        %v2143 = vxor.u32 %v1855, %v1999
        %v2144 = vxor.u32 %v1856, %v2000
        %v2145 = vxor.u32 %v1857, %v2001
        %v2146 = vxor.u32 %v1858, %v2002
        %v2147 = vxor.u32 %v1859, %v2003
        %v2148 = vxor.u32 %v1860, %v2004
        %v2149 = vxor.u32 %v1861, %v2005
        %v2150 = vxor.u32 %v1862, %v2006
        %v2151 = vxor.u32 %v1863, %v2007
        %v2152 = vxor.u32 %v1864, %v2008
        %v2153 = vxor.u32 %v1865, %v2009
        %v2154 = vxor.u32 %v1866, %v2010
        %v2155 = vxor.u32 %v1867, %v2011
        %v2156 = vxor.u32 %v1868, %v2012
        %v2157 = vxor.u32 %v1869, %v2013
        %v2158 = vxor.u32 %v1870, %v2014
        %v2159 = vxor.u32 %v1871, %v2015
        %v2160 = vxor.u32 %v1872, %v2016
        %v2161 = vxor.u32 %v1873, %v2017
        %v2162 = vxor.u32 %v1874, %v2018
        %v2163 = vxor.u32 %v1875, %v2019
        %v2164 = vxor.u32 %v1876, %v2020
        %v2165 = vxor.u32 %v1877, %v2021
        %v2166 = vxor.u32 %v1878, %v2022
        %v2167 = vxor.u32 %v1879, %v2023
        %v2168 = vxor.u32 %v1880, %v2024
        %v2169 = vxor.u32 %v1881, %v2025
        %v2170 = vxor.u32 %v1882, %v2026
        %v2171 = vxor.u32 %v1883, %v2027
        %v2172 = vxor.u32 %v1884, %v2028
        %v2173 = vxor.u32 %v1885, %v2029
        %v2174 = vxor.u32 %v1886, %v2030
        %v2175 = vxor.u32 %v1887, %v2031
        %v2176 = vxor.u32 %v1888, %v2032
        %v2177 = vxor.u32 %v1889, %v2033
        %v2178 = vxor.u32 %v1890, %v2034
        %v2179 = vxor.u32 %v1891, %v2035
        %v2180 = vxor.u32 %v1892, %v2036
        %v2181 = vxor.u32 %v1893, %v2037
        %v2182 = vxor.u32 %v1894, %v2038
        %v2183 = vxor.u32 %v1895, %v2039
        %v2184 = vxor.u32 %v1896, %v2040
        %v2185 = vxor.u32 %v1897, %v2041
        %v2186 = vxor.u32 %v1898, %v2042
        %v2187 = vxor.u32 %v1899, %v2043
        %v2188 = vxor.u32 %v1900, %v2044
        %v2189 = vxor.u32 %v1901, %v2045
        %v2190 = vxor.u32 %v1902, %v2046
        %v2191 = vxor.u32 %v1903, %v2047
        %v2192 = vxor.u32 %v1904, %v2048
        %v2193 = vxor.u32 %v1905, %v2049
        %v2194 = vxor.u32 %v1906, %v2050
        %v2195 = vxor.u32 %v1907, %v2051
        %v2196 = vxor.u32 %v1908, %v2052
        %v2197 = vxor.u32 %v1909, %v2053
        %v2198 = vxor.u32 %v1910, %v2054
        %v2199 = vxor.u32 %v1911, %v2055
        %v2200 = vxor.u32 %v1912, %v2056
        %v2201 = vxor.u32 %v1913, %v2057
        %v2202 = vxor.u32 %v1914, %v2058
        %v2203 = vxor.u32 %v1915, %v2059
        %v2204 = vxor.u32 %v1916, %v2060
        %v2205 = vxor.u32 %v1917, %v2061
        %v2206 = vxor.u32 %v1918, %v2062
        %v2207 = vxor.u32 %v1919, %v2063
        %v2208 = vxor.u32 %v1920, %v2064
        %v2209 = vxor.u32 %v1921, %v2065
        %v2210 = vxor.u32 %v1922, %v2066
        %v2211 = vxor.u32 %v1923, %v2067
        %v2212 = vxor.u32 %v1924, %v2068
        %v2213 = vxor.u32 %v1925, %v2069
        %v2214 = vxor.u32 %v1926, %v2070
        %v2215 = vxor.u32 %v1927, %v2071
        %v2216 = vxor.u32 %v1928, %v2072
        %v2217 = vxor.u32 %v1929, %v2073
        %v2218 = vxor.u32 %v1930, %v2074
        %v2219 = vxor.u32 %v1931, %v2075
        %v2220 = vxor.u32 %v1932, %v2076
        %v2221 = vxor.u32 %v1933, %v2077
        %v2222 = vxor.u32 %v1934, %v2078
        %v2223 = vxor.u32 %v1935, %v2079
        %v2224 = vxor.u32 %v1936, %v2080
        %v2225 = vxor.u32 %v1937, %v2081
        %v2226 = vxor.u32 %v1938, %v2082
        %v2227 = vxor.u32 %v1939, %v2083
        %v2228 = vxor.u32 %v1940, %v2084
        %v2229 = vxor.u32 %v1941, %v2085
        %v2230 = vxor.u32 %v1942, %v2086
        %v2231 = vxor.u32 %v1943, %v2087
        %v2232 = vxor.u32 %v1944, %v2088
        %v2233 = vxor.u32 %v1945, %v2089
        %v2234 = vxor.u32 %v1946, %v2090
        %v2235 = vxor.u32 %v1947, %v2091
        %v2236 = vxor.u32 %v1948, %v2092
        %v2237 = vxor.u32 %v1949, %v2093
        %v2238 = vxor.u32 %v1950, %v2094
        %v2239 = vxor.u32 %v1951, %v2095
        %v2240 = vxor.u32 %v1952, %v2096
        %v2241 = vxor.u32 %v1953, %v2097
        %v2242 = vxor.u32 %v1954, %v2098
        %v2243 = vxor.u32 %v1955, %v2099
        %v2244 = vxor.u32 %v1956, %v2100
        %v2245 = vxor.u32 %v1957, %v2101
        %v2246 = vxor.u32 %v1958, %v2102
        %v2247 = vxor.u32 %v1959, %v2103
        %v2248 = vxor.u32 %v1960, %v2104
        %v2249 = vxor.u32 %v1961, %v2105
        %v2250 = vxor.u32 %v1962, %v2106
        %v2251 = vxor.u32 %v1963, %v2107
        %v2252 = vxor.u32 %v1964, %v2108
        %v2253 = vxor.u32 %v1965, %v2109
        %v2254 = vxor.u32 %v1966, %v2110
        %v2255 = vxor.u32 %v1967, %v2111
        %v2256 = vxor.u32 %v1968, %v2112
        %v2257 = vxor.u32 %v1969, %v2113
        %v2258 = vxor.u32 %v1970, %v2114
        %v2259 = vxor.u32 %v1971, %v2115
        %v2260 = vxor.u32 %v1972, %v2116
        %v2261 = vxor.u32 %v1973, %v2117
        %v2262 = vxor.u32 %v1974, %v2118
        %v2263 = vxor.u32 %v1975, %v2119
        %v2264 = vxor.u32 %v1976, %v2120
        %v2265 = vxor.u32 %v1977, %v2121
        %v2266 = vxor.u32 %v1978, %v2122
        %v2267 = vxor.u32 %v1979, %v2123
        %v2268 = vmul.u32 %v2124, 3266489909
        %v2269 = vmul.u32 %v2125, 3266489909
        %v2270 = vmul.u32 %v2126, 3266489909
        %v2271 = vmul.u32 %v2127, 3266489909
        %v2272 = vmul.u32 %v2128, 3266489909
        %v2273 = vmul.u32 %v2129, 3266489909
        %v2274 = vmul.u32 %v2130, 3266489909
        %v2275 = vmul.u32 %v2131, 3266489909
        %v2276 = vmul.u32 %v2132, 3266489909
        %v2277 = vmul.u32 %v2133, 3266489909
        %v2278 = vmul.u32 %v2134, 3266489909
        %v2279 = vmul.u32 %v2135, 3266489909
        %v2280 = vmul.u32 %v2136, 3266489909
        %v2281 = vmul.u32 %v2137, 3266489909
        %v2282 = vmul.u32 %v2138, 3266489909
        %v2283 = vmul.u32 %v2139, 3266489909
        %v2284 = vmul.u32 %v2140, 3266489909
        %v2285 = vmul.u32 %v2141, 3266489909
        %v2286 = vmul.u32 %v2142, 3266489909
        %v2287 = vmul.u32 %v2143, 3266489909
        %v2288 = vmul.u32 %v2144, 3266489909
        %v2289 = vmul.u32 %v2145, 3266489909
        %v2290 = vmul.u32 %v2146, 3266489909
        %v2291 = vmul.u32 %v2147, 3266489909
        %v2292 = vmul.u32 %v2148, 3266489909
        %v2293 = vmul.u32 %v2149, 3266489909
        %v2294 = vmul.u32 %v2150, 3266489909
        %v2295 = vmul.u32 %v2151, 3266489909
        %v2296 = vmul.u32 %v2152, 3266489909
        %v2297 = vmul.u32 %v2153, 3266489909
        %v2298 = vmul.u32 %v2154, 3266489909
        %v2299 = vmul.u32 %v2155, 3266489909
        %v2300 = vmul.u32 %v2156, 3266489909
        %v2301 = vmul.u32 %v2157, 3266489909
        %v2302 = vmul.u32 %v2158, 3266489909
        %v2303 = vmul.u32 %v2159, 3266489909
        %v2304 = vmul.u32 %v2160, 3266489909
        %v2305 = vmul.u32 %v2161, 3266489909
        %v2306 = vmul.u32 %v2162, 3266489909
        %v2307 = vmul.u32 %v2163, 3266489909
        %v2308 = vmul.u32 %v2164, 3266489909
        %v2309 = vmul.u32 %v2165, 3266489909
        %v2310 = vmul.u32 %v2166, 3266489909
        %v2311 = vmul.u32 %v2167, 3266489909
        %v2312 = vmul.u32 %v2168, 3266489909
        %v2313 = vmul.u32 %v2169, 3266489909
        %v2314 = vmul.u32 %v2170, 3266489909
        %v2315 = vmul.u32 %v2171, 3266489909
        %v2316 = vmul.u32 %v2172, 3266489909
        %v2317 = vmul.u32 %v2173, 3266489909
        %v2318 = vmul.u32 %v2174, 3266489909
        %v2319 = vmul.u32 %v2175, 3266489909
        %v2320 = vmul.u32 %v2176, 3266489909
        %v2321 = vmul.u32 %v2177, 3266489909
        %v2322 = vmul.u32 %v2178, 3266489909
        %v2323 = vmul.u32 %v2179, 3266489909
        %v2324 = vmul.u32 %v2180, 3266489909
        %v2325 = vmul.u32 %v2181, 3266489909
        %v2326 = vmul.u32 %v2182, 3266489909
        %v2327 = vmul.u32 %v2183, 3266489909
        %v2328 = vmul.u32 %v2184, 3266489909
        %v2329 = vmul.u32 %v2185, 3266489909
        %v2330 = vmul.u32 %v2186, 3266489909
        %v2331 = vmul.u32 %v2187, 3266489909
        %v2332 = vmul.u32 %v2188, 3266489909
        %v2333 = vmul.u32 %v2189, 3266489909
        %v2334 = vmul.u32 %v2190, 3266489909
        %v2335 = vmul.u32 %v2191, 3266489909
        %v2336 = vmul.u32 %v2192, 3266489909
        %v2337 = vmul.u32 %v2193, 3266489909
        %v2338 = vmul.u32 %v2194, 3266489909
        %v2339 = vmul.u32 %v2195, 3266489909
        %v2340 = vmul.u32 %v2196, 3266489909
        %v2341 = vmul.u32 %v2197, 3266489909
        %v2342 = vmul.u32 %v2198, 3266489909
        %v2343 = vmul.u32 %v2199, 3266489909
        %v2344 = vmul.u32 %v2200, 3266489909
        %v2345 = vmul.u32 %v2201, 3266489909
        %v2346 = vmul.u32 %v2202, 3266489909
        %v2347 = vmul.u32 %v2203, 3266489909
        %v2348 = vmul.u32 %v2204, 3266489909
        %v2349 = vmul.u32 %v2205, 3266489909
        %v2350 = vmul.u32 %v2206, 3266489909
        %v2351 = vmul.u32 %v2207, 3266489909
        %v2352 = vmul.u32 %v2208, 3266489909
        %v2353 = vmul.u32 %v2209, 3266489909
        %v2354 = vmul.u32 %v2210, 3266489909
        %v2355 = vmul.u32 %v2211, 3266489909
        %v2356 = vmul.u32 %v2212, 3266489909
        %v2357 = vmul.u32 %v2213, 3266489909
        %v2358 = vmul.u32 %v2214, 3266489909
        %v2359 = vmul.u32 %v2215, 3266489909
        %v2360 = vmul.u32 %v2216, 3266489909
        %v2361 = vmul.u32 %v2217, 3266489909
        %v2362 = vmul.u32 %v2218, 3266489909
        %v2363 = vmul.u32 %v2219, 3266489909
        %v2364 = vmul.u32 %v2220, 3266489909
        %v2365 = vmul.u32 %v2221, 3266489909
        %v2366 = vmul.u32 %v2222, 3266489909
        %v2367 = vmul.u32 %v2223, 3266489909
        %v2368 = vmul.u32 %v2224, 3266489909
        %v2369 = vmul.u32 %v2225, 3266489909
        %v2370 = vmul.u32 %v2226, 3266489909
        %v2371 = vmul.u32 %v2227, 3266489909
        %v2372 = vmul.u32 %v2228, 3266489909
        %v2373 = vmul.u32 %v2229, 3266489909
        %v2374 = vmul.u32 %v2230, 3266489909
        %v2375 = vmul.u32 %v2231, 3266489909
        %v2376 = vmul.u32 %v2232, 3266489909
        %v2377 = vmul.u32 %v2233, 3266489909
        %v2378 = vmul.u32 %v2234, 3266489909
        %v2379 = vmul.u32 %v2235, 3266489909
        %v2380 = vmul.u32 %v2236, 3266489909
        %v2381 = vmul.u32 %v2237, 3266489909
        %v2382 = vmul.u32 %v2238, 3266489909
        %v2383 = vmul.u32 %v2239, 3266489909
        %v2384 = vmul.u32 %v2240, 3266489909
        %v2385 = vmul.u32 %v2241, 3266489909
        %v2386 = vmul.u32 %v2242, 3266489909
        %v2387 = vmul.u32 %v2243, 3266489909
        %v2388 = vmul.u32 %v2244, 3266489909
        %v2389 = vmul.u32 %v2245, 3266489909
        %v2390 = vmul.u32 %v2246, 3266489909
        %v2391 = vmul.u32 %v2247, 3266489909
        %v2392 = vmul.u32 %v2248, 3266489909
        %v2393 = vmul.u32 %v2249, 3266489909
        %v2394 = vmul.u32 %v2250, 3266489909
        %v2395 = vmul.u32 %v2251, 3266489909
        %v2396 = vmul.u32 %v2252, 3266489909
        %v2397 = vmul.u32 %v2253, 3266489909
        %v2398 = vmul.u32 %v2254, 3266489909
        %v2399 = vmul.u32 %v2255, 3266489909
        %v2400 = vmul.u32 %v2256, 3266489909
        %v2401 = vmul.u32 %v2257, 3266489909
        %v2402 = vmul.u32 %v2258, 3266489909
        %v2403 = vmul.u32 %v2259, 3266489909
        %v2404 = vmul.u32 %v2260, 3266489909
        %v2405 = vmul.u32 %v2261, 3266489909
        %v2406 = vmul.u32 %v2262, 3266489909
        %v2407 = vmul.u32 %v2263, 3266489909
        %v2408 = vmul.u32 %v2264, 3266489909
        %v2409 = vmul.u32 %v2265, 3266489909
        %v2410 = vmul.u32 %v2266, 3266489909
        %v2411 = vmul.u32 %v2267, 3266489909
        %v2412 = vshrl.u32 %v2268, 16
        %v2413 = vshrl.u32 %v2269, 16
        %v2414 = vshrl.u32 %v2270, 16
        %v2415 = vshrl.u32 %v2271, 16
        %v2416 = vshrl.u32 %v2272, 16
        %v2417 = vshrl.u32 %v2273, 16
        %v2418 = vshrl.u32 %v2274, 16
        %v2419 = vshrl.u32 %v2275, 16
        %v2420 = vshrl.u32 %v2276, 16
        %v2421 = vshrl.u32 %v2277, 16
        %v2422 = vshrl.u32 %v2278, 16
        %v2423 = vshrl.u32 %v2279, 16
        %v2424 = vshrl.u32 %v2280, 16
        %v2425 = vshrl.u32 %v2281, 16
        %v2426 = vshrl.u32 %v2282, 16
        %v2427 = vshrl.u32 %v2283, 16
        %v2428 = vshrl.u32 %v2284, 16
        %v2429 = vshrl.u32 %v2285, 16
        %v2430 = vshrl.u32 %v2286, 16
        %v2431 = vshrl.u32 %v2287, 16
        %v2432 = vshrl.u32 %v2288, 16
        %v2433 = vshrl.u32 %v2289, 16
        %v2434 = vshrl.u32 %v2290, 16
        %v2435 = vshrl.u32 %v2291, 16
        %v2436 = vshrl.u32 %v2292, 16
        %v2437 = vshrl.u32 %v2293, 16
        %v2438 = vshrl.u32 %v2294, 16
        %v2439 = vshrl.u32 %v2295, 16
        %v2440 = vshrl.u32 %v2296, 16
        %v2441 = vshrl.u32 %v2297, 16
        %v2442 = vshrl.u32 %v2298, 16
        %v2443 = vshrl.u32 %v2299, 16
        %v2444 = vshrl.u32 %v2300, 16
        %v2445 = vshrl.u32 %v2301, 16
        %v2446 = vshrl.u32 %v2302, 16
        %v2447 = vshrl.u32 %v2303, 16
        %v2448 = vshrl.u32 %v2304, 16
        %v2449 = vshrl.u32 %v2305, 16
        %v2450 = vshrl.u32 %v2306, 16
        %v2451 = vshrl.u32 %v2307, 16
        %v2452 = vshrl.u32 %v2308, 16
        %v2453 = vshrl.u32 %v2309, 16
        %v2454 = vshrl.u32 %v2310, 16
        %v2455 = vshrl.u32 %v2311, 16
        %v2456 = vshrl.u32 %v2312, 16
        %v2457 = vshrl.u32 %v2313, 16
        %v2458 = vshrl.u32 %v2314, 16
        %v2459 = vshrl.u32 %v2315, 16
        %v2460 = vshrl.u32 %v2316, 16
        %v2461 = vshrl.u32 %v2317, 16
        %v2462 = vshrl.u32 %v2318, 16
        %v2463 = vshrl.u32 %v2319, 16
        %v2464 = vshrl.u32 %v2320, 16
        %v2465 = vshrl.u32 %v2321, 16
        %v2466 = vshrl.u32 %v2322, 16
        %v2467 = vshrl.u32 %v2323, 16
        %v2468 = vshrl.u32 %v2324, 16
        %v2469 = vshrl.u32 %v2325, 16
        %v2470 = vshrl.u32 %v2326, 16
        %v2471 = vshrl.u32 %v2327, 16
        %v2472 = vshrl.u32 %v2328, 16
        %v2473 = vshrl.u32 %v2329, 16
        %v2474 = vshrl.u32 %v2330, 16
        %v2475 = vshrl.u32 %v2331, 16
        %v2476 = vshrl.u32 %v2332, 16
        %v2477 = vshrl.u32 %v2333, 16
        %v2478 = vshrl.u32 %v2334, 16
        %v2479 = vshrl.u32 %v2335, 16
        %v2480 = vshrl.u32 %v2336, 16
        %v2481 = vshrl.u32 %v2337, 16
        %v2482 = vshrl.u32 %v2338, 16
        %v2483 = vshrl.u32 %v2339, 16
        %v2484 = vshrl.u32 %v2340, 16
        %v2485 = vshrl.u32 %v2341, 16
        %v2486 = vshrl.u32 %v2342, 16
        %v2487 = vshrl.u32 %v2343, 16
        %v2488 = vshrl.u32 %v2344, 16
        %v2489 = vshrl.u32 %v2345, 16
        %v2490 = vshrl.u32 %v2346, 16
        %v2491 = vshrl.u32 %v2347, 16
        %v2492 = vshrl.u32 %v2348, 16
        %v2493 = vshrl.u32 %v2349, 16
        %v2494 = vshrl.u32 %v2350, 16
        %v2495 = vshrl.u32 %v2351, 16
        %v2496 = vshrl.u32 %v2352, 16
        %v2497 = vshrl.u32 %v2353, 16
        %v2498 = vshrl.u32 %v2354, 16
        %v2499 = vshrl.u32 %v2355, 16
        %v2500 = vshrl.u32 %v2356, 16
        %v2501 = vshrl.u32 %v2357, 16
        %v2502 = vshrl.u32 %v2358, 16
        %v2503 = vshrl.u32 %v2359, 16
        %v2504 = vshrl.u32 %v2360, 16
        %v2505 = vshrl.u32 %v2361, 16
        %v2506 = vshrl.u32 %v2362, 16
        %v2507 = vshrl.u32 %v2363, 16
        %v2508 = vshrl.u32 %v2364, 16
        %v2509 = vshrl.u32 %v2365, 16
        %v2510 = vshrl.u32 %v2366, 16
        %v2511 = vshrl.u32 %v2367, 16
        %v2512 = vshrl.u32 %v2368, 16
        %v2513 = vshrl.u32 %v2369, 16
        %v2514 = vshrl.u32 %v2370, 16
        %v2515 = vshrl.u32 %v2371, 16
        %v2516 = vshrl.u32 %v2372, 16
        %v2517 = vshrl.u32 %v2373, 16
        %v2518 = vshrl.u32 %v2374, 16
        %v2519 = vshrl.u32 %v2375, 16
        %v2520 = vshrl.u32 %v2376, 16
        %v2521 = vshrl.u32 %v2377, 16
        %v2522 = vshrl.u32 %v2378, 16
        %v2523 = vshrl.u32 %v2379, 16
        %v2524 = vshrl.u32 %v2380, 16
        %v2525 = vshrl.u32 %v2381, 16
        %v2526 = vshrl.u32 %v2382, 16
        %v2527 = vshrl.u32 %v2383, 16
        %v2528 = vshrl.u32 %v2384, 16
        %v2529 = vshrl.u32 %v2385, 16
        %v2530 = vshrl.u32 %v2386, 16
        %v2531 = vshrl.u32 %v2387, 16
        %v2532 = vshrl.u32 %v2388, 16
        %v2533 = vshrl.u32 %v2389, 16
        %v2534 = vshrl.u32 %v2390, 16
        %v2535 = vshrl.u32 %v2391, 16
        %v2536 = vshrl.u32 %v2392, 16
        %v2537 = vshrl.u32 %v2393, 16
        %v2538 = vshrl.u32 %v2394, 16
        %v2539 = vshrl.u32 %v2395, 16
        %v2540 = vshrl.u32 %v2396, 16
        %v2541 = vshrl.u32 %v2397, 16
        %v2542 = vshrl.u32 %v2398, 16
        %v2543 = vshrl.u32 %v2399, 16
        %v2544 = vshrl.u32 %v2400, 16
        %v2545 = vshrl.u32 %v2401, 16
        %v2546 = vshrl.u32 %v2402, 16
        %v2547 = vshrl.u32 %v2403, 16
        %v2548 = vshrl.u32 %v2404, 16
        %v2549 = vshrl.u32 %v2405, 16
        %v2550 = vshrl.u32 %v2406, 16
        %v2551 = vshrl.u32 %v2407, 16
        %v2552 = vshrl.u32 %v2408, 16
        %v2553 = vshrl.u32 %v2409, 16
        %v2554 = vshrl.u32 %v2410, 16
        %v2555 = vshrl.u32 %v2411, 16
        %v2556 = vxor.u32 %v2268, %v2412
        %v2557 = vxor.u32 %v2269, %v2413
        %v2558 = vxor.u32 %v2270, %v2414
        %v2559 = vxor.u32 %v2271, %v2415
        %v2560 = vxor.u32 %v2272, %v2416
        %v2561 = vxor.u32 %v2273, %v2417
        %v2562 = vxor.u32 %v2274, %v2418
        %v2563 = vxor.u32 %v2275, %v2419
        %v2564 = vxor.u32 %v2276, %v2420
        %v2565 = vxor.u32 %v2277, %v2421
        %v2566 = vxor.u32 %v2278, %v2422
        %v2567 = vxor.u32 %v2279, %v2423
        %v2568 = vxor.u32 %v2280, %v2424
        %v2569 = vxor.u32 %v2281, %v2425
        %v2570 = vxor.u32 %v2282, %v2426
        %v2571 = vxor.u32 %v2283, %v2427
        %v2572 = vxor.u32 %v2284, %v2428
        %v2573 = vxor.u32 %v2285, %v2429
        %v2574 = vxor.u32 %v2286, %v2430
        %v2575 = vxor.u32 %v2287, %v2431
        %v2576 = vxor.u32 %v2288, %v2432
        %v2577 = vxor.u32 %v2289, %v2433
        %v2578 = vxor.u32 %v2290, %v2434
        %v2579 = vxor.u32 %v2291, %v2435
        %v2580 = vxor.u32 %v2292, %v2436
        %v2581 = vxor.u32 %v2293, %v2437
        %v2582 = vxor.u32 %v2294, %v2438
        %v2583 = vxor.u32 %v2295, %v2439
        %v2584 = vxor.u32 %v2296, %v2440
        %v2585 = vxor.u32 %v2297, %v2441
        %v2586 = vxor.u32 %v2298, %v2442
        %v2587 = vxor.u32 %v2299, %v2443
        %v2588 = vxor.u32 %v2300, %v2444
        %v2589 = vxor.u32 %v2301, %v2445
        %v2590 = vxor.u32 %v2302, %v2446
        %v2591 = vxor.u32 %v2303, %v2447
        %v2592 = vxor.u32 %v2304, %v2448
        %v2593 = vxor.u32 %v2305, %v2449
        %v2594 = vxor.u32 %v2306, %v2450
        %v2595 = vxor.u32 %v2307, %v2451
        %v2596 = vxor.u32 %v2308, %v2452
        %v2597 = vxor.u32 %v2309, %v2453
        %v2598 = vxor.u32 %v2310, %v2454
        %v2599 = vxor.u32 %v2311, %v2455
        %v2600 = vxor.u32 %v2312, %v2456
        %v2601 = vxor.u32 %v2313, %v2457
        %v2602 = vxor.u32 %v2314, %v2458
        %v2603 = vxor.u32 %v2315, %v2459
        %v2604 = vxor.u32 %v2316, %v2460
        %v2605 = vxor.u32 %v2317, %v2461
        %v2606 = vxor.u32 %v2318, %v2462
        %v2607 = vxor.u32 %v2319, %v2463
        %v2608 = vxor.u32 %v2320, %v2464
        %v2609 = vxor.u32 %v2321, %v2465
        %v2610 = vxor.u32 %v2322, %v2466
        %v2611 = vxor.u32 %v2323, %v2467
        %v2612 = vxor.u32 %v2324, %v2468
        %v2613 = vxor.u32 %v2325, %v2469
        %v2614 = vxor.u32 %v2326, %v2470
        %v2615 = vxor.u32 %v2327, %v2471
        %v2616 = vxor.u32 %v2328, %v2472
        %v2617 = vxor.u32 %v2329, %v2473
        %v2618 = vxor.u32 %v2330, %v2474
        %v2619 = vxor.u32 %v2331, %v2475
        %v2620 = vxor.u32 %v2332, %v2476
        %v2621 = vxor.u32 %v2333, %v2477
        %v2622 = vxor.u32 %v2334, %v2478
        %v2623 = vxor.u32 %v2335, %v2479
        %v2624 = vxor.u32 %v2336, %v2480
        %v2625 = vxor.u32 %v2337, %v2481
        %v2626 = vxor.u32 %v2338, %v2482
        %v2627 = vxor.u32 %v2339, %v2483
        %v2628 = vxor.u32 %v2340, %v2484
        %v2629 = vxor.u32 %v2341, %v2485
        %v2630 = vxor.u32 %v2342, %v2486
        %v2631 = vxor.u32 %v2343, %v2487
        %v2632 = vxor.u32 %v2344, %v2488
        %v2633 = vxor.u32 %v2345, %v2489
        %v2634 = vxor.u32 %v2346, %v2490
        %v2635 = vxor.u32 %v2347, %v2491
        %v2636 = vxor.u32 %v2348, %v2492
        %v2637 = vxor.u32 %v2349, %v2493
        %v2638 = vxor.u32 %v2350, %v2494
        %v2639 = vxor.u32 %v2351, %v2495
        %v2640 = vxor.u32 %v2352, %v2496
        %v2641 = vxor.u32 %v2353, %v2497
        %v2642 = vxor.u32 %v2354, %v2498
        %v2643 = vxor.u32 %v2355, %v2499
        %v2644 = vxor.u32 %v2356, %v2500
        %v2645 = vxor.u32 %v2357, %v2501
        %v2646 = vxor.u32 %v2358, %v2502
        %v2647 = vxor.u32 %v2359, %v2503
        %v2648 = vxor.u32 %v2360, %v2504
        %v2649 = vxor.u32 %v2361, %v2505
        %v2650 = vxor.u32 %v2362, %v2506
        %v2651 = vxor.u32 %v2363, %v2507
        %v2652 = vxor.u32 %v2364, %v2508
        %v2653 = vxor.u32 %v2365, %v2509
        %v2654 = vxor.u32 %v2366, %v2510
        %v2655 = vxor.u32 %v2367, %v2511
        %v2656 = vxor.u32 %v2368, %v2512
        %v2657 = vxor.u32 %v2369, %v2513
        %v2658 = vxor.u32 %v2370, %v2514
        %v2659 = vxor.u32 %v2371, %v2515
        %v2660 = vxor.u32 %v2372, %v2516
        %v2661 = vxor.u32 %v2373, %v2517
        %v2662 = vxor.u32 %v2374, %v2518
        %v2663 = vxor.u32 %v2375, %v2519
        %v2664 = vxor.u32 %v2376, %v2520
        %v2665 = vxor.u32 %v2377, %v2521
        %v2666 = vxor.u32 %v2378, %v2522
        %v2667 = vxor.u32 %v2379, %v2523
        %v2668 = vxor.u32 %v2380, %v2524
        %v2669 = vxor.u32 %v2381, %v2525
        %v2670 = vxor.u32 %v2382, %v2526
        %v2671 = vxor.u32 %v2383, %v2527
        %v2672 = vxor.u32 %v2384, %v2528
        %v2673 = vxor.u32 %v2385, %v2529
        %v2674 = vxor.u32 %v2386, %v2530
        %v2675 = vxor.u32 %v2387, %v2531
        %v2676 = vxor.u32 %v2388, %v2532
        %v2677 = vxor.u32 %v2389, %v2533
        %v2678 = vxor.u32 %v2390, %v2534
        %v2679 = vxor.u32 %v2391, %v2535
        %v2680 = vxor.u32 %v2392, %v2536
        %v2681 = vxor.u32 %v2393, %v2537
        %v2682 = vxor.u32 %v2394, %v2538
        %v2683 = vxor.u32 %v2395, %v2539
        %v2684 = vxor.u32 %v2396, %v2540
        %v2685 = vxor.u32 %v2397, %v2541
        %v2686 = vxor.u32 %v2398, %v2542
        %v2687 = vxor.u32 %v2399, %v2543
        %v2688 = vxor.u32 %v2400, %v2544
        %v2689 = vxor.u32 %v2401, %v2545
        %v2690 = vxor.u32 %v2402, %v2546
        %v2691 = vxor.u32 %v2403, %v2547
        %v2692 = vxor.u32 %v2404, %v2548
        %v2693 = vxor.u32 %v2405, %v2549
        %v2694 = vxor.u32 %v2406, %v2550
        %v2695 = vxor.u32 %v2407, %v2551
        %v2696 = vxor.u32 %v2408, %v2552
        %v2697 = vxor.u32 %v2409, %v2553
        %v2698 = vxor.u32 %v2410, %v2554
        %v2699 = vxor.u32 %v2411, %v2555
        %v2700 = vand.u32 %v2556, 16777215
        %v2701 = vand.u32 %v2557, 16777215
        %v2702 = vand.u32 %v2558, 16777215
        %v2703 = vand.u32 %v2559, 16777215
        %v2704 = vand.u32 %v2560, 16777215
        %v2705 = vand.u32 %v2561, 16777215
        %v2706 = vand.u32 %v2562, 16777215
        %v2707 = vand.u32 %v2563, 16777215
        %v2708 = vand.u32 %v2564, 16777215
        %v2709 = vand.u32 %v2565, 16777215
        %v2710 = vand.u32 %v2566, 16777215
        %v2711 = vand.u32 %v2567, 16777215
        %v2712 = vand.u32 %v2568, 16777215
        %v2713 = vand.u32 %v2569, 16777215
        %v2714 = vand.u32 %v2570, 16777215
        %v2715 = vand.u32 %v2571, 16777215
        %v2716 = vand.u32 %v2572, 16777215
        %v2717 = vand.u32 %v2573, 16777215
        %v2718 = vand.u32 %v2574, 16777215
        %v2719 = vand.u32 %v2575, 16777215
        %v2720 = vand.u32 %v2576, 16777215
        %v2721 = vand.u32 %v2577, 16777215
        %v2722 = vand.u32 %v2578, 16777215
        %v2723 = vand.u32 %v2579, 16777215
        %v2724 = vand.u32 %v2580, 16777215
        %v2725 = vand.u32 %v2581, 16777215
        %v2726 = vand.u32 %v2582, 16777215
        %v2727 = vand.u32 %v2583, 16777215
        %v2728 = vand.u32 %v2584, 16777215
        %v2729 = vand.u32 %v2585, 16777215
        %v2730 = vand.u32 %v2586, 16777215
        %v2731 = vand.u32 %v2587, 16777215
        %v2732 = vand.u32 %v2588, 16777215
        %v2733 = vand.u32 %v2589, 16777215
        %v2734 = vand.u32 %v2590, 16777215
        %v2735 = vand.u32 %v2591, 16777215
        %v2736 = vand.u32 %v2592, 16777215
        %v2737 = vand.u32 %v2593, 16777215
        %v2738 = vand.u32 %v2594, 16777215
        %v2739 = vand.u32 %v2595, 16777215
        %v2740 = vand.u32 %v2596, 16777215
        %v2741 = vand.u32 %v2597, 16777215
        %v2742 = vand.u32 %v2598, 16777215
        %v2743 = vand.u32 %v2599, 16777215
        %v2744 = vand.u32 %v2600, 16777215
        %v2745 = vand.u32 %v2601, 16777215
        %v2746 = vand.u32 %v2602, 16777215
        %v2747 = vand.u32 %v2603, 16777215
        %v2748 = vand.u32 %v2604, 16777215
        %v2749 = vand.u32 %v2605, 16777215
        %v2750 = vand.u32 %v2606, 16777215
        %v2751 = vand.u32 %v2607, 16777215
        %v2752 = vand.u32 %v2608, 16777215
        %v2753 = vand.u32 %v2609, 16777215
        %v2754 = vand.u32 %v2610, 16777215
        %v2755 = vand.u32 %v2611, 16777215
        %v2756 = vand.u32 %v2612, 16777215
        %v2757 = vand.u32 %v2613, 16777215
        %v2758 = vand.u32 %v2614, 16777215
        %v2759 = vand.u32 %v2615, 16777215
        %v2760 = vand.u32 %v2616, 16777215
        %v2761 = vand.u32 %v2617, 16777215
        %v2762 = vand.u32 %v2618, 16777215
        %v2763 = vand.u32 %v2619, 16777215
        %v2764 = vand.u32 %v2620, 16777215
        %v2765 = vand.u32 %v2621, 16777215
        %v2766 = vand.u32 %v2622, 16777215
        %v2767 = vand.u32 %v2623, 16777215
        %v2768 = vand.u32 %v2624, 16777215
        %v2769 = vand.u32 %v2625, 16777215
        %v2770 = vand.u32 %v2626, 16777215
        %v2771 = vand.u32 %v2627, 16777215
        %v2772 = vand.u32 %v2628, 16777215
        %v2773 = vand.u32 %v2629, 16777215
        %v2774 = vand.u32 %v2630, 16777215
        %v2775 = vand.u32 %v2631, 16777215
        %v2776 = vand.u32 %v2632, 16777215
        %v2777 = vand.u32 %v2633, 16777215
        %v2778 = vand.u32 %v2634, 16777215
        %v2779 = vand.u32 %v2635, 16777215
        %v2780 = vand.u32 %v2636, 16777215
        %v2781 = vand.u32 %v2637, 16777215
        %v2782 = vand.u32 %v2638, 16777215
        %v2783 = vand.u32 %v2639, 16777215
        %v2784 = vand.u32 %v2640, 16777215
        %v2785 = vand.u32 %v2641, 16777215
        %v2786 = vand.u32 %v2642, 16777215
        %v2787 = vand.u32 %v2643, 16777215
        %v2788 = vand.u32 %v2644, 16777215
        %v2789 = vand.u32 %v2645, 16777215
        %v2790 = vand.u32 %v2646, 16777215
        %v2791 = vand.u32 %v2647, 16777215
        %v2792 = vand.u32 %v2648, 16777215
        %v2793 = vand.u32 %v2649, 16777215
        %v2794 = vand.u32 %v2650, 16777215
        %v2795 = vand.u32 %v2651, 16777215
        %v2796 = vand.u32 %v2652, 16777215
        %v2797 = vand.u32 %v2653, 16777215
        %v2798 = vand.u32 %v2654, 16777215
        %v2799 = vand.u32 %v2655, 16777215
        %v2800 = vand.u32 %v2656, 16777215
        %v2801 = vand.u32 %v2657, 16777215
        %v2802 = vand.u32 %v2658, 16777215
        %v2803 = vand.u32 %v2659, 16777215
        %v2804 = vand.u32 %v2660, 16777215
        %v2805 = vand.u32 %v2661, 16777215
        %v2806 = vand.u32 %v2662, 16777215
        %v2807 = vand.u32 %v2663, 16777215
        %v2808 = vand.u32 %v2664, 16777215
        %v2809 = vand.u32 %v2665, 16777215
        %v2810 = vand.u32 %v2666, 16777215
        %v2811 = vand.u32 %v2667, 16777215
        %v2812 = vand.u32 %v2668, 16777215
        %v2813 = vand.u32 %v2669, 16777215
        %v2814 = vand.u32 %v2670, 16777215
        %v2815 = vand.u32 %v2671, 16777215
        %v2816 = vand.u32 %v2672, 16777215
        %v2817 = vand.u32 %v2673, 16777215
        %v2818 = vand.u32 %v2674, 16777215
        %v2819 = vand.u32 %v2675, 16777215
        %v2820 = vand.u32 %v2676, 16777215
        %v2821 = vand.u32 %v2677, 16777215
        %v2822 = vand.u32 %v2678, 16777215
        %v2823 = vand.u32 %v2679, 16777215
        %v2824 = vand.u32 %v2680, 16777215
        %v2825 = vand.u32 %v2681, 16777215
        %v2826 = vand.u32 %v2682, 16777215
        %v2827 = vand.u32 %v2683, 16777215
        %v2828 = vand.u32 %v2684, 16777215
        %v2829 = vand.u32 %v2685, 16777215
        %v2830 = vand.u32 %v2686, 16777215
        %v2831 = vand.u32 %v2687, 16777215
        %v2832 = vand.u32 %v2688, 16777215
        %v2833 = vand.u32 %v2689, 16777215
        %v2834 = vand.u32 %v2690, 16777215
        %v2835 = vand.u32 %v2691, 16777215
        %v2836 = vand.u32 %v2692, 16777215
        %v2837 = vand.u32 %v2693, 16777215
        %v2838 = vand.u32 %v2694, 16777215
        %v2839 = vand.u32 %v2695, 16777215
        %v2840 = vand.u32 %v2696, 16777215
        %v2841 = vand.u32 %v2697, 16777215
        %v2842 = vand.u32 %v2698, 16777215
        %v2843 = vand.u32 %v2699, 16777215
        %vm2844 = vcmp.ge.s32.totalorder %v2700, 1677722
        %vm2845 = vcmp.ge.s32.totalorder %v2701, 1677722
        %vm2846 = vcmp.ge.s32.totalorder %v2702, 1677722
        %vm2847 = vcmp.ge.s32.totalorder %v2703, 1677722
        %vm2848 = vcmp.ge.s32.totalorder %v2704, 1677722
        %vm2849 = vcmp.ge.s32.totalorder %v2705, 1677722
        %vm2850 = vcmp.ge.s32.totalorder %v2706, 1677722
        %vm2851 = vcmp.ge.s32.totalorder %v2707, 1677722
        %vm2852 = vcmp.ge.s32.totalorder %v2708, 1677722
        %vm2853 = vcmp.ge.s32.totalorder %v2709, 1677722
        %vm2854 = vcmp.ge.s32.totalorder %v2710, 1677722
        %vm2855 = vcmp.ge.s32.totalorder %v2711, 1677722
        %vm2856 = vcmp.ge.s32.totalorder %v2712, 1677722
        %vm2857 = vcmp.ge.s32.totalorder %v2713, 1677722
        %vm2858 = vcmp.ge.s32.totalorder %v2714, 1677722
        %vm2859 = vcmp.ge.s32.totalorder %v2715, 1677722
        %vm2860 = vcmp.ge.s32.totalorder %v2716, 1677722
        %vm2861 = vcmp.ge.s32.totalorder %v2717, 1677722
        %vm2862 = vcmp.ge.s32.totalorder %v2718, 1677722
        %vm2863 = vcmp.ge.s32.totalorder %v2719, 1677722
        %vm2864 = vcmp.ge.s32.totalorder %v2720, 1677722
        %vm2865 = vcmp.ge.s32.totalorder %v2721, 1677722
        %vm2866 = vcmp.ge.s32.totalorder %v2722, 1677722
        %vm2867 = vcmp.ge.s32.totalorder %v2723, 1677722
        %vm2868 = vcmp.ge.s32.totalorder %v2724, 1677722
        %vm2869 = vcmp.ge.s32.totalorder %v2725, 1677722
        %vm2870 = vcmp.ge.s32.totalorder %v2726, 1677722
        %vm2871 = vcmp.ge.s32.totalorder %v2727, 1677722
        %vm2872 = vcmp.ge.s32.totalorder %v2728, 1677722
        %vm2873 = vcmp.ge.s32.totalorder %v2729, 1677722
        %vm2874 = vcmp.ge.s32.totalorder %v2730, 1677722
        %vm2875 = vcmp.ge.s32.totalorder %v2731, 1677722
        %vm2876 = vcmp.ge.s32.totalorder %v2732, 1677722
        %vm2877 = vcmp.ge.s32.totalorder %v2733, 1677722
        %vm2878 = vcmp.ge.s32.totalorder %v2734, 1677722
        %vm2879 = vcmp.ge.s32.totalorder %v2735, 1677722
        %vm2880 = vcmp.ge.s32.totalorder %v2736, 1677722
        %vm2881 = vcmp.ge.s32.totalorder %v2737, 1677722
        %vm2882 = vcmp.ge.s32.totalorder %v2738, 1677722
        %vm2883 = vcmp.ge.s32.totalorder %v2739, 1677722
        %vm2884 = vcmp.ge.s32.totalorder %v2740, 1677722
        %vm2885 = vcmp.ge.s32.totalorder %v2741, 1677722
        %vm2886 = vcmp.ge.s32.totalorder %v2742, 1677722
        %vm2887 = vcmp.ge.s32.totalorder %v2743, 1677722
        %vm2888 = vcmp.ge.s32.totalorder %v2744, 1677722
        %vm2889 = vcmp.ge.s32.totalorder %v2745, 1677722
        %vm2890 = vcmp.ge.s32.totalorder %v2746, 1677722
        %vm2891 = vcmp.ge.s32.totalorder %v2747, 1677722
        %vm2892 = vcmp.ge.s32.totalorder %v2748, 1677722
        %vm2893 = vcmp.ge.s32.totalorder %v2749, 1677722
        %vm2894 = vcmp.ge.s32.totalorder %v2750, 1677722
        %vm2895 = vcmp.ge.s32.totalorder %v2751, 1677722
        %vm2896 = vcmp.ge.s32.totalorder %v2752, 1677722
        %vm2897 = vcmp.ge.s32.totalorder %v2753, 1677722
        %vm2898 = vcmp.ge.s32.totalorder %v2754, 1677722
        %vm2899 = vcmp.ge.s32.totalorder %v2755, 1677722
        %vm2900 = vcmp.ge.s32.totalorder %v2756, 1677722
        %vm2901 = vcmp.ge.s32.totalorder %v2757, 1677722
        %vm2902 = vcmp.ge.s32.totalorder %v2758, 1677722
        %vm2903 = vcmp.ge.s32.totalorder %v2759, 1677722
        %vm2904 = vcmp.ge.s32.totalorder %v2760, 1677722
        %vm2905 = vcmp.ge.s32.totalorder %v2761, 1677722
        %vm2906 = vcmp.ge.s32.totalorder %v2762, 1677722
        %vm2907 = vcmp.ge.s32.totalorder %v2763, 1677722
        %vm2908 = vcmp.ge.s32.totalorder %v2764, 1677722
        %vm2909 = vcmp.ge.s32.totalorder %v2765, 1677722
        %vm2910 = vcmp.ge.s32.totalorder %v2766, 1677722
        %vm2911 = vcmp.ge.s32.totalorder %v2767, 1677722
        %vm2912 = vcmp.ge.s32.totalorder %v2768, 1677722
        %vm2913 = vcmp.ge.s32.totalorder %v2769, 1677722
        %vm2914 = vcmp.ge.s32.totalorder %v2770, 1677722
        %vm2915 = vcmp.ge.s32.totalorder %v2771, 1677722
        %vm2916 = vcmp.ge.s32.totalorder %v2772, 1677722
        %vm2917 = vcmp.ge.s32.totalorder %v2773, 1677722
        %vm2918 = vcmp.ge.s32.totalorder %v2774, 1677722
        %vm2919 = vcmp.ge.s32.totalorder %v2775, 1677722
        %vm2920 = vcmp.ge.s32.totalorder %v2776, 1677722
        %vm2921 = vcmp.ge.s32.totalorder %v2777, 1677722
        %vm2922 = vcmp.ge.s32.totalorder %v2778, 1677722
        %vm2923 = vcmp.ge.s32.totalorder %v2779, 1677722
        %vm2924 = vcmp.ge.s32.totalorder %v2780, 1677722
        %vm2925 = vcmp.ge.s32.totalorder %v2781, 1677722
        %vm2926 = vcmp.ge.s32.totalorder %v2782, 1677722
        %vm2927 = vcmp.ge.s32.totalorder %v2783, 1677722
        %vm2928 = vcmp.ge.s32.totalorder %v2784, 1677722
        %vm2929 = vcmp.ge.s32.totalorder %v2785, 1677722
        %vm2930 = vcmp.ge.s32.totalorder %v2786, 1677722
        %vm2931 = vcmp.ge.s32.totalorder %v2787, 1677722
        %vm2932 = vcmp.ge.s32.totalorder %v2788, 1677722
        %vm2933 = vcmp.ge.s32.totalorder %v2789, 1677722
        %vm2934 = vcmp.ge.s32.totalorder %v2790, 1677722
        %vm2935 = vcmp.ge.s32.totalorder %v2791, 1677722
        %vm2936 = vcmp.ge.s32.totalorder %v2792, 1677722
        %vm2937 = vcmp.ge.s32.totalorder %v2793, 1677722
        %vm2938 = vcmp.ge.s32.totalorder %v2794, 1677722
        %vm2939 = vcmp.ge.s32.totalorder %v2795, 1677722
        %vm2940 = vcmp.ge.s32.totalorder %v2796, 1677722
        %vm2941 = vcmp.ge.s32.totalorder %v2797, 1677722
        %vm2942 = vcmp.ge.s32.totalorder %v2798, 1677722
        %vm2943 = vcmp.ge.s32.totalorder %v2799, 1677722
        %vm2944 = vcmp.ge.s32.totalorder %v2800, 1677722
        %vm2945 = vcmp.ge.s32.totalorder %v2801, 1677722
        %vm2946 = vcmp.ge.s32.totalorder %v2802, 1677722
        %vm2947 = vcmp.ge.s32.totalorder %v2803, 1677722
        %vm2948 = vcmp.ge.s32.totalorder %v2804, 1677722
        %vm2949 = vcmp.ge.s32.totalorder %v2805, 1677722
        %vm2950 = vcmp.ge.s32.totalorder %v2806, 1677722
        %vm2951 = vcmp.ge.s32.totalorder %v2807, 1677722
        %vm2952 = vcmp.ge.s32.totalorder %v2808, 1677722
        %vm2953 = vcmp.ge.s32.totalorder %v2809, 1677722
        %vm2954 = vcmp.ge.s32.totalorder %v2810, 1677722
        %vm2955 = vcmp.ge.s32.totalorder %v2811, 1677722
        %vm2956 = vcmp.ge.s32.totalorder %v2812, 1677722
        %vm2957 = vcmp.ge.s32.totalorder %v2813, 1677722
        %vm2958 = vcmp.ge.s32.totalorder %v2814, 1677722
        %vm2959 = vcmp.ge.s32.totalorder %v2815, 1677722
        %vm2960 = vcmp.ge.s32.totalorder %v2816, 1677722
        %vm2961 = vcmp.ge.s32.totalorder %v2817, 1677722
        %vm2962 = vcmp.ge.s32.totalorder %v2818, 1677722
        %vm2963 = vcmp.ge.s32.totalorder %v2819, 1677722
        %vm2964 = vcmp.ge.s32.totalorder %v2820, 1677722
        %vm2965 = vcmp.ge.s32.totalorder %v2821, 1677722
        %vm2966 = vcmp.ge.s32.totalorder %v2822, 1677722
        %vm2967 = vcmp.ge.s32.totalorder %v2823, 1677722
        %vm2968 = vcmp.ge.s32.totalorder %v2824, 1677722
        %vm2969 = vcmp.ge.s32.totalorder %v2825, 1677722
        %vm2970 = vcmp.ge.s32.totalorder %v2826, 1677722
        %vm2971 = vcmp.ge.s32.totalorder %v2827, 1677722
        %vm2972 = vcmp.ge.s32.totalorder %v2828, 1677722
        %vm2973 = vcmp.ge.s32.totalorder %v2829, 1677722
        %vm2974 = vcmp.ge.s32.totalorder %v2830, 1677722
        %vm2975 = vcmp.ge.s32.totalorder %v2831, 1677722
        %vm2976 = vcmp.ge.s32.totalorder %v2832, 1677722
        %vm2977 = vcmp.ge.s32.totalorder %v2833, 1677722
        %vm2978 = vcmp.ge.s32.totalorder %v2834, 1677722
        %vm2979 = vcmp.ge.s32.totalorder %v2835, 1677722
        %vm2980 = vcmp.ge.s32.totalorder %v2836, 1677722
        %vm2981 = vcmp.ge.s32.totalorder %v2837, 1677722
        %vm2982 = vcmp.ge.s32.totalorder %v2838, 1677722
        %vm2983 = vcmp.ge.s32.totalorder %v2839, 1677722
        %vm2984 = vcmp.ge.s32.totalorder %v2840, 1677722
        %vm2985 = vcmp.ge.s32.totalorder %v2841, 1677722
        %vm2986 = vcmp.ge.s32.totalorder %v2842, 1677722
        %vm2987 = vcmp.ge.s32.totalorder %v2843, 1677722
        %v2988 = vsel %vm2844, 1.1111112, 0.0
        %v2989 = vsel %vm2845, 1.1111112, 0.0
        %v2990 = vsel %vm2846, 1.1111112, 0.0
        %v2991 = vsel %vm2847, 1.1111112, 0.0
        %v2992 = vsel %vm2848, 1.1111112, 0.0
        %v2993 = vsel %vm2849, 1.1111112, 0.0
        %v2994 = vsel %vm2850, 1.1111112, 0.0
        %v2995 = vsel %vm2851, 1.1111112, 0.0
        %v2996 = vsel %vm2852, 1.1111112, 0.0
        %v2997 = vsel %vm2853, 1.1111112, 0.0
        %v2998 = vsel %vm2854, 1.1111112, 0.0
        %v2999 = vsel %vm2855, 1.1111112, 0.0
        %v3000 = vsel %vm2856, 1.1111112, 0.0
        %v3001 = vsel %vm2857, 1.1111112, 0.0
        %v3002 = vsel %vm2858, 1.1111112, 0.0
        %v3003 = vsel %vm2859, 1.1111112, 0.0
        %v3004 = vsel %vm2860, 1.1111112, 0.0
        %v3005 = vsel %vm2861, 1.1111112, 0.0
        %v3006 = vsel %vm2862, 1.1111112, 0.0
        %v3007 = vsel %vm2863, 1.1111112, 0.0
        %v3008 = vsel %vm2864, 1.1111112, 0.0
        %v3009 = vsel %vm2865, 1.1111112, 0.0
        %v3010 = vsel %vm2866, 1.1111112, 0.0
        %v3011 = vsel %vm2867, 1.1111112, 0.0
        %v3012 = vsel %vm2868, 1.1111112, 0.0
        %v3013 = vsel %vm2869, 1.1111112, 0.0
        %v3014 = vsel %vm2870, 1.1111112, 0.0
        %v3015 = vsel %vm2871, 1.1111112, 0.0
        %v3016 = vsel %vm2872, 1.1111112, 0.0
        %v3017 = vsel %vm2873, 1.1111112, 0.0
        %v3018 = vsel %vm2874, 1.1111112, 0.0
        %v3019 = vsel %vm2875, 1.1111112, 0.0
        %v3020 = vsel %vm2876, 1.1111112, 0.0
        %v3021 = vsel %vm2877, 1.1111112, 0.0
        %v3022 = vsel %vm2878, 1.1111112, 0.0
        %v3023 = vsel %vm2879, 1.1111112, 0.0
        %v3024 = vsel %vm2880, 1.1111112, 0.0
        %v3025 = vsel %vm2881, 1.1111112, 0.0
        %v3026 = vsel %vm2882, 1.1111112, 0.0
        %v3027 = vsel %vm2883, 1.1111112, 0.0
        %v3028 = vsel %vm2884, 1.1111112, 0.0
        %v3029 = vsel %vm2885, 1.1111112, 0.0
        %v3030 = vsel %vm2886, 1.1111112, 0.0
        %v3031 = vsel %vm2887, 1.1111112, 0.0
        %v3032 = vsel %vm2888, 1.1111112, 0.0
        %v3033 = vsel %vm2889, 1.1111112, 0.0
        %v3034 = vsel %vm2890, 1.1111112, 0.0
        %v3035 = vsel %vm2891, 1.1111112, 0.0
        %v3036 = vsel %vm2892, 1.1111112, 0.0
        %v3037 = vsel %vm2893, 1.1111112, 0.0
        %v3038 = vsel %vm2894, 1.1111112, 0.0
        %v3039 = vsel %vm2895, 1.1111112, 0.0
        %v3040 = vsel %vm2896, 1.1111112, 0.0
        %v3041 = vsel %vm2897, 1.1111112, 0.0
        %v3042 = vsel %vm2898, 1.1111112, 0.0
        %v3043 = vsel %vm2899, 1.1111112, 0.0
        %v3044 = vsel %vm2900, 1.1111112, 0.0
        %v3045 = vsel %vm2901, 1.1111112, 0.0
        %v3046 = vsel %vm2902, 1.1111112, 0.0
        %v3047 = vsel %vm2903, 1.1111112, 0.0
        %v3048 = vsel %vm2904, 1.1111112, 0.0
        %v3049 = vsel %vm2905, 1.1111112, 0.0
        %v3050 = vsel %vm2906, 1.1111112, 0.0
        %v3051 = vsel %vm2907, 1.1111112, 0.0
        %v3052 = vsel %vm2908, 1.1111112, 0.0
        %v3053 = vsel %vm2909, 1.1111112, 0.0
        %v3054 = vsel %vm2910, 1.1111112, 0.0
        %v3055 = vsel %vm2911, 1.1111112, 0.0
        %v3056 = vsel %vm2912, 1.1111112, 0.0
        %v3057 = vsel %vm2913, 1.1111112, 0.0
        %v3058 = vsel %vm2914, 1.1111112, 0.0
        %v3059 = vsel %vm2915, 1.1111112, 0.0
        %v3060 = vsel %vm2916, 1.1111112, 0.0
        %v3061 = vsel %vm2917, 1.1111112, 0.0
        %v3062 = vsel %vm2918, 1.1111112, 0.0
        %v3063 = vsel %vm2919, 1.1111112, 0.0
        %v3064 = vsel %vm2920, 1.1111112, 0.0
        %v3065 = vsel %vm2921, 1.1111112, 0.0
        %v3066 = vsel %vm2922, 1.1111112, 0.0
        %v3067 = vsel %vm2923, 1.1111112, 0.0
        %v3068 = vsel %vm2924, 1.1111112, 0.0
        %v3069 = vsel %vm2925, 1.1111112, 0.0
        %v3070 = vsel %vm2926, 1.1111112, 0.0
        %v3071 = vsel %vm2927, 1.1111112, 0.0
        %v3072 = vsel %vm2928, 1.1111112, 0.0
        %v3073 = vsel %vm2929, 1.1111112, 0.0
        %v3074 = vsel %vm2930, 1.1111112, 0.0
        %v3075 = vsel %vm2931, 1.1111112, 0.0
        %v3076 = vsel %vm2932, 1.1111112, 0.0
        %v3077 = vsel %vm2933, 1.1111112, 0.0
        %v3078 = vsel %vm2934, 1.1111112, 0.0
        %v3079 = vsel %vm2935, 1.1111112, 0.0
        %v3080 = vsel %vm2936, 1.1111112, 0.0
        %v3081 = vsel %vm2937, 1.1111112, 0.0
        %v3082 = vsel %vm2938, 1.1111112, 0.0
        %v3083 = vsel %vm2939, 1.1111112, 0.0
        %v3084 = vsel %vm2940, 1.1111112, 0.0
        %v3085 = vsel %vm2941, 1.1111112, 0.0
        %v3086 = vsel %vm2942, 1.1111112, 0.0
        %v3087 = vsel %vm2943, 1.1111112, 0.0
        %v3088 = vsel %vm2944, 1.1111112, 0.0
        %v3089 = vsel %vm2945, 1.1111112, 0.0
        %v3090 = vsel %vm2946, 1.1111112, 0.0
        %v3091 = vsel %vm2947, 1.1111112, 0.0
        %v3092 = vsel %vm2948, 1.1111112, 0.0
        %v3093 = vsel %vm2949, 1.1111112, 0.0
        %v3094 = vsel %vm2950, 1.1111112, 0.0
        %v3095 = vsel %vm2951, 1.1111112, 0.0
        %v3096 = vsel %vm2952, 1.1111112, 0.0
        %v3097 = vsel %vm2953, 1.1111112, 0.0
        %v3098 = vsel %vm2954, 1.1111112, 0.0
        %v3099 = vsel %vm2955, 1.1111112, 0.0
        %v3100 = vsel %vm2956, 1.1111112, 0.0
        %v3101 = vsel %vm2957, 1.1111112, 0.0
        %v3102 = vsel %vm2958, 1.1111112, 0.0
        %v3103 = vsel %vm2959, 1.1111112, 0.0
        %v3104 = vsel %vm2960, 1.1111112, 0.0
        %v3105 = vsel %vm2961, 1.1111112, 0.0
        %v3106 = vsel %vm2962, 1.1111112, 0.0
        %v3107 = vsel %vm2963, 1.1111112, 0.0
        %v3108 = vsel %vm2964, 1.1111112, 0.0
        %v3109 = vsel %vm2965, 1.1111112, 0.0
        %v3110 = vsel %vm2966, 1.1111112, 0.0
        %v3111 = vsel %vm2967, 1.1111112, 0.0
        %v3112 = vsel %vm2968, 1.1111112, 0.0
        %v3113 = vsel %vm2969, 1.1111112, 0.0
        %v3114 = vsel %vm2970, 1.1111112, 0.0
        %v3115 = vsel %vm2971, 1.1111112, 0.0
        %v3116 = vsel %vm2972, 1.1111112, 0.0
        %v3117 = vsel %vm2973, 1.1111112, 0.0
        %v3118 = vsel %vm2974, 1.1111112, 0.0
        %v3119 = vsel %vm2975, 1.1111112, 0.0
        %v3120 = vsel %vm2976, 1.1111112, 0.0
        %v3121 = vsel %vm2977, 1.1111112, 0.0
        %v3122 = vsel %vm2978, 1.1111112, 0.0
        %v3123 = vsel %vm2979, 1.1111112, 0.0
        %v3124 = vsel %vm2980, 1.1111112, 0.0
        %v3125 = vsel %vm2981, 1.1111112, 0.0
        %v3126 = vsel %vm2982, 1.1111112, 0.0
        %v3127 = vsel %vm2983, 1.1111112, 0.0
        %v3128 = vsel %vm2984, 1.1111112, 0.0
        %v3129 = vsel %vm2985, 1.1111112, 0.0
        %v3130 = vsel %vm2986, 1.1111112, 0.0
        %v3131 = vsel %vm2987, 1.1111112, 0.0
        %v3132 = vmul.f32 %v677, %v2988
        %v3133 = vmul.f32 %v679, %v2989
        %v3134 = vmul.f32 %v681, %v2990
        %v3135 = vmul.f32 %v683, %v2991
        %v3136 = vmul.f32 %v685, %v2992
        %v3137 = vmul.f32 %v687, %v2993
        %v3138 = vmul.f32 %v689, %v2994
        %v3139 = vmul.f32 %v691, %v2995
        %v3140 = vmul.f32 %v693, %v2996
        %v3141 = vmul.f32 %v695, %v2997
        %v3142 = vmul.f32 %v697, %v2998
        %v3143 = vmul.f32 %v699, %v2999
        %v3144 = vmul.f32 %v701, %v3000
        %v3145 = vmul.f32 %v703, %v3001
        %v3146 = vmul.f32 %v705, %v3002
        %v3147 = vmul.f32 %v707, %v3003
        %v3148 = vmul.f32 %v709, %v3004
        %v3149 = vmul.f32 %v711, %v3005
        %v3150 = vmul.f32 %v713, %v3006
        %v3151 = vmul.f32 %v715, %v3007
        %v3152 = vmul.f32 %v717, %v3008
        %v3153 = vmul.f32 %v719, %v3009
        %v3154 = vmul.f32 %v721, %v3010
        %v3155 = vmul.f32 %v723, %v3011
        %v3156 = vmul.f32 %v725, %v3012
        %v3157 = vmul.f32 %v727, %v3013
        %v3158 = vmul.f32 %v729, %v3014
        %v3159 = vmul.f32 %v731, %v3015
        %v3160 = vmul.f32 %v733, %v3016
        %v3161 = vmul.f32 %v735, %v3017
        %v3162 = vmul.f32 %v737, %v3018
        %v3163 = vmul.f32 %v739, %v3019
        %v3164 = vmul.f32 %v741, %v3020
        %v3165 = vmul.f32 %v743, %v3021
        %v3166 = vmul.f32 %v745, %v3022
        %v3167 = vmul.f32 %v747, %v3023
        %v3168 = vmul.f32 %v749, %v3024
        %v3169 = vmul.f32 %v751, %v3025
        %v3170 = vmul.f32 %v753, %v3026
        %v3171 = vmul.f32 %v755, %v3027
        %v3172 = vmul.f32 %v757, %v3028
        %v3173 = vmul.f32 %v759, %v3029
        %v3174 = vmul.f32 %v761, %v3030
        %v3175 = vmul.f32 %v763, %v3031
        %v3176 = vmul.f32 %v765, %v3032
        %v3177 = vmul.f32 %v767, %v3033
        %v3178 = vmul.f32 %v769, %v3034
        %v3179 = vmul.f32 %v771, %v3035
        %v3180 = vmul.f32 %v773, %v3036
        %v3181 = vmul.f32 %v775, %v3037
        %v3182 = vmul.f32 %v777, %v3038
        %v3183 = vmul.f32 %v779, %v3039
        %v3184 = vmul.f32 %v781, %v3040
        %v3185 = vmul.f32 %v783, %v3041
        %v3186 = vmul.f32 %v785, %v3042
        %v3187 = vmul.f32 %v787, %v3043
        %v3188 = vmul.f32 %v789, %v3044
        %v3189 = vmul.f32 %v791, %v3045
        %v3190 = vmul.f32 %v793, %v3046
        %v3191 = vmul.f32 %v795, %v3047
        %v3192 = vmul.f32 %v797, %v3048
        %v3193 = vmul.f32 %v799, %v3049
        %v3194 = vmul.f32 %v801, %v3050
        %v3195 = vmul.f32 %v803, %v3051
        %v3196 = vmul.f32 %v805, %v3052
        %v3197 = vmul.f32 %v807, %v3053
        %v3198 = vmul.f32 %v809, %v3054
        %v3199 = vmul.f32 %v811, %v3055
        %v3200 = vmul.f32 %v813, %v3056
        %v3201 = vmul.f32 %v815, %v3057
        %v3202 = vmul.f32 %v817, %v3058
        %v3203 = vmul.f32 %v819, %v3059
        %v3204 = vmul.f32 %v821, %v3060
        %v3205 = vmul.f32 %v823, %v3061
        %v3206 = vmul.f32 %v825, %v3062
        %v3207 = vmul.f32 %v827, %v3063
        %v3208 = vmul.f32 %v829, %v3064
        %v3209 = vmul.f32 %v831, %v3065
        %v3210 = vmul.f32 %v833, %v3066
        %v3211 = vmul.f32 %v835, %v3067
        %v3212 = vmul.f32 %v837, %v3068
        %v3213 = vmul.f32 %v839, %v3069
        %v3214 = vmul.f32 %v841, %v3070
        %v3215 = vmul.f32 %v843, %v3071
        %v3216 = vmul.f32 %v845, %v3072
        %v3217 = vmul.f32 %v847, %v3073
        %v3218 = vmul.f32 %v849, %v3074
        %v3219 = vmul.f32 %v851, %v3075
        %v3220 = vmul.f32 %v853, %v3076
        %v3221 = vmul.f32 %v855, %v3077
        %v3222 = vmul.f32 %v857, %v3078
        %v3223 = vmul.f32 %v859, %v3079
        %v3224 = vmul.f32 %v861, %v3080
        %v3225 = vmul.f32 %v863, %v3081
        %v3226 = vmul.f32 %v865, %v3082
        %v3227 = vmul.f32 %v867, %v3083
        %v3228 = vmul.f32 %v869, %v3084
        %v3229 = vmul.f32 %v871, %v3085
        %v3230 = vmul.f32 %v873, %v3086
        %v3231 = vmul.f32 %v875, %v3087
        %v3232 = vmul.f32 %v877, %v3088
        %v3233 = vmul.f32 %v879, %v3089
        %v3234 = vmul.f32 %v881, %v3090
        %v3235 = vmul.f32 %v883, %v3091
        %v3236 = vmul.f32 %v885, %v3092
        %v3237 = vmul.f32 %v887, %v3093
        %v3238 = vmul.f32 %v889, %v3094
        %v3239 = vmul.f32 %v891, %v3095
        %v3240 = vmul.f32 %v893, %v3096
        %v3241 = vmul.f32 %v895, %v3097
        %v3242 = vmul.f32 %v897, %v3098
        %v3243 = vmul.f32 %v899, %v3099
        %v3244 = vmul.f32 %v901, %v3100
        %v3245 = vmul.f32 %v903, %v3101
        %v3246 = vmul.f32 %v905, %v3102
        %v3247 = vmul.f32 %v907, %v3103
        %v3248 = vmul.f32 %v909, %v3104
        %v3249 = vmul.f32 %v911, %v3105
        %v3250 = vmul.f32 %v913, %v3106
        %v3251 = vmul.f32 %v915, %v3107
        %v3252 = vmul.f32 %v917, %v3108
        %v3253 = vmul.f32 %v919, %v3109
        %v3254 = vmul.f32 %v921, %v3110
        %v3255 = vmul.f32 %v923, %v3111
        %v3256 = vmul.f32 %v925, %v3112
        %v3257 = vmul.f32 %v927, %v3113
        %v3258 = vmul.f32 %v929, %v3114
        %v3259 = vmul.f32 %v931, %v3115
        %v3260 = vmul.f32 %v933, %v3116
        %v3261 = vmul.f32 %v935, %v3117
        %v3262 = vmul.f32 %v937, %v3118
        %v3263 = vmul.f32 %v939, %v3119
        %v3264 = vmul.f32 %v941, %v3120
        %v3265 = vmul.f32 %v943, %v3121
        %v3266 = vmul.f32 %v945, %v3122
        %v3267 = vmul.f32 %v947, %v3123
        %v3268 = vmul.f32 %v949, %v3124
        %v3269 = vmul.f32 %v951, %v3125
        %v3270 = vmul.f32 %v953, %v3126
        %v3271 = vmul.f32 %v955, %v3127
        %v3272 = vmul.f32 %v957, %v3128
        %v3273 = vmul.f32 %v959, %v3129
        %v3274 = vmul.f32 %v961, %v3130
        %v3275 = vmul.f32 %v963, %v3131
        %v3276 = vpack.c.bf16 %v3135, %v3132
        %v3277 = vpack.c.bf16 %v3136, %v3133
        %v3278 = vpack.c.bf16 %v3137, %v3134
        %v3279 = vpack.c.bf16 %v3141, %v3138
        %v3280 = vpack.c.bf16 %v3142, %v3139
        %v3281 = vpack.c.bf16 %v3143, %v3140
        %v3282 = vpack.c.bf16 %v3147, %v3144
        %v3283 = vpack.c.bf16 %v3148, %v3145
        %v3284 = vpack.c.bf16 %v3149, %v3146
        %v3285 = vpack.c.bf16 %v3153, %v3150
        %v3286 = vpack.c.bf16 %v3154, %v3151
        %v3287 = vpack.c.bf16 %v3155, %v3152
        %v3288 = vpack.c.bf16 %v3159, %v3156
        %v3289 = vpack.c.bf16 %v3160, %v3157
        %v3290 = vpack.c.bf16 %v3161, %v3158
        %v3291 = vpack.c.bf16 %v3165, %v3162
        %v3292 = vpack.c.bf16 %v3166, %v3163
        %v3293 = vpack.c.bf16 %v3167, %v3164
        %v3294 = vpack.c.bf16 %v3171, %v3168
        %v3295 = vpack.c.bf16 %v3172, %v3169
        %v3296 = vpack.c.bf16 %v3173, %v3170
        %v3297 = vpack.c.bf16 %v3177, %v3174
        %v3298 = vpack.c.bf16 %v3178, %v3175
        %v3299 = vpack.c.bf16 %v3179, %v3176
        %v3300 = vpack.c.bf16 %v3183, %v3180
        %v3301 = vpack.c.bf16 %v3184, %v3181
        %v3302 = vpack.c.bf16 %v3185, %v3182
        %v3303 = vpack.c.bf16 %v3189, %v3186
        %v3304 = vpack.c.bf16 %v3190, %v3187
        %v3305 = vpack.c.bf16 %v3191, %v3188
        %v3306 = vpack.c.bf16 %v3195, %v3192
        %v3307 = vpack.c.bf16 %v3196, %v3193
        %v3308 = vpack.c.bf16 %v3197, %v3194
        %v3309 = vpack.c.bf16 %v3201, %v3198
        %v3310 = vpack.c.bf16 %v3202, %v3199
        %v3311 = vpack.c.bf16 %v3203, %v3200
        %v3312 = vpack.c.bf16 %v3207, %v3204
        %v3313 = vpack.c.bf16 %v3208, %v3205
        %v3314 = vpack.c.bf16 %v3209, %v3206
        %v3315 = vpack.c.bf16 %v3213, %v3210
        %v3316 = vpack.c.bf16 %v3214, %v3211
        %v3317 = vpack.c.bf16 %v3215, %v3212
        %v3318 = vpack.c.bf16 %v3219, %v3216
        %v3319 = vpack.c.bf16 %v3220, %v3217
        %v3320 = vpack.c.bf16 %v3221, %v3218
        %v3321 = vpack.c.bf16 %v3225, %v3222
        %v3322 = vpack.c.bf16 %v3226, %v3223
        %v3323 = vpack.c.bf16 %v3227, %v3224
        %v3324 = vpack.c.bf16 %v3231, %v3228
        %v3325 = vpack.c.bf16 %v3232, %v3229
        %v3326 = vpack.c.bf16 %v3233, %v3230
        %v3327 = vpack.c.bf16 %v3237, %v3234
        %v3328 = vpack.c.bf16 %v3238, %v3235
        %v3329 = vpack.c.bf16 %v3239, %v3236
        %v3330 = vpack.c.bf16 %v3243, %v3240
        %v3331 = vpack.c.bf16 %v3244, %v3241
        %v3332 = vpack.c.bf16 %v3245, %v3242
        %v3333 = vpack.c.bf16 %v3249, %v3246
        %v3334 = vpack.c.bf16 %v3250, %v3247
        %v3335 = vpack.c.bf16 %v3251, %v3248
        %v3336 = vpack.c.bf16 %v3255, %v3252
        %v3337 = vpack.c.bf16 %v3256, %v3253
        %v3338 = vpack.c.bf16 %v3257, %v3254
        %v3339 = vpack.c.bf16 %v3261, %v3258
        %v3340 = vpack.c.bf16 %v3262, %v3259
        %v3341 = vpack.c.bf16 %v3263, %v3260
        %v3342 = vpack.c.bf16 %v3267, %v3264
        %v3343 = vpack.c.bf16 %v3268, %v3265
        %v3344 = vpack.c.bf16 %v3269, %v3266
        %v3345 = vpack.c.bf16 %v3273, %v3270
        %v3346 = vpack.c.bf16 %v3274, %v3271
        %v3347 = vpack.c.bf16 %v3275, %v3272
        %v3348 = vld [vmem:[%s185] sm:$0xff]
        %v3349 = vld [vmem:[%s185 + $0x8] sm:$0xff]
        %v3350 = vld [vmem:[%s185 + $0x10] sm:$0xff]
        %v3351 = vld [vmem:[%s185 + $0x18] sm:$0xff]
        %v3352 = vld [vmem:[%s185 + $0x20] sm:$0xff]
        %v3353 = vld [vmem:[%s185 + $0x28] sm:$0xff]
        %v3354 = vld [vmem:[%s185 + $0x30] sm:$0xff]
        %v3355 = vld [vmem:[%s185 + $0x38] sm:$0xff]
        %v3356 = vld [vmem:[%s185 + $0x40] sm:$0xff]
        %v3357 = vld [vmem:[%s185 + $0x48] sm:$0xff]
        %v3358 = vld [vmem:[%s185 + $0x50] sm:$0xff]
        %v3359 = vld [vmem:[%s185 + $0x58] sm:$0xff]
        %v3360 = vld [vmem:[%s185 + $0x60] sm:$0xff]
        %v3361 = vld [vmem:[%s185 + $0x68] sm:$0xff]
        %v3362 = vld [vmem:[%s185 + $0x70] sm:$0xff]
        %v3363 = vld [vmem:[%s185 + $0x78] sm:$0xff]
        %v3364 = vld [vmem:[%s185 + $0x80] sm:$0xff]
        %v3365 = vld [vmem:[%s185 + $0x88] sm:$0xff]
        %v3366 = vld [vmem:[%s185 + $0x90] sm:$0xff]
        %v3367 = vld [vmem:[%s185 + $0x98] sm:$0xff]
        %v3368 = vld [vmem:[%s185 + $0xa0] sm:$0xff]
        %v3369 = vld [vmem:[%s185 + $0xa8] sm:$0xff]
        %v3370 = vld [vmem:[%s185 + $0xb0] sm:$0xff]
        %v3371 = vld [vmem:[%s185 + $0xb8] sm:$0xff]
        %v3372 = vld [vmem:[%s185 + $0xc0] sm:$0xff]
        %v3373 = vld [vmem:[%s185 + $0xc8] sm:$0xff]
        %v3374 = vld [vmem:[%s185 + $0xd0] sm:$0xff]
        %v3375 = vld [vmem:[%s185 + $0xd8] sm:$0xff]
        %v3376 = vld [vmem:[%s185 + $0xe0] sm:$0xff]
        %v3377 = vld [vmem:[%s185 + $0xe8] sm:$0xff]
        %v3378 = vld [vmem:[%s185 + $0xf0] sm:$0xff]
        %v3379 = vld [vmem:[%s185 + $0xf8] sm:$0xff]
        %v3380 = vld [vmem:[%s185 + $0x100] sm:$0xff]
        %v3381 = vld [vmem:[%s185 + $0x108] sm:$0xff]
        %v3382 = vld [vmem:[%s185 + $0x110] sm:$0xff]
        %v3383 = vld [vmem:[%s185 + $0x118] sm:$0xff]
        %v3384 = vld [vmem:[%s185 + $0x120] sm:$0xff]
        %v3385 = vld [vmem:[%s185 + $0x128] sm:$0xff]
        %v3386 = vld [vmem:[%s185 + $0x130] sm:$0xff]
        %v3387 = vld [vmem:[%s185 + $0x138] sm:$0xff]
        %v3388 = vld [vmem:[%s185 + $0x140] sm:$0xff]
        %v3389 = vld [vmem:[%s185 + $0x148] sm:$0xff]
        %v3390 = vld [vmem:[%s185 + $0x150] sm:$0xff]
        %v3391 = vld [vmem:[%s185 + $0x158] sm:$0xff]
        %v3392 = vld [vmem:[%s185 + $0x160] sm:$0xff]
        %v3393 = vld [vmem:[%s185 + $0x168] sm:$0xff]
        %v3394 = vld [vmem:[%s185 + $0x170] sm:$0xff]
        %v3395 = vld [vmem:[%s185 + $0x178] sm:$0xff]
        %v3396 = vpack.c.bf16 %v3349, %v3348
        %v3397 = vpack.c.bf16 %v3351, %v3350
        %v3398 = vpack.c.bf16 %v3353, %v3352
        %v3399 = vpack.c.bf16 %v3355, %v3354
        %v3400 = vpack.c.bf16 %v3357, %v3356
        %v3401 = vpack.c.bf16 %v3359, %v3358
        %v3402 = vpack.c.bf16 %v3361, %v3360
        %v3403 = vpack.c.bf16 %v3363, %v3362
        %v3404 = vpack.c.bf16 %v3365, %v3364
        %v3405 = vpack.c.bf16 %v3367, %v3366
        %v3406 = vpack.c.bf16 %v3369, %v3368
        %v3407 = vpack.c.bf16 %v3371, %v3370
        %v3408 = vpack.c.bf16 %v3373, %v3372
        %v3409 = vpack.c.bf16 %v3375, %v3374
        %v3410 = vpack.c.bf16 %v3377, %v3376
        %v3411 = vpack.c.bf16 %v3379, %v3378
        %v3412 = vpack.c.bf16 %v3381, %v3380
        %v3413 = vpack.c.bf16 %v3383, %v3382
        %v3414 = vpack.c.bf16 %v3385, %v3384
        %v3415 = vpack.c.bf16 %v3387, %v3386
        %v3416 = vpack.c.bf16 %v3389, %v3388
        %v3417 = vpack.c.bf16 %v3391, %v3390
        %v3418 = vpack.c.bf16 %v3393, %v3392
        %v3419 = vpack.c.bf16 %v3395, %v3394
        %3420 = vmatprep.subr.bf16.mxu0 0
        %3421 = vmatpush1.bf16.msra.mxu0 %v3396
        %3422 = vmatprep.subr.bf16.mxu0 0
        %3423 = vmatpush1.bf16.msra.mxu0 %v3397
        %3424 = vmatprep.subr.bf16.mxu0 0
        %3425 = vmatpush1.bf16.msra.mxu0 %v3398
        %3426 = vmatprep.subr.bf16.mxu0 0
        %3427 = vmatpush1.bf16.msra.mxu0 %v3399
        %3428 = vmatprep.subr.bf16.mxu0 0
        %3429 = vmatpush1.bf16.msra.mxu0 %v3400
        %3430 = vmatprep.subr.bf16.mxu0 0
        %3431 = vmatpush1.bf16.msra.mxu0 %v3401
        %3432 = vmatprep.subr.bf16.mxu0 0
        %3433 = vmatpush1.bf16.msra.mxu0 %v3402
        %3434 = vmatprep.subr.bf16.mxu0 0
        %3435 = vmatpush1.bf16.msra.mxu0 %v3403
        %3436 = vmatprep.subr.bf16.mxu0 0
        %3437 = vmatpush1.bf16.msra.mxu0 %v3404
        %3438 = vmatprep.subr.bf16.mxu0 0
        %3439 = vmatpush1.bf16.msra.mxu0 %v3405
        %3440 = vmatprep.subr.bf16.mxu0 0
        %3441 = vmatpush1.bf16.msra.mxu0 %v3406
        %3442 = vmatprep.subr.bf16.mxu0 0
        %3443 = vmatpush1.bf16.msra.mxu0 %v3407
        %3444 = vmatprep.subr.bf16.mxu0 0
        %3445 = vmatpush1.bf16.msra.mxu0 %v3408
        %3446 = vmatprep.subr.bf16.mxu0 0
        %3447 = vmatpush1.bf16.msra.mxu0 %v3409
        %3448 = vmatprep.subr.bf16.mxu0 0
        %3449 = vmatpush1.bf16.msra.mxu0 %v3410
        %3450 = vmatprep.subr.bf16.mxu0 0
        %3451 = vmatpush1.bf16.msra.mxu0 %v3411
        %3452 = vmatprep.mubr.bf16.mxu0 %v3277
        %3453 = vmatmul.mubr.bf16.gmra.mrb[0].mxu0 %v3276
        %v3454 = vpop.f32.mrb[0].mxu0
        %v3455 = vadd.f32 0.0, %v3454
        %v3456 = vpop.f32.mrb[0].mxu0
        %v3457 = vpop.f32.mrb[0].mxu0
        %v3458 = vadd.f32 0.0, %v3457
        %v3459 = vpop.f32.mrb[0].mxu0
        %3460 = vmatprep.mubr.bf16.mxu0 %v3280
        %3461 = vmatmul.mubr.bf16.gmra.mrb[0].mxu0 %v3279
        %v3462 = vpop.f32.mrb[0].mxu0
        %v3463 = vadd.f32 0.0, %v3462
        %v3464 = vpop.f32.mrb[0].mxu0
        %v3465 = vpop.f32.mrb[0].mxu0
        %v3466 = vadd.f32 0.0, %v3465
        %v3467 = vpop.f32.mrb[0].mxu0
        %3468 = vmatprep.mubr.bf16.mxu0 %v3283
        %3469 = vmatmul.mubr.bf16.gmra.mrb[0].mxu0 %v3282
        %v3470 = vpop.f32.mrb[0].mxu0
        %v3471 = vadd.f32 0.0, %v3470
        %v3472 = vpop.f32.mrb[0].mxu0
        %v3473 = vpop.f32.mrb[0].mxu0
        %v3474 = vadd.f32 0.0, %v3473
        %v3475 = vpop.f32.mrb[0].mxu0
        %3476 = vmatprep.mubr.bf16.mxu0 %v3286
        %3477 = vmatmul.mubr.bf16.gmra.mrb[0].mxu0 %v3285
        %v3478 = vpop.f32.mrb[0].mxu0
        %v3479 = vadd.f32 0.0, %v3478
        %v3480 = vpop.f32.mrb[0].mxu0
        %v3481 = vpop.f32.mrb[0].mxu0
        %v3482 = vadd.f32 0.0, %v3481
        %v3483 = vpop.f32.mrb[0].mxu0
        %3484 = vmatprep.mubr.bf16.mxu0 %v3289
        %3485 = vmatmul.mubr.bf16.gmra.mrb[0].mxu0 %v3288
        %v3486 = vpop.f32.mrb[0].mxu0
        %v3487 = vadd.f32 0.0, %v3486
        %v3488 = vpop.f32.mrb[0].mxu0
        %v3489 = vpop.f32.mrb[0].mxu0
        %v3490 = vadd.f32 0.0, %v3489
        %v3491 = vpop.f32.mrb[0].mxu0
        %3492 = vmatprep.mubr.bf16.mxu0 %v3292
        %3493 = vmatmul.mubr.bf16.gmra.mrb[0].mxu0 %v3291
        %v3494 = vpop.f32.mrb[0].mxu0
        %v3495 = vadd.f32 0.0, %v3494
        %v3496 = vpop.f32.mrb[0].mxu0
        %v3497 = vpop.f32.mrb[0].mxu0
        %v3498 = vadd.f32 0.0, %v3497
        %v3499 = vpop.f32.mrb[0].mxu0
        %3500 = vmatprep.mubr.bf16.mxu0 %v3295
        %3501 = vmatmul.mubr.bf16.gmra.mrb[0].mxu0 %v3294
        %v3502 = vpop.f32.mrb[0].mxu0
        %v3503 = vadd.f32 0.0, %v3502
        %v3504 = vpop.f32.mrb[0].mxu0
        %v3505 = vpop.f32.mrb[0].mxu0
        %v3506 = vadd.f32 0.0, %v3505
        %v3507 = vpop.f32.mrb[0].mxu0
        %3508 = vmatprep.mubr.bf16.mxu0 %v3298
        %3509 = vmatmul.mubr.bf16.gmra.mrb[0].mxu0 %v3297
        %v3510 = vpop.f32.mrb[0].mxu0
        %v3511 = vadd.f32 0.0, %v3510
        %v3512 = vpop.f32.mrb[0].mxu0
        %v3513 = vpop.f32.mrb[0].mxu0
        %v3514 = vadd.f32 0.0, %v3513
        %v3515 = vpop.f32.mrb[0].mxu0
        %3516 = vmatprep.mubr.bf16.mxu0 %v3301
        %3517 = vmatmul.mubr.bf16.gmra.mrb[0].mxu0 %v3300
        %v3518 = vpop.f32.mrb[0].mxu0
        %v3519 = vadd.f32 0.0, %v3518
        %v3520 = vpop.f32.mrb[0].mxu0
        %v3521 = vpop.f32.mrb[0].mxu0
        %v3522 = vadd.f32 0.0, %v3521
        %v3523 = vpop.f32.mrb[0].mxu0
        %3524 = vmatprep.mubr.bf16.mxu0 %v3304
        %3525 = vmatmul.mubr.bf16.gmra.mrb[0].mxu0 %v3303
        %v3526 = vpop.f32.mrb[0].mxu0
        %v3527 = vadd.f32 0.0, %v3526
        %v3528 = vpop.f32.mrb[0].mxu0
        %v3529 = vpop.f32.mrb[0].mxu0
        %v3530 = vadd.f32 0.0, %v3529
        %v3531 = vpop.f32.mrb[0].mxu0
        %3532 = vmatprep.mubr.bf16.mxu0 %v3307
        %3533 = vmatmul.mubr.bf16.gmra.mrb[0].mxu0 %v3306
        %v3534 = vpop.f32.mrb[0].mxu0
        %v3535 = vadd.f32 0.0, %v3534
        %v3536 = vpop.f32.mrb[0].mxu0
        %v3537 = vpop.f32.mrb[0].mxu0
        %v3538 = vadd.f32 0.0, %v3537
        %v3539 = vpop.f32.mrb[0].mxu0
        %3540 = vmatprep.mubr.bf16.mxu0 %v3310
        %3541 = vmatmul.mubr.bf16.gmra.mrb[0].mxu0 %v3309
        %v3542 = vpop.f32.mrb[0].mxu0
        %v3543 = vadd.f32 0.0, %v3542
        %v3544 = vpop.f32.mrb[0].mxu0
        %v3545 = vpop.f32.mrb[0].mxu0
        %v3546 = vadd.f32 0.0, %v3545
        %v3547 = vpop.f32.mrb[0].mxu0
        %3548 = vmatprep.mubr.bf16.mxu0 %v3313
        %3549 = vmatmul.mubr.bf16.gmra.mrb[0].mxu0 %v3312
        %v3550 = vpop.f32.mrb[0].mxu0
        %v3551 = vadd.f32 0.0, %v3550
        %v3552 = vpop.f32.mrb[0].mxu0
        %v3553 = vpop.f32.mrb[0].mxu0
        %v3554 = vadd.f32 0.0, %v3553
        %v3555 = vpop.f32.mrb[0].mxu0
        %3556 = vmatprep.mubr.bf16.mxu0 %v3316
        %3557 = vmatmul.mubr.bf16.gmra.mrb[0].mxu0 %v3315
        %v3558 = vpop.f32.mrb[0].mxu0
        %v3559 = vadd.f32 0.0, %v3558
        %v3560 = vpop.f32.mrb[0].mxu0
        %v3561 = vpop.f32.mrb[0].mxu0
        %v3562 = vadd.f32 0.0, %v3561
        %v3563 = vpop.f32.mrb[0].mxu0
        %3564 = vmatprep.mubr.bf16.mxu0 %v3319
        %3565 = vmatmul.mubr.bf16.gmra.mrb[0].mxu0 %v3318
        %v3566 = vpop.f32.mrb[0].mxu0
        %v3567 = vadd.f32 0.0, %v3566
        %v3568 = vpop.f32.mrb[0].mxu0
        %v3569 = vpop.f32.mrb[0].mxu0
        %v3570 = vadd.f32 0.0, %v3569
        %v3571 = vpop.f32.mrb[0].mxu0
        %3572 = vmatprep.mubr.bf16.mxu0 %v3322
        %3573 = vmatmul.mubr.bf16.gmra.mrb[0].mxu0 %v3321
        %v3574 = vpop.f32.mrb[0].mxu0
        %v3575 = vadd.f32 0.0, %v3574
        %v3576 = vpop.f32.mrb[0].mxu0
        %v3577 = vpop.f32.mrb[0].mxu0
        %v3578 = vadd.f32 0.0, %v3577
        %v3579 = vpop.f32.mrb[0].mxu0
        %3580 = vmatprep.mubr.bf16.mxu0 %v3325
        %3581 = vmatmul.mubr.bf16.gmra.mrb[0].mxu0 %v3324
        %v3582 = vpop.f32.mrb[0].mxu0
        %v3583 = vadd.f32 0.0, %v3582
        %v3584 = vpop.f32.mrb[0].mxu0
        %v3585 = vpop.f32.mrb[0].mxu0
        %v3586 = vadd.f32 0.0, %v3585
        %v3587 = vpop.f32.mrb[0].mxu0
        %3588 = vmatprep.mubr.bf16.mxu0 %v3328
        %3589 = vmatmul.mubr.bf16.gmra.mrb[0].mxu0 %v3327
        %v3590 = vpop.f32.mrb[0].mxu0
        %v3591 = vadd.f32 0.0, %v3590
        %v3592 = vpop.f32.mrb[0].mxu0
        %v3593 = vpop.f32.mrb[0].mxu0
        %v3594 = vadd.f32 0.0, %v3593
        %v3595 = vpop.f32.mrb[0].mxu0
        %3596 = vmatprep.mubr.bf16.mxu0 %v3331
        %3597 = vmatmul.mubr.bf16.gmra.mrb[0].mxu0 %v3330
        %v3598 = vpop.f32.mrb[0].mxu0
        %v3599 = vadd.f32 0.0, %v3598
        %v3600 = vpop.f32.mrb[0].mxu0
        %v3601 = vpop.f32.mrb[0].mxu0
        %v3602 = vadd.f32 0.0, %v3601
        %v3603 = vpop.f32.mrb[0].mxu0
        %3604 = vmatprep.mubr.bf16.mxu0 %v3334
        %3605 = vmatmul.mubr.bf16.gmra.mrb[0].mxu0 %v3333
        %v3606 = vpop.f32.mrb[0].mxu0
        %v3607 = vadd.f32 0.0, %v3606
        %v3608 = vpop.f32.mrb[0].mxu0
        %v3609 = vpop.f32.mrb[0].mxu0
        %v3610 = vadd.f32 0.0, %v3609
        %v3611 = vpop.f32.mrb[0].mxu0
        %3612 = vmatprep.mubr.bf16.mxu0 %v3337
        %3613 = vmatmul.mubr.bf16.gmra.mrb[0].mxu0 %v3336
        %v3614 = vpop.f32.mrb[0].mxu0
        %v3615 = vadd.f32 0.0, %v3614
        %v3616 = vpop.f32.mrb[0].mxu0
        %v3617 = vpop.f32.mrb[0].mxu0
        %v3618 = vadd.f32 0.0, %v3617
        %v3619 = vpop.f32.mrb[0].mxu0
        %3620 = vmatprep.mubr.bf16.mxu0 %v3340
        %3621 = vmatmul.mubr.bf16.gmra.mrb[0].mxu0 %v3339
        %v3622 = vpop.f32.mrb[0].mxu0
        %v3623 = vadd.f32 0.0, %v3622
        %v3624 = vpop.f32.mrb[0].mxu0
        %v3625 = vpop.f32.mrb[0].mxu0
        %v3626 = vadd.f32 0.0, %v3625
        %v3627 = vpop.f32.mrb[0].mxu0
        %3628 = vmatprep.mubr.bf16.mxu0 %v3343
        %3629 = vmatmul.mubr.bf16.gmra.mrb[0].mxu0 %v3342
        %v3630 = vpop.f32.mrb[0].mxu0
        %v3631 = vadd.f32 0.0, %v3630
        %v3632 = vpop.f32.mrb[0].mxu0
        %v3633 = vpop.f32.mrb[0].mxu0
        %v3634 = vadd.f32 0.0, %v3633
        %v3635 = vpop.f32.mrb[0].mxu0
        %3636 = vmatprep.mubr.bf16.mxu0 %v3346
        %3637 = vmatmul.mubr.bf16.gmra.mrb[0].mxu0 %v3345
        %v3638 = vpop.f32.mrb[0].mxu0
        %v3639 = vadd.f32 0.0, %v3638
        %v3640 = vpop.f32.mrb[0].mxu0
        %v3641 = vpop.f32.mrb[0].mxu0
        %v3642 = vadd.f32 0.0, %v3641
        %v3643 = vpop.f32.mrb[0].mxu0
        %3644 = vdwg.mxu0
        %3645 = vmatprep.subr.bf16.mxu0 0
        %3646 = vmatpush1.bf16.msra.mxu0 %v3412
        %3647 = vmatprep.subr.bf16.mxu0 0
        %3648 = vmatpush1.bf16.msra.mxu0 %v3413
        %3649 = vmatprep.subr.bf16.mxu0 0
        %3650 = vmatpush1.bf16.msra.mxu0 %v3414
        %3651 = vmatprep.subr.bf16.mxu0 0
        %3652 = vmatpush1.bf16.msra.mxu0 %v3415
        %3653 = vmatprep.subr.bf16.mxu0 0
        %3654 = vmatpush1.bf16.msra.mxu0 %v3416
        %3655 = vmatprep.subr.bf16.mxu0 0
        %3656 = vmatpush1.bf16.msra.mxu0 %v3417
        %3657 = vmatprep.subr.bf16.mxu0 0
        %3658 = vmatpush1.bf16.msra.mxu0 %v3418
        %3659 = vmatprep.subr.bf16.mxu0 0
        %3660 = vmatpush1.bf16.msra.mxu0 %v3419
        %3661 = vmatprep.subr.bf16.mxu0 0
        %3662 = vmatpush1.bf16.msra.mxu0 0
        %3663 = vmatprep.subr.bf16.mxu0 0
        %3664 = vmatpush1.bf16.msra.mxu0 0
        %3665 = vmatprep.subr.bf16.mxu0 0
        %3666 = vmatpush1.bf16.msra.mxu0 0
        %3667 = vmatprep.subr.bf16.mxu0 0
        %3668 = vmatpush1.bf16.msra.mxu0 0
        %3669 = vmatprep.subr.bf16.mxu0 0
        %3670 = vmatpush1.bf16.msra.mxu0 0
        %3671 = vmatprep.subr.bf16.mxu0 0
        %3672 = vmatpush1.bf16.msra.mxu0 0
        %3673 = vmatprep.subr.bf16.mxu0 0
        %3674 = vmatpush1.bf16.msra.mxu0 0
        %3675 = vmatprep.subr.bf16.mxu0 0
        %3676 = vmatpush1.bf16.msra.mxu0 0
        %3677 = vmatprep.mubr.bf16.mxu0 0
        %3678 = vmatmul.mubr.bf16.gmra.mrb[0].mxu0 %v3278
        %v3679 = vpop.f32.mrb[0].mxu0
        %v3680 = vadd.f32 %v3455, %v3679
        %v3681 = vpop.f32.mrb[0].mxu0
        %v3682 = vpop.f32.mrb[0].mxu0
        %v3683 = vadd.f32 %v3458, %v3682
        %v3684 = vpop.f32.mrb[0].mxu0
        %3685 = vmatprep.mubr.bf16.mxu0 0
        %3686 = vmatmul.mubr.bf16.gmra.mrb[0].mxu0 %v3281
        %v3687 = vpop.f32.mrb[0].mxu0
        %v3688 = vadd.f32 %v3463, %v3687
        %v3689 = vpop.f32.mrb[0].mxu0
        %v3690 = vpop.f32.mrb[0].mxu0
        %v3691 = vadd.f32 %v3466, %v3690
        %v3692 = vpop.f32.mrb[0].mxu0
        %3693 = vmatprep.mubr.bf16.mxu0 0
        %3694 = vmatmul.mubr.bf16.gmra.mrb[0].mxu0 %v3284
        %v3695 = vpop.f32.mrb[0].mxu0
        %v3696 = vadd.f32 %v3471, %v3695
        %v3697 = vpop.f32.mrb[0].mxu0
        %v3698 = vpop.f32.mrb[0].mxu0
        %v3699 = vadd.f32 %v3474, %v3698
        %v3700 = vpop.f32.mrb[0].mxu0
        %3701 = vmatprep.mubr.bf16.mxu0 0
        %3702 = vmatmul.mubr.bf16.gmra.mrb[0].mxu0 %v3287
        %v3703 = vpop.f32.mrb[0].mxu0
        %v3704 = vadd.f32 %v3479, %v3703
        %v3705 = vpop.f32.mrb[0].mxu0
        %v3706 = vpop.f32.mrb[0].mxu0
        %v3707 = vadd.f32 %v3482, %v3706
        %v3708 = vpop.f32.mrb[0].mxu0
        %3709 = vmatprep.mubr.bf16.mxu0 0
        %3710 = vmatmul.mubr.bf16.gmra.mrb[0].mxu0 %v3290
        %v3711 = vpop.f32.mrb[0].mxu0
        %v3712 = vadd.f32 %v3487, %v3711
        %v3713 = vpop.f32.mrb[0].mxu0
        %v3714 = vpop.f32.mrb[0].mxu0
        %v3715 = vadd.f32 %v3490, %v3714
        %v3716 = vpop.f32.mrb[0].mxu0
        %3717 = vmatprep.mubr.bf16.mxu0 0
        %3718 = vmatmul.mubr.bf16.gmra.mrb[0].mxu0 %v3293
        %v3719 = vpop.f32.mrb[0].mxu0
        %v3720 = vadd.f32 %v3495, %v3719
        %v3721 = vpop.f32.mrb[0].mxu0
        %v3722 = vpop.f32.mrb[0].mxu0
        %v3723 = vadd.f32 %v3498, %v3722
        %v3724 = vpop.f32.mrb[0].mxu0
        %3725 = vmatprep.mubr.bf16.mxu0 0
        %3726 = vmatmul.mubr.bf16.gmra.mrb[0].mxu0 %v3296
        %v3727 = vpop.f32.mrb[0].mxu0
        %v3728 = vadd.f32 %v3503, %v3727
        %v3729 = vpop.f32.mrb[0].mxu0
        %v3730 = vpop.f32.mrb[0].mxu0
        %v3731 = vadd.f32 %v3506, %v3730
        %v3732 = vpop.f32.mrb[0].mxu0
        %3733 = vmatprep.mubr.bf16.mxu0 0
        %3734 = vmatmul.mubr.bf16.gmra.mrb[0].mxu0 %v3299
        %v3735 = vpop.f32.mrb[0].mxu0
        %v3736 = vadd.f32 %v3511, %v3735
        %v3737 = vpop.f32.mrb[0].mxu0
        %v3738 = vpop.f32.mrb[0].mxu0
        %v3739 = vadd.f32 %v3514, %v3738
        %v3740 = vpop.f32.mrb[0].mxu0
        %3741 = vmatprep.mubr.bf16.mxu0 0
        %3742 = vmatmul.mubr.bf16.gmra.mrb[0].mxu0 %v3302
        %v3743 = vpop.f32.mrb[0].mxu0
        %v3744 = vadd.f32 %v3519, %v3743
        %v3745 = vpop.f32.mrb[0].mxu0
        %v3746 = vpop.f32.mrb[0].mxu0
        %v3747 = vadd.f32 %v3522, %v3746
        %v3748 = vpop.f32.mrb[0].mxu0
        %3749 = vmatprep.mubr.bf16.mxu0 0
        %3750 = vmatmul.mubr.bf16.gmra.mrb[0].mxu0 %v3305
        %v3751 = vpop.f32.mrb[0].mxu0
        %v3752 = vadd.f32 %v3527, %v3751
        %v3753 = vpop.f32.mrb[0].mxu0
        %v3754 = vpop.f32.mrb[0].mxu0
        %v3755 = vadd.f32 %v3530, %v3754
        %v3756 = vpop.f32.mrb[0].mxu0
        %3757 = vmatprep.mubr.bf16.mxu0 0
        %3758 = vmatmul.mubr.bf16.gmra.mrb[0].mxu0 %v3308
        %v3759 = vpop.f32.mrb[0].mxu0
        %v3760 = vadd.f32 %v3535, %v3759
        %v3761 = vpop.f32.mrb[0].mxu0
        %v3762 = vpop.f32.mrb[0].mxu0
        %v3763 = vadd.f32 %v3538, %v3762
        %v3764 = vpop.f32.mrb[0].mxu0
        %3765 = vmatprep.mubr.bf16.mxu0 0
        %3766 = vmatmul.mubr.bf16.gmra.mrb[0].mxu0 %v3311
        %v3767 = vpop.f32.mrb[0].mxu0
        %v3768 = vadd.f32 %v3543, %v3767
        %v3769 = vpop.f32.mrb[0].mxu0
        %v3770 = vpop.f32.mrb[0].mxu0
        %v3771 = vadd.f32 %v3546, %v3770
        %v3772 = vpop.f32.mrb[0].mxu0
        %3773 = vmatprep.mubr.bf16.mxu0 0
        %3774 = vmatmul.mubr.bf16.gmra.mrb[0].mxu0 %v3314
        %v3775 = vpop.f32.mrb[0].mxu0
        %v3776 = vadd.f32 %v3551, %v3775
        %v3777 = vpop.f32.mrb[0].mxu0
        %v3778 = vpop.f32.mrb[0].mxu0
        %v3779 = vadd.f32 %v3554, %v3778
        %v3780 = vpop.f32.mrb[0].mxu0
        %3781 = vmatprep.mubr.bf16.mxu0 0
        %3782 = vmatmul.mubr.bf16.gmra.mrb[0].mxu0 %v3317
        %v3783 = vpop.f32.mrb[0].mxu0
        %v3784 = vadd.f32 %v3559, %v3783
        %v3785 = vpop.f32.mrb[0].mxu0
        %v3786 = vpop.f32.mrb[0].mxu0
        %v3787 = vadd.f32 %v3562, %v3786
        %v3788 = vpop.f32.mrb[0].mxu0
        %3789 = vmatprep.mubr.bf16.mxu0 0
        %3790 = vmatmul.mubr.bf16.gmra.mrb[0].mxu0 %v3320
        %v3791 = vpop.f32.mrb[0].mxu0
        %v3792 = vadd.f32 %v3567, %v3791
        %v3793 = vpop.f32.mrb[0].mxu0
        %v3794 = vpop.f32.mrb[0].mxu0
        %v3795 = vadd.f32 %v3570, %v3794
        %v3796 = vpop.f32.mrb[0].mxu0
        %3797 = vmatprep.mubr.bf16.mxu0 0
        %3798 = vmatmul.mubr.bf16.gmra.mrb[0].mxu0 %v3323
        %v3799 = vpop.f32.mrb[0].mxu0
        %v3800 = vadd.f32 %v3575, %v3799
        %v3801 = vpop.f32.mrb[0].mxu0
        %v3802 = vpop.f32.mrb[0].mxu0
        %v3803 = vadd.f32 %v3578, %v3802
        %v3804 = vpop.f32.mrb[0].mxu0
        %3805 = vmatprep.mubr.bf16.mxu0 0
        %3806 = vmatmul.mubr.bf16.gmra.mrb[0].mxu0 %v3326
        %v3807 = vpop.f32.mrb[0].mxu0
        %v3808 = vadd.f32 %v3583, %v3807
        %v3809 = vpop.f32.mrb[0].mxu0
        %v3810 = vpop.f32.mrb[0].mxu0
        %v3811 = vadd.f32 %v3586, %v3810
        %v3812 = vpop.f32.mrb[0].mxu0
        %3813 = vmatprep.mubr.bf16.mxu0 0
        %3814 = vmatmul.mubr.bf16.gmra.mrb[0].mxu0 %v3329
        %v3815 = vpop.f32.mrb[0].mxu0
        %v3816 = vadd.f32 %v3591, %v3815
        %v3817 = vpop.f32.mrb[0].mxu0
        %v3818 = vpop.f32.mrb[0].mxu0
        %v3819 = vadd.f32 %v3594, %v3818
        %v3820 = vpop.f32.mrb[0].mxu0
        %3821 = vmatprep.mubr.bf16.mxu0 0
        %3822 = vmatmul.mubr.bf16.gmra.mrb[0].mxu0 %v3332
        %v3823 = vpop.f32.mrb[0].mxu0
        %v3824 = vadd.f32 %v3599, %v3823
        %v3825 = vpop.f32.mrb[0].mxu0
        %v3826 = vpop.f32.mrb[0].mxu0
        %v3827 = vadd.f32 %v3602, %v3826
        %v3828 = vpop.f32.mrb[0].mxu0
        %3829 = vmatprep.mubr.bf16.mxu0 0
        %3830 = vmatmul.mubr.bf16.gmra.mrb[0].mxu0 %v3335
        %v3831 = vpop.f32.mrb[0].mxu0
        %v3832 = vadd.f32 %v3607, %v3831
        %v3833 = vpop.f32.mrb[0].mxu0
        %v3834 = vpop.f32.mrb[0].mxu0
        %v3835 = vadd.f32 %v3610, %v3834
        %v3836 = vpop.f32.mrb[0].mxu0
        %3837 = vmatprep.mubr.bf16.mxu0 0
        %3838 = vmatmul.mubr.bf16.gmra.mrb[0].mxu0 %v3338
        %v3839 = vpop.f32.mrb[0].mxu0
        %v3840 = vadd.f32 %v3615, %v3839
        %v3841 = vpop.f32.mrb[0].mxu0
        %v3842 = vpop.f32.mrb[0].mxu0
        %v3843 = vadd.f32 %v3618, %v3842
        %v3844 = vpop.f32.mrb[0].mxu0
        %3845 = vmatprep.mubr.bf16.mxu0 0
        %3846 = vmatmul.mubr.bf16.gmra.mrb[0].mxu0 %v3341
        %v3847 = vpop.f32.mrb[0].mxu0
        %v3848 = vadd.f32 %v3623, %v3847
        %v3849 = vpop.f32.mrb[0].mxu0
        %v3850 = vpop.f32.mrb[0].mxu0
        %v3851 = vadd.f32 %v3626, %v3850
        %v3852 = vpop.f32.mrb[0].mxu0
        %3853 = vmatprep.mubr.bf16.mxu0 0
        %3854 = vmatmul.mubr.bf16.gmra.mrb[0].mxu0 %v3344
        %v3855 = vpop.f32.mrb[0].mxu0
        %v3856 = vadd.f32 %v3631, %v3855
        %v3857 = vpop.f32.mrb[0].mxu0
        %v3858 = vpop.f32.mrb[0].mxu0
        %v3859 = vadd.f32 %v3634, %v3858
        %v3860 = vpop.f32.mrb[0].mxu0
        %3861 = vmatprep.mubr.bf16.mxu0 0
        %3862 = vmatmul.mubr.bf16.gmra.mrb[0].mxu0 %v3347
        %v3863 = vpop.f32.mrb[0].mxu0
        %v3864 = vadd.f32 %v3639, %v3863
        %v3865 = vpop.f32.mrb[0].mxu0
        %v3866 = vpop.f32.mrb[0].mxu0
        %v3867 = vadd.f32 %v3642, %v3866
        %v3868 = vpop.f32.mrb[0].mxu0
        %3869 = vdwg.mxu0
        %v3870 = vrcp.pop %v967
        %v3871 = vrcp.pop %v971
        %v3872 = vrcp.pop %v975
        %v3873 = vrcp.pop %v979
        %v3874 = vrcp.pop %v983
        %v3875 = vrcp.pop %v987
        %v3876 = vrcp.pop %v991
        %v3877 = vrcp.pop %v995
        %v3878 = vrcp.pop %v999
        %v3879 = vrcp.pop %v1003
        %v3880 = vrcp.pop %v1007
        %v3881 = vrcp.pop %v1011
        %v3882 = vrcp.pop %v1015
        %v3883 = vrcp.pop %v1019
        %v3884 = vrcp.pop %v1023
        %v3885 = vrcp.pop %v1027
        %v3886 = vrcp.pop %v1031
        %v3887 = vrcp.pop %v1035
        %v3888 = vrcp.pop %v1039
        %v3889 = vrcp.pop %v1043
        %v3890 = vrcp.pop %v1047
        %v3891 = vrcp.pop %v1051
        %v3892 = vrcp.pop %v1055
        %v3893 = vrcp.pop %v1059
        %v3894 = vrcp.pop %v1063
        %v3895 = vrcp.pop %v1067
        %v3896 = vrcp.pop %v1071
        %v3897 = vrcp.pop %v1075
        %v3898 = vrcp.pop %v1079
        %v3899 = vrcp.pop %v1083
        %v3900 = vrcp.pop %v1087
        %v3901 = vrcp.pop %v1091
        %v3902 = vrcp.pop %v1095
        %v3903 = vrcp.pop %v1099
        %v3904 = vrcp.pop %v1103
        %v3905 = vrcp.pop %v1107
        %v3906 = vrcp.pop %v1111
        %v3907 = vrcp.pop %v1115
        %v3908 = vrcp.pop %v1119
        %v3909 = vrcp.pop %v1123
        %v3910 = vrcp.pop %v1127
        %v3911 = vrcp.pop %v1131
        %v3912 = vrcp.pop %v1135
        %v3913 = vrcp.pop %v1139
        %v3914 = vrcp.pop %v1143
        %v3915 = vrcp.pop %v1147
        %v3916 = vrcp.pop %v1151
        %v3917 = vrcp.pop %v1155
        %v3918 = vmul.f32 %v3680, %v3870
        %v3919 = vmul.f32 %v3683, %v3871
        %v3920 = vmul.f32 %v3688, %v3872
        %v3921 = vmul.f32 %v3691, %v3873
        %v3922 = vmul.f32 %v3696, %v3874
        %v3923 = vmul.f32 %v3699, %v3875
        %v3924 = vmul.f32 %v3704, %v3876
        %v3925 = vmul.f32 %v3707, %v3877
        %v3926 = vmul.f32 %v3712, %v3878
        %v3927 = vmul.f32 %v3715, %v3879
        %v3928 = vmul.f32 %v3720, %v3880
        %v3929 = vmul.f32 %v3723, %v3881
        %v3930 = vmul.f32 %v3728, %v3882
        %v3931 = vmul.f32 %v3731, %v3883
        %v3932 = vmul.f32 %v3736, %v3884
        %v3933 = vmul.f32 %v3739, %v3885
        %v3934 = vmul.f32 %v3744, %v3886
        %v3935 = vmul.f32 %v3747, %v3887
        %v3936 = vmul.f32 %v3752, %v3888
        %v3937 = vmul.f32 %v3755, %v3889
        %v3938 = vmul.f32 %v3760, %v3890
        %v3939 = vmul.f32 %v3763, %v3891
        %v3940 = vmul.f32 %v3768, %v3892
        %v3941 = vmul.f32 %v3771, %v3893
        %v3942 = vmul.f32 %v3776, %v3894
        %v3943 = vmul.f32 %v3779, %v3895
        %v3944 = vmul.f32 %v3784, %v3896
        %v3945 = vmul.f32 %v3787, %v3897
        %v3946 = vmul.f32 %v3792, %v3898
        %v3947 = vmul.f32 %v3795, %v3899
        %v3948 = vmul.f32 %v3800, %v3900
        %v3949 = vmul.f32 %v3803, %v3901
        %v3950 = vmul.f32 %v3808, %v3902
        %v3951 = vmul.f32 %v3811, %v3903
        %v3952 = vmul.f32 %v3816, %v3904
        %v3953 = vmul.f32 %v3819, %v3905
        %v3954 = vmul.f32 %v3824, %v3906
        %v3955 = vmul.f32 %v3827, %v3907
        %v3956 = vmul.f32 %v3832, %v3908
        %v3957 = vmul.f32 %v3835, %v3909
        %v3958 = vmul.f32 %v3840, %v3910
        %v3959 = vmul.f32 %v3843, %v3911
        %v3960 = vmul.f32 %v3848, %v3912
        %v3961 = vmul.f32 %v3851, %v3913
        %v3962 = vmul.f32 %v3856, %v3914
        %v3963 = vmul.f32 %v3859, %v3915
        %v3964 = vmul.f32 %v3864, %v3916
        %v3965 = vmul.f32 %v3867, %v3917
        %vm3966 = vcmask 523264
        %3967 = vst.msk [vmem:[%s192] sm:$0xff] %vm3966, %v3918
        %3968 = vst.msk [vmem:[%s192 + $0x8] sm:$0xff] %vm3966, %v3919
        %3969 = vst.msk [vmem:[%s192 + $0x10] sm:$0xff] %vm3966, %v3920
        %3970 = vst.msk [vmem:[%s192 + $0x18] sm:$0xff] %vm3966, %v3921
        %3971 = vst.msk [vmem:[%s192 + $0x20] sm:$0xff] %vm3966, %v3922
        %3972 = vst.msk [vmem:[%s192 + $0x28] sm:$0xff] %vm3966, %v3923
        %3973 = vst.msk [vmem:[%s192 + $0x30] sm:$0xff] %vm3966, %v3924
        %3974 = vst.msk [vmem:[%s192 + $0x38] sm:$0xff] %vm3966, %v3925
        %3975 = vst.msk [vmem:[%s192 + $0x40] sm:$0xff] %vm3966, %v3926
        %3976 = vst.msk [vmem:[%s192 + $0x48] sm:$0xff] %vm3966, %v3927
        %3977 = vst.msk [vmem:[%s192 + $0x50] sm:$0xff] %vm3966, %v3928
        %3978 = vst.msk [vmem:[%s192 + $0x58] sm:$0xff] %vm3966, %v3929
        %3979 = vst.msk [vmem:[%s192 + $0x60] sm:$0xff] %vm3966, %v3930
        %3980 = vst.msk [vmem:[%s192 + $0x68] sm:$0xff] %vm3966, %v3931
        %3981 = vst.msk [vmem:[%s192 + $0x70] sm:$0xff] %vm3966, %v3932
        %3982 = vst.msk [vmem:[%s192 + $0x78] sm:$0xff] %vm3966, %v3933
        %3983 = vst.msk [vmem:[%s192 + $0x80] sm:$0xff] %vm3966, %v3934
        %3984 = vst.msk [vmem:[%s192 + $0x88] sm:$0xff] %vm3966, %v3935
        %3985 = vst.msk [vmem:[%s192 + $0x90] sm:$0xff] %vm3966, %v3936
        %3986 = vst.msk [vmem:[%s192 + $0x98] sm:$0xff] %vm3966, %v3937
        %3987 = vst.msk [vmem:[%s192 + $0xa0] sm:$0xff] %vm3966, %v3938
        %3988 = vst.msk [vmem:[%s192 + $0xa8] sm:$0xff] %vm3966, %v3939
        %3989 = vst.msk [vmem:[%s192 + $0xb0] sm:$0xff] %vm3966, %v3940
        %3990 = vst.msk [vmem:[%s192 + $0xb8] sm:$0xff] %vm3966, %v3941
        %3991 = vst.msk [vmem:[%s192 + $0xc0] sm:$0xff] %vm3966, %v3942
        %3992 = vst.msk [vmem:[%s192 + $0xc8] sm:$0xff] %vm3966, %v3943
        %3993 = vst.msk [vmem:[%s192 + $0xd0] sm:$0xff] %vm3966, %v3944
        %3994 = vst.msk [vmem:[%s192 + $0xd8] sm:$0xff] %vm3966, %v3945
        %3995 = vst.msk [vmem:[%s192 + $0xe0] sm:$0xff] %vm3966, %v3946
        %3996 = vst.msk [vmem:[%s192 + $0xe8] sm:$0xff] %vm3966, %v3947
        %3997 = vst.msk [vmem:[%s192 + $0xf0] sm:$0xff] %vm3966, %v3948
        %3998 = vst.msk [vmem:[%s192 + $0xf8] sm:$0xff] %vm3966, %v3949
        %3999 = vst.msk [vmem:[%s192 + $0x100] sm:$0xff] %vm3966, %v3950
        %4000 = vst.msk [vmem:[%s192 + $0x108] sm:$0xff] %vm3966, %v3951
        %4001 = vst.msk [vmem:[%s192 + $0x110] sm:$0xff] %vm3966, %v3952
        %4002 = vst.msk [vmem:[%s192 + $0x118] sm:$0xff] %vm3966, %v3953
        %4003 = vst.msk [vmem:[%s192 + $0x120] sm:$0xff] %vm3966, %v3954
        %4004 = vst.msk [vmem:[%s192 + $0x128] sm:$0xff] %vm3966, %v3955
        %4005 = vst.msk [vmem:[%s192 + $0x130] sm:$0xff] %vm3966, %v3956
        %4006 = vst.msk [vmem:[%s192 + $0x138] sm:$0xff] %vm3966, %v3957
        %4007 = vst.msk [vmem:[%s192 + $0x140] sm:$0xff] %vm3966, %v3958
        %4008 = vst.msk [vmem:[%s192 + $0x148] sm:$0xff] %vm3966, %v3959
        %4009 = vst.msk [vmem:[%s192 + $0x150] sm:$0xff] %vm3966, %v3960
        %4010 = vst.msk [vmem:[%s192 + $0x158] sm:$0xff] %vm3966, %v3961
        %4011 = vst.msk [vmem:[%s192 + $0x160] sm:$0xff] %vm3966, %v3962
        %4012 = vst.msk [vmem:[%s192 + $0x168] sm:$0xff] %vm3966, %v3963
        %4013 = vst.msk [vmem:[%s192 + $0x170] sm:$0xff] %vm3966, %v3964
        %4014 = vst.msk [vmem:[%s192 + $0x178] sm:$0xff] %vm3966, %v3965
        %s4015 = scalar_lea.vmem %s151, 1152 [#allocation2]
        %v4016 = vld [vmem:[%s4015] sm:$0xff]
        %v4017 = vld [vmem:[%s4015 + $0x8] sm:$0xff]
        %v4018 = vld [vmem:[%s4015 + $0x10] sm:$0xff]
        %v4019 = vld [vmem:[%s4015 + $0x18] sm:$0xff]
        %v4020 = vld [vmem:[%s4015 + $0x20] sm:$0xff]
        %v4021 = vld [vmem:[%s4015 + $0x28] sm:$0xff]
        %v4022 = vld [vmem:[%s4015 + $0x30] sm:$0xff]
        %v4023 = vld [vmem:[%s4015 + $0x38] sm:$0xff]
        %v4024 = vld [vmem:[%s4015 + $0x40] sm:$0xff]
        %v4025 = vld [vmem:[%s4015 + $0x48] sm:$0xff]
        %v4026 = vld [vmem:[%s4015 + $0x50] sm:$0xff]
        %v4027 = vld [vmem:[%s4015 + $0x58] sm:$0xff]
        %v4028 = vld [vmem:[%s4015 + $0x60] sm:$0xff]
        %v4029 = vld [vmem:[%s4015 + $0x68] sm:$0xff]
        %v4030 = vld [vmem:[%s4015 + $0x70] sm:$0xff]
        %v4031 = vld [vmem:[%s4015 + $0x78] sm:$0xff]
        %v4032 = vld [vmem:[%s4015 + $0x80] sm:$0xff]
        %v4033 = vld [vmem:[%s4015 + $0x88] sm:$0xff]
        %v4034 = vld [vmem:[%s4015 + $0x90] sm:$0xff]
        %v4035 = vld [vmem:[%s4015 + $0x98] sm:$0xff]
        %v4036 = vld [vmem:[%s4015 + $0xa0] sm:$0xff]
        %v4037 = vld [vmem:[%s4015 + $0xa8] sm:$0xff]
        %v4038 = vld [vmem:[%s4015 + $0xb0] sm:$0xff]
        %v4039 = vld [vmem:[%s4015 + $0xb8] sm:$0xff]
        %v4040 = vld [vmem:[%s4015 + $0xc0] sm:$0xff]
        %v4041 = vld [vmem:[%s4015 + $0xc8] sm:$0xff]
        %v4042 = vld [vmem:[%s4015 + $0xd0] sm:$0xff]
        %v4043 = vld [vmem:[%s4015 + $0xd8] sm:$0xff]
        %v4044 = vld [vmem:[%s4015 + $0xe0] sm:$0xff]
        %v4045 = vld [vmem:[%s4015 + $0xe8] sm:$0xff]
        %v4046 = vld [vmem:[%s4015 + $0xf0] sm:$0xff]
        %v4047 = vld [vmem:[%s4015 + $0xf8] sm:$0xff]
        %v4048 = vld [vmem:[%s4015 + $0x100] sm:$0xff]
        %v4049 = vld [vmem:[%s4015 + $0x108] sm:$0xff]
        %v4050 = vld [vmem:[%s4015 + $0x110] sm:$0xff]
        %v4051 = vld [vmem:[%s4015 + $0x118] sm:$0xff]
        %v4052 = vld [vmem:[%s4015 + $0x120] sm:$0xff]
        %v4053 = vld [vmem:[%s4015 + $0x128] sm:$0xff]
        %v4054 = vld [vmem:[%s4015 + $0x130] sm:$0xff]
        %v4055 = vld [vmem:[%s4015 + $0x138] sm:$0xff]
        %v4056 = vld [vmem:[%s4015 + $0x140] sm:$0xff]
        %v4057 = vld [vmem:[%s4015 + $0x148] sm:$0xff]
        %v4058 = vld [vmem:[%s4015 + $0x150] sm:$0xff]
        %v4059 = vld [vmem:[%s4015 + $0x158] sm:$0xff]
        %v4060 = vld [vmem:[%s4015 + $0x160] sm:$0xff]
        %v4061 = vld [vmem:[%s4015 + $0x168] sm:$0xff]
        %v4062 = vld [vmem:[%s4015 + $0x170] sm:$0xff]
        %v4063 = vld [vmem:[%s4015 + $0x178] sm:$0xff]
        %v4064 = vld [vmem:[%s4015 + $0x180] sm:$0xff]
        %v4065 = vld [vmem:[%s4015 + $0x188] sm:$0xff]
        %v4066 = vld [vmem:[%s4015 + $0x190] sm:$0xff]
        %v4067 = vld [vmem:[%s4015 + $0x198] sm:$0xff]
        %v4068 = vld [vmem:[%s4015 + $0x1a0] sm:$0xff]
        %v4069 = vld [vmem:[%s4015 + $0x1a8] sm:$0xff]
        %v4070 = vld [vmem:[%s4015 + $0x1b0] sm:$0xff]
        %v4071 = vld [vmem:[%s4015 + $0x1b8] sm:$0xff]
        %v4072 = vld [vmem:[%s4015 + $0x1c0] sm:$0xff]
        %v4073 = vld [vmem:[%s4015 + $0x1c8] sm:$0xff]
        %v4074 = vld [vmem:[%s4015 + $0x1d0] sm:$0xff]
        %v4075 = vld [vmem:[%s4015 + $0x1d8] sm:$0xff]
        %v4076 = vld [vmem:[%s4015 + $0x1e0] sm:$0xff]
        %v4077 = vld [vmem:[%s4015 + $0x1e8] sm:$0xff]
        %v4078 = vld [vmem:[%s4015 + $0x1f0] sm:$0xff]
        %v4079 = vld [vmem:[%s4015 + $0x1f8] sm:$0xff]
        %v4080 = vld [vmem:[%s4015 + $0x200] sm:$0xff]
        %v4081 = vld [vmem:[%s4015 + $0x208] sm:$0xff]
        %v4082 = vld [vmem:[%s4015 + $0x210] sm:$0xff]
        %v4083 = vld [vmem:[%s4015 + $0x218] sm:$0xff]
        %v4084 = vld [vmem:[%s4015 + $0x220] sm:$0xff]
        %v4085 = vld [vmem:[%s4015 + $0x228] sm:$0xff]
        %v4086 = vld [vmem:[%s4015 + $0x230] sm:$0xff]
        %v4087 = vld [vmem:[%s4015 + $0x238] sm:$0xff]
        %v4088 = vld [vmem:[%s4015 + $0x240] sm:$0xff]
        %v4089 = vld [vmem:[%s4015 + $0x248] sm:$0xff]
        %v4090 = vld [vmem:[%s4015 + $0x250] sm:$0xff]
        %v4091 = vld [vmem:[%s4015 + $0x258] sm:$0xff]
        %v4092 = vld [vmem:[%s4015 + $0x260] sm:$0xff]
        %v4093 = vld [vmem:[%s4015 + $0x268] sm:$0xff]
        %v4094 = vld [vmem:[%s4015 + $0x270] sm:$0xff]
        %v4095 = vld [vmem:[%s4015 + $0x278] sm:$0xff]
        %v4096 = vld [vmem:[%s4015 + $0x280] sm:$0xff]
        %v4097 = vld [vmem:[%s4015 + $0x288] sm:$0xff]
        %v4098 = vld [vmem:[%s4015 + $0x290] sm:$0xff]
        %v4099 = vld [vmem:[%s4015 + $0x298] sm:$0xff]
        %v4100 = vld [vmem:[%s4015 + $0x2a0] sm:$0xff]
        %v4101 = vld [vmem:[%s4015 + $0x2a8] sm:$0xff]
        %v4102 = vld [vmem:[%s4015 + $0x2b0] sm:$0xff]
        %v4103 = vld [vmem:[%s4015 + $0x2b8] sm:$0xff]
        %v4104 = vld [vmem:[%s4015 + $0x2c0] sm:$0xff]
        %v4105 = vld [vmem:[%s4015 + $0x2c8] sm:$0xff]
        %v4106 = vld [vmem:[%s4015 + $0x2d0] sm:$0xff]
        %v4107 = vld [vmem:[%s4015 + $0x2d8] sm:$0xff]
        %v4108 = vld [vmem:[%s4015 + $0x2e0] sm:$0xff]
        %v4109 = vld [vmem:[%s4015 + $0x2e8] sm:$0xff]
        %v4110 = vld [vmem:[%s4015 + $0x2f0] sm:$0xff]
        %v4111 = vld [vmem:[%s4015 + $0x2f8] sm:$0xff]
        %v4112 = vld [vmem:[%s4015 + $0x300] sm:$0xff]
        %v4113 = vld [vmem:[%s4015 + $0x308] sm:$0xff]
        %v4114 = vld [vmem:[%s4015 + $0x310] sm:$0xff]
        %v4115 = vld [vmem:[%s4015 + $0x318] sm:$0xff]
        %v4116 = vld [vmem:[%s4015 + $0x320] sm:$0xff]
        %v4117 = vld [vmem:[%s4015 + $0x328] sm:$0xff]
        %v4118 = vld [vmem:[%s4015 + $0x330] sm:$0xff]
        %v4119 = vld [vmem:[%s4015 + $0x338] sm:$0xff]
        %v4120 = vld [vmem:[%s4015 + $0x340] sm:$0xff]
        %v4121 = vld [vmem:[%s4015 + $0x348] sm:$0xff]
        %v4122 = vld [vmem:[%s4015 + $0x350] sm:$0xff]
        %v4123 = vld [vmem:[%s4015 + $0x358] sm:$0xff]
        %v4124 = vld [vmem:[%s4015 + $0x360] sm:$0xff]
        %v4125 = vld [vmem:[%s4015 + $0x368] sm:$0xff]
        %v4126 = vld [vmem:[%s4015 + $0x370] sm:$0xff]
        %v4127 = vld [vmem:[%s4015 + $0x378] sm:$0xff]
        %v4128 = vld [vmem:[%s4015 + $0x380] sm:$0xff]
        %v4129 = vld [vmem:[%s4015 + $0x388] sm:$0xff]
        %v4130 = vld [vmem:[%s4015 + $0x390] sm:$0xff]
        %v4131 = vld [vmem:[%s4015 + $0x398] sm:$0xff]
        %v4132 = vld [vmem:[%s4015 + $0x3a0] sm:$0xff]
        %v4133 = vld [vmem:[%s4015 + $0x3a8] sm:$0xff]
        %v4134 = vld [vmem:[%s4015 + $0x3b0] sm:$0xff]
        %v4135 = vld [vmem:[%s4015 + $0x3b8] sm:$0xff]
        %v4136 = vld [vmem:[%s4015 + $0x3c0] sm:$0xff]
        %v4137 = vld [vmem:[%s4015 + $0x3c8] sm:$0xff]
        %v4138 = vld [vmem:[%s4015 + $0x3d0] sm:$0xff]
        %v4139 = vld [vmem:[%s4015 + $0x3d8] sm:$0xff]
        %v4140 = vld [vmem:[%s4015 + $0x3e0] sm:$0xff]
        %v4141 = vld [vmem:[%s4015 + $0x3e8] sm:$0xff]
        %v4142 = vld [vmem:[%s4015 + $0x3f0] sm:$0xff]
        %v4143 = vld [vmem:[%s4015 + $0x3f8] sm:$0xff]
        %v4144 = vld [vmem:[%s4015 + $0x400] sm:$0xff]
        %v4145 = vld [vmem:[%s4015 + $0x408] sm:$0xff]
        %v4146 = vld [vmem:[%s4015 + $0x410] sm:$0xff]
        %v4147 = vld [vmem:[%s4015 + $0x418] sm:$0xff]
        %v4148 = vld [vmem:[%s4015 + $0x420] sm:$0xff]
        %v4149 = vld [vmem:[%s4015 + $0x428] sm:$0xff]
        %v4150 = vld [vmem:[%s4015 + $0x430] sm:$0xff]
        %v4151 = vld [vmem:[%s4015 + $0x438] sm:$0xff]
        %v4152 = vld [vmem:[%s4015 + $0x440] sm:$0xff]
        %v4153 = vld [vmem:[%s4015 + $0x448] sm:$0xff]
        %v4154 = vld [vmem:[%s4015 + $0x450] sm:$0xff]
        %v4155 = vld [vmem:[%s4015 + $0x458] sm:$0xff]
        %v4156 = vld [vmem:[%s4015 + $0x460] sm:$0xff]
        %v4157 = vld [vmem:[%s4015 + $0x468] sm:$0xff]
        %v4158 = vld [vmem:[%s4015 + $0x470] sm:$0xff]
        %v4159 = vld [vmem:[%s4015 + $0x478] sm:$0xff]
        %v4160 = vmax.f32 %v4016, %v4017
        %v4161 = vmax.f32 %v4160, %v4018
        %4162 = vmax.xlane.f32.xlu0 %v4161
        %v4163 = vpop.xlane.xlu0 %4162
        %v4164 = vmax.f32 %v4019, %v4020
        %v4165 = vmax.f32 %v4164, %v4021
        %4166 = vmax.xlane.f32.xlu0 %v4165
        %v4167 = vpop.xlane.xlu0 %4166
        %v4168 = vmax.f32 %v4022, %v4023
        %v4169 = vmax.f32 %v4168, %v4024
        %4170 = vmax.xlane.f32.xlu0 %v4169
        %v4171 = vpop.xlane.xlu0 %4170
        %v4172 = vmax.f32 %v4025, %v4026
        %v4173 = vmax.f32 %v4172, %v4027
        %4174 = vmax.xlane.f32.xlu0 %v4173
        %v4175 = vpop.xlane.xlu0 %4174
        %v4176 = vmax.f32 %v4028, %v4029
        %v4177 = vmax.f32 %v4176, %v4030
        %4178 = vmax.xlane.f32.xlu0 %v4177
        %v4179 = vpop.xlane.xlu0 %4178
        %v4180 = vmax.f32 %v4031, %v4032
        %v4181 = vmax.f32 %v4180, %v4033
        %4182 = vmax.xlane.f32.xlu0 %v4181
        %v4183 = vpop.xlane.xlu0 %4182
        %v4184 = vmax.f32 %v4034, %v4035
        %v4185 = vmax.f32 %v4184, %v4036
        %4186 = vmax.xlane.f32.xlu0 %v4185
        %v4187 = vpop.xlane.xlu0 %4186
        %v4188 = vmax.f32 %v4037, %v4038
        %v4189 = vmax.f32 %v4188, %v4039
        %4190 = vmax.xlane.f32.xlu0 %v4189
        %v4191 = vpop.xlane.xlu0 %4190
        %v4192 = vmax.f32 %v4040, %v4041
        %v4193 = vmax.f32 %v4192, %v4042
        %4194 = vmax.xlane.f32.xlu0 %v4193
        %v4195 = vpop.xlane.xlu0 %4194
        %v4196 = vmax.f32 %v4043, %v4044
        %v4197 = vmax.f32 %v4196, %v4045
        %4198 = vmax.xlane.f32.xlu0 %v4197
        %v4199 = vpop.xlane.xlu0 %4198
        %v4200 = vmax.f32 %v4046, %v4047
        %v4201 = vmax.f32 %v4200, %v4048
        %4202 = vmax.xlane.f32.xlu0 %v4201
        %v4203 = vpop.xlane.xlu0 %4202
        %v4204 = vmax.f32 %v4049, %v4050
        %v4205 = vmax.f32 %v4204, %v4051
        %4206 = vmax.xlane.f32.xlu0 %v4205
        %v4207 = vpop.xlane.xlu0 %4206
        %v4208 = vmax.f32 %v4052, %v4053
        %v4209 = vmax.f32 %v4208, %v4054
        %4210 = vmax.xlane.f32.xlu0 %v4209
        %v4211 = vpop.xlane.xlu0 %4210
        %v4212 = vmax.f32 %v4055, %v4056
        %v4213 = vmax.f32 %v4212, %v4057
        %4214 = vmax.xlane.f32.xlu0 %v4213
        %v4215 = vpop.xlane.xlu0 %4214
        %v4216 = vmax.f32 %v4058, %v4059
        %v4217 = vmax.f32 %v4216, %v4060
        %4218 = vmax.xlane.f32.xlu0 %v4217
        %v4219 = vpop.xlane.xlu0 %4218
        %v4220 = vmax.f32 %v4061, %v4062
        %v4221 = vmax.f32 %v4220, %v4063
        %4222 = vmax.xlane.f32.xlu0 %v4221
        %v4223 = vpop.xlane.xlu0 %4222
        %v4224 = vmax.f32 %v4064, %v4065
        %v4225 = vmax.f32 %v4224, %v4066
        %4226 = vmax.xlane.f32.xlu0 %v4225
        %v4227 = vpop.xlane.xlu0 %4226
        %v4228 = vmax.f32 %v4067, %v4068
        %v4229 = vmax.f32 %v4228, %v4069
        %4230 = vmax.xlane.f32.xlu0 %v4229
        %v4231 = vpop.xlane.xlu0 %4230
        %v4232 = vmax.f32 %v4070, %v4071
        %v4233 = vmax.f32 %v4232, %v4072
        %4234 = vmax.xlane.f32.xlu0 %v4233
        %v4235 = vpop.xlane.xlu0 %4234
        %v4236 = vmax.f32 %v4073, %v4074
        %v4237 = vmax.f32 %v4236, %v4075
        %4238 = vmax.xlane.f32.xlu0 %v4237
        %v4239 = vpop.xlane.xlu0 %4238
        %v4240 = vmax.f32 %v4076, %v4077
        %v4241 = vmax.f32 %v4240, %v4078
        %4242 = vmax.xlane.f32.xlu0 %v4241
        %v4243 = vpop.xlane.xlu0 %4242
        %v4244 = vmax.f32 %v4079, %v4080
        %v4245 = vmax.f32 %v4244, %v4081
        %4246 = vmax.xlane.f32.xlu0 %v4245
        %v4247 = vpop.xlane.xlu0 %4246
        %v4248 = vmax.f32 %v4082, %v4083
        %v4249 = vmax.f32 %v4248, %v4084
        %4250 = vmax.xlane.f32.xlu0 %v4249
        %v4251 = vpop.xlane.xlu0 %4250
        %v4252 = vmax.f32 %v4085, %v4086
        %v4253 = vmax.f32 %v4252, %v4087
        %4254 = vmax.xlane.f32.xlu0 %v4253
        %v4255 = vpop.xlane.xlu0 %4254
        %v4256 = vmax.f32 %v4088, %v4089
        %v4257 = vmax.f32 %v4256, %v4090
        %4258 = vmax.xlane.f32.xlu0 %v4257
        %v4259 = vpop.xlane.xlu0 %4258
        %v4260 = vmax.f32 %v4091, %v4092
        %v4261 = vmax.f32 %v4260, %v4093
        %4262 = vmax.xlane.f32.xlu0 %v4261
        %v4263 = vpop.xlane.xlu0 %4262
        %v4264 = vmax.f32 %v4094, %v4095
        %v4265 = vmax.f32 %v4264, %v4096
        %4266 = vmax.xlane.f32.xlu0 %v4265
        %v4267 = vpop.xlane.xlu0 %4266
        %v4268 = vmax.f32 %v4097, %v4098
        %v4269 = vmax.f32 %v4268, %v4099
        %4270 = vmax.xlane.f32.xlu0 %v4269
        %v4271 = vpop.xlane.xlu0 %4270
        %v4272 = vmax.f32 %v4100, %v4101
        %v4273 = vmax.f32 %v4272, %v4102
        %4274 = vmax.xlane.f32.xlu0 %v4273
        %v4275 = vpop.xlane.xlu0 %4274
        %v4276 = vmax.f32 %v4103, %v4104
        %v4277 = vmax.f32 %v4276, %v4105
        %4278 = vmax.xlane.f32.xlu0 %v4277
        %v4279 = vpop.xlane.xlu0 %4278
        %v4280 = vmax.f32 %v4106, %v4107
        %v4281 = vmax.f32 %v4280, %v4108
        %4282 = vmax.xlane.f32.xlu0 %v4281
        %v4283 = vpop.xlane.xlu0 %4282
        %v4284 = vmax.f32 %v4109, %v4110
        %v4285 = vmax.f32 %v4284, %v4111
        %4286 = vmax.xlane.f32.xlu0 %v4285
        %v4287 = vpop.xlane.xlu0 %4286
        %v4288 = vmax.f32 %v4112, %v4113
        %v4289 = vmax.f32 %v4288, %v4114
        %4290 = vmax.xlane.f32.xlu0 %v4289
        %v4291 = vpop.xlane.xlu0 %4290
        %v4292 = vmax.f32 %v4115, %v4116
        %v4293 = vmax.f32 %v4292, %v4117
        %4294 = vmax.xlane.f32.xlu0 %v4293
        %v4295 = vpop.xlane.xlu0 %4294
        %v4296 = vmax.f32 %v4118, %v4119
        %v4297 = vmax.f32 %v4296, %v4120
        %4298 = vmax.xlane.f32.xlu0 %v4297
        %v4299 = vpop.xlane.xlu0 %4298
        %v4300 = vmax.f32 %v4121, %v4122
        %v4301 = vmax.f32 %v4300, %v4123
        %4302 = vmax.xlane.f32.xlu0 %v4301
        %v4303 = vpop.xlane.xlu0 %4302
        %v4304 = vmax.f32 %v4124, %v4125
        %v4305 = vmax.f32 %v4304, %v4126
        %4306 = vmax.xlane.f32.xlu0 %v4305
        %v4307 = vpop.xlane.xlu0 %4306
        %v4308 = vmax.f32 %v4127, %v4128
        %v4309 = vmax.f32 %v4308, %v4129
        %4310 = vmax.xlane.f32.xlu0 %v4309
        %v4311 = vpop.xlane.xlu0 %4310
        %v4312 = vmax.f32 %v4130, %v4131
        %v4313 = vmax.f32 %v4312, %v4132
        %4314 = vmax.xlane.f32.xlu0 %v4313
        %v4315 = vpop.xlane.xlu0 %4314
        %v4316 = vmax.f32 %v4133, %v4134
        %v4317 = vmax.f32 %v4316, %v4135
        %4318 = vmax.xlane.f32.xlu0 %v4317
        %v4319 = vpop.xlane.xlu0 %4318
        %v4320 = vmax.f32 %v4136, %v4137
        %v4321 = vmax.f32 %v4320, %v4138
        %4322 = vmax.xlane.f32.xlu0 %v4321
        %v4323 = vpop.xlane.xlu0 %4322
        %v4324 = vmax.f32 %v4139, %v4140
        %v4325 = vmax.f32 %v4324, %v4141
        %4326 = vmax.xlane.f32.xlu0 %v4325
        %v4327 = vpop.xlane.xlu0 %4326
        %v4328 = vmax.f32 %v4142, %v4143
        %v4329 = vmax.f32 %v4328, %v4144
        %4330 = vmax.xlane.f32.xlu0 %v4329
        %v4331 = vpop.xlane.xlu0 %4330
        %v4332 = vmax.f32 %v4145, %v4146
        %v4333 = vmax.f32 %v4332, %v4147
        %4334 = vmax.xlane.f32.xlu0 %v4333
        %v4335 = vpop.xlane.xlu0 %4334
        %v4336 = vmax.f32 %v4148, %v4149
        %v4337 = vmax.f32 %v4336, %v4150
        %4338 = vmax.xlane.f32.xlu0 %v4337
        %v4339 = vpop.xlane.xlu0 %4338
        %v4340 = vmax.f32 %v4151, %v4152
        %v4341 = vmax.f32 %v4340, %v4153
        %4342 = vmax.xlane.f32.xlu0 %v4341
        %v4343 = vpop.xlane.xlu0 %4342
        %v4344 = vmax.f32 %v4154, %v4155
        %v4345 = vmax.f32 %v4344, %v4156
        %4346 = vmax.xlane.f32.xlu0 %v4345
        %v4347 = vpop.xlane.xlu0 %4346
        %v4348 = vmax.f32 %v4157, %v4158
        %v4349 = vmax.f32 %v4348, %v4159
        %4350 = vmax.xlane.f32.xlu0 %v4349
        %v4351 = vpop.xlane.xlu0 %4350
        %v4352 = vsub.f32 %v4016, %v4163
        %v4353 = vsub.f32 %v4017, %v4163
        %v4354 = vsub.f32 %v4018, %v4163
        %v4355 = vsub.f32 %v4019, %v4167
        %v4356 = vsub.f32 %v4020, %v4167
        %v4357 = vsub.f32 %v4021, %v4167
        %v4358 = vsub.f32 %v4022, %v4171
        %v4359 = vsub.f32 %v4023, %v4171
        %v4360 = vsub.f32 %v4024, %v4171
        %v4361 = vsub.f32 %v4025, %v4175
        %v4362 = vsub.f32 %v4026, %v4175
        %v4363 = vsub.f32 %v4027, %v4175
        %v4364 = vsub.f32 %v4028, %v4179
        %v4365 = vsub.f32 %v4029, %v4179
        %v4366 = vsub.f32 %v4030, %v4179
        %v4367 = vsub.f32 %v4031, %v4183
        %v4368 = vsub.f32 %v4032, %v4183
        %v4369 = vsub.f32 %v4033, %v4183
        %v4370 = vsub.f32 %v4034, %v4187
        %v4371 = vsub.f32 %v4035, %v4187
        %v4372 = vsub.f32 %v4036, %v4187
        %v4373 = vsub.f32 %v4037, %v4191
        %v4374 = vsub.f32 %v4038, %v4191
        %v4375 = vsub.f32 %v4039, %v4191
        %v4376 = vsub.f32 %v4040, %v4195
        %v4377 = vsub.f32 %v4041, %v4195
        %v4378 = vsub.f32 %v4042, %v4195
        %v4379 = vsub.f32 %v4043, %v4199
        %v4380 = vsub.f32 %v4044, %v4199
        %v4381 = vsub.f32 %v4045, %v4199
        %v4382 = vsub.f32 %v4046, %v4203
        %v4383 = vsub.f32 %v4047, %v4203
        %v4384 = vsub.f32 %v4048, %v4203
        %v4385 = vsub.f32 %v4049, %v4207
        %v4386 = vsub.f32 %v4050, %v4207
        %v4387 = vsub.f32 %v4051, %v4207
        %v4388 = vsub.f32 %v4052, %v4211
        %v4389 = vsub.f32 %v4053, %v4211
        %v4390 = vsub.f32 %v4054, %v4211
        %v4391 = vsub.f32 %v4055, %v4215
        %v4392 = vsub.f32 %v4056, %v4215
        %v4393 = vsub.f32 %v4057, %v4215
        %v4394 = vsub.f32 %v4058, %v4219
        %v4395 = vsub.f32 %v4059, %v4219
        %v4396 = vsub.f32 %v4060, %v4219
        %v4397 = vsub.f32 %v4061, %v4223
        %v4398 = vsub.f32 %v4062, %v4223
        %v4399 = vsub.f32 %v4063, %v4223
        %v4400 = vsub.f32 %v4064, %v4227
        %v4401 = vsub.f32 %v4065, %v4227
        %v4402 = vsub.f32 %v4066, %v4227
        %v4403 = vsub.f32 %v4067, %v4231
        %v4404 = vsub.f32 %v4068, %v4231
        %v4405 = vsub.f32 %v4069, %v4231
        %v4406 = vsub.f32 %v4070, %v4235
        %v4407 = vsub.f32 %v4071, %v4235
        %v4408 = vsub.f32 %v4072, %v4235
        %v4409 = vsub.f32 %v4073, %v4239
        %v4410 = vsub.f32 %v4074, %v4239
        %v4411 = vsub.f32 %v4075, %v4239
        %v4412 = vsub.f32 %v4076, %v4243
        %v4413 = vsub.f32 %v4077, %v4243
        %v4414 = vsub.f32 %v4078, %v4243
        %v4415 = vsub.f32 %v4079, %v4247
        %v4416 = vsub.f32 %v4080, %v4247
        %v4417 = vsub.f32 %v4081, %v4247
        %v4418 = vsub.f32 %v4082, %v4251
        %v4419 = vsub.f32 %v4083, %v4251
        %v4420 = vsub.f32 %v4084, %v4251
        %v4421 = vsub.f32 %v4085, %v4255
        %v4422 = vsub.f32 %v4086, %v4255
        %v4423 = vsub.f32 %v4087, %v4255
        %v4424 = vsub.f32 %v4088, %v4259
        %v4425 = vsub.f32 %v4089, %v4259
        %v4426 = vsub.f32 %v4090, %v4259
        %v4427 = vsub.f32 %v4091, %v4263
        %v4428 = vsub.f32 %v4092, %v4263
        %v4429 = vsub.f32 %v4093, %v4263
        %v4430 = vsub.f32 %v4094, %v4267
        %v4431 = vsub.f32 %v4095, %v4267
        %v4432 = vsub.f32 %v4096, %v4267
        %v4433 = vsub.f32 %v4097, %v4271
        %v4434 = vsub.f32 %v4098, %v4271
        %v4435 = vsub.f32 %v4099, %v4271
        %v4436 = vsub.f32 %v4100, %v4275
        %v4437 = vsub.f32 %v4101, %v4275
        %v4438 = vsub.f32 %v4102, %v4275
        %v4439 = vsub.f32 %v4103, %v4279
        %v4440 = vsub.f32 %v4104, %v4279
        %v4441 = vsub.f32 %v4105, %v4279
        %v4442 = vsub.f32 %v4106, %v4283
        %v4443 = vsub.f32 %v4107, %v4283
        %v4444 = vsub.f32 %v4108, %v4283
        %v4445 = vsub.f32 %v4109, %v4287
        %v4446 = vsub.f32 %v4110, %v4287
        %v4447 = vsub.f32 %v4111, %v4287
        %v4448 = vsub.f32 %v4112, %v4291
        %v4449 = vsub.f32 %v4113, %v4291
        %v4450 = vsub.f32 %v4114, %v4291
        %v4451 = vsub.f32 %v4115, %v4295
        %v4452 = vsub.f32 %v4116, %v4295
        %v4453 = vsub.f32 %v4117, %v4295
        %v4454 = vsub.f32 %v4118, %v4299
        %v4455 = vsub.f32 %v4119, %v4299
        %v4456 = vsub.f32 %v4120, %v4299
        %v4457 = vsub.f32 %v4121, %v4303
        %v4458 = vsub.f32 %v4122, %v4303
        %v4459 = vsub.f32 %v4123, %v4303
        %v4460 = vsub.f32 %v4124, %v4307
        %v4461 = vsub.f32 %v4125, %v4307
        %v4462 = vsub.f32 %v4126, %v4307
        %v4463 = vsub.f32 %v4127, %v4311
        %v4464 = vsub.f32 %v4128, %v4311
        %v4465 = vsub.f32 %v4129, %v4311
        %v4466 = vsub.f32 %v4130, %v4315
        %v4467 = vsub.f32 %v4131, %v4315
        %v4468 = vsub.f32 %v4132, %v4315
        %v4469 = vsub.f32 %v4133, %v4319
        %v4470 = vsub.f32 %v4134, %v4319
        %v4471 = vsub.f32 %v4135, %v4319
        %v4472 = vsub.f32 %v4136, %v4323
        %v4473 = vsub.f32 %v4137, %v4323
        %v4474 = vsub.f32 %v4138, %v4323
        %v4475 = vsub.f32 %v4139, %v4327
        %v4476 = vsub.f32 %v4140, %v4327
        %v4477 = vsub.f32 %v4141, %v4327
        %v4478 = vsub.f32 %v4142, %v4331
        %v4479 = vsub.f32 %v4143, %v4331
        %v4480 = vsub.f32 %v4144, %v4331
        %v4481 = vsub.f32 %v4145, %v4335
        %v4482 = vsub.f32 %v4146, %v4335
        %v4483 = vsub.f32 %v4147, %v4335
        %v4484 = vsub.f32 %v4148, %v4339
        %v4485 = vsub.f32 %v4149, %v4339
        %v4486 = vsub.f32 %v4150, %v4339
        %v4487 = vsub.f32 %v4151, %v4343
        %v4488 = vsub.f32 %v4152, %v4343
        %v4489 = vsub.f32 %v4153, %v4343
        %v4490 = vsub.f32 %v4154, %v4347
        %v4491 = vsub.f32 %v4155, %v4347
        %v4492 = vsub.f32 %v4156, %v4347
        %v4493 = vsub.f32 %v4157, %v4351
        %v4494 = vsub.f32 %v4158, %v4351
        %v4495 = vsub.f32 %v4159, %v4351
        %v4496 = vmul.f32 %v4352, 1.442695
        %v4497 = vpow.pop %v4496
        %v4498 = vmul.f32 %v4353, 1.442695
        %v4499 = vpow.pop %v4498
        %v4500 = vmul.f32 %v4354, 1.442695
        %v4501 = vpow.pop %v4500
        %v4502 = vmul.f32 %v4355, 1.442695
        %v4503 = vpow.pop %v4502
        %v4504 = vmul.f32 %v4356, 1.442695
        %v4505 = vpow.pop %v4504
        %v4506 = vmul.f32 %v4357, 1.442695
        %v4507 = vpow.pop %v4506
        %v4508 = vmul.f32 %v4358, 1.442695
        %v4509 = vpow.pop %v4508
        %v4510 = vmul.f32 %v4359, 1.442695
        %v4511 = vpow.pop %v4510
        %v4512 = vmul.f32 %v4360, 1.442695
        %v4513 = vpow.pop %v4512
        %v4514 = vmul.f32 %v4361, 1.442695
        %v4515 = vpow.pop %v4514
        %v4516 = vmul.f32 %v4362, 1.442695
        %v4517 = vpow.pop %v4516
        %v4518 = vmul.f32 %v4363, 1.442695
        %v4519 = vpow.pop %v4518
        %v4520 = vmul.f32 %v4364, 1.442695
        %v4521 = vpow.pop %v4520
        %v4522 = vmul.f32 %v4365, 1.442695
        %v4523 = vpow.pop %v4522
        %v4524 = vmul.f32 %v4366, 1.442695
        %v4525 = vpow.pop %v4524
        %v4526 = vmul.f32 %v4367, 1.442695
        %v4527 = vpow.pop %v4526
        %v4528 = vmul.f32 %v4368, 1.442695
        %v4529 = vpow.pop %v4528
        %v4530 = vmul.f32 %v4369, 1.442695
        %v4531 = vpow.pop %v4530
        %v4532 = vmul.f32 %v4370, 1.442695
        %v4533 = vpow.pop %v4532
        %v4534 = vmul.f32 %v4371, 1.442695
        %v4535 = vpow.pop %v4534
        %v4536 = vmul.f32 %v4372, 1.442695
        %v4537 = vpow.pop %v4536
        %v4538 = vmul.f32 %v4373, 1.442695
        %v4539 = vpow.pop %v4538
        %v4540 = vmul.f32 %v4374, 1.442695
        %v4541 = vpow.pop %v4540
        %v4542 = vmul.f32 %v4375, 1.442695
        %v4543 = vpow.pop %v4542
        %v4544 = vmul.f32 %v4376, 1.442695
        %v4545 = vpow.pop %v4544
        %v4546 = vmul.f32 %v4377, 1.442695
        %v4547 = vpow.pop %v4546
        %v4548 = vmul.f32 %v4378, 1.442695
        %v4549 = vpow.pop %v4548
        %v4550 = vmul.f32 %v4379, 1.442695
        %v4551 = vpow.pop %v4550
        %v4552 = vmul.f32 %v4380, 1.442695
        %v4553 = vpow.pop %v4552
        %v4554 = vmul.f32 %v4381, 1.442695
        %v4555 = vpow.pop %v4554
        %v4556 = vmul.f32 %v4382, 1.442695
        %v4557 = vpow.pop %v4556
        %v4558 = vmul.f32 %v4383, 1.442695
        %v4559 = vpow.pop %v4558
        %v4560 = vmul.f32 %v4384, 1.442695
        %v4561 = vpow.pop %v4560
        %v4562 = vmul.f32 %v4385, 1.442695
        %v4563 = vpow.pop %v4562
        %v4564 = vmul.f32 %v4386, 1.442695
        %v4565 = vpow.pop %v4564
        %v4566 = vmul.f32 %v4387, 1.442695
        %v4567 = vpow.pop %v4566
        %v4568 = vmul.f32 %v4388, 1.442695
        %v4569 = vpow.pop %v4568
        %v4570 = vmul.f32 %v4389, 1.442695
        %v4571 = vpow.pop %v4570
        %v4572 = vmul.f32 %v4390, 1.442695
        %v4573 = vpow.pop %v4572
        %v4574 = vmul.f32 %v4391, 1.442695
        %v4575 = vpow.pop %v4574
        %v4576 = vmul.f32 %v4392, 1.442695
        %v4577 = vpow.pop %v4576
        %v4578 = vmul.f32 %v4393, 1.442695
        %v4579 = vpow.pop %v4578
        %v4580 = vmul.f32 %v4394, 1.442695
        %v4581 = vpow.pop %v4580
        %v4582 = vmul.f32 %v4395, 1.442695
        %v4583 = vpow.pop %v4582
        %v4584 = vmul.f32 %v4396, 1.442695
        %v4585 = vpow.pop %v4584
        %v4586 = vmul.f32 %v4397, 1.442695
        %v4587 = vpow.pop %v4586
        %v4588 = vmul.f32 %v4398, 1.442695
        %v4589 = vpow.pop %v4588
        %v4590 = vmul.f32 %v4399, 1.442695
        %v4591 = vpow.pop %v4590
        %v4592 = vmul.f32 %v4400, 1.442695
        %v4593 = vpow.pop %v4592
        %v4594 = vmul.f32 %v4401, 1.442695
        %v4595 = vpow.pop %v4594
        %v4596 = vmul.f32 %v4402, 1.442695
        %v4597 = vpow.pop %v4596
        %v4598 = vmul.f32 %v4403, 1.442695
        %v4599 = vpow.pop %v4598
        %v4600 = vmul.f32 %v4404, 1.442695
        %v4601 = vpow.pop %v4600
        %v4602 = vmul.f32 %v4405, 1.442695
        %v4603 = vpow.pop %v4602
        %v4604 = vmul.f32 %v4406, 1.442695
        %v4605 = vpow.pop %v4604
        %v4606 = vmul.f32 %v4407, 1.442695
        %v4607 = vpow.pop %v4606
        %v4608 = vmul.f32 %v4408, 1.442695
        %v4609 = vpow.pop %v4608
        %v4610 = vmul.f32 %v4409, 1.442695
        %v4611 = vpow.pop %v4610
        %v4612 = vmul.f32 %v4410, 1.442695
        %v4613 = vpow.pop %v4612
        %v4614 = vmul.f32 %v4411, 1.442695
        %v4615 = vpow.pop %v4614
        %v4616 = vmul.f32 %v4412, 1.442695
        %v4617 = vpow.pop %v4616
        %v4618 = vmul.f32 %v4413, 1.442695
        %v4619 = vpow.pop %v4618
        %v4620 = vmul.f32 %v4414, 1.442695
        %v4621 = vpow.pop %v4620
        %v4622 = vmul.f32 %v4415, 1.442695
        %v4623 = vpow.pop %v4622
        %v4624 = vmul.f32 %v4416, 1.442695
        %v4625 = vpow.pop %v4624
        %v4626 = vmul.f32 %v4417, 1.442695
        %v4627 = vpow.pop %v4626
        %v4628 = vmul.f32 %v4418, 1.442695
        %v4629 = vpow.pop %v4628
        %v4630 = vmul.f32 %v4419, 1.442695
        %v4631 = vpow.pop %v4630
        %v4632 = vmul.f32 %v4420, 1.442695
        %v4633 = vpow.pop %v4632
        %v4634 = vmul.f32 %v4421, 1.442695
        %v4635 = vpow.pop %v4634
        %v4636 = vmul.f32 %v4422, 1.442695
        %v4637 = vpow.pop %v4636
        %v4638 = vmul.f32 %v4423, 1.442695
        %v4639 = vpow.pop %v4638
        %v4640 = vmul.f32 %v4424, 1.442695
        %v4641 = vpow.pop %v4640
        %v4642 = vmul.f32 %v4425, 1.442695
        %v4643 = vpow.pop %v4642
        %v4644 = vmul.f32 %v4426, 1.442695
        %v4645 = vpow.pop %v4644
        %v4646 = vmul.f32 %v4427, 1.442695
        %v4647 = vpow.pop %v4646
        %v4648 = vmul.f32 %v4428, 1.442695
        %v4649 = vpow.pop %v4648
        %v4650 = vmul.f32 %v4429, 1.442695
        %v4651 = vpow.pop %v4650
        %v4652 = vmul.f32 %v4430, 1.442695
        %v4653 = vpow.pop %v4652
        %v4654 = vmul.f32 %v4431, 1.442695
        %v4655 = vpow.pop %v4654
        %v4656 = vmul.f32 %v4432, 1.442695
        %v4657 = vpow.pop %v4656
        %v4658 = vmul.f32 %v4433, 1.442695
        %v4659 = vpow.pop %v4658
        %v4660 = vmul.f32 %v4434, 1.442695
        %v4661 = vpow.pop %v4660
        %v4662 = vmul.f32 %v4435, 1.442695
        %v4663 = vpow.pop %v4662
        %v4664 = vmul.f32 %v4436, 1.442695
        %v4665 = vpow.pop %v4664
        %v4666 = vmul.f32 %v4437, 1.442695
        %v4667 = vpow.pop %v4666
        %v4668 = vmul.f32 %v4438, 1.442695
        %v4669 = vpow.pop %v4668
        %v4670 = vmul.f32 %v4439, 1.442695
        %v4671 = vpow.pop %v4670
        %v4672 = vmul.f32 %v4440, 1.442695
        %v4673 = vpow.pop %v4672
        %v4674 = vmul.f32 %v4441, 1.442695
        %v4675 = vpow.pop %v4674
        %v4676 = vmul.f32 %v4442, 1.442695
        %v4677 = vpow.pop %v4676
        %v4678 = vmul.f32 %v4443, 1.442695
        %v4679 = vpow.pop %v4678
        %v4680 = vmul.f32 %v4444, 1.442695
        %v4681 = vpow.pop %v4680
        %v4682 = vmul.f32 %v4445, 1.442695
        %v4683 = vpow.pop %v4682
        %v4684 = vmul.f32 %v4446, 1.442695
        %v4685 = vpow.pop %v4684
        %v4686 = vmul.f32 %v4447, 1.442695
        %v4687 = vpow.pop %v4686
        %v4688 = vmul.f32 %v4448, 1.442695
        %v4689 = vpow.pop %v4688
        %v4690 = vmul.f32 %v4449, 1.442695
        %v4691 = vpow.pop %v4690
        %v4692 = vmul.f32 %v4450, 1.442695
        %v4693 = vpow.pop %v4692
        %v4694 = vmul.f32 %v4451, 1.442695
        %v4695 = vpow.pop %v4694
        %v4696 = vmul.f32 %v4452, 1.442695
        %v4697 = vpow.pop %v4696
        %v4698 = vmul.f32 %v4453, 1.442695
        %v4699 = vpow.pop %v4698
        %v4700 = vmul.f32 %v4454, 1.442695
        %v4701 = vpow.pop %v4700
        %v4702 = vmul.f32 %v4455, 1.442695
        %v4703 = vpow.pop %v4702
        %v4704 = vmul.f32 %v4456, 1.442695
        %v4705 = vpow.pop %v4704
        %v4706 = vmul.f32 %v4457, 1.442695
        %v4707 = vpow.pop %v4706
        %v4708 = vmul.f32 %v4458, 1.442695
        %v4709 = vpow.pop %v4708
        %v4710 = vmul.f32 %v4459, 1.442695
        %v4711 = vpow.pop %v4710
        %v4712 = vmul.f32 %v4460, 1.442695
        %v4713 = vpow.pop %v4712
        %v4714 = vmul.f32 %v4461, 1.442695
        %v4715 = vpow.pop %v4714
        %v4716 = vmul.f32 %v4462, 1.442695
        %v4717 = vpow.pop %v4716
        %v4718 = vmul.f32 %v4463, 1.442695
        %v4719 = vpow.pop %v4718
        %v4720 = vmul.f32 %v4464, 1.442695
        %v4721 = vpow.pop %v4720
        %v4722 = vmul.f32 %v4465, 1.442695
        %v4723 = vpow.pop %v4722
        %v4724 = vmul.f32 %v4466, 1.442695
        %v4725 = vpow.pop %v4724
        %v4726 = vmul.f32 %v4467, 1.442695
        %v4727 = vpow.pop %v4726
        %v4728 = vmul.f32 %v4468, 1.442695
        %v4729 = vpow.pop %v4728
        %v4730 = vmul.f32 %v4469, 1.442695
        %v4731 = vpow.pop %v4730
        %v4732 = vmul.f32 %v4470, 1.442695
        %v4733 = vpow.pop %v4732
        %v4734 = vmul.f32 %v4471, 1.442695
        %v4735 = vpow.pop %v4734
        %v4736 = vmul.f32 %v4472, 1.442695
        %v4737 = vpow.pop %v4736
        %v4738 = vmul.f32 %v4473, 1.442695
        %v4739 = vpow.pop %v4738
        %v4740 = vmul.f32 %v4474, 1.442695
        %v4741 = vpow.pop %v4740
        %v4742 = vmul.f32 %v4475, 1.442695
        %v4743 = vpow.pop %v4742
        %v4744 = vmul.f32 %v4476, 1.442695
        %v4745 = vpow.pop %v4744
        %v4746 = vmul.f32 %v4477, 1.442695
        %v4747 = vpow.pop %v4746
        %v4748 = vmul.f32 %v4478, 1.442695
        %v4749 = vpow.pop %v4748
        %v4750 = vmul.f32 %v4479, 1.442695
        %v4751 = vpow.pop %v4750
        %v4752 = vmul.f32 %v4480, 1.442695
        %v4753 = vpow.pop %v4752
        %v4754 = vmul.f32 %v4481, 1.442695
        %v4755 = vpow.pop %v4754
        %v4756 = vmul.f32 %v4482, 1.442695
        %v4757 = vpow.pop %v4756
        %v4758 = vmul.f32 %v4483, 1.442695
        %v4759 = vpow.pop %v4758
        %v4760 = vmul.f32 %v4484, 1.442695
        %v4761 = vpow.pop %v4760
        %v4762 = vmul.f32 %v4485, 1.442695
        %v4763 = vpow.pop %v4762
        %v4764 = vmul.f32 %v4486, 1.442695
        %v4765 = vpow.pop %v4764
        %v4766 = vmul.f32 %v4487, 1.442695
        %v4767 = vpow.pop %v4766
        %v4768 = vmul.f32 %v4488, 1.442695
        %v4769 = vpow.pop %v4768
        %v4770 = vmul.f32 %v4489, 1.442695
        %v4771 = vpow.pop %v4770
        %v4772 = vmul.f32 %v4490, 1.442695
        %v4773 = vpow.pop %v4772
        %v4774 = vmul.f32 %v4491, 1.442695
        %v4775 = vpow.pop %v4774
        %v4776 = vmul.f32 %v4492, 1.442695
        %v4777 = vpow.pop %v4776
        %v4778 = vmul.f32 %v4493, 1.442695
        %v4779 = vpow.pop %v4778
        %v4780 = vmul.f32 %v4494, 1.442695
        %v4781 = vpow.pop %v4780
        %v4782 = vmul.f32 %v4495, 1.442695
        %v4783 = vpow.pop %v4782
        %v4784 = vadd.f32 %v4497, %v4499
        %v4785 = vadd.f32 %v4784, %v4501
        %4786 = vadd.xlane.f32.xlu0 %v4785
        %v4787 = vpop.xlane.xlu0 %4786
        %v4788 = vadd.f32 %v4503, %v4505
        %v4789 = vadd.f32 %v4788, %v4507
        %4790 = vadd.xlane.f32.xlu0 %v4789
        %v4791 = vpop.xlane.xlu0 %4790
        %v4792 = vadd.f32 %v4509, %v4511
        %v4793 = vadd.f32 %v4792, %v4513
        %4794 = vadd.xlane.f32.xlu0 %v4793
        %v4795 = vpop.xlane.xlu0 %4794
        %v4796 = vadd.f32 %v4515, %v4517
        %v4797 = vadd.f32 %v4796, %v4519
        %4798 = vadd.xlane.f32.xlu0 %v4797
        %v4799 = vpop.xlane.xlu0 %4798
        %v4800 = vadd.f32 %v4521, %v4523
        %v4801 = vadd.f32 %v4800, %v4525
        %4802 = vadd.xlane.f32.xlu0 %v4801
        %v4803 = vpop.xlane.xlu0 %4802
        %v4804 = vadd.f32 %v4527, %v4529
        %v4805 = vadd.f32 %v4804, %v4531
        %4806 = vadd.xlane.f32.xlu0 %v4805
        %v4807 = vpop.xlane.xlu0 %4806
        %v4808 = vadd.f32 %v4533, %v4535
        %v4809 = vadd.f32 %v4808, %v4537
        %4810 = vadd.xlane.f32.xlu0 %v4809
        %v4811 = vpop.xlane.xlu0 %4810
        %v4812 = vadd.f32 %v4539, %v4541
        %v4813 = vadd.f32 %v4812, %v4543
        %4814 = vadd.xlane.f32.xlu0 %v4813
        %v4815 = vpop.xlane.xlu0 %4814
        %v4816 = vadd.f32 %v4545, %v4547
        %v4817 = vadd.f32 %v4816, %v4549
        %4818 = vadd.xlane.f32.xlu0 %v4817
        %v4819 = vpop.xlane.xlu0 %4818
        %v4820 = vadd.f32 %v4551, %v4553
        %v4821 = vadd.f32 %v4820, %v4555
        %4822 = vadd.xlane.f32.xlu0 %v4821
        %v4823 = vpop.xlane.xlu0 %4822
        %v4824 = vadd.f32 %v4557, %v4559
        %v4825 = vadd.f32 %v4824, %v4561
        %4826 = vadd.xlane.f32.xlu0 %v4825
        %v4827 = vpop.xlane.xlu0 %4826
        %v4828 = vadd.f32 %v4563, %v4565
        %v4829 = vadd.f32 %v4828, %v4567
        %4830 = vadd.xlane.f32.xlu0 %v4829
        %v4831 = vpop.xlane.xlu0 %4830
        %v4832 = vadd.f32 %v4569, %v4571
        %v4833 = vadd.f32 %v4832, %v4573
        %4834 = vadd.xlane.f32.xlu0 %v4833
        %v4835 = vpop.xlane.xlu0 %4834
        %v4836 = vadd.f32 %v4575, %v4577
        %v4837 = vadd.f32 %v4836, %v4579
        %4838 = vadd.xlane.f32.xlu0 %v4837
        %v4839 = vpop.xlane.xlu0 %4838
        %v4840 = vadd.f32 %v4581, %v4583
        %v4841 = vadd.f32 %v4840, %v4585
        %4842 = vadd.xlane.f32.xlu0 %v4841
        %v4843 = vpop.xlane.xlu0 %4842
        %v4844 = vadd.f32 %v4587, %v4589
        %v4845 = vadd.f32 %v4844, %v4591
        %4846 = vadd.xlane.f32.xlu0 %v4845
        %v4847 = vpop.xlane.xlu0 %4846
        %v4848 = vadd.f32 %v4593, %v4595
        %v4849 = vadd.f32 %v4848, %v4597
        %4850 = vadd.xlane.f32.xlu0 %v4849
        %v4851 = vpop.xlane.xlu0 %4850
        %v4852 = vadd.f32 %v4599, %v4601
        %v4853 = vadd.f32 %v4852, %v4603
        %4854 = vadd.xlane.f32.xlu0 %v4853
        %v4855 = vpop.xlane.xlu0 %4854
        %v4856 = vadd.f32 %v4605, %v4607
        %v4857 = vadd.f32 %v4856, %v4609
        %4858 = vadd.xlane.f32.xlu0 %v4857
        %v4859 = vpop.xlane.xlu0 %4858
        %v4860 = vadd.f32 %v4611, %v4613
        %v4861 = vadd.f32 %v4860, %v4615
        %4862 = vadd.xlane.f32.xlu0 %v4861
        %v4863 = vpop.xlane.xlu0 %4862
        %v4864 = vadd.f32 %v4617, %v4619
        %v4865 = vadd.f32 %v4864, %v4621
        %4866 = vadd.xlane.f32.xlu0 %v4865
        %v4867 = vpop.xlane.xlu0 %4866
        %v4868 = vadd.f32 %v4623, %v4625
        %v4869 = vadd.f32 %v4868, %v4627
        %4870 = vadd.xlane.f32.xlu0 %v4869
        %v4871 = vpop.xlane.xlu0 %4870
        %v4872 = vadd.f32 %v4629, %v4631
        %v4873 = vadd.f32 %v4872, %v4633
        %4874 = vadd.xlane.f32.xlu0 %v4873
        %v4875 = vpop.xlane.xlu0 %4874
        %v4876 = vadd.f32 %v4635, %v4637
        %v4877 = vadd.f32 %v4876, %v4639
        %4878 = vadd.xlane.f32.xlu0 %v4877
        %v4879 = vpop.xlane.xlu0 %4878
        %v4880 = vadd.f32 %v4641, %v4643
        %v4881 = vadd.f32 %v4880, %v4645
        %4882 = vadd.xlane.f32.xlu0 %v4881
        %v4883 = vpop.xlane.xlu0 %4882
        %v4884 = vadd.f32 %v4647, %v4649
        %v4885 = vadd.f32 %v4884, %v4651
        %4886 = vadd.xlane.f32.xlu0 %v4885
        %v4887 = vpop.xlane.xlu0 %4886
        %v4888 = vadd.f32 %v4653, %v4655
        %v4889 = vadd.f32 %v4888, %v4657
        %4890 = vadd.xlane.f32.xlu0 %v4889
        %v4891 = vpop.xlane.xlu0 %4890
        %v4892 = vadd.f32 %v4659, %v4661
        %v4893 = vadd.f32 %v4892, %v4663
        %4894 = vadd.xlane.f32.xlu0 %v4893
        %v4895 = vpop.xlane.xlu0 %4894
        %v4896 = vadd.f32 %v4665, %v4667
        %v4897 = vadd.f32 %v4896, %v4669
        %4898 = vadd.xlane.f32.xlu0 %v4897
        %v4899 = vpop.xlane.xlu0 %4898
        %v4900 = vadd.f32 %v4671, %v4673
        %v4901 = vadd.f32 %v4900, %v4675
        %4902 = vadd.xlane.f32.xlu0 %v4901
        %v4903 = vpop.xlane.xlu0 %4902
        %v4904 = vadd.f32 %v4677, %v4679
        %v4905 = vadd.f32 %v4904, %v4681
        %4906 = vadd.xlane.f32.xlu0 %v4905
        %v4907 = vpop.xlane.xlu0 %4906
        %v4908 = vadd.f32 %v4683, %v4685
        %v4909 = vadd.f32 %v4908, %v4687
        %4910 = vadd.xlane.f32.xlu0 %v4909
        %v4911 = vpop.xlane.xlu0 %4910
        %v4912 = vadd.f32 %v4689, %v4691
        %v4913 = vadd.f32 %v4912, %v4693
        %4914 = vadd.xlane.f32.xlu0 %v4913
        %v4915 = vpop.xlane.xlu0 %4914
        %v4916 = vadd.f32 %v4695, %v4697
        %v4917 = vadd.f32 %v4916, %v4699
        %4918 = vadd.xlane.f32.xlu0 %v4917
        %v4919 = vpop.xlane.xlu0 %4918
        %v4920 = vadd.f32 %v4701, %v4703
        %v4921 = vadd.f32 %v4920, %v4705
        %4922 = vadd.xlane.f32.xlu0 %v4921
        %v4923 = vpop.xlane.xlu0 %4922
        %v4924 = vadd.f32 %v4707, %v4709
        %v4925 = vadd.f32 %v4924, %v4711
        %4926 = vadd.xlane.f32.xlu0 %v4925
        %v4927 = vpop.xlane.xlu0 %4926
        %v4928 = vadd.f32 %v4713, %v4715
        %v4929 = vadd.f32 %v4928, %v4717
        %4930 = vadd.xlane.f32.xlu0 %v4929
        %v4931 = vpop.xlane.xlu0 %4930
        %v4932 = vadd.f32 %v4719, %v4721
        %v4933 = vadd.f32 %v4932, %v4723
        %4934 = vadd.xlane.f32.xlu0 %v4933
        %v4935 = vpop.xlane.xlu0 %4934
        %v4936 = vadd.f32 %v4725, %v4727
        %v4937 = vadd.f32 %v4936, %v4729
        %4938 = vadd.xlane.f32.xlu0 %v4937
        %v4939 = vpop.xlane.xlu0 %4938
        %v4940 = vadd.f32 %v4731, %v4733
        %v4941 = vadd.f32 %v4940, %v4735
        %4942 = vadd.xlane.f32.xlu0 %v4941
        %v4943 = vpop.xlane.xlu0 %4942
        %v4944 = vadd.f32 %v4737, %v4739
        %v4945 = vadd.f32 %v4944, %v4741
        %4946 = vadd.xlane.f32.xlu0 %v4945
        %v4947 = vpop.xlane.xlu0 %4946
        %v4948 = vadd.f32 %v4743, %v4745
        %v4949 = vadd.f32 %v4948, %v4747
        %4950 = vadd.xlane.f32.xlu0 %v4949
        %v4951 = vpop.xlane.xlu0 %4950
        %v4952 = vadd.f32 %v4749, %v4751
        %v4953 = vadd.f32 %v4952, %v4753
        %4954 = vadd.xlane.f32.xlu0 %v4953
        %v4955 = vpop.xlane.xlu0 %4954
        %v4956 = vadd.f32 %v4755, %v4757
        %v4957 = vadd.f32 %v4956, %v4759
        %4958 = vadd.xlane.f32.xlu0 %v4957
        %v4959 = vpop.xlane.xlu0 %4958
        %v4960 = vadd.f32 %v4761, %v4763
        %v4961 = vadd.f32 %v4960, %v4765
        %4962 = vadd.xlane.f32.xlu0 %v4961
        %v4963 = vpop.xlane.xlu0 %4962
        %v4964 = vadd.f32 %v4767, %v4769
        %v4965 = vadd.f32 %v4964, %v4771
        %4966 = vadd.xlane.f32.xlu0 %v4965
        %v4967 = vpop.xlane.xlu0 %4966
        %v4968 = vadd.f32 %v4773, %v4775
        %v4969 = vadd.f32 %v4968, %v4777
        %4970 = vadd.xlane.f32.xlu0 %v4969
        %v4971 = vpop.xlane.xlu0 %4970
        %v4972 = vadd.f32 %v4779, %v4781
        %v4973 = vadd.f32 %v4972, %v4783
        %4974 = vadd.xlane.f32.xlu0 %v4973
        %v4975 = vpop.xlane.xlu0 %4974
        %s4976 = sadd.s32 %s195, 1
        %s4977 = smul.u32 %s4976, 2246822519
        %s4978 = sxor.u32 %s4977, 2808649522
        %v4979 = vstv %s4978
        %v4980 = vxor.u32 %v1257, %v4979
        %v4981 = vxor.u32 %v1258, %v4979
        %v4982 = vxor.u32 %v1259, %v4979
        %v4983 = vxor.u32 %v1260, %v4979
        %v4984 = vxor.u32 %v1261, %v4979
        %v4985 = vxor.u32 %v1262, %v4979
        %v4986 = vxor.u32 %v1263, %v4979
        %v4987 = vxor.u32 %v1264, %v4979
        %v4988 = vxor.u32 %v1265, %v4979
        %v4989 = vxor.u32 %v1266, %v4979
        %v4990 = vxor.u32 %v1267, %v4979
        %v4991 = vxor.u32 %v1268, %v4979
        %v4992 = vxor.u32 %v1269, %v4979
        %v4993 = vxor.u32 %v1270, %v4979
        %v4994 = vxor.u32 %v1271, %v4979
        %v4995 = vxor.u32 %v1272, %v4979
        %v4996 = vxor.u32 %v1273, %v4979
        %v4997 = vxor.u32 %v1274, %v4979
        %v4998 = vxor.u32 %v1275, %v4979
        %v4999 = vxor.u32 %v1276, %v4979
        %v5000 = vxor.u32 %v1277, %v4979
        %v5001 = vxor.u32 %v1278, %v4979
        %v5002 = vxor.u32 %v1279, %v4979
        %v5003 = vxor.u32 %v1280, %v4979
        %v5004 = vxor.u32 %v1281, %v4979
        %v5005 = vxor.u32 %v1282, %v4979
        %v5006 = vxor.u32 %v1283, %v4979
        %v5007 = vxor.u32 %v1284, %v4979
        %v5008 = vxor.u32 %v1285, %v4979
        %v5009 = vxor.u32 %v1286, %v4979
        %v5010 = vxor.u32 %v1287, %v4979
        %v5011 = vxor.u32 %v1288, %v4979
        %v5012 = vxor.u32 %v1289, %v4979
        %v5013 = vxor.u32 %v1290, %v4979
        %v5014 = vxor.u32 %v1291, %v4979
        %v5015 = vxor.u32 %v1292, %v4979
        %v5016 = vxor.u32 %v1293, %v4979
        %v5017 = vxor.u32 %v1294, %v4979
        %v5018 = vxor.u32 %v1295, %v4979
        %v5019 = vxor.u32 %v1296, %v4979
        %v5020 = vxor.u32 %v1297, %v4979
        %v5021 = vxor.u32 %v1298, %v4979
        %v5022 = vxor.u32 %v1299, %v4979
        %v5023 = vxor.u32 %v1300, %v4979
        %v5024 = vxor.u32 %v1301, %v4979
        %v5025 = vxor.u32 %v1302, %v4979
        %v5026 = vxor.u32 %v1303, %v4979
        %v5027 = vxor.u32 %v1304, %v4979
        %v5028 = vxor.u32 %v1305, %v4979
        %v5029 = vxor.u32 %v1306, %v4979
        %v5030 = vxor.u32 %v1307, %v4979
        %v5031 = vxor.u32 %v1308, %v4979
        %v5032 = vxor.u32 %v1309, %v4979
        %v5033 = vxor.u32 %v1310, %v4979
        %v5034 = vxor.u32 %v1311, %v4979
        %v5035 = vxor.u32 %v1312, %v4979
        %v5036 = vxor.u32 %v1313, %v4979
        %v5037 = vxor.u32 %v1314, %v4979
        %v5038 = vxor.u32 %v1315, %v4979
        %v5039 = vxor.u32 %v1316, %v4979
        %v5040 = vxor.u32 %v1317, %v4979
        %v5041 = vxor.u32 %v1318, %v4979
        %v5042 = vxor.u32 %v1319, %v4979
        %v5043 = vxor.u32 %v1320, %v4979
        %v5044 = vxor.u32 %v1321, %v4979
        %v5045 = vxor.u32 %v1322, %v4979
        %v5046 = vxor.u32 %v1323, %v4979
        %v5047 = vxor.u32 %v1324, %v4979
        %v5048 = vxor.u32 %v1325, %v4979
        %v5049 = vxor.u32 %v1326, %v4979
        %v5050 = vxor.u32 %v1327, %v4979
        %v5051 = vxor.u32 %v1328, %v4979
        %v5052 = vxor.u32 %v1329, %v4979
        %v5053 = vxor.u32 %v1330, %v4979
        %v5054 = vxor.u32 %v1331, %v4979
        %v5055 = vxor.u32 %v1332, %v4979
        %v5056 = vxor.u32 %v1333, %v4979
        %v5057 = vxor.u32 %v1334, %v4979
        %v5058 = vxor.u32 %v1335, %v4979
        %v5059 = vxor.u32 %v1336, %v4979
        %v5060 = vxor.u32 %v1337, %v4979
        %v5061 = vxor.u32 %v1338, %v4979
        %v5062 = vxor.u32 %v1339, %v4979
        %v5063 = vxor.u32 %v1340, %v4979
        %v5064 = vxor.u32 %v1341, %v4979
        %v5065 = vxor.u32 %v1342, %v4979
        %v5066 = vxor.u32 %v1343, %v4979
        %v5067 = vxor.u32 %v1344, %v4979
        %v5068 = vxor.u32 %v1345, %v4979
        %v5069 = vxor.u32 %v1346, %v4979
        %v5070 = vxor.u32 %v1347, %v4979
        %v5071 = vxor.u32 %v1348, %v4979
        %v5072 = vxor.u32 %v1349, %v4979
        %v5073 = vxor.u32 %v1350, %v4979
        %v5074 = vxor.u32 %v1351, %v4979
        %v5075 = vxor.u32 %v1352, %v4979
        %v5076 = vxor.u32 %v1353, %v4979
        %v5077 = vxor.u32 %v1354, %v4979
        %v5078 = vxor.u32 %v1355, %v4979
        %v5079 = vxor.u32 %v1356, %v4979
        %v5080 = vxor.u32 %v1357, %v4979
        %v5081 = vxor.u32 %v1358, %v4979
        %v5082 = vxor.u32 %v1359, %v4979
        %v5083 = vxor.u32 %v1360, %v4979
        %v5084 = vxor.u32 %v1361, %v4979
        %v5085 = vxor.u32 %v1362, %v4979
        %v5086 = vxor.u32 %v1363, %v4979
        %v5087 = vxor.u32 %v1364, %v4979
        %v5088 = vxor.u32 %v1365, %v4979
        %v5089 = vxor.u32 %v1366, %v4979
        %v5090 = vxor.u32 %v1367, %v4979
        %v5091 = vxor.u32 %v1368, %v4979
        %v5092 = vxor.u32 %v1369, %v4979
        %v5093 = vxor.u32 %v1370, %v4979
        %v5094 = vxor.u32 %v1371, %v4979
        %v5095 = vxor.u32 %v1372, %v4979
        %v5096 = vxor.u32 %v1373, %v4979
        %v5097 = vxor.u32 %v1374, %v4979
        %v5098 = vxor.u32 %v1375, %v4979
        %v5099 = vxor.u32 %v1376, %v4979
        %v5100 = vxor.u32 %v1377, %v4979
        %v5101 = vxor.u32 %v1378, %v4979
        %v5102 = vxor.u32 %v1379, %v4979
        %v5103 = vxor.u32 %v1380, %v4979
        %v5104 = vxor.u32 %v1381, %v4979
        %v5105 = vxor.u32 %v1382, %v4979
        %v5106 = vxor.u32 %v1383, %v4979
        %v5107 = vxor.u32 %v1384, %v4979
        %v5108 = vxor.u32 %v1385, %v4979
        %v5109 = vxor.u32 %v1386, %v4979
        %v5110 = vxor.u32 %v1387, %v4979
        %v5111 = vxor.u32 %v1388, %v4979
        %v5112 = vxor.u32 %v1389, %v4979
        %v5113 = vxor.u32 %v1390, %v4979
        %v5114 = vxor.u32 %v1391, %v4979
        %v5115 = vxor.u32 %v1392, %v4979
        %v5116 = vxor.u32 %v1393, %v4979
        %v5117 = vxor.u32 %v1394, %v4979
        %v5118 = vxor.u32 %v1395, %v4979
        %v5119 = vxor.u32 %v1396, %v4979
        %v5120 = vxor.u32 %v1397, %v4979
        %v5121 = vxor.u32 %v1398, %v4979
        %v5122 = vxor.u32 %v1399, %v4979
        %v5123 = vxor.u32 %v1400, %v4979
        %v5124 = vshrl.u32 %v4980, 16
        %v5125 = vshrl.u32 %v4981, 16
        %v5126 = vshrl.u32 %v4982, 16
        %v5127 = vshrl.u32 %v4983, 16
        %v5128 = vshrl.u32 %v4984, 16
        %v5129 = vshrl.u32 %v4985, 16
        %v5130 = vshrl.u32 %v4986, 16
        %v5131 = vshrl.u32 %v4987, 16
        %v5132 = vshrl.u32 %v4988, 16
        %v5133 = vshrl.u32 %v4989, 16
        %v5134 = vshrl.u32 %v4990, 16
        %v5135 = vshrl.u32 %v4991, 16
        %v5136 = vshrl.u32 %v4992, 16
        %v5137 = vshrl.u32 %v4993, 16
        %v5138 = vshrl.u32 %v4994, 16
        %v5139 = vshrl.u32 %v4995, 16
        %v5140 = vshrl.u32 %v4996, 16
        %v5141 = vshrl.u32 %v4997, 16
        %v5142 = vshrl.u32 %v4998, 16
        %v5143 = vshrl.u32 %v4999, 16
        %v5144 = vshrl.u32 %v5000, 16
        %v5145 = vshrl.u32 %v5001, 16
        %v5146 = vshrl.u32 %v5002, 16
        %v5147 = vshrl.u32 %v5003, 16
        %v5148 = vshrl.u32 %v5004, 16
        %v5149 = vshrl.u32 %v5005, 16
        %v5150 = vshrl.u32 %v5006, 16
        %v5151 = vshrl.u32 %v5007, 16
        %v5152 = vshrl.u32 %v5008, 16
        %v5153 = vshrl.u32 %v5009, 16
        %v5154 = vshrl.u32 %v5010, 16
        %v5155 = vshrl.u32 %v5011, 16
        %v5156 = vshrl.u32 %v5012, 16
        %v5157 = vshrl.u32 %v5013, 16
        %v5158 = vshrl.u32 %v5014, 16
        %v5159 = vshrl.u32 %v5015, 16
        %v5160 = vshrl.u32 %v5016, 16
        %v5161 = vshrl.u32 %v5017, 16
        %v5162 = vshrl.u32 %v5018, 16
        %v5163 = vshrl.u32 %v5019, 16
        %v5164 = vshrl.u32 %v5020, 16
        %v5165 = vshrl.u32 %v5021, 16
        %v5166 = vshrl.u32 %v5022, 16
        %v5167 = vshrl.u32 %v5023, 16
        %v5168 = vshrl.u32 %v5024, 16
        %v5169 = vshrl.u32 %v5025, 16
        %v5170 = vshrl.u32 %v5026, 16
        %v5171 = vshrl.u32 %v5027, 16
        %v5172 = vshrl.u32 %v5028, 16
        %v5173 = vshrl.u32 %v5029, 16
        %v5174 = vshrl.u32 %v5030, 16
        %v5175 = vshrl.u32 %v5031, 16
        %v5176 = vshrl.u32 %v5032, 16
        %v5177 = vshrl.u32 %v5033, 16
        %v5178 = vshrl.u32 %v5034, 16
        %v5179 = vshrl.u32 %v5035, 16
        %v5180 = vshrl.u32 %v5036, 16
        %v5181 = vshrl.u32 %v5037, 16
        %v5182 = vshrl.u32 %v5038, 16
        %v5183 = vshrl.u32 %v5039, 16
        %v5184 = vshrl.u32 %v5040, 16
        %v5185 = vshrl.u32 %v5041, 16
        %v5186 = vshrl.u32 %v5042, 16
        %v5187 = vshrl.u32 %v5043, 16
        %v5188 = vshrl.u32 %v5044, 16
        %v5189 = vshrl.u32 %v5045, 16
        %v5190 = vshrl.u32 %v5046, 16
        %v5191 = vshrl.u32 %v5047, 16
        %v5192 = vshrl.u32 %v5048, 16
        %v5193 = vshrl.u32 %v5049, 16
        %v5194 = vshrl.u32 %v5050, 16
        %v5195 = vshrl.u32 %v5051, 16
        %v5196 = vshrl.u32 %v5052, 16
        %v5197 = vshrl.u32 %v5053, 16
        %v5198 = vshrl.u32 %v5054, 16
        %v5199 = vshrl.u32 %v5055, 16
        %v5200 = vshrl.u32 %v5056, 16
        %v5201 = vshrl.u32 %v5057, 16
        %v5202 = vshrl.u32 %v5058, 16
        %v5203 = vshrl.u32 %v5059, 16
        %v5204 = vshrl.u32 %v5060, 16
        %v5205 = vshrl.u32 %v5061, 16
        %v5206 = vshrl.u32 %v5062, 16
        %v5207 = vshrl.u32 %v5063, 16
        %v5208 = vshrl.u32 %v5064, 16
        %v5209 = vshrl.u32 %v5065, 16
        %v5210 = vshrl.u32 %v5066, 16
        %v5211 = vshrl.u32 %v5067, 16
        %v5212 = vshrl.u32 %v5068, 16
        %v5213 = vshrl.u32 %v5069, 16
        %v5214 = vshrl.u32 %v5070, 16
        %v5215 = vshrl.u32 %v5071, 16
        %v5216 = vshrl.u32 %v5072, 16
        %v5217 = vshrl.u32 %v5073, 16
        %v5218 = vshrl.u32 %v5074, 16
        %v5219 = vshrl.u32 %v5075, 16
        %v5220 = vshrl.u32 %v5076, 16
        %v5221 = vshrl.u32 %v5077, 16
        %v5222 = vshrl.u32 %v5078, 16
        %v5223 = vshrl.u32 %v5079, 16
        %v5224 = vshrl.u32 %v5080, 16
        %v5225 = vshrl.u32 %v5081, 16
        %v5226 = vshrl.u32 %v5082, 16
        %v5227 = vshrl.u32 %v5083, 16
        %v5228 = vshrl.u32 %v5084, 16
        %v5229 = vshrl.u32 %v5085, 16
        %v5230 = vshrl.u32 %v5086, 16
        %v5231 = vshrl.u32 %v5087, 16
        %v5232 = vshrl.u32 %v5088, 16
        %v5233 = vshrl.u32 %v5089, 16
        %v5234 = vshrl.u32 %v5090, 16
        %v5235 = vshrl.u32 %v5091, 16
        %v5236 = vshrl.u32 %v5092, 16
        %v5237 = vshrl.u32 %v5093, 16
        %v5238 = vshrl.u32 %v5094, 16
        %v5239 = vshrl.u32 %v5095, 16
        %v5240 = vshrl.u32 %v5096, 16
        %v5241 = vshrl.u32 %v5097, 16
        %v5242 = vshrl.u32 %v5098, 16
        %v5243 = vshrl.u32 %v5099, 16
        %v5244 = vshrl.u32 %v5100, 16
        %v5245 = vshrl.u32 %v5101, 16
        %v5246 = vshrl.u32 %v5102, 16
        %v5247 = vshrl.u32 %v5103, 16
        %v5248 = vshrl.u32 %v5104, 16
        %v5249 = vshrl.u32 %v5105, 16
        %v5250 = vshrl.u32 %v5106, 16
        %v5251 = vshrl.u32 %v5107, 16
        %v5252 = vshrl.u32 %v5108, 16
        %v5253 = vshrl.u32 %v5109, 16
        %v5254 = vshrl.u32 %v5110, 16
        %v5255 = vshrl.u32 %v5111, 16
        %v5256 = vshrl.u32 %v5112, 16
        %v5257 = vshrl.u32 %v5113, 16
        %v5258 = vshrl.u32 %v5114, 16
        %v5259 = vshrl.u32 %v5115, 16
        %v5260 = vshrl.u32 %v5116, 16
        %v5261 = vshrl.u32 %v5117, 16
        %v5262 = vshrl.u32 %v5118, 16
        %v5263 = vshrl.u32 %v5119, 16
        %v5264 = vshrl.u32 %v5120, 16
        %v5265 = vshrl.u32 %v5121, 16
        %v5266 = vshrl.u32 %v5122, 16
        %v5267 = vshrl.u32 %v5123, 16
        %v5268 = vxor.u32 %v4980, %v5124
        %v5269 = vxor.u32 %v4981, %v5125
        %v5270 = vxor.u32 %v4982, %v5126
        %v5271 = vxor.u32 %v4983, %v5127
        %v5272 = vxor.u32 %v4984, %v5128
        %v5273 = vxor.u32 %v4985, %v5129
        %v5274 = vxor.u32 %v4986, %v5130
        %v5275 = vxor.u32 %v4987, %v5131
        %v5276 = vxor.u32 %v4988, %v5132
        %v5277 = vxor.u32 %v4989, %v5133
        %v5278 = vxor.u32 %v4990, %v5134
        %v5279 = vxor.u32 %v4991, %v5135
        %v5280 = vxor.u32 %v4992, %v5136
        %v5281 = vxor.u32 %v4993, %v5137
        %v5282 = vxor.u32 %v4994, %v5138
        %v5283 = vxor.u32 %v4995, %v5139
        %v5284 = vxor.u32 %v4996, %v5140
        %v5285 = vxor.u32 %v4997, %v5141
        %v5286 = vxor.u32 %v4998, %v5142
        %v5287 = vxor.u32 %v4999, %v5143
        %v5288 = vxor.u32 %v5000, %v5144
        %v5289 = vxor.u32 %v5001, %v5145
        %v5290 = vxor.u32 %v5002, %v5146
        %v5291 = vxor.u32 %v5003, %v5147
        %v5292 = vxor.u32 %v5004, %v5148
        %v5293 = vxor.u32 %v5005, %v5149
        %v5294 = vxor.u32 %v5006, %v5150
        %v5295 = vxor.u32 %v5007, %v5151
        %v5296 = vxor.u32 %v5008, %v5152
        %v5297 = vxor.u32 %v5009, %v5153
        %v5298 = vxor.u32 %v5010, %v5154
        %v5299 = vxor.u32 %v5011, %v5155
        %v5300 = vxor.u32 %v5012, %v5156
        %v5301 = vxor.u32 %v5013, %v5157
        %v5302 = vxor.u32 %v5014, %v5158
        %v5303 = vxor.u32 %v5015, %v5159
        %v5304 = vxor.u32 %v5016, %v5160
        %v5305 = vxor.u32 %v5017, %v5161
        %v5306 = vxor.u32 %v5018, %v5162
        %v5307 = vxor.u32 %v5019, %v5163
        %v5308 = vxor.u32 %v5020, %v5164
        %v5309 = vxor.u32 %v5021, %v5165
        %v5310 = vxor.u32 %v5022, %v5166
        %v5311 = vxor.u32 %v5023, %v5167
        %v5312 = vxor.u32 %v5024, %v5168
        %v5313 = vxor.u32 %v5025, %v5169
        %v5314 = vxor.u32 %v5026, %v5170
        %v5315 = vxor.u32 %v5027, %v5171
        %v5316 = vxor.u32 %v5028, %v5172
        %v5317 = vxor.u32 %v5029, %v5173
        %v5318 = vxor.u32 %v5030, %v5174
        %v5319 = vxor.u32 %v5031, %v5175
        %v5320 = vxor.u32 %v5032, %v5176
        %v5321 = vxor.u32 %v5033, %v5177
        %v5322 = vxor.u32 %v5034, %v5178
        %v5323 = vxor.u32 %v5035, %v5179
        %v5324 = vxor.u32 %v5036, %v5180
        %v5325 = vxor.u32 %v5037, %v5181
        %v5326 = vxor.u32 %v5038, %v5182
        %v5327 = vxor.u32 %v5039, %v5183
        %v5328 = vxor.u32 %v5040, %v5184
        %v5329 = vxor.u32 %v5041, %v5185
        %v5330 = vxor.u32 %v5042, %v5186
        %v5331 = vxor.u32 %v5043, %v5187
        %v5332 = vxor.u32 %v5044, %v5188
        %v5333 = vxor.u32 %v5045, %v5189
        %v5334 = vxor.u32 %v5046, %v5190
        %v5335 = vxor.u32 %v5047, %v5191
        %v5336 = vxor.u32 %v5048, %v5192
        %v5337 = vxor.u32 %v5049, %v5193
        %v5338 = vxor.u32 %v5050, %v5194
        %v5339 = vxor.u32 %v5051, %v5195
        %v5340 = vxor.u32 %v5052, %v5196
        %v5341 = vxor.u32 %v5053, %v5197
        %v5342 = vxor.u32 %v5054, %v5198
        %v5343 = vxor.u32 %v5055, %v5199
        %v5344 = vxor.u32 %v5056, %v5200
        %v5345 = vxor.u32 %v5057, %v5201
        %v5346 = vxor.u32 %v5058, %v5202
        %v5347 = vxor.u32 %v5059, %v5203
        %v5348 = vxor.u32 %v5060, %v5204
        %v5349 = vxor.u32 %v5061, %v5205
        %v5350 = vxor.u32 %v5062, %v5206
        %v5351 = vxor.u32 %v5063, %v5207
        %v5352 = vxor.u32 %v5064, %v5208
        %v5353 = vxor.u32 %v5065, %v5209
        %v5354 = vxor.u32 %v5066, %v5210
        %v5355 = vxor.u32 %v5067, %v5211
        %v5356 = vxor.u32 %v5068, %v5212
        %v5357 = vxor.u32 %v5069, %v5213
        %v5358 = vxor.u32 %v5070, %v5214
        %v5359 = vxor.u32 %v5071, %v5215
        %v5360 = vxor.u32 %v5072, %v5216
        %v5361 = vxor.u32 %v5073, %v5217
        %v5362 = vxor.u32 %v5074, %v5218
        %v5363 = vxor.u32 %v5075, %v5219
        %v5364 = vxor.u32 %v5076, %v5220
        %v5365 = vxor.u32 %v5077, %v5221
        %v5366 = vxor.u32 %v5078, %v5222
        %v5367 = vxor.u32 %v5079, %v5223
        %v5368 = vxor.u32 %v5080, %v5224
        %v5369 = vxor.u32 %v5081, %v5225
        %v5370 = vxor.u32 %v5082, %v5226
        %v5371 = vxor.u32 %v5083, %v5227
        %v5372 = vxor.u32 %v5084, %v5228
        %v5373 = vxor.u32 %v5085, %v5229
        %v5374 = vxor.u32 %v5086, %v5230
        %v5375 = vxor.u32 %v5087, %v5231
        %v5376 = vxor.u32 %v5088, %v5232
        %v5377 = vxor.u32 %v5089, %v5233
        %v5378 = vxor.u32 %v5090, %v5234
        %v5379 = vxor.u32 %v5091, %v5235
        %v5380 = vxor.u32 %v5092, %v5236
        %v5381 = vxor.u32 %v5093, %v5237
        %v5382 = vxor.u32 %v5094, %v5238
        %v5383 = vxor.u32 %v5095, %v5239
        %v5384 = vxor.u32 %v5096, %v5240
        %v5385 = vxor.u32 %v5097, %v5241
        %v5386 = vxor.u32 %v5098, %v5242
        %v5387 = vxor.u32 %v5099, %v5243
        %v5388 = vxor.u32 %v5100, %v5244
        %v5389 = vxor.u32 %v5101, %v5245
        %v5390 = vxor.u32 %v5102, %v5246
        %v5391 = vxor.u32 %v5103, %v5247
        %v5392 = vxor.u32 %v5104, %v5248
        %v5393 = vxor.u32 %v5105, %v5249
        %v5394 = vxor.u32 %v5106, %v5250
        %v5395 = vxor.u32 %v5107, %v5251
        %v5396 = vxor.u32 %v5108, %v5252
        %v5397 = vxor.u32 %v5109, %v5253
        %v5398 = vxor.u32 %v5110, %v5254
        %v5399 = vxor.u32 %v5111, %v5255
        %v5400 = vxor.u32 %v5112, %v5256
        %v5401 = vxor.u32 %v5113, %v5257
        %v5402 = vxor.u32 %v5114, %v5258
        %v5403 = vxor.u32 %v5115, %v5259
        %v5404 = vxor.u32 %v5116, %v5260
        %v5405 = vxor.u32 %v5117, %v5261
        %v5406 = vxor.u32 %v5118, %v5262
        %v5407 = vxor.u32 %v5119, %v5263
        %v5408 = vxor.u32 %v5120, %v5264
        %v5409 = vxor.u32 %v5121, %v5265
        %v5410 = vxor.u32 %v5122, %v5266
        %v5411 = vxor.u32 %v5123, %v5267
        %v5412 = vmul.u32 %v5268, 2246822507
        %v5413 = vmul.u32 %v5269, 2246822507
        %v5414 = vmul.u32 %v5270, 2246822507
        %v5415 = vmul.u32 %v5271, 2246822507
        %v5416 = vmul.u32 %v5272, 2246822507
        %v5417 = vmul.u32 %v5273, 2246822507
        %v5418 = vmul.u32 %v5274, 2246822507
        %v5419 = vmul.u32 %v5275, 2246822507
        %v5420 = vmul.u32 %v5276, 2246822507
        %v5421 = vmul.u32 %v5277, 2246822507
        %v5422 = vmul.u32 %v5278, 2246822507
        %v5423 = vmul.u32 %v5279, 2246822507
        %v5424 = vmul.u32 %v5280, 2246822507
        %v5425 = vmul.u32 %v5281, 2246822507
        %v5426 = vmul.u32 %v5282, 2246822507
        %v5427 = vmul.u32 %v5283, 2246822507
        %v5428 = vmul.u32 %v5284, 2246822507
        %v5429 = vmul.u32 %v5285, 2246822507
        %v5430 = vmul.u32 %v5286, 2246822507
        %v5431 = vmul.u32 %v5287, 2246822507
        %v5432 = vmul.u32 %v5288, 2246822507
        %v5433 = vmul.u32 %v5289, 2246822507
        %v5434 = vmul.u32 %v5290, 2246822507
        %v5435 = vmul.u32 %v5291, 2246822507
        %v5436 = vmul.u32 %v5292, 2246822507
        %v5437 = vmul.u32 %v5293, 2246822507
        %v5438 = vmul.u32 %v5294, 2246822507
        %v5439 = vmul.u32 %v5295, 2246822507
        %v5440 = vmul.u32 %v5296, 2246822507
        %v5441 = vmul.u32 %v5297, 2246822507
        %v5442 = vmul.u32 %v5298, 2246822507
        %v5443 = vmul.u32 %v5299, 2246822507
        %v5444 = vmul.u32 %v5300, 2246822507
        %v5445 = vmul.u32 %v5301, 2246822507
        %v5446 = vmul.u32 %v5302, 2246822507
        %v5447 = vmul.u32 %v5303, 2246822507
        %v5448 = vmul.u32 %v5304, 2246822507
        %v5449 = vmul.u32 %v5305, 2246822507
        %v5450 = vmul.u32 %v5306, 2246822507
        %v5451 = vmul.u32 %v5307, 2246822507
        %v5452 = vmul.u32 %v5308, 2246822507
        %v5453 = vmul.u32 %v5309, 2246822507
        %v5454 = vmul.u32 %v5310, 2246822507
        %v5455 = vmul.u32 %v5311, 2246822507
        %v5456 = vmul.u32 %v5312, 2246822507
        %v5457 = vmul.u32 %v5313, 2246822507
        %v5458 = vmul.u32 %v5314, 2246822507
        %v5459 = vmul.u32 %v5315, 2246822507
        %v5460 = vmul.u32 %v5316, 2246822507
        %v5461 = vmul.u32 %v5317, 2246822507
        %v5462 = vmul.u32 %v5318, 2246822507
        %v5463 = vmul.u32 %v5319, 2246822507
        %v5464 = vmul.u32 %v5320, 2246822507
        %v5465 = vmul.u32 %v5321, 2246822507
        %v5466 = vmul.u32 %v5322, 2246822507
        %v5467 = vmul.u32 %v5323, 2246822507
        %v5468 = vmul.u32 %v5324, 2246822507
        %v5469 = vmul.u32 %v5325, 2246822507
        %v5470 = vmul.u32 %v5326, 2246822507
        %v5471 = vmul.u32 %v5327, 2246822507
        %v5472 = vmul.u32 %v5328, 2246822507
        %v5473 = vmul.u32 %v5329, 2246822507
        %v5474 = vmul.u32 %v5330, 2246822507
        %v5475 = vmul.u32 %v5331, 2246822507
        %v5476 = vmul.u32 %v5332, 2246822507
        %v5477 = vmul.u32 %v5333, 2246822507
        %v5478 = vmul.u32 %v5334, 2246822507
        %v5479 = vmul.u32 %v5335, 2246822507
        %v5480 = vmul.u32 %v5336, 2246822507
        %v5481 = vmul.u32 %v5337, 2246822507
        %v5482 = vmul.u32 %v5338, 2246822507
        %v5483 = vmul.u32 %v5339, 2246822507
        %v5484 = vmul.u32 %v5340, 2246822507
        %v5485 = vmul.u32 %v5341, 2246822507
        %v5486 = vmul.u32 %v5342, 2246822507
        %v5487 = vmul.u32 %v5343, 2246822507
        %v5488 = vmul.u32 %v5344, 2246822507
        %v5489 = vmul.u32 %v5345, 2246822507
        %v5490 = vmul.u32 %v5346, 2246822507
        %v5491 = vmul.u32 %v5347, 2246822507
        %v5492 = vmul.u32 %v5348, 2246822507
        %v5493 = vmul.u32 %v5349, 2246822507
        %v5494 = vmul.u32 %v5350, 2246822507
        %v5495 = vmul.u32 %v5351, 2246822507
        %v5496 = vmul.u32 %v5352, 2246822507
        %v5497 = vmul.u32 %v5353, 2246822507
        %v5498 = vmul.u32 %v5354, 2246822507
        %v5499 = vmul.u32 %v5355, 2246822507
        %v5500 = vmul.u32 %v5356, 2246822507
        %v5501 = vmul.u32 %v5357, 2246822507
        %v5502 = vmul.u32 %v5358, 2246822507
        %v5503 = vmul.u32 %v5359, 2246822507
        %v5504 = vmul.u32 %v5360, 2246822507
        %v5505 = vmul.u32 %v5361, 2246822507
        %v5506 = vmul.u32 %v5362, 2246822507
        %v5507 = vmul.u32 %v5363, 2246822507
        %v5508 = vmul.u32 %v5364, 2246822507
        %v5509 = vmul.u32 %v5365, 2246822507
        %v5510 = vmul.u32 %v5366, 2246822507
        %v5511 = vmul.u32 %v5367, 2246822507
        %v5512 = vmul.u32 %v5368, 2246822507
        %v5513 = vmul.u32 %v5369, 2246822507
        %v5514 = vmul.u32 %v5370, 2246822507
        %v5515 = vmul.u32 %v5371, 2246822507
        %v5516 = vmul.u32 %v5372, 2246822507
        %v5517 = vmul.u32 %v5373, 2246822507
        %v5518 = vmul.u32 %v5374, 2246822507
        %v5519 = vmul.u32 %v5375, 2246822507
        %v5520 = vmul.u32 %v5376, 2246822507
        %v5521 = vmul.u32 %v5377, 2246822507
        %v5522 = vmul.u32 %v5378, 2246822507
        %v5523 = vmul.u32 %v5379, 2246822507
        %v5524 = vmul.u32 %v5380, 2246822507
        %v5525 = vmul.u32 %v5381, 2246822507
        %v5526 = vmul.u32 %v5382, 2246822507
        %v5527 = vmul.u32 %v5383, 2246822507
        %v5528 = vmul.u32 %v5384, 2246822507
        %v5529 = vmul.u32 %v5385, 2246822507
        %v5530 = vmul.u32 %v5386, 2246822507
        %v5531 = vmul.u32 %v5387, 2246822507
        %v5532 = vmul.u32 %v5388, 2246822507
        %v5533 = vmul.u32 %v5389, 2246822507
        %v5534 = vmul.u32 %v5390, 2246822507
        %v5535 = vmul.u32 %v5391, 2246822507
        %v5536 = vmul.u32 %v5392, 2246822507
        %v5537 = vmul.u32 %v5393, 2246822507
        %v5538 = vmul.u32 %v5394, 2246822507
        %v5539 = vmul.u32 %v5395, 2246822507
        %v5540 = vmul.u32 %v5396, 2246822507
        %v5541 = vmul.u32 %v5397, 2246822507
        %v5542 = vmul.u32 %v5398, 2246822507
        %v5543 = vmul.u32 %v5399, 2246822507
        %v5544 = vmul.u32 %v5400, 2246822507
        %v5545 = vmul.u32 %v5401, 2246822507
        %v5546 = vmul.u32 %v5402, 2246822507
        %v5547 = vmul.u32 %v5403, 2246822507
        %v5548 = vmul.u32 %v5404, 2246822507
        %v5549 = vmul.u32 %v5405, 2246822507
        %v5550 = vmul.u32 %v5406, 2246822507
        %v5551 = vmul.u32 %v5407, 2246822507
        %v5552 = vmul.u32 %v5408, 2246822507
        %v5553 = vmul.u32 %v5409, 2246822507
        %v5554 = vmul.u32 %v5410, 2246822507
        %v5555 = vmul.u32 %v5411, 2246822507
        %v5556 = vshrl.u32 %v5412, 13
        %v5557 = vshrl.u32 %v5413, 13
        %v5558 = vshrl.u32 %v5414, 13
        %v5559 = vshrl.u32 %v5415, 13
        %v5560 = vshrl.u32 %v5416, 13
        %v5561 = vshrl.u32 %v5417, 13
        %v5562 = vshrl.u32 %v5418, 13
        %v5563 = vshrl.u32 %v5419, 13
        %v5564 = vshrl.u32 %v5420, 13
        %v5565 = vshrl.u32 %v5421, 13
        %v5566 = vshrl.u32 %v5422, 13
        %v5567 = vshrl.u32 %v5423, 13
        %v5568 = vshrl.u32 %v5424, 13
        %v5569 = vshrl.u32 %v5425, 13
        %v5570 = vshrl.u32 %v5426, 13
        %v5571 = vshrl.u32 %v5427, 13
        %v5572 = vshrl.u32 %v5428, 13
        %v5573 = vshrl.u32 %v5429, 13
        %v5574 = vshrl.u32 %v5430, 13
        %v5575 = vshrl.u32 %v5431, 13
        %v5576 = vshrl.u32 %v5432, 13
        %v5577 = vshrl.u32 %v5433, 13
        %v5578 = vshrl.u32 %v5434, 13
        %v5579 = vshrl.u32 %v5435, 13
        %v5580 = vshrl.u32 %v5436, 13
        %v5581 = vshrl.u32 %v5437, 13
        %v5582 = vshrl.u32 %v5438, 13
        %v5583 = vshrl.u32 %v5439, 13
        %v5584 = vshrl.u32 %v5440, 13
        %v5585 = vshrl.u32 %v5441, 13
        %v5586 = vshrl.u32 %v5442, 13
        %v5587 = vshrl.u32 %v5443, 13
        %v5588 = vshrl.u32 %v5444, 13
        %v5589 = vshrl.u32 %v5445, 13
        %v5590 = vshrl.u32 %v5446, 13
        %v5591 = vshrl.u32 %v5447, 13
        %v5592 = vshrl.u32 %v5448, 13
        %v5593 = vshrl.u32 %v5449, 13
        %v5594 = vshrl.u32 %v5450, 13
        %v5595 = vshrl.u32 %v5451, 13
        %v5596 = vshrl.u32 %v5452, 13
        %v5597 = vshrl.u32 %v5453, 13
        %v5598 = vshrl.u32 %v5454, 13
        %v5599 = vshrl.u32 %v5455, 13
        %v5600 = vshrl.u32 %v5456, 13
        %v5601 = vshrl.u32 %v5457, 13
        %v5602 = vshrl.u32 %v5458, 13
        %v5603 = vshrl.u32 %v5459, 13
        %v5604 = vshrl.u32 %v5460, 13
        %v5605 = vshrl.u32 %v5461, 13
        %v5606 = vshrl.u32 %v5462, 13
        %v5607 = vshrl.u32 %v5463, 13
        %v5608 = vshrl.u32 %v5464, 13
        %v5609 = vshrl.u32 %v5465, 13
        %v5610 = vshrl.u32 %v5466, 13
        %v5611 = vshrl.u32 %v5467, 13
        %v5612 = vshrl.u32 %v5468, 13
        %v5613 = vshrl.u32 %v5469, 13
        %v5614 = vshrl.u32 %v5470, 13
        %v5615 = vshrl.u32 %v5471, 13
        %v5616 = vshrl.u32 %v5472, 13
        %v5617 = vshrl.u32 %v5473, 13
        %v5618 = vshrl.u32 %v5474, 13
        %v5619 = vshrl.u32 %v5475, 13
        %v5620 = vshrl.u32 %v5476, 13
        %v5621 = vshrl.u32 %v5477, 13
        %v5622 = vshrl.u32 %v5478, 13
        %v5623 = vshrl.u32 %v5479, 13
        %v5624 = vshrl.u32 %v5480, 13
        %v5625 = vshrl.u32 %v5481, 13
        %v5626 = vshrl.u32 %v5482, 13
        %v5627 = vshrl.u32 %v5483, 13
        %v5628 = vshrl.u32 %v5484, 13
        %v5629 = vshrl.u32 %v5485, 13
        %v5630 = vshrl.u32 %v5486, 13
        %v5631 = vshrl.u32 %v5487, 13
        %v5632 = vshrl.u32 %v5488, 13
        %v5633 = vshrl.u32 %v5489, 13
        %v5634 = vshrl.u32 %v5490, 13
        %v5635 = vshrl.u32 %v5491, 13
        %v5636 = vshrl.u32 %v5492, 13
        %v5637 = vshrl.u32 %v5493, 13
        %v5638 = vshrl.u32 %v5494, 13
        %v5639 = vshrl.u32 %v5495, 13
        %v5640 = vshrl.u32 %v5496, 13
        %v5641 = vshrl.u32 %v5497, 13
        %v5642 = vshrl.u32 %v5498, 13
        %v5643 = vshrl.u32 %v5499, 13
        %v5644 = vshrl.u32 %v5500, 13
        %v5645 = vshrl.u32 %v5501, 13
        %v5646 = vshrl.u32 %v5502, 13
        %v5647 = vshrl.u32 %v5503, 13
        %v5648 = vshrl.u32 %v5504, 13
        %v5649 = vshrl.u32 %v5505, 13
        %v5650 = vshrl.u32 %v5506, 13
        %v5651 = vshrl.u32 %v5507, 13
        %v5652 = vshrl.u32 %v5508, 13
        %v5653 = vshrl.u32 %v5509, 13
        %v5654 = vshrl.u32 %v5510, 13
        %v5655 = vshrl.u32 %v5511, 13
        %v5656 = vshrl.u32 %v5512, 13
        %v5657 = vshrl.u32 %v5513, 13
        %v5658 = vshrl.u32 %v5514, 13
        %v5659 = vshrl.u32 %v5515, 13
        %v5660 = vshrl.u32 %v5516, 13
        %v5661 = vshrl.u32 %v5517, 13
        %v5662 = vshrl.u32 %v5518, 13
        %v5663 = vshrl.u32 %v5519, 13
        %v5664 = vshrl.u32 %v5520, 13
        %v5665 = vshrl.u32 %v5521, 13
        %v5666 = vshrl.u32 %v5522, 13
        %v5667 = vshrl.u32 %v5523, 13
        %v5668 = vshrl.u32 %v5524, 13
        %v5669 = vshrl.u32 %v5525, 13
        %v5670 = vshrl.u32 %v5526, 13
        %v5671 = vshrl.u32 %v5527, 13
        %v5672 = vshrl.u32 %v5528, 13
        %v5673 = vshrl.u32 %v5529, 13
        %v5674 = vshrl.u32 %v5530, 13
        %v5675 = vshrl.u32 %v5531, 13
        %v5676 = vshrl.u32 %v5532, 13
        %v5677 = vshrl.u32 %v5533, 13
        %v5678 = vshrl.u32 %v5534, 13
        %v5679 = vshrl.u32 %v5535, 13
        %v5680 = vshrl.u32 %v5536, 13
        %v5681 = vshrl.u32 %v5537, 13
        %v5682 = vshrl.u32 %v5538, 13
        %v5683 = vshrl.u32 %v5539, 13
        %v5684 = vshrl.u32 %v5540, 13
        %v5685 = vshrl.u32 %v5541, 13
        %v5686 = vshrl.u32 %v5542, 13
        %v5687 = vshrl.u32 %v5543, 13
        %v5688 = vshrl.u32 %v5544, 13
        %v5689 = vshrl.u32 %v5545, 13
        %v5690 = vshrl.u32 %v5546, 13
        %v5691 = vshrl.u32 %v5547, 13
        %v5692 = vshrl.u32 %v5548, 13
        %v5693 = vshrl.u32 %v5549, 13
        %v5694 = vshrl.u32 %v5550, 13
        %v5695 = vshrl.u32 %v5551, 13
        %v5696 = vshrl.u32 %v5552, 13
        %v5697 = vshrl.u32 %v5553, 13
        %v5698 = vshrl.u32 %v5554, 13
        %v5699 = vshrl.u32 %v5555, 13
        %v5700 = vxor.u32 %v5412, %v5556
        %v5701 = vxor.u32 %v5413, %v5557
        %v5702 = vxor.u32 %v5414, %v5558
        %v5703 = vxor.u32 %v5415, %v5559
        %v5704 = vxor.u32 %v5416, %v5560
        %v5705 = vxor.u32 %v5417, %v5561
        %v5706 = vxor.u32 %v5418, %v5562
        %v5707 = vxor.u32 %v5419, %v5563
        %v5708 = vxor.u32 %v5420, %v5564
        %v5709 = vxor.u32 %v5421, %v5565
        %v5710 = vxor.u32 %v5422, %v5566
        %v5711 = vxor.u32 %v5423, %v5567
        %v5712 = vxor.u32 %v5424, %v5568
        %v5713 = vxor.u32 %v5425, %v5569
        %v5714 = vxor.u32 %v5426, %v5570
        %v5715 = vxor.u32 %v5427, %v5571
        %v5716 = vxor.u32 %v5428, %v5572
        %v5717 = vxor.u32 %v5429, %v5573
        %v5718 = vxor.u32 %v5430, %v5574
        %v5719 = vxor.u32 %v5431, %v5575
        %v5720 = vxor.u32 %v5432, %v5576
        %v5721 = vxor.u32 %v5433, %v5577
        %v5722 = vxor.u32 %v5434, %v5578
        %v5723 = vxor.u32 %v5435, %v5579
        %v5724 = vxor.u32 %v5436, %v5580
        %v5725 = vxor.u32 %v5437, %v5581
        %v5726 = vxor.u32 %v5438, %v5582
        %v5727 = vxor.u32 %v5439, %v5583
        %v5728 = vxor.u32 %v5440, %v5584
        %v5729 = vxor.u32 %v5441, %v5585
        %v5730 = vxor.u32 %v5442, %v5586
        %v5731 = vxor.u32 %v5443, %v5587
        %v5732 = vxor.u32 %v5444, %v5588
        %v5733 = vxor.u32 %v5445, %v5589
        %v5734 = vxor.u32 %v5446, %v5590
        %v5735 = vxor.u32 %v5447, %v5591
        %v5736 = vxor.u32 %v5448, %v5592
        %v5737 = vxor.u32 %v5449, %v5593
        %v5738 = vxor.u32 %v5450, %v5594
        %v5739 = vxor.u32 %v5451, %v5595
        %v5740 = vxor.u32 %v5452, %v5596
        %v5741 = vxor.u32 %v5453, %v5597
        %v5742 = vxor.u32 %v5454, %v5598
        %v5743 = vxor.u32 %v5455, %v5599
        %v5744 = vxor.u32 %v5456, %v5600
        %v5745 = vxor.u32 %v5457, %v5601
        %v5746 = vxor.u32 %v5458, %v5602
        %v5747 = vxor.u32 %v5459, %v5603
        %v5748 = vxor.u32 %v5460, %v5604
        %v5749 = vxor.u32 %v5461, %v5605
        %v5750 = vxor.u32 %v5462, %v5606
        %v5751 = vxor.u32 %v5463, %v5607
        %v5752 = vxor.u32 %v5464, %v5608
        %v5753 = vxor.u32 %v5465, %v5609
        %v5754 = vxor.u32 %v5466, %v5610
        %v5755 = vxor.u32 %v5467, %v5611
        %v5756 = vxor.u32 %v5468, %v5612
        %v5757 = vxor.u32 %v5469, %v5613
        %v5758 = vxor.u32 %v5470, %v5614
        %v5759 = vxor.u32 %v5471, %v5615
        %v5760 = vxor.u32 %v5472, %v5616
        %v5761 = vxor.u32 %v5473, %v5617
        %v5762 = vxor.u32 %v5474, %v5618
        %v5763 = vxor.u32 %v5475, %v5619
        %v5764 = vxor.u32 %v5476, %v5620
        %v5765 = vxor.u32 %v5477, %v5621
        %v5766 = vxor.u32 %v5478, %v5622
        %v5767 = vxor.u32 %v5479, %v5623
        %v5768 = vxor.u32 %v5480, %v5624
        %v5769 = vxor.u32 %v5481, %v5625
        %v5770 = vxor.u32 %v5482, %v5626
        %v5771 = vxor.u32 %v5483, %v5627
        %v5772 = vxor.u32 %v5484, %v5628
        %v5773 = vxor.u32 %v5485, %v5629
        %v5774 = vxor.u32 %v5486, %v5630
        %v5775 = vxor.u32 %v5487, %v5631
        %v5776 = vxor.u32 %v5488, %v5632
        %v5777 = vxor.u32 %v5489, %v5633
        %v5778 = vxor.u32 %v5490, %v5634
        %v5779 = vxor.u32 %v5491, %v5635
        %v5780 = vxor.u32 %v5492, %v5636
        %v5781 = vxor.u32 %v5493, %v5637
        %v5782 = vxor.u32 %v5494, %v5638
        %v5783 = vxor.u32 %v5495, %v5639
        %v5784 = vxor.u32 %v5496, %v5640
        %v5785 = vxor.u32 %v5497, %v5641
        %v5786 = vxor.u32 %v5498, %v5642
        %v5787 = vxor.u32 %v5499, %v5643
        %v5788 = vxor.u32 %v5500, %v5644
        %v5789 = vxor.u32 %v5501, %v5645
        %v5790 = vxor.u32 %v5502, %v5646
        %v5791 = vxor.u32 %v5503, %v5647
        %v5792 = vxor.u32 %v5504, %v5648
        %v5793 = vxor.u32 %v5505, %v5649
        %v5794 = vxor.u32 %v5506, %v5650
        %v5795 = vxor.u32 %v5507, %v5651
        %v5796 = vxor.u32 %v5508, %v5652
        %v5797 = vxor.u32 %v5509, %v5653
        %v5798 = vxor.u32 %v5510, %v5654
        %v5799 = vxor.u32 %v5511, %v5655
        %v5800 = vxor.u32 %v5512, %v5656
        %v5801 = vxor.u32 %v5513, %v5657
        %v5802 = vxor.u32 %v5514, %v5658
        %v5803 = vxor.u32 %v5515, %v5659
        %v5804 = vxor.u32 %v5516, %v5660
        %v5805 = vxor.u32 %v5517, %v5661
        %v5806 = vxor.u32 %v5518, %v5662
        %v5807 = vxor.u32 %v5519, %v5663
        %v5808 = vxor.u32 %v5520, %v5664
        %v5809 = vxor.u32 %v5521, %v5665
        %v5810 = vxor.u32 %v5522, %v5666
        %v5811 = vxor.u32 %v5523, %v5667
        %v5812 = vxor.u32 %v5524, %v5668
        %v5813 = vxor.u32 %v5525, %v5669
        %v5814 = vxor.u32 %v5526, %v5670
        %v5815 = vxor.u32 %v5527, %v5671
        %v5816 = vxor.u32 %v5528, %v5672
        %v5817 = vxor.u32 %v5529, %v5673
        %v5818 = vxor.u32 %v5530, %v5674
        %v5819 = vxor.u32 %v5531, %v5675
        %v5820 = vxor.u32 %v5532, %v5676
        %v5821 = vxor.u32 %v5533, %v5677
        %v5822 = vxor.u32 %v5534, %v5678
        %v5823 = vxor.u32 %v5535, %v5679
        %v5824 = vxor.u32 %v5536, %v5680
        %v5825 = vxor.u32 %v5537, %v5681
        %v5826 = vxor.u32 %v5538, %v5682
        %v5827 = vxor.u32 %v5539, %v5683
        %v5828 = vxor.u32 %v5540, %v5684
        %v5829 = vxor.u32 %v5541, %v5685
        %v5830 = vxor.u32 %v5542, %v5686
        %v5831 = vxor.u32 %v5543, %v5687
        %v5832 = vxor.u32 %v5544, %v5688
        %v5833 = vxor.u32 %v5545, %v5689
        %v5834 = vxor.u32 %v5546, %v5690
        %v5835 = vxor.u32 %v5547, %v5691
        %v5836 = vxor.u32 %v5548, %v5692
        %v5837 = vxor.u32 %v5549, %v5693
        %v5838 = vxor.u32 %v5550, %v5694
        %v5839 = vxor.u32 %v5551, %v5695
        %v5840 = vxor.u32 %v5552, %v5696
        %v5841 = vxor.u32 %v5553, %v5697
        %v5842 = vxor.u32 %v5554, %v5698
        %v5843 = vxor.u32 %v5555, %v5699
        %v5844 = vmul.u32 %v5700, 3266489909
        %v5845 = vmul.u32 %v5701, 3266489909
        %v5846 = vmul.u32 %v5702, 3266489909
        %v5847 = vmul.u32 %v5703, 3266489909
        %v5848 = vmul.u32 %v5704, 3266489909
        %v5849 = vmul.u32 %v5705, 3266489909
        %v5850 = vmul.u32 %v5706, 3266489909
        %v5851 = vmul.u32 %v5707, 3266489909
        %v5852 = vmul.u32 %v5708, 3266489909
        %v5853 = vmul.u32 %v5709, 3266489909
        %v5854 = vmul.u32 %v5710, 3266489909
        %v5855 = vmul.u32 %v5711, 3266489909
        %v5856 = vmul.u32 %v5712, 3266489909
        %v5857 = vmul.u32 %v5713, 3266489909
        %v5858 = vmul.u32 %v5714, 3266489909
        %v5859 = vmul.u32 %v5715, 3266489909
        %v5860 = vmul.u32 %v5716, 3266489909
        %v5861 = vmul.u32 %v5717, 3266489909
        %v5862 = vmul.u32 %v5718, 3266489909
        %v5863 = vmul.u32 %v5719, 3266489909
        %v5864 = vmul.u32 %v5720, 3266489909
        %v5865 = vmul.u32 %v5721, 3266489909
        %v5866 = vmul.u32 %v5722, 3266489909
        %v5867 = vmul.u32 %v5723, 3266489909
        %v5868 = vmul.u32 %v5724, 3266489909
        %v5869 = vmul.u32 %v5725, 3266489909
        %v5870 = vmul.u32 %v5726, 3266489909
        %v5871 = vmul.u32 %v5727, 3266489909
        %v5872 = vmul.u32 %v5728, 3266489909
        %v5873 = vmul.u32 %v5729, 3266489909
        %v5874 = vmul.u32 %v5730, 3266489909
        %v5875 = vmul.u32 %v5731, 3266489909
        %v5876 = vmul.u32 %v5732, 3266489909
        %v5877 = vmul.u32 %v5733, 3266489909
        %v5878 = vmul.u32 %v5734, 3266489909
        %v5879 = vmul.u32 %v5735, 3266489909
        %v5880 = vmul.u32 %v5736, 3266489909
        %v5881 = vmul.u32 %v5737, 3266489909
        %v5882 = vmul.u32 %v5738, 3266489909
        %v5883 = vmul.u32 %v5739, 3266489909
        %v5884 = vmul.u32 %v5740, 3266489909
        %v5885 = vmul.u32 %v5741, 3266489909
        %v5886 = vmul.u32 %v5742, 3266489909
        %v5887 = vmul.u32 %v5743, 3266489909
        %v5888 = vmul.u32 %v5744, 3266489909
        %v5889 = vmul.u32 %v5745, 3266489909
        %v5890 = vmul.u32 %v5746, 3266489909
        %v5891 = vmul.u32 %v5747, 3266489909
        %v5892 = vmul.u32 %v5748, 3266489909
        %v5893 = vmul.u32 %v5749, 3266489909
        %v5894 = vmul.u32 %v5750, 3266489909
        %v5895 = vmul.u32 %v5751, 3266489909
        %v5896 = vmul.u32 %v5752, 3266489909
        %v5897 = vmul.u32 %v5753, 3266489909
        %v5898 = vmul.u32 %v5754, 3266489909
        %v5899 = vmul.u32 %v5755, 3266489909
        %v5900 = vmul.u32 %v5756, 3266489909
        %v5901 = vmul.u32 %v5757, 3266489909
        %v5902 = vmul.u32 %v5758, 3266489909
        %v5903 = vmul.u32 %v5759, 3266489909
        %v5904 = vmul.u32 %v5760, 3266489909
        %v5905 = vmul.u32 %v5761, 3266489909
        %v5906 = vmul.u32 %v5762, 3266489909
        %v5907 = vmul.u32 %v5763, 3266489909
        %v5908 = vmul.u32 %v5764, 3266489909
        %v5909 = vmul.u32 %v5765, 3266489909
        %v5910 = vmul.u32 %v5766, 3266489909
        %v5911 = vmul.u32 %v5767, 3266489909
        %v5912 = vmul.u32 %v5768, 3266489909
        %v5913 = vmul.u32 %v5769, 3266489909
        %v5914 = vmul.u32 %v5770, 3266489909
        %v5915 = vmul.u32 %v5771, 3266489909
        %v5916 = vmul.u32 %v5772, 3266489909
        %v5917 = vmul.u32 %v5773, 3266489909
        %v5918 = vmul.u32 %v5774, 3266489909
        %v5919 = vmul.u32 %v5775, 3266489909
        %v5920 = vmul.u32 %v5776, 3266489909
        %v5921 = vmul.u32 %v5777, 3266489909
        %v5922 = vmul.u32 %v5778, 3266489909
        %v5923 = vmul.u32 %v5779, 3266489909
        %v5924 = vmul.u32 %v5780, 3266489909
        %v5925 = vmul.u32 %v5781, 3266489909
        %v5926 = vmul.u32 %v5782, 3266489909
        %v5927 = vmul.u32 %v5783, 3266489909
        %v5928 = vmul.u32 %v5784, 3266489909
        %v5929 = vmul.u32 %v5785, 3266489909
        %v5930 = vmul.u32 %v5786, 3266489909
        %v5931 = vmul.u32 %v5787, 3266489909
        %v5932 = vmul.u32 %v5788, 3266489909
        %v5933 = vmul.u32 %v5789, 3266489909
        %v5934 = vmul.u32 %v5790, 3266489909
        %v5935 = vmul.u32 %v5791, 3266489909
        %v5936 = vmul.u32 %v5792, 3266489909
        %v5937 = vmul.u32 %v5793, 3266489909
        %v5938 = vmul.u32 %v5794, 3266489909
        %v5939 = vmul.u32 %v5795, 3266489909
        %v5940 = vmul.u32 %v5796, 3266489909
        %v5941 = vmul.u32 %v5797, 3266489909
        %v5942 = vmul.u32 %v5798, 3266489909
        %v5943 = vmul.u32 %v5799, 3266489909
        %v5944 = vmul.u32 %v5800, 3266489909
        %v5945 = vmul.u32 %v5801, 3266489909
        %v5946 = vmul.u32 %v5802, 3266489909
        %v5947 = vmul.u32 %v5803, 3266489909
        %v5948 = vmul.u32 %v5804, 3266489909
        %v5949 = vmul.u32 %v5805, 3266489909
        %v5950 = vmul.u32 %v5806, 3266489909
        %v5951 = vmul.u32 %v5807, 3266489909
        %v5952 = vmul.u32 %v5808, 3266489909
        %v5953 = vmul.u32 %v5809, 3266489909
        %v5954 = vmul.u32 %v5810, 3266489909
        %v5955 = vmul.u32 %v5811, 3266489909
        %v5956 = vmul.u32 %v5812, 3266489909
        %v5957 = vmul.u32 %v5813, 3266489909
        %v5958 = vmul.u32 %v5814, 3266489909
        %v5959 = vmul.u32 %v5815, 3266489909
        %v5960 = vmul.u32 %v5816, 3266489909
        %v5961 = vmul.u32 %v5817, 3266489909
        %v5962 = vmul.u32 %v5818, 3266489909
        %v5963 = vmul.u32 %v5819, 3266489909
        %v5964 = vmul.u32 %v5820, 3266489909
        %v5965 = vmul.u32 %v5821, 3266489909
        %v5966 = vmul.u32 %v5822, 3266489909
        %v5967 = vmul.u32 %v5823, 3266489909
        %v5968 = vmul.u32 %v5824, 3266489909
        %v5969 = vmul.u32 %v5825, 3266489909
        %v5970 = vmul.u32 %v5826, 3266489909
        %v5971 = vmul.u32 %v5827, 3266489909
        %v5972 = vmul.u32 %v5828, 3266489909
        %v5973 = vmul.u32 %v5829, 3266489909
        %v5974 = vmul.u32 %v5830, 3266489909
        %v5975 = vmul.u32 %v5831, 3266489909
        %v5976 = vmul.u32 %v5832, 3266489909
        %v5977 = vmul.u32 %v5833, 3266489909
        %v5978 = vmul.u32 %v5834, 3266489909
        %v5979 = vmul.u32 %v5835, 3266489909
        %v5980 = vmul.u32 %v5836, 3266489909
        %v5981 = vmul.u32 %v5837, 3266489909
        %v5982 = vmul.u32 %v5838, 3266489909
        %v5983 = vmul.u32 %v5839, 3266489909
        %v5984 = vmul.u32 %v5840, 3266489909
        %v5985 = vmul.u32 %v5841, 3266489909
        %v5986 = vmul.u32 %v5842, 3266489909
        %v5987 = vmul.u32 %v5843, 3266489909
        %v5988 = vshrl.u32 %v5844, 16
        %v5989 = vshrl.u32 %v5845, 16
        %v5990 = vshrl.u32 %v5846, 16
        %v5991 = vshrl.u32 %v5847, 16
        %v5992 = vshrl.u32 %v5848, 16
        %v5993 = vshrl.u32 %v5849, 16
        %v5994 = vshrl.u32 %v5850, 16
        %v5995 = vshrl.u32 %v5851, 16
        %v5996 = vshrl.u32 %v5852, 16
        %v5997 = vshrl.u32 %v5853, 16
        %v5998 = vshrl.u32 %v5854, 16
        %v5999 = vshrl.u32 %v5855, 16
        %v6000 = vshrl.u32 %v5856, 16
        %v6001 = vshrl.u32 %v5857, 16
        %v6002 = vshrl.u32 %v5858, 16
        %v6003 = vshrl.u32 %v5859, 16
        %v6004 = vshrl.u32 %v5860, 16
        %v6005 = vshrl.u32 %v5861, 16
        %v6006 = vshrl.u32 %v5862, 16
        %v6007 = vshrl.u32 %v5863, 16
        %v6008 = vshrl.u32 %v5864, 16
        %v6009 = vshrl.u32 %v5865, 16
        %v6010 = vshrl.u32 %v5866, 16
        %v6011 = vshrl.u32 %v5867, 16
        %v6012 = vshrl.u32 %v5868, 16
        %v6013 = vshrl.u32 %v5869, 16
        %v6014 = vshrl.u32 %v5870, 16
        %v6015 = vshrl.u32 %v5871, 16
        %v6016 = vshrl.u32 %v5872, 16
        %v6017 = vshrl.u32 %v5873, 16
        %v6018 = vshrl.u32 %v5874, 16
        %v6019 = vshrl.u32 %v5875, 16
        %v6020 = vshrl.u32 %v5876, 16
        %v6021 = vshrl.u32 %v5877, 16
        %v6022 = vshrl.u32 %v5878, 16
        %v6023 = vshrl.u32 %v5879, 16
        %v6024 = vshrl.u32 %v5880, 16
        %v6025 = vshrl.u32 %v5881, 16
        %v6026 = vshrl.u32 %v5882, 16
        %v6027 = vshrl.u32 %v5883, 16
        %v6028 = vshrl.u32 %v5884, 16
        %v6029 = vshrl.u32 %v5885, 16
        %v6030 = vshrl.u32 %v5886, 16
        %v6031 = vshrl.u32 %v5887, 16
        %v6032 = vshrl.u32 %v5888, 16
        %v6033 = vshrl.u32 %v5889, 16
        %v6034 = vshrl.u32 %v5890, 16
        %v6035 = vshrl.u32 %v5891, 16
        %v6036 = vshrl.u32 %v5892, 16
        %v6037 = vshrl.u32 %v5893, 16
        %v6038 = vshrl.u32 %v5894, 16
        %v6039 = vshrl.u32 %v5895, 16
        %v6040 = vshrl.u32 %v5896, 16
        %v6041 = vshrl.u32 %v5897, 16
        %v6042 = vshrl.u32 %v5898, 16
        %v6043 = vshrl.u32 %v5899, 16
        %v6044 = vshrl.u32 %v5900, 16
        %v6045 = vshrl.u32 %v5901, 16
        %v6046 = vshrl.u32 %v5902, 16
        %v6047 = vshrl.u32 %v5903, 16
        %v6048 = vshrl.u32 %v5904, 16
        %v6049 = vshrl.u32 %v5905, 16
        %v6050 = vshrl.u32 %v5906, 16
        %v6051 = vshrl.u32 %v5907, 16
        %v6052 = vshrl.u32 %v5908, 16
        %v6053 = vshrl.u32 %v5909, 16
        %v6054 = vshrl.u32 %v5910, 16
        %v6055 = vshrl.u32 %v5911, 16
        %v6056 = vshrl.u32 %v5912, 16
        %v6057 = vshrl.u32 %v5913, 16
        %v6058 = vshrl.u32 %v5914, 16
        %v6059 = vshrl.u32 %v5915, 16
        %v6060 = vshrl.u32 %v5916, 16
        %v6061 = vshrl.u32 %v5917, 16
        %v6062 = vshrl.u32 %v5918, 16
        %v6063 = vshrl.u32 %v5919, 16
        %v6064 = vshrl.u32 %v5920, 16
        %v6065 = vshrl.u32 %v5921, 16
        %v6066 = vshrl.u32 %v5922, 16
        %v6067 = vshrl.u32 %v5923, 16
        %v6068 = vshrl.u32 %v5924, 16
        %v6069 = vshrl.u32 %v5925, 16
        %v6070 = vshrl.u32 %v5926, 16
        %v6071 = vshrl.u32 %v5927, 16
        %v6072 = vshrl.u32 %v5928, 16
        %v6073 = vshrl.u32 %v5929, 16
        %v6074 = vshrl.u32 %v5930, 16
        %v6075 = vshrl.u32 %v5931, 16
        %v6076 = vshrl.u32 %v5932, 16
        %v6077 = vshrl.u32 %v5933, 16
        %v6078 = vshrl.u32 %v5934, 16
        %v6079 = vshrl.u32 %v5935, 16
        %v6080 = vshrl.u32 %v5936, 16
        %v6081 = vshrl.u32 %v5937, 16
        %v6082 = vshrl.u32 %v5938, 16
        %v6083 = vshrl.u32 %v5939, 16
        %v6084 = vshrl.u32 %v5940, 16
        %v6085 = vshrl.u32 %v5941, 16
        %v6086 = vshrl.u32 %v5942, 16
        %v6087 = vshrl.u32 %v5943, 16
        %v6088 = vshrl.u32 %v5944, 16
        %v6089 = vshrl.u32 %v5945, 16
        %v6090 = vshrl.u32 %v5946, 16
        %v6091 = vshrl.u32 %v5947, 16
        %v6092 = vshrl.u32 %v5948, 16
        %v6093 = vshrl.u32 %v5949, 16
        %v6094 = vshrl.u32 %v5950, 16
        %v6095 = vshrl.u32 %v5951, 16
        %v6096 = vshrl.u32 %v5952, 16
        %v6097 = vshrl.u32 %v5953, 16
        %v6098 = vshrl.u32 %v5954, 16
        %v6099 = vshrl.u32 %v5955, 16
        %v6100 = vshrl.u32 %v5956, 16
        %v6101 = vshrl.u32 %v5957, 16
        %v6102 = vshrl.u32 %v5958, 16
        %v6103 = vshrl.u32 %v5959, 16
        %v6104 = vshrl.u32 %v5960, 16
        %v6105 = vshrl.u32 %v5961, 16
        %v6106 = vshrl.u32 %v5962, 16
        %v6107 = vshrl.u32 %v5963, 16
        %v6108 = vshrl.u32 %v5964, 16
        %v6109 = vshrl.u32 %v5965, 16
        %v6110 = vshrl.u32 %v5966, 16
        %v6111 = vshrl.u32 %v5967, 16
        %v6112 = vshrl.u32 %v5968, 16
        %v6113 = vshrl.u32 %v5969, 16
        %v6114 = vshrl.u32 %v5970, 16
        %v6115 = vshrl.u32 %v5971, 16
        %v6116 = vshrl.u32 %v5972, 16
        %v6117 = vshrl.u32 %v5973, 16
        %v6118 = vshrl.u32 %v5974, 16
        %v6119 = vshrl.u32 %v5975, 16
        %v6120 = vshrl.u32 %v5976, 16
        %v6121 = vshrl.u32 %v5977, 16
        %v6122 = vshrl.u32 %v5978, 16
        %v6123 = vshrl.u32 %v5979, 16
        %v6124 = vshrl.u32 %v5980, 16
        %v6125 = vshrl.u32 %v5981, 16
        %v6126 = vshrl.u32 %v5982, 16
        %v6127 = vshrl.u32 %v5983, 16
        %v6128 = vshrl.u32 %v5984, 16
        %v6129 = vshrl.u32 %v5985, 16
        %v6130 = vshrl.u32 %v5986, 16
        %v6131 = vshrl.u32 %v5987, 16
        %v6132 = vxor.u32 %v5844, %v5988
        %v6133 = vxor.u32 %v5845, %v5989
        %v6134 = vxor.u32 %v5846, %v5990
        %v6135 = vxor.u32 %v5847, %v5991
        %v6136 = vxor.u32 %v5848, %v5992
        %v6137 = vxor.u32 %v5849, %v5993
        %v6138 = vxor.u32 %v5850, %v5994
        %v6139 = vxor.u32 %v5851, %v5995
        %v6140 = vxor.u32 %v5852, %v5996
        %v6141 = vxor.u32 %v5853, %v5997
        %v6142 = vxor.u32 %v5854, %v5998
        %v6143 = vxor.u32 %v5855, %v5999
        %v6144 = vxor.u32 %v5856, %v6000
        %v6145 = vxor.u32 %v5857, %v6001
        %v6146 = vxor.u32 %v5858, %v6002
        %v6147 = vxor.u32 %v5859, %v6003
        %v6148 = vxor.u32 %v5860, %v6004
        %v6149 = vxor.u32 %v5861, %v6005
        %v6150 = vxor.u32 %v5862, %v6006
        %v6151 = vxor.u32 %v5863, %v6007
        %v6152 = vxor.u32 %v5864, %v6008
        %v6153 = vxor.u32 %v5865, %v6009
        %v6154 = vxor.u32 %v5866, %v6010
        %v6155 = vxor.u32 %v5867, %v6011
        %v6156 = vxor.u32 %v5868, %v6012
        %v6157 = vxor.u32 %v5869, %v6013
        %v6158 = vxor.u32 %v5870, %v6014
        %v6159 = vxor.u32 %v5871, %v6015
        %v6160 = vxor.u32 %v5872, %v6016
        %v6161 = vxor.u32 %v5873, %v6017
        %v6162 = vxor.u32 %v5874, %v6018
        %v6163 = vxor.u32 %v5875, %v6019
        %v6164 = vxor.u32 %v5876, %v6020
        %v6165 = vxor.u32 %v5877, %v6021
        %v6166 = vxor.u32 %v5878, %v6022
        %v6167 = vxor.u32 %v5879, %v6023
        %v6168 = vxor.u32 %v5880, %v6024
        %v6169 = vxor.u32 %v5881, %v6025
        %v6170 = vxor.u32 %v5882, %v6026
        %v6171 = vxor.u32 %v5883, %v6027
        %v6172 = vxor.u32 %v5884, %v6028
        %v6173 = vxor.u32 %v5885, %v6029
        %v6174 = vxor.u32 %v5886, %v6030
        %v6175 = vxor.u32 %v5887, %v6031
        %v6176 = vxor.u32 %v5888, %v6032
        %v6177 = vxor.u32 %v5889, %v6033
        %v6178 = vxor.u32 %v5890, %v6034
        %v6179 = vxor.u32 %v5891, %v6035
        %v6180 = vxor.u32 %v5892, %v6036
        %v6181 = vxor.u32 %v5893, %v6037
        %v6182 = vxor.u32 %v5894, %v6038
        %v6183 = vxor.u32 %v5895, %v6039
        %v6184 = vxor.u32 %v5896, %v6040
        %v6185 = vxor.u32 %v5897, %v6041
        %v6186 = vxor.u32 %v5898, %v6042
        %v6187 = vxor.u32 %v5899, %v6043
        %v6188 = vxor.u32 %v5900, %v6044
        %v6189 = vxor.u32 %v5901, %v6045
        %v6190 = vxor.u32 %v5902, %v6046
        %v6191 = vxor.u32 %v5903, %v6047
        %v6192 = vxor.u32 %v5904, %v6048
        %v6193 = vxor.u32 %v5905, %v6049
        %v6194 = vxor.u32 %v5906, %v6050
        %v6195 = vxor.u32 %v5907, %v6051
        %v6196 = vxor.u32 %v5908, %v6052
        %v6197 = vxor.u32 %v5909, %v6053
        %v6198 = vxor.u32 %v5910, %v6054
        %v6199 = vxor.u32 %v5911, %v6055
        %v6200 = vxor.u32 %v5912, %v6056
        %v6201 = vxor.u32 %v5913, %v6057
        %v6202 = vxor.u32 %v5914, %v6058
        %v6203 = vxor.u32 %v5915, %v6059
        %v6204 = vxor.u32 %v5916, %v6060
        %v6205 = vxor.u32 %v5917, %v6061
        %v6206 = vxor.u32 %v5918, %v6062
        %v6207 = vxor.u32 %v5919, %v6063
        %v6208 = vxor.u32 %v5920, %v6064
        %v6209 = vxor.u32 %v5921, %v6065
        %v6210 = vxor.u32 %v5922, %v6066
        %v6211 = vxor.u32 %v5923, %v6067
        %v6212 = vxor.u32 %v5924, %v6068
        %v6213 = vxor.u32 %v5925, %v6069
        %v6214 = vxor.u32 %v5926, %v6070
        %v6215 = vxor.u32 %v5927, %v6071
        %v6216 = vxor.u32 %v5928, %v6072
        %v6217 = vxor.u32 %v5929, %v6073
        %v6218 = vxor.u32 %v5930, %v6074
        %v6219 = vxor.u32 %v5931, %v6075
        %v6220 = vxor.u32 %v5932, %v6076
        %v6221 = vxor.u32 %v5933, %v6077
        %v6222 = vxor.u32 %v5934, %v6078
        %v6223 = vxor.u32 %v5935, %v6079
        %v6224 = vxor.u32 %v5936, %v6080
        %v6225 = vxor.u32 %v5937, %v6081
        %v6226 = vxor.u32 %v5938, %v6082
        %v6227 = vxor.u32 %v5939, %v6083
        %v6228 = vxor.u32 %v5940, %v6084
        %v6229 = vxor.u32 %v5941, %v6085
        %v6230 = vxor.u32 %v5942, %v6086
        %v6231 = vxor.u32 %v5943, %v6087
        %v6232 = vxor.u32 %v5944, %v6088
        %v6233 = vxor.u32 %v5945, %v6089
        %v6234 = vxor.u32 %v5946, %v6090
        %v6235 = vxor.u32 %v5947, %v6091
        %v6236 = vxor.u32 %v5948, %v6092
        %v6237 = vxor.u32 %v5949, %v6093
        %v6238 = vxor.u32 %v5950, %v6094
        %v6239 = vxor.u32 %v5951, %v6095
        %v6240 = vxor.u32 %v5952, %v6096
        %v6241 = vxor.u32 %v5953, %v6097
        %v6242 = vxor.u32 %v5954, %v6098
        %v6243 = vxor.u32 %v5955, %v6099
        %v6244 = vxor.u32 %v5956, %v6100
        %v6245 = vxor.u32 %v5957, %v6101
        %v6246 = vxor.u32 %v5958, %v6102
        %v6247 = vxor.u32 %v5959, %v6103
        %v6248 = vxor.u32 %v5960, %v6104
        %v6249 = vxor.u32 %v5961, %v6105
        %v6250 = vxor.u32 %v5962, %v6106
        %v6251 = vxor.u32 %v5963, %v6107
        %v6252 = vxor.u32 %v5964, %v6108
        %v6253 = vxor.u32 %v5965, %v6109
        %v6254 = vxor.u32 %v5966, %v6110
        %v6255 = vxor.u32 %v5967, %v6111
        %v6256 = vxor.u32 %v5968, %v6112
        %v6257 = vxor.u32 %v5969, %v6113
        %v6258 = vxor.u32 %v5970, %v6114
        %v6259 = vxor.u32 %v5971, %v6115
        %v6260 = vxor.u32 %v5972, %v6116
        %v6261 = vxor.u32 %v5973, %v6117
        %v6262 = vxor.u32 %v5974, %v6118
        %v6263 = vxor.u32 %v5975, %v6119
        %v6264 = vxor.u32 %v5976, %v6120
        %v6265 = vxor.u32 %v5977, %v6121
        %v6266 = vxor.u32 %v5978, %v6122
        %v6267 = vxor.u32 %v5979, %v6123
        %v6268 = vxor.u32 %v5980, %v6124
        %v6269 = vxor.u32 %v5981, %v6125
        %v6270 = vxor.u32 %v5982, %v6126
        %v6271 = vxor.u32 %v5983, %v6127
        %v6272 = vxor.u32 %v5984, %v6128
        %v6273 = vxor.u32 %v5985, %v6129
        %v6274 = vxor.u32 %v5986, %v6130
        %v6275 = vxor.u32 %v5987, %v6131
        %v6276 = vand.u32 %v6132, 16777215
        %v6277 = vand.u32 %v6133, 16777215
        %v6278 = vand.u32 %v6134, 16777215
        %v6279 = vand.u32 %v6135, 16777215
        %v6280 = vand.u32 %v6136, 16777215
        %v6281 = vand.u32 %v6137, 16777215
        %v6282 = vand.u32 %v6138, 16777215
        %v6283 = vand.u32 %v6139, 16777215
        %v6284 = vand.u32 %v6140, 16777215
        %v6285 = vand.u32 %v6141, 16777215
        %v6286 = vand.u32 %v6142, 16777215
        %v6287 = vand.u32 %v6143, 16777215
        %v6288 = vand.u32 %v6144, 16777215
        %v6289 = vand.u32 %v6145, 16777215
        %v6290 = vand.u32 %v6146, 16777215
        %v6291 = vand.u32 %v6147, 16777215
        %v6292 = vand.u32 %v6148, 16777215
        %v6293 = vand.u32 %v6149, 16777215
        %v6294 = vand.u32 %v6150, 16777215
        %v6295 = vand.u32 %v6151, 16777215
        %v6296 = vand.u32 %v6152, 16777215
        %v6297 = vand.u32 %v6153, 16777215
        %v6298 = vand.u32 %v6154, 16777215
        %v6299 = vand.u32 %v6155, 16777215
        %v6300 = vand.u32 %v6156, 16777215
        %v6301 = vand.u32 %v6157, 16777215
        %v6302 = vand.u32 %v6158, 16777215
        %v6303 = vand.u32 %v6159, 16777215
        %v6304 = vand.u32 %v6160, 16777215
        %v6305 = vand.u32 %v6161, 16777215
        %v6306 = vand.u32 %v6162, 16777215
        %v6307 = vand.u32 %v6163, 16777215
        %v6308 = vand.u32 %v6164, 16777215
        %v6309 = vand.u32 %v6165, 16777215
        %v6310 = vand.u32 %v6166, 16777215
        %v6311 = vand.u32 %v6167, 16777215
        %v6312 = vand.u32 %v6168, 16777215
        %v6313 = vand.u32 %v6169, 16777215
        %v6314 = vand.u32 %v6170, 16777215
        %v6315 = vand.u32 %v6171, 16777215
        %v6316 = vand.u32 %v6172, 16777215
        %v6317 = vand.u32 %v6173, 16777215
        %v6318 = vand.u32 %v6174, 16777215
        %v6319 = vand.u32 %v6175, 16777215
        %v6320 = vand.u32 %v6176, 16777215
        %v6321 = vand.u32 %v6177, 16777215
        %v6322 = vand.u32 %v6178, 16777215
        %v6323 = vand.u32 %v6179, 16777215
        %v6324 = vand.u32 %v6180, 16777215
        %v6325 = vand.u32 %v6181, 16777215
        %v6326 = vand.u32 %v6182, 16777215
        %v6327 = vand.u32 %v6183, 16777215
        %v6328 = vand.u32 %v6184, 16777215
        %v6329 = vand.u32 %v6185, 16777215
        %v6330 = vand.u32 %v6186, 16777215
        %v6331 = vand.u32 %v6187, 16777215
        %v6332 = vand.u32 %v6188, 16777215
        %v6333 = vand.u32 %v6189, 16777215
        %v6334 = vand.u32 %v6190, 16777215
        %v6335 = vand.u32 %v6191, 16777215
        %v6336 = vand.u32 %v6192, 16777215
        %v6337 = vand.u32 %v6193, 16777215
        %v6338 = vand.u32 %v6194, 16777215
        %v6339 = vand.u32 %v6195, 16777215
        %v6340 = vand.u32 %v6196, 16777215
        %v6341 = vand.u32 %v6197, 16777215
        %v6342 = vand.u32 %v6198, 16777215
        %v6343 = vand.u32 %v6199, 16777215
        %v6344 = vand.u32 %v6200, 16777215
        %v6345 = vand.u32 %v6201, 16777215
        %v6346 = vand.u32 %v6202, 16777215
        %v6347 = vand.u32 %v6203, 16777215
        %v6348 = vand.u32 %v6204, 16777215
        %v6349 = vand.u32 %v6205, 16777215
        %v6350 = vand.u32 %v6206, 16777215
        %v6351 = vand.u32 %v6207, 16777215
        %v6352 = vand.u32 %v6208, 16777215
        %v6353 = vand.u32 %v6209, 16777215
        %v6354 = vand.u32 %v6210, 16777215
        %v6355 = vand.u32 %v6211, 16777215
        %v6356 = vand.u32 %v6212, 16777215
        %v6357 = vand.u32 %v6213, 16777215
        %v6358 = vand.u32 %v6214, 16777215
        %v6359 = vand.u32 %v6215, 16777215
        %v6360 = vand.u32 %v6216, 16777215
        %v6361 = vand.u32 %v6217, 16777215
        %v6362 = vand.u32 %v6218, 16777215
        %v6363 = vand.u32 %v6219, 16777215
        %v6364 = vand.u32 %v6220, 16777215
        %v6365 = vand.u32 %v6221, 16777215
        %v6366 = vand.u32 %v6222, 16777215
        %v6367 = vand.u32 %v6223, 16777215
        %v6368 = vand.u32 %v6224, 16777215
        %v6369 = vand.u32 %v6225, 16777215
        %v6370 = vand.u32 %v6226, 16777215
        %v6371 = vand.u32 %v6227, 16777215
        %v6372 = vand.u32 %v6228, 16777215
        %v6373 = vand.u32 %v6229, 16777215
        %v6374 = vand.u32 %v6230, 16777215
        %v6375 = vand.u32 %v6231, 16777215
        %v6376 = vand.u32 %v6232, 16777215
        %v6377 = vand.u32 %v6233, 16777215
        %v6378 = vand.u32 %v6234, 16777215
        %v6379 = vand.u32 %v6235, 16777215
        %v6380 = vand.u32 %v6236, 16777215
        %v6381 = vand.u32 %v6237, 16777215
        %v6382 = vand.u32 %v6238, 16777215
        %v6383 = vand.u32 %v6239, 16777215
        %v6384 = vand.u32 %v6240, 16777215
        %v6385 = vand.u32 %v6241, 16777215
        %v6386 = vand.u32 %v6242, 16777215
        %v6387 = vand.u32 %v6243, 16777215
        %v6388 = vand.u32 %v6244, 16777215
        %v6389 = vand.u32 %v6245, 16777215
        %v6390 = vand.u32 %v6246, 16777215
        %v6391 = vand.u32 %v6247, 16777215
        %v6392 = vand.u32 %v6248, 16777215
        %v6393 = vand.u32 %v6249, 16777215
        %v6394 = vand.u32 %v6250, 16777215
        %v6395 = vand.u32 %v6251, 16777215
        %v6396 = vand.u32 %v6252, 16777215
        %v6397 = vand.u32 %v6253, 16777215
        %v6398 = vand.u32 %v6254, 16777215
        %v6399 = vand.u32 %v6255, 16777215
        %v6400 = vand.u32 %v6256, 16777215
        %v6401 = vand.u32 %v6257, 16777215
        %v6402 = vand.u32 %v6258, 16777215
        %v6403 = vand.u32 %v6259, 16777215
        %v6404 = vand.u32 %v6260, 16777215
        %v6405 = vand.u32 %v6261, 16777215
        %v6406 = vand.u32 %v6262, 16777215
        %v6407 = vand.u32 %v6263, 16777215
        %v6408 = vand.u32 %v6264, 16777215
        %v6409 = vand.u32 %v6265, 16777215
        %v6410 = vand.u32 %v6266, 16777215
        %v6411 = vand.u32 %v6267, 16777215
        %v6412 = vand.u32 %v6268, 16777215
        %v6413 = vand.u32 %v6269, 16777215
        %v6414 = vand.u32 %v6270, 16777215
        %v6415 = vand.u32 %v6271, 16777215
        %v6416 = vand.u32 %v6272, 16777215
        %v6417 = vand.u32 %v6273, 16777215
        %v6418 = vand.u32 %v6274, 16777215
        %v6419 = vand.u32 %v6275, 16777215
        %vm6420 = vcmp.ge.s32.totalorder %v6276, 1677722
        %vm6421 = vcmp.ge.s32.totalorder %v6277, 1677722
        %vm6422 = vcmp.ge.s32.totalorder %v6278, 1677722
        %vm6423 = vcmp.ge.s32.totalorder %v6279, 1677722
        %vm6424 = vcmp.ge.s32.totalorder %v6280, 1677722
        %vm6425 = vcmp.ge.s32.totalorder %v6281, 1677722
        %vm6426 = vcmp.ge.s32.totalorder %v6282, 1677722
        %vm6427 = vcmp.ge.s32.totalorder %v6283, 1677722
        %vm6428 = vcmp.ge.s32.totalorder %v6284, 1677722
        %vm6429 = vcmp.ge.s32.totalorder %v6285, 1677722
        %vm6430 = vcmp.ge.s32.totalorder %v6286, 1677722
        %vm6431 = vcmp.ge.s32.totalorder %v6287, 1677722
        %vm6432 = vcmp.ge.s32.totalorder %v6288, 1677722
        %vm6433 = vcmp.ge.s32.totalorder %v6289, 1677722
        %vm6434 = vcmp.ge.s32.totalorder %v6290, 1677722
        %vm6435 = vcmp.ge.s32.totalorder %v6291, 1677722
        %vm6436 = vcmp.ge.s32.totalorder %v6292, 1677722
        %vm6437 = vcmp.ge.s32.totalorder %v6293, 1677722
        %vm6438 = vcmp.ge.s32.totalorder %v6294, 1677722
        %vm6439 = vcmp.ge.s32.totalorder %v6295, 1677722
        %vm6440 = vcmp.ge.s32.totalorder %v6296, 1677722
        %vm6441 = vcmp.ge.s32.totalorder %v6297, 1677722
        %vm6442 = vcmp.ge.s32.totalorder %v6298, 1677722
        %vm6443 = vcmp.ge.s32.totalorder %v6299, 1677722
        %vm6444 = vcmp.ge.s32.totalorder %v6300, 1677722
        %vm6445 = vcmp.ge.s32.totalorder %v6301, 1677722
        %vm6446 = vcmp.ge.s32.totalorder %v6302, 1677722
        %vm6447 = vcmp.ge.s32.totalorder %v6303, 1677722
        %vm6448 = vcmp.ge.s32.totalorder %v6304, 1677722
        %vm6449 = vcmp.ge.s32.totalorder %v6305, 1677722
        %vm6450 = vcmp.ge.s32.totalorder %v6306, 1677722
        %vm6451 = vcmp.ge.s32.totalorder %v6307, 1677722
        %vm6452 = vcmp.ge.s32.totalorder %v6308, 1677722
        %vm6453 = vcmp.ge.s32.totalorder %v6309, 1677722
        %vm6454 = vcmp.ge.s32.totalorder %v6310, 1677722
        %vm6455 = vcmp.ge.s32.totalorder %v6311, 1677722
        %vm6456 = vcmp.ge.s32.totalorder %v6312, 1677722
        %vm6457 = vcmp.ge.s32.totalorder %v6313, 1677722
        %vm6458 = vcmp.ge.s32.totalorder %v6314, 1677722
        %vm6459 = vcmp.ge.s32.totalorder %v6315, 1677722
        %vm6460 = vcmp.ge.s32.totalorder %v6316, 1677722
        %vm6461 = vcmp.ge.s32.totalorder %v6317, 1677722
        %vm6462 = vcmp.ge.s32.totalorder %v6318, 1677722
        %vm6463 = vcmp.ge.s32.totalorder %v6319, 1677722
        %vm6464 = vcmp.ge.s32.totalorder %v6320, 1677722
        %vm6465 = vcmp.ge.s32.totalorder %v6321, 1677722
        %vm6466 = vcmp.ge.s32.totalorder %v6322, 1677722
        %vm6467 = vcmp.ge.s32.totalorder %v6323, 1677722
        %vm6468 = vcmp.ge.s32.totalorder %v6324, 1677722
        %vm6469 = vcmp.ge.s32.totalorder %v6325, 1677722
        %vm6470 = vcmp.ge.s32.totalorder %v6326, 1677722
        %vm6471 = vcmp.ge.s32.totalorder %v6327, 1677722
        %vm6472 = vcmp.ge.s32.totalorder %v6328, 1677722
        %vm6473 = vcmp.ge.s32.totalorder %v6329, 1677722
        %vm6474 = vcmp.ge.s32.totalorder %v6330, 1677722
        %vm6475 = vcmp.ge.s32.totalorder %v6331, 1677722
        %vm6476 = vcmp.ge.s32.totalorder %v6332, 1677722
        %vm6477 = vcmp.ge.s32.totalorder %v6333, 1677722
        %vm6478 = vcmp.ge.s32.totalorder %v6334, 1677722
        %vm6479 = vcmp.ge.s32.totalorder %v6335, 1677722
        %vm6480 = vcmp.ge.s32.totalorder %v6336, 1677722
        %vm6481 = vcmp.ge.s32.totalorder %v6337, 1677722
        %vm6482 = vcmp.ge.s32.totalorder %v6338, 1677722
        %vm6483 = vcmp.ge.s32.totalorder %v6339, 1677722
        %vm6484 = vcmp.ge.s32.totalorder %v6340, 1677722
        %vm6485 = vcmp.ge.s32.totalorder %v6341, 1677722
        %vm6486 = vcmp.ge.s32.totalorder %v6342, 1677722
        %vm6487 = vcmp.ge.s32.totalorder %v6343, 1677722
        %vm6488 = vcmp.ge.s32.totalorder %v6344, 1677722
        %vm6489 = vcmp.ge.s32.totalorder %v6345, 1677722
        %vm6490 = vcmp.ge.s32.totalorder %v6346, 1677722
        %vm6491 = vcmp.ge.s32.totalorder %v6347, 1677722
        %vm6492 = vcmp.ge.s32.totalorder %v6348, 1677722
        %vm6493 = vcmp.ge.s32.totalorder %v6349, 1677722
        %vm6494 = vcmp.ge.s32.totalorder %v6350, 1677722
        %vm6495 = vcmp.ge.s32.totalorder %v6351, 1677722
        %vm6496 = vcmp.ge.s32.totalorder %v6352, 1677722
        %vm6497 = vcmp.ge.s32.totalorder %v6353, 1677722
        %vm6498 = vcmp.ge.s32.totalorder %v6354, 1677722
        %vm6499 = vcmp.ge.s32.totalorder %v6355, 1677722
        %vm6500 = vcmp.ge.s32.totalorder %v6356, 1677722
        %vm6501 = vcmp.ge.s32.totalorder %v6357, 1677722
        %vm6502 = vcmp.ge.s32.totalorder %v6358, 1677722
        %vm6503 = vcmp.ge.s32.totalorder %v6359, 1677722
        %vm6504 = vcmp.ge.s32.totalorder %v6360, 1677722
        %vm6505 = vcmp.ge.s32.totalorder %v6361, 1677722
        %vm6506 = vcmp.ge.s32.totalorder %v6362, 1677722
        %vm6507 = vcmp.ge.s32.totalorder %v6363, 1677722
        %vm6508 = vcmp.ge.s32.totalorder %v6364, 1677722
        %vm6509 = vcmp.ge.s32.totalorder %v6365, 1677722
        %vm6510 = vcmp.ge.s32.totalorder %v6366, 1677722
        %vm6511 = vcmp.ge.s32.totalorder %v6367, 1677722
        %vm6512 = vcmp.ge.s32.totalorder %v6368, 1677722
        %vm6513 = vcmp.ge.s32.totalorder %v6369, 1677722
        %vm6514 = vcmp.ge.s32.totalorder %v6370, 1677722
        %vm6515 = vcmp.ge.s32.totalorder %v6371, 1677722
        %vm6516 = vcmp.ge.s32.totalorder %v6372, 1677722
        %vm6517 = vcmp.ge.s32.totalorder %v6373, 1677722
        %vm6518 = vcmp.ge.s32.totalorder %v6374, 1677722
        %vm6519 = vcmp.ge.s32.totalorder %v6375, 1677722
        %vm6520 = vcmp.ge.s32.totalorder %v6376, 1677722
        %vm6521 = vcmp.ge.s32.totalorder %v6377, 1677722
        %vm6522 = vcmp.ge.s32.totalorder %v6378, 1677722
        %vm6523 = vcmp.ge.s32.totalorder %v6379, 1677722
        %vm6524 = vcmp.ge.s32.totalorder %v6380, 1677722
        %vm6525 = vcmp.ge.s32.totalorder %v6381, 1677722
        %vm6526 = vcmp.ge.s32.totalorder %v6382, 1677722
        %vm6527 = vcmp.ge.s32.totalorder %v6383, 1677722
        %vm6528 = vcmp.ge.s32.totalorder %v6384, 1677722
        %vm6529 = vcmp.ge.s32.totalorder %v6385, 1677722
        %vm6530 = vcmp.ge.s32.totalorder %v6386, 1677722
        %vm6531 = vcmp.ge.s32.totalorder %v6387, 1677722
        %vm6532 = vcmp.ge.s32.totalorder %v6388, 1677722
        %vm6533 = vcmp.ge.s32.totalorder %v6389, 1677722
        %vm6534 = vcmp.ge.s32.totalorder %v6390, 1677722
        %vm6535 = vcmp.ge.s32.totalorder %v6391, 1677722
        %vm6536 = vcmp.ge.s32.totalorder %v6392, 1677722
        %vm6537 = vcmp.ge.s32.totalorder %v6393, 1677722
        %vm6538 = vcmp.ge.s32.totalorder %v6394, 1677722
        %vm6539 = vcmp.ge.s32.totalorder %v6395, 1677722
        %vm6540 = vcmp.ge.s32.totalorder %v6396, 1677722
        %vm6541 = vcmp.ge.s32.totalorder %v6397, 1677722
        %vm6542 = vcmp.ge.s32.totalorder %v6398, 1677722
        %vm6543 = vcmp.ge.s32.totalorder %v6399, 1677722
        %vm6544 = vcmp.ge.s32.totalorder %v6400, 1677722
        %vm6545 = vcmp.ge.s32.totalorder %v6401, 1677722
        %vm6546 = vcmp.ge.s32.totalorder %v6402, 1677722
        %vm6547 = vcmp.ge.s32.totalorder %v6403, 1677722
        %vm6548 = vcmp.ge.s32.totalorder %v6404, 1677722
        %vm6549 = vcmp.ge.s32.totalorder %v6405, 1677722
        %vm6550 = vcmp.ge.s32.totalorder %v6406, 1677722
        %vm6551 = vcmp.ge.s32.totalorder %v6407, 1677722
        %vm6552 = vcmp.ge.s32.totalorder %v6408, 1677722
        %vm6553 = vcmp.ge.s32.totalorder %v6409, 1677722
        %vm6554 = vcmp.ge.s32.totalorder %v6410, 1677722
        %vm6555 = vcmp.ge.s32.totalorder %v6411, 1677722
        %vm6556 = vcmp.ge.s32.totalorder %v6412, 1677722
        %vm6557 = vcmp.ge.s32.totalorder %v6413, 1677722
        %vm6558 = vcmp.ge.s32.totalorder %v6414, 1677722
        %vm6559 = vcmp.ge.s32.totalorder %v6415, 1677722
        %vm6560 = vcmp.ge.s32.totalorder %v6416, 1677722
        %vm6561 = vcmp.ge.s32.totalorder %v6417, 1677722
        %vm6562 = vcmp.ge.s32.totalorder %v6418, 1677722
        %vm6563 = vcmp.ge.s32.totalorder %v6419, 1677722
        %v6564 = vsel %vm6420, 1.1111112, 0.0
        %v6565 = vsel %vm6421, 1.1111112, 0.0
        %v6566 = vsel %vm6422, 1.1111112, 0.0
        %v6567 = vsel %vm6423, 1.1111112, 0.0
        %v6568 = vsel %vm6424, 1.1111112, 0.0
        %v6569 = vsel %vm6425, 1.1111112, 0.0
        %v6570 = vsel %vm6426, 1.1111112, 0.0
        %v6571 = vsel %vm6427, 1.1111112, 0.0
        %v6572 = vsel %vm6428, 1.1111112, 0.0
        %v6573 = vsel %vm6429, 1.1111112, 0.0
        %v6574 = vsel %vm6430, 1.1111112, 0.0
        %v6575 = vsel %vm6431, 1.1111112, 0.0
        %v6576 = vsel %vm6432, 1.1111112, 0.0
        %v6577 = vsel %vm6433, 1.1111112, 0.0
        %v6578 = vsel %vm6434, 1.1111112, 0.0
        %v6579 = vsel %vm6435, 1.1111112, 0.0
        %v6580 = vsel %vm6436, 1.1111112, 0.0
        %v6581 = vsel %vm6437, 1.1111112, 0.0
        %v6582 = vsel %vm6438, 1.1111112, 0.0
        %v6583 = vsel %vm6439, 1.1111112, 0.0
        %v6584 = vsel %vm6440, 1.1111112, 0.0
        %v6585 = vsel %vm6441, 1.1111112, 0.0
        %v6586 = vsel %vm6442, 1.1111112, 0.0
        %v6587 = vsel %vm6443, 1.1111112, 0.0
        %v6588 = vsel %vm6444, 1.1111112, 0.0
        %v6589 = vsel %vm6445, 1.1111112, 0.0
        %v6590 = vsel %vm6446, 1.1111112, 0.0
        %v6591 = vsel %vm6447, 1.1111112, 0.0
        %v6592 = vsel %vm6448, 1.1111112, 0.0
        %v6593 = vsel %vm6449, 1.1111112, 0.0
        %v6594 = vsel %vm6450, 1.1111112, 0.0
        %v6595 = vsel %vm6451, 1.1111112, 0.0
        %v6596 = vsel %vm6452, 1.1111112, 0.0
        %v6597 = vsel %vm6453, 1.1111112, 0.0
        %v6598 = vsel %vm6454, 1.1111112, 0.0
        %v6599 = vsel %vm6455, 1.1111112, 0.0
        %v6600 = vsel %vm6456, 1.1111112, 0.0
        %v6601 = vsel %vm6457, 1.1111112, 0.0
        %v6602 = vsel %vm6458, 1.1111112, 0.0
        %v6603 = vsel %vm6459, 1.1111112, 0.0
        %v6604 = vsel %vm6460, 1.1111112, 0.0
        %v6605 = vsel %vm6461, 1.1111112, 0.0
        %v6606 = vsel %vm6462, 1.1111112, 0.0
        %v6607 = vsel %vm6463, 1.1111112, 0.0
        %v6608 = vsel %vm6464, 1.1111112, 0.0
        %v6609 = vsel %vm6465, 1.1111112, 0.0
        %v6610 = vsel %vm6466, 1.1111112, 0.0
        %v6611 = vsel %vm6467, 1.1111112, 0.0
        %v6612 = vsel %vm6468, 1.1111112, 0.0
        %v6613 = vsel %vm6469, 1.1111112, 0.0
        %v6614 = vsel %vm6470, 1.1111112, 0.0
        %v6615 = vsel %vm6471, 1.1111112, 0.0
        %v6616 = vsel %vm6472, 1.1111112, 0.0
        %v6617 = vsel %vm6473, 1.1111112, 0.0
        %v6618 = vsel %vm6474, 1.1111112, 0.0
        %v6619 = vsel %vm6475, 1.1111112, 0.0
        %v6620 = vsel %vm6476, 1.1111112, 0.0
        %v6621 = vsel %vm6477, 1.1111112, 0.0
        %v6622 = vsel %vm6478, 1.1111112, 0.0
        %v6623 = vsel %vm6479, 1.1111112, 0.0
        %v6624 = vsel %vm6480, 1.1111112, 0.0
        %v6625 = vsel %vm6481, 1.1111112, 0.0
        %v6626 = vsel %vm6482, 1.1111112, 0.0
        %v6627 = vsel %vm6483, 1.1111112, 0.0
        %v6628 = vsel %vm6484, 1.1111112, 0.0
        %v6629 = vsel %vm6485, 1.1111112, 0.0
        %v6630 = vsel %vm6486, 1.1111112, 0.0
        %v6631 = vsel %vm6487, 1.1111112, 0.0
        %v6632 = vsel %vm6488, 1.1111112, 0.0
        %v6633 = vsel %vm6489, 1.1111112, 0.0
        %v6634 = vsel %vm6490, 1.1111112, 0.0
        %v6635 = vsel %vm6491, 1.1111112, 0.0
        %v6636 = vsel %vm6492, 1.1111112, 0.0
        %v6637 = vsel %vm6493, 1.1111112, 0.0
        %v6638 = vsel %vm6494, 1.1111112, 0.0
        %v6639 = vsel %vm6495, 1.1111112, 0.0
        %v6640 = vsel %vm6496, 1.1111112, 0.0
        %v6641 = vsel %vm6497, 1.1111112, 0.0
        %v6642 = vsel %vm6498, 1.1111112, 0.0
        %v6643 = vsel %vm6499, 1.1111112, 0.0
        %v6644 = vsel %vm6500, 1.1111112, 0.0
        %v6645 = vsel %vm6501, 1.1111112, 0.0
        %v6646 = vsel %vm6502, 1.1111112, 0.0
        %v6647 = vsel %vm6503, 1.1111112, 0.0
        %v6648 = vsel %vm6504, 1.1111112, 0.0
        %v6649 = vsel %vm6505, 1.1111112, 0.0
        %v6650 = vsel %vm6506, 1.1111112, 0.0
        %v6651 = vsel %vm6507, 1.1111112, 0.0
        %v6652 = vsel %vm6508, 1.1111112, 0.0
        %v6653 = vsel %vm6509, 1.1111112, 0.0
        %v6654 = vsel %vm6510, 1.1111112, 0.0
        %v6655 = vsel %vm6511, 1.1111112, 0.0
        %v6656 = vsel %vm6512, 1.1111112, 0.0
        %v6657 = vsel %vm6513, 1.1111112, 0.0
        %v6658 = vsel %vm6514, 1.1111112, 0.0
        %v6659 = vsel %vm6515, 1.1111112, 0.0
        %v6660 = vsel %vm6516, 1.1111112, 0.0
        %v6661 = vsel %vm6517, 1.1111112, 0.0
        %v6662 = vsel %vm6518, 1.1111112, 0.0
        %v6663 = vsel %vm6519, 1.1111112, 0.0
        %v6664 = vsel %vm6520, 1.1111112, 0.0
        %v6665 = vsel %vm6521, 1.1111112, 0.0
        %v6666 = vsel %vm6522, 1.1111112, 0.0
        %v6667 = vsel %vm6523, 1.1111112, 0.0
        %v6668 = vsel %vm6524, 1.1111112, 0.0
        %v6669 = vsel %vm6525, 1.1111112, 0.0
        %v6670 = vsel %vm6526, 1.1111112, 0.0
        %v6671 = vsel %vm6527, 1.1111112, 0.0
        %v6672 = vsel %vm6528, 1.1111112, 0.0
        %v6673 = vsel %vm6529, 1.1111112, 0.0
        %v6674 = vsel %vm6530, 1.1111112, 0.0
        %v6675 = vsel %vm6531, 1.1111112, 0.0
        %v6676 = vsel %vm6532, 1.1111112, 0.0
        %v6677 = vsel %vm6533, 1.1111112, 0.0
        %v6678 = vsel %vm6534, 1.1111112, 0.0
        %v6679 = vsel %vm6535, 1.1111112, 0.0
        %v6680 = vsel %vm6536, 1.1111112, 0.0
        %v6681 = vsel %vm6537, 1.1111112, 0.0
        %v6682 = vsel %vm6538, 1.1111112, 0.0
        %v6683 = vsel %vm6539, 1.1111112, 0.0
        %v6684 = vsel %vm6540, 1.1111112, 0.0
        %v6685 = vsel %vm6541, 1.1111112, 0.0
        %v6686 = vsel %vm6542, 1.1111112, 0.0
        %v6687 = vsel %vm6543, 1.1111112, 0.0
        %v6688 = vsel %vm6544, 1.1111112, 0.0
        %v6689 = vsel %vm6545, 1.1111112, 0.0
        %v6690 = vsel %vm6546, 1.1111112, 0.0
        %v6691 = vsel %vm6547, 1.1111112, 0.0
        %v6692 = vsel %vm6548, 1.1111112, 0.0
        %v6693 = vsel %vm6549, 1.1111112, 0.0
        %v6694 = vsel %vm6550, 1.1111112, 0.0
        %v6695 = vsel %vm6551, 1.1111112, 0.0
        %v6696 = vsel %vm6552, 1.1111112, 0.0
        %v6697 = vsel %vm6553, 1.1111112, 0.0
        %v6698 = vsel %vm6554, 1.1111112, 0.0
        %v6699 = vsel %vm6555, 1.1111112, 0.0
        %v6700 = vsel %vm6556, 1.1111112, 0.0
        %v6701 = vsel %vm6557, 1.1111112, 0.0
        %v6702 = vsel %vm6558, 1.1111112, 0.0
        %v6703 = vsel %vm6559, 1.1111112, 0.0
        %v6704 = vsel %vm6560, 1.1111112, 0.0
        %v6705 = vsel %vm6561, 1.1111112, 0.0
        %v6706 = vsel %vm6562, 1.1111112, 0.0
        %v6707 = vsel %vm6563, 1.1111112, 0.0
        %v6708 = vmul.f32 %v4497, %v6564
        %v6709 = vmul.f32 %v4499, %v6565
        %v6710 = vmul.f32 %v4501, %v6566
        %v6711 = vmul.f32 %v4503, %v6567
        %v6712 = vmul.f32 %v4505, %v6568
        %v6713 = vmul.f32 %v4507, %v6569
        %v6714 = vmul.f32 %v4509, %v6570
        %v6715 = vmul.f32 %v4511, %v6571
        %v6716 = vmul.f32 %v4513, %v6572
        %v6717 = vmul.f32 %v4515, %v6573
        %v6718 = vmul.f32 %v4517, %v6574
        %v6719 = vmul.f32 %v4519, %v6575
        %v6720 = vmul.f32 %v4521, %v6576
        %v6721 = vmul.f32 %v4523, %v6577
        %v6722 = vmul.f32 %v4525, %v6578
        %v6723 = vmul.f32 %v4527, %v6579
        %v6724 = vmul.f32 %v4529, %v6580
        %v6725 = vmul.f32 %v4531, %v6581
        %v6726 = vmul.f32 %v4533, %v6582
        %v6727 = vmul.f32 %v4535, %v6583
        %v6728 = vmul.f32 %v4537, %v6584
        %v6729 = vmul.f32 %v4539, %v6585
        %v6730 = vmul.f32 %v4541, %v6586
        %v6731 = vmul.f32 %v4543, %v6587
        %v6732 = vmul.f32 %v4545, %v6588
        %v6733 = vmul.f32 %v4547, %v6589
        %v6734 = vmul.f32 %v4549, %v6590
        %v6735 = vmul.f32 %v4551, %v6591
        %v6736 = vmul.f32 %v4553, %v6592
        %v6737 = vmul.f32 %v4555, %v6593
        %v6738 = vmul.f32 %v4557, %v6594
        %v6739 = vmul.f32 %v4559, %v6595
        %v6740 = vmul.f32 %v4561, %v6596
        %v6741 = vmul.f32 %v4563, %v6597
        %v6742 = vmul.f32 %v4565, %v6598
        %v6743 = vmul.f32 %v4567, %v6599
        %v6744 = vmul.f32 %v4569, %v6600
        %v6745 = vmul.f32 %v4571, %v6601
        %v6746 = vmul.f32 %v4573, %v6602
        %v6747 = vmul.f32 %v4575, %v6603
        %v6748 = vmul.f32 %v4577, %v6604
        %v6749 = vmul.f32 %v4579, %v6605
        %v6750 = vmul.f32 %v4581, %v6606
        %v6751 = vmul.f32 %v4583, %v6607
        %v6752 = vmul.f32 %v4585, %v6608
        %v6753 = vmul.f32 %v4587, %v6609
        %v6754 = vmul.f32 %v4589, %v6610
        %v6755 = vmul.f32 %v4591, %v6611
        %v6756 = vmul.f32 %v4593, %v6612
        %v6757 = vmul.f32 %v4595, %v6613
        %v6758 = vmul.f32 %v4597, %v6614
        %v6759 = vmul.f32 %v4599, %v6615
        %v6760 = vmul.f32 %v4601, %v6616
        %v6761 = vmul.f32 %v4603, %v6617
        %v6762 = vmul.f32 %v4605, %v6618
        %v6763 = vmul.f32 %v4607, %v6619
        %v6764 = vmul.f32 %v4609, %v6620
        %v6765 = vmul.f32 %v4611, %v6621
        %v6766 = vmul.f32 %v4613, %v6622
        %v6767 = vmul.f32 %v4615, %v6623
        %v6768 = vmul.f32 %v4617, %v6624
        %v6769 = vmul.f32 %v4619, %v6625
        %v6770 = vmul.f32 %v4621, %v6626
        %v6771 = vmul.f32 %v4623, %v6627
        %v6772 = vmul.f32 %v4625, %v6628
        %v6773 = vmul.f32 %v4627, %v6629
        %v6774 = vmul.f32 %v4629, %v6630
        %v6775 = vmul.f32 %v4631, %v6631
        %v6776 = vmul.f32 %v4633, %v6632
        %v6777 = vmul.f32 %v4635, %v6633
        %v6778 = vmul.f32 %v4637, %v6634
        %v6779 = vmul.f32 %v4639, %v6635
        %v6780 = vmul.f32 %v4641, %v6636
        %v6781 = vmul.f32 %v4643, %v6637
        %v6782 = vmul.f32 %v4645, %v6638
        %v6783 = vmul.f32 %v4647, %v6639
        %v6784 = vmul.f32 %v4649, %v6640
        %v6785 = vmul.f32 %v4651, %v6641
        %v6786 = vmul.f32 %v4653, %v6642
        %v6787 = vmul.f32 %v4655, %v6643
        %v6788 = vmul.f32 %v4657, %v6644
        %v6789 = vmul.f32 %v4659, %v6645
        %v6790 = vmul.f32 %v4661, %v6646
        %v6791 = vmul.f32 %v4663, %v6647
        %v6792 = vmul.f32 %v4665, %v6648
        %v6793 = vmul.f32 %v4667, %v6649
        %v6794 = vmul.f32 %v4669, %v6650
        %v6795 = vmul.f32 %v4671, %v6651
        %v6796 = vmul.f32 %v4673, %v6652
        %v6797 = vmul.f32 %v4675, %v6653
        %v6798 = vmul.f32 %v4677, %v6654
        %v6799 = vmul.f32 %v4679, %v6655
        %v6800 = vmul.f32 %v4681, %v6656
        %v6801 = vmul.f32 %v4683, %v6657
        %v6802 = vmul.f32 %v4685, %v6658
        %v6803 = vmul.f32 %v4687, %v6659
        %v6804 = vmul.f32 %v4689, %v6660
        %v6805 = vmul.f32 %v4691, %v6661
        %v6806 = vmul.f32 %v4693, %v6662
        %v6807 = vmul.f32 %v4695, %v6663
        %v6808 = vmul.f32 %v4697, %v6664
        %v6809 = vmul.f32 %v4699, %v6665
        %v6810 = vmul.f32 %v4701, %v6666
        %v6811 = vmul.f32 %v4703, %v6667
        %v6812 = vmul.f32 %v4705, %v6668
        %v6813 = vmul.f32 %v4707, %v6669
        %v6814 = vmul.f32 %v4709, %v6670
        %v6815 = vmul.f32 %v4711, %v6671
        %v6816 = vmul.f32 %v4713, %v6672
        %v6817 = vmul.f32 %v4715, %v6673
        %v6818 = vmul.f32 %v4717, %v6674
        %v6819 = vmul.f32 %v4719, %v6675
        %v6820 = vmul.f32 %v4721, %v6676
        %v6821 = vmul.f32 %v4723, %v6677
        %v6822 = vmul.f32 %v4725, %v6678
        %v6823 = vmul.f32 %v4727, %v6679
        %v6824 = vmul.f32 %v4729, %v6680
        %v6825 = vmul.f32 %v4731, %v6681
        %v6826 = vmul.f32 %v4733, %v6682
        %v6827 = vmul.f32 %v4735, %v6683
        %v6828 = vmul.f32 %v4737, %v6684
        %v6829 = vmul.f32 %v4739, %v6685
        %v6830 = vmul.f32 %v4741, %v6686
        %v6831 = vmul.f32 %v4743, %v6687
        %v6832 = vmul.f32 %v4745, %v6688
        %v6833 = vmul.f32 %v4747, %v6689
        %v6834 = vmul.f32 %v4749, %v6690
        %v6835 = vmul.f32 %v4751, %v6691
        %v6836 = vmul.f32 %v4753, %v6692
        %v6837 = vmul.f32 %v4755, %v6693
        %v6838 = vmul.f32 %v4757, %v6694
        %v6839 = vmul.f32 %v4759, %v6695
        %v6840 = vmul.f32 %v4761, %v6696
        %v6841 = vmul.f32 %v4763, %v6697
        %v6842 = vmul.f32 %v4765, %v6698
        %v6843 = vmul.f32 %v4767, %v6699
        %v6844 = vmul.f32 %v4769, %v6700
        %v6845 = vmul.f32 %v4771, %v6701
        %v6846 = vmul.f32 %v4773, %v6702
        %v6847 = vmul.f32 %v4775, %v6703
        %v6848 = vmul.f32 %v4777, %v6704
        %v6849 = vmul.f32 %v4779, %v6705
        %v6850 = vmul.f32 %v4781, %v6706
        %v6851 = vmul.f32 %v4783, %v6707
        %v6852 = vpack.c.bf16 %v6711, %v6708
        %v6853 = vpack.c.bf16 %v6712, %v6709
        %v6854 = vpack.c.bf16 %v6713, %v6710
        %v6855 = vpack.c.bf16 %v6717, %v6714
        %v6856 = vpack.c.bf16 %v6718, %v6715
        %v6857 = vpack.c.bf16 %v6719, %v6716
        %v6858 = vpack.c.bf16 %v6723, %v6720
        %v6859 = vpack.c.bf16 %v6724, %v6721
        %v6860 = vpack.c.bf16 %v6725, %v6722
        %v6861 = vpack.c.bf16 %v6729, %v6726
        %v6862 = vpack.c.bf16 %v6730, %v6727
        %v6863 = vpack.c.bf16 %v6731, %v6728
        %v6864 = vpack.c.bf16 %v6735, %v6732
        %v6865 = vpack.c.bf16 %v6736, %v6733
        %v6866 = vpack.c.bf16 %v6737, %v6734
        %v6867 = vpack.c.bf16 %v6741, %v6738
        %v6868 = vpack.c.bf16 %v6742, %v6739
        %v6869 = vpack.c.bf16 %v6743, %v6740
        %v6870 = vpack.c.bf16 %v6747, %v6744
        %v6871 = vpack.c.bf16 %v6748, %v6745
        %v6872 = vpack.c.bf16 %v6749, %v6746
        %v6873 = vpack.c.bf16 %v6753, %v6750
        %v6874 = vpack.c.bf16 %v6754, %v6751
        %v6875 = vpack.c.bf16 %v6755, %v6752
        %v6876 = vpack.c.bf16 %v6759, %v6756
        %v6877 = vpack.c.bf16 %v6760, %v6757
        %v6878 = vpack.c.bf16 %v6761, %v6758
        %v6879 = vpack.c.bf16 %v6765, %v6762
        %v6880 = vpack.c.bf16 %v6766, %v6763
        %v6881 = vpack.c.bf16 %v6767, %v6764
        %v6882 = vpack.c.bf16 %v6771, %v6768
        %v6883 = vpack.c.bf16 %v6772, %v6769
        %v6884 = vpack.c.bf16 %v6773, %v6770
        %v6885 = vpack.c.bf16 %v6777, %v6774
        %v6886 = vpack.c.bf16 %v6778, %v6775
        %v6887 = vpack.c.bf16 %v6779, %v6776
        %v6888 = vpack.c.bf16 %v6783, %v6780
        %v6889 = vpack.c.bf16 %v6784, %v6781
        %v6890 = vpack.c.bf16 %v6785, %v6782
        %v6891 = vpack.c.bf16 %v6789, %v6786
        %v6892 = vpack.c.bf16 %v6790, %v6787
        %v6893 = vpack.c.bf16 %v6791, %v6788
        %v6894 = vpack.c.bf16 %v6795, %v6792
        %v6895 = vpack.c.bf16 %v6796, %v6793
        %v6896 = vpack.c.bf16 %v6797, %v6794
        %v6897 = vpack.c.bf16 %v6801, %v6798
        %v6898 = vpack.c.bf16 %v6802, %v6799
        %v6899 = vpack.c.bf16 %v6803, %v6800
        %v6900 = vpack.c.bf16 %v6807, %v6804
        %v6901 = vpack.c.bf16 %v6808, %v6805
        %v6902 = vpack.c.bf16 %v6809, %v6806
        %v6903 = vpack.c.bf16 %v6813, %v6810
        %v6904 = vpack.c.bf16 %v6814, %v6811
        %v6905 = vpack.c.bf16 %v6815, %v6812
        %v6906 = vpack.c.bf16 %v6819, %v6816
        %v6907 = vpack.c.bf16 %v6820, %v6817
        %v6908 = vpack.c.bf16 %v6821, %v6818
        %v6909 = vpack.c.bf16 %v6825, %v6822
        %v6910 = vpack.c.bf16 %v6826, %v6823
        %v6911 = vpack.c.bf16 %v6827, %v6824
        %v6912 = vpack.c.bf16 %v6831, %v6828
        %v6913 = vpack.c.bf16 %v6832, %v6829
        %v6914 = vpack.c.bf16 %v6833, %v6830
        %v6915 = vpack.c.bf16 %v6837, %v6834
        %v6916 = vpack.c.bf16 %v6838, %v6835
        %v6917 = vpack.c.bf16 %v6839, %v6836
        %v6918 = vpack.c.bf16 %v6843, %v6840
        %v6919 = vpack.c.bf16 %v6844, %v6841
        %v6920 = vpack.c.bf16 %v6845, %v6842
        %v6921 = vpack.c.bf16 %v6849, %v6846
        %v6922 = vpack.c.bf16 %v6850, %v6847
        %v6923 = vpack.c.bf16 %v6851, %v6848
        %s6924 = scalar_lea.vmem %s185, 384
        %v6925 = vld [vmem:[%s6924] sm:$0xff]
        %v6926 = vld [vmem:[%s6924 + $0x8] sm:$0xff]
        %v6927 = vld [vmem:[%s6924 + $0x10] sm:$0xff]
        %v6928 = vld [vmem:[%s6924 + $0x18] sm:$0xff]
        %v6929 = vld [vmem:[%s6924 + $0x20] sm:$0xff]
        %v6930 = vld [vmem:[%s6924 + $0x28] sm:$0xff]
        %v6931 = vld [vmem:[%s6924 + $0x30] sm:$0xff]
        %v6932 = vld [vmem:[%s6924 + $0x38] sm:$0xff]
        %v6933 = vld [vmem:[%s6924 + $0x40] sm:$0xff]
        %v6934 = vld [vmem:[%s6924 + $0x48] sm:$0xff]
        %v6935 = vld [vmem:[%s6924 + $0x50] sm:$0xff]
        %v6936 = vld [vmem:[%s6924 + $0x58] sm:$0xff]
        %v6937 = vld [vmem:[%s6924 + $0x60] sm:$0xff]
        %v6938 = vld [vmem:[%s6924 + $0x68] sm:$0xff]
        %v6939 = vld [vmem:[%s6924 + $0x70] sm:$0xff]
        %v6940 = vld [vmem:[%s6924 + $0x78] sm:$0xff]
        %v6941 = vld [vmem:[%s6924 + $0x80] sm:$0xff]
        %v6942 = vld [vmem:[%s6924 + $0x88] sm:$0xff]
        %v6943 = vld [vmem:[%s6924 + $0x90] sm:$0xff]
        %v6944 = vld [vmem:[%s6924 + $0x98] sm:$0xff]
        %v6945 = vld [vmem:[%s6924 + $0xa0] sm:$0xff]
        %v6946 = vld [vmem:[%s6924 + $0xa8] sm:$0xff]
        %v6947 = vld [vmem:[%s6924 + $0xb0] sm:$0xff]
        %v6948 = vld [vmem:[%s6924 + $0xb8] sm:$0xff]
        %v6949 = vld [vmem:[%s6924 + $0xc0] sm:$0xff]
        %v6950 = vld [vmem:[%s6924 + $0xc8] sm:$0xff]
        %v6951 = vld [vmem:[%s6924 + $0xd0] sm:$0xff]
        %v6952 = vld [vmem:[%s6924 + $0xd8] sm:$0xff]
        %v6953 = vld [vmem:[%s6924 + $0xe0] sm:$0xff]
        %v6954 = vld [vmem:[%s6924 + $0xe8] sm:$0xff]
        %v6955 = vld [vmem:[%s6924 + $0xf0] sm:$0xff]
        %v6956 = vld [vmem:[%s6924 + $0xf8] sm:$0xff]
        %v6957 = vld [vmem:[%s6924 + $0x100] sm:$0xff]
        %v6958 = vld [vmem:[%s6924 + $0x108] sm:$0xff]
        %v6959 = vld [vmem:[%s6924 + $0x110] sm:$0xff]
        %v6960 = vld [vmem:[%s6924 + $0x118] sm:$0xff]
        %v6961 = vld [vmem:[%s6924 + $0x120] sm:$0xff]
        %v6962 = vld [vmem:[%s6924 + $0x128] sm:$0xff]
        %v6963 = vld [vmem:[%s6924 + $0x130] sm:$0xff]
        %v6964 = vld [vmem:[%s6924 + $0x138] sm:$0xff]
        %v6965 = vld [vmem:[%s6924 + $0x140] sm:$0xff]
        %v6966 = vld [vmem:[%s6924 + $0x148] sm:$0xff]
        %v6967 = vld [vmem:[%s6924 + $0x150] sm:$0xff]
        %v6968 = vld [vmem:[%s6924 + $0x158] sm:$0xff]
        %v6969 = vld [vmem:[%s6924 + $0x160] sm:$0xff]
        %v6970 = vld [vmem:[%s6924 + $0x168] sm:$0xff]
        %v6971 = vld [vmem:[%s6924 + $0x170] sm:$0xff]
        %v6972 = vld [vmem:[%s6924 + $0x178] sm:$0xff]
        %v6973 = vpack.c.bf16 %v6926, %v6925
        %v6974 = vpack.c.bf16 %v6928, %v6927
        %v6975 = vpack.c.bf16 %v6930, %v6929
        %v6976 = vpack.c.bf16 %v6932, %v6931
        %v6977 = vpack.c.bf16 %v6934, %v6933
        %v6978 = vpack.c.bf16 %v6936, %v6935
        %v6979 = vpack.c.bf16 %v6938, %v6937
        %v6980 = vpack.c.bf16 %v6940, %v6939
        %v6981 = vpack.c.bf16 %v6942, %v6941
        %v6982 = vpack.c.bf16 %v6944, %v6943
        %v6983 = vpack.c.bf16 %v6946, %v6945
        %v6984 = vpack.c.bf16 %v6948, %v6947
        %v6985 = vpack.c.bf16 %v6950, %v6949
        %v6986 = vpack.c.bf16 %v6952, %v6951
        %v6987 = vpack.c.bf16 %v6954, %v6953
        %v6988 = vpack.c.bf16 %v6956, %v6955
        %v6989 = vpack.c.bf16 %v6958, %v6957
        %v6990 = vpack.c.bf16 %v6960, %v6959
        %v6991 = vpack.c.bf16 %v6962, %v6961
        %v6992 = vpack.c.bf16 %v6964, %v6963
        %v6993 = vpack.c.bf16 %v6966, %v6965
        %v6994 = vpack.c.bf16 %v6968, %v6967
        %v6995 = vpack.c.bf16 %v6970, %v6969
        %v6996 = vpack.c.bf16 %v6972, %v6971
        %6997 = vmatprep.subr.bf16.mxu0 0
        %6998 = vmatpush1.bf16.msra.mxu0 %v6973
        %6999 = vmatprep.subr.bf16.mxu0 0
        %7000 = vmatpush1.bf16.msra.mxu0 %v6974
        %7001 = vmatprep.subr.bf16.mxu0 0
        %7002 = vmatpush1.bf16.msra.mxu0 %v6975
        %7003 = vmatprep.subr.bf16.mxu0 0
        %7004 = vmatpush1.bf16.msra.mxu0 %v6976
        %7005 = vmatprep.subr.bf16.mxu0 0
        %7006 = vmatpush1.bf16.msra.mxu0 %v6977
        %7007 = vmatprep.subr.bf16.mxu0 0
        %7008 = vmatpush1.bf16.msra.mxu0 %v6978
        %7009 = vmatprep.subr.bf16.mxu0 0
        %7010 = vmatpush1.bf16.msra.mxu0 %v6979
        %7011 = vmatprep.subr.bf16.mxu0 0
        %7012 = vmatpush1.bf16.msra.mxu0 %v6980
        %7013 = vmatprep.subr.bf16.mxu0 0
        %7014 = vmatpush1.bf16.msra.mxu0 %v6981
        %7015 = vmatprep.subr.bf16.mxu0 0
        %7016 = vmatpush1.bf16.msra.mxu0 %v6982
        %7017 = vmatprep.subr.bf16.mxu0 0
        %7018 = vmatpush1.bf16.msra.mxu0 %v6983
        %7019 = vmatprep.subr.bf16.mxu0 0
        %7020 = vmatpush1.bf16.msra.mxu0 %v6984
        %7021 = vmatprep.subr.bf16.mxu0 0
        %7022 = vmatpush1.bf16.msra.mxu0 %v6985
        %7023 = vmatprep.subr.bf16.mxu0 0
        %7024 = vmatpush1.bf16.msra.mxu0 %v6986
        %7025 = vmatprep.subr.bf16.mxu0 0
        %7026 = vmatpush1.bf16.msra.mxu0 %v6987
        %7027 = vmatprep.subr.bf16.mxu0 0
        %7028 = vmatpush1.bf16.msra.mxu0 %v6988
        %7029 = vmatprep.mubr.bf16.mxu0 %v6853
        %7030 = vmatmul.mubr.bf16.gmra.mrb[0].mxu0 %v6852
        %v7031 = vpop.f32.mrb[0].mxu0
        %v7032 = vadd.f32 0.0, %v7031
        %v7033 = vpop.f32.mrb[0].mxu0
        %v7034 = vpop.f32.mrb[0].mxu0
        %v7035 = vadd.f32 0.0, %v7034
        %v7036 = vpop.f32.mrb[0].mxu0
        %7037 = vmatprep.mubr.bf16.mxu0 %v6856
        %7038 = vmatmul.mubr.bf16.gmra.mrb[0].mxu0 %v6855
        %v7039 = vpop.f32.mrb[0].mxu0
        %v7040 = vadd.f32 0.0, %v7039
        %v7041 = vpop.f32.mrb[0].mxu0
        %v7042 = vpop.f32.mrb[0].mxu0
        %v7043 = vadd.f32 0.0, %v7042
        %v7044 = vpop.f32.mrb[0].mxu0
        %7045 = vmatprep.mubr.bf16.mxu0 %v6859
        %7046 = vmatmul.mubr.bf16.gmra.mrb[0].mxu0 %v6858
        %v7047 = vpop.f32.mrb[0].mxu0
        %v7048 = vadd.f32 0.0, %v7047
        %v7049 = vpop.f32.mrb[0].mxu0
        %v7050 = vpop.f32.mrb[0].mxu0
        %v7051 = vadd.f32 0.0, %v7050
        %v7052 = vpop.f32.mrb[0].mxu0
        %7053 = vmatprep.mubr.bf16.mxu0 %v6862
        %7054 = vmatmul.mubr.bf16.gmra.mrb[0].mxu0 %v6861
        %v7055 = vpop.f32.mrb[0].mxu0
        %v7056 = vadd.f32 0.0, %v7055
        %v7057 = vpop.f32.mrb[0].mxu0
        %v7058 = vpop.f32.mrb[0].mxu0
        %v7059 = vadd.f32 0.0, %v7058
        %v7060 = vpop.f32.mrb[0].mxu0
        %7061 = vmatprep.mubr.bf16.mxu0 %v6865
        %7062 = vmatmul.mubr.bf16.gmra.mrb[0].mxu0 %v6864
        %v7063 = vpop.f32.mrb[0].mxu0
        %v7064 = vadd.f32 0.0, %v7063
        %v7065 = vpop.f32.mrb[0].mxu0
        %v7066 = vpop.f32.mrb[0].mxu0
        %v7067 = vadd.f32 0.0, %v7066
        %v7068 = vpop.f32.mrb[0].mxu0
        %7069 = vmatprep.mubr.bf16.mxu0 %v6868
        %7070 = vmatmul.mubr.bf16.gmra.mrb[0].mxu0 %v6867
        %v7071 = vpop.f32.mrb[0].mxu0
        %v7072 = vadd.f32 0.0, %v7071
        %v7073 = vpop.f32.mrb[0].mxu0
        %v7074 = vpop.f32.mrb[0].mxu0
        %v7075 = vadd.f32 0.0, %v7074
        %v7076 = vpop.f32.mrb[0].mxu0
        %7077 = vmatprep.mubr.bf16.mxu0 %v6871
        %7078 = vmatmul.mubr.bf16.gmra.mrb[0].mxu0 %v6870
        %v7079 = vpop.f32.mrb[0].mxu0
        %v7080 = vadd.f32 0.0, %v7079
        %v7081 = vpop.f32.mrb[0].mxu0
        %v7082 = vpop.f32.mrb[0].mxu0
        %v7083 = vadd.f32 0.0, %v7082
        %v7084 = vpop.f32.mrb[0].mxu0
        %7085 = vmatprep.mubr.bf16.mxu0 %v6874
        %7086 = vmatmul.mubr.bf16.gmra.mrb[0].mxu0 %v6873
        %v7087 = vpop.f32.mrb[0].mxu0
        %v7088 = vadd.f32 0.0, %v7087
        %v7089 = vpop.f32.mrb[0].mxu0
        %v7090 = vpop.f32.mrb[0].mxu0
        %v7091 = vadd.f32 0.0, %v7090
        %v7092 = vpop.f32.mrb[0].mxu0
        %7093 = vmatprep.mubr.bf16.mxu0 %v6877
        %7094 = vmatmul.mubr.bf16.gmra.mrb[0].mxu0 %v6876
        %v7095 = vpop.f32.mrb[0].mxu0
        %v7096 = vadd.f32 0.0, %v7095
        %v7097 = vpop.f32.mrb[0].mxu0
        %v7098 = vpop.f32.mrb[0].mxu0
        %v7099 = vadd.f32 0.0, %v7098
        %v7100 = vpop.f32.mrb[0].mxu0
        %7101 = vmatprep.mubr.bf16.mxu0 %v6880
        %7102 = vmatmul.mubr.bf16.gmra.mrb[0].mxu0 %v6879
        %v7103 = vpop.f32.mrb[0].mxu0
        %v7104 = vadd.f32 0.0, %v7103
        %v7105 = vpop.f32.mrb[0].mxu0
        %v7106 = vpop.f32.mrb[0].mxu0
        %v7107 = vadd.f32 0.0, %v7106
        %v7108 = vpop.f32.mrb[0].mxu0
        %7109 = vmatprep.mubr.bf16.mxu0 %v6883
        %7110 = vmatmul.mubr.bf16.gmra.mrb[0].mxu0 %v6882
        %v7111 = vpop.f32.mrb[0].mxu0
        %v7112 = vadd.f32 0.0, %v7111
        %v7113 = vpop.f32.mrb[0].mxu0
        %v7114 = vpop.f32.mrb[0].mxu0
        %v7115 = vadd.f32 0.0, %v7114
        %v7116 = vpop.f32.mrb[0].mxu0
        %7117 = vmatprep.mubr.bf16.mxu0 %v6886
        %7118 = vmatmul.mubr.bf16.gmra.mrb[0].mxu0 %v6885
        %v7119 = vpop.f32.mrb[0].mxu0
        %v7120 = vadd.f32 0.0, %v7119
        %v7121 = vpop.f32.mrb[0].mxu0
        %v7122 = vpop.f32.mrb[0].mxu0
        %v7123 = vadd.f32 0.0, %v7122
        %v7124 = vpop.f32.mrb[0].mxu0
        %7125 = vmatprep.mubr.bf16.mxu0 %v6889
        %7126 = vmatmul.mubr.bf16.gmra.mrb[0].mxu0 %v6888
        %v7127 = vpop.f32.mrb[0].mxu0
        %v7128 = vadd.f32 0.0, %v7127
        %v7129 = vpop.f32.mrb[0].mxu0
        %v7130 = vpop.f32.mrb[0].mxu0
        %v7131 = vadd.f32 0.0, %v7130
        %v7132 = vpop.f32.mrb[0].mxu0
        %7133 = vmatprep.mubr.bf16.mxu0 %v6892
        %7134 = vmatmul.mubr.bf16.gmra.mrb[0].mxu0 %v6891
        %v7135 = vpop.f32.mrb[0].mxu0
        %v7136 = vadd.f32 0.0, %v7135
        %v7137 = vpop.f32.mrb[0].mxu0
        %v7138 = vpop.f32.mrb[0].mxu0
        %v7139 = vadd.f32 0.0, %v7138
        %v7140 = vpop.f32.mrb[0].mxu0
        %7141 = vmatprep.mubr.bf16.mxu0 %v6895
        %7142 = vmatmul.mubr.bf16.gmra.mrb[0].mxu0 %v6894
        %v7143 = vpop.f32.mrb[0].mxu0
        %v7144 = vadd.f32 0.0, %v7143
        %v7145 = vpop.f32.mrb[0].mxu0
        %v7146 = vpop.f32.mrb[0].mxu0
        %v7147 = vadd.f32 0.0, %v7146
        %v7148 = vpop.f32.mrb[0].mxu0
        %7149 = vmatprep.mubr.bf16.mxu0 %v6898
        %7150 = vmatmul.mubr.bf16.gmra.mrb[0].mxu0 %v6897
        %v7151 = vpop.f32.mrb[0].mxu0
        %v7152 = vadd.f32 0.0, %v7151
        %v7153 = vpop.f32.mrb[0].mxu0
        %v7154 = vpop.f32.mrb[0].mxu0
        %v7155 = vadd.f32 0.0, %v7154
        %v7156 = vpop.f32.mrb[0].mxu0
        %7157 = vmatprep.mubr.bf16.mxu0 %v6901
        %7158 = vmatmul.mubr.bf16.gmra.mrb[0].mxu0 %v6900
        %v7159 = vpop.f32.mrb[0].mxu0
        %v7160 = vadd.f32 0.0, %v7159
        %v7161 = vpop.f32.mrb[0].mxu0
        %v7162 = vpop.f32.mrb[0].mxu0
        %v7163 = vadd.f32 0.0, %v7162
        %v7164 = vpop.f32.mrb[0].mxu0
        %7165 = vmatprep.mubr.bf16.mxu0 %v6904
        %7166 = vmatmul.mubr.bf16.gmra.mrb[0].mxu0 %v6903
        %v7167 = vpop.f32.mrb[0].mxu0
        %v7168 = vadd.f32 0.0, %v7167
        %v7169 = vpop.f32.mrb[0].mxu0
        %v7170 = vpop.f32.mrb[0].mxu0
        %v7171 = vadd.f32 0.0, %v7170
        %v7172 = vpop.f32.mrb[0].mxu0
        %7173 = vmatprep.mubr.bf16.mxu0 %v6907
        %7174 = vmatmul.mubr.bf16.gmra.mrb[0].mxu0 %v6906
        %v7175 = vpop.f32.mrb[0].mxu0
        %v7176 = vadd.f32 0.0, %v7175
        %v7177 = vpop.f32.mrb[0].mxu0
        %v7178 = vpop.f32.mrb[0].mxu0
        %v7179 = vadd.f32 0.0, %v7178
        %v7180 = vpop.f32.mrb[0].mxu0
        %7181 = vmatprep.mubr.bf16.mxu0 %v6910
        %7182 = vmatmul.mubr.bf16.gmra.mrb[0].mxu0 %v6909
        %v7183 = vpop.f32.mrb[0].mxu0
        %v7184 = vadd.f32 0.0, %v7183
        %v7185 = vpop.f32.mrb[0].mxu0
        %v7186 = vpop.f32.mrb[0].mxu0
        %v7187 = vadd.f32 0.0, %v7186
        %v7188 = vpop.f32.mrb[0].mxu0
        %7189 = vmatprep.mubr.bf16.mxu0 %v6913
        %7190 = vmatmul.mubr.bf16.gmra.mrb[0].mxu0 %v6912
        %v7191 = vpop.f32.mrb[0].mxu0
        %v7192 = vadd.f32 0.0, %v7191
        %v7193 = vpop.f32.mrb[0].mxu0
        %v7194 = vpop.f32.mrb[0].mxu0
        %v7195 = vadd.f32 0.0, %v7194
        %v7196 = vpop.f32.mrb[0].mxu0
        %7197 = vmatprep.mubr.bf16.mxu0 %v6916
        %7198 = vmatmul.mubr.bf16.gmra.mrb[0].mxu0 %v6915
        %v7199 = vpop.f32.mrb[0].mxu0
        %v7200 = vadd.f32 0.0, %v7199
        %v7201 = vpop.f32.mrb[0].mxu0
        %v7202 = vpop.f32.mrb[0].mxu0
        %v7203 = vadd.f32 0.0, %v7202
        %v7204 = vpop.f32.mrb[0].mxu0
        %7205 = vmatprep.mubr.bf16.mxu0 %v6919
        %7206 = vmatmul.mubr.bf16.gmra.mrb[0].mxu0 %v6918
        %v7207 = vpop.f32.mrb[0].mxu0
        %v7208 = vadd.f32 0.0, %v7207
        %v7209 = vpop.f32.mrb[0].mxu0
        %v7210 = vpop.f32.mrb[0].mxu0
        %v7211 = vadd.f32 0.0, %v7210
        %v7212 = vpop.f32.mrb[0].mxu0
        %7213 = vmatprep.mubr.bf16.mxu0 %v6922
        %7214 = vmatmul.mubr.bf16.gmra.mrb[0].mxu0 %v6921
        %v7215 = vpop.f32.mrb[0].mxu0
        %v7216 = vadd.f32 0.0, %v7215
        %v7217 = vpop.f32.mrb[0].mxu0
        %v7218 = vpop.f32.mrb[0].mxu0
        %v7219 = vadd.f32 0.0, %v7218
        %v7220 = vpop.f32.mrb[0].mxu0
        %7221 = vdwg.mxu0
        %7222 = vmatprep.subr.bf16.mxu0 0
        %7223 = vmatpush1.bf16.msra.mxu0 %v6989
        %7224 = vmatprep.subr.bf16.mxu0 0
        %7225 = vmatpush1.bf16.msra.mxu0 %v6990
        %7226 = vmatprep.subr.bf16.mxu0 0
        %7227 = vmatpush1.bf16.msra.mxu0 %v6991
        %7228 = vmatprep.subr.bf16.mxu0 0
        %7229 = vmatpush1.bf16.msra.mxu0 %v6992
        %7230 = vmatprep.subr.bf16.mxu0 0
        %7231 = vmatpush1.bf16.msra.mxu0 %v6993
        %7232 = vmatprep.subr.bf16.mxu0 0
        %7233 = vmatpush1.bf16.msra.mxu0 %v6994
        %7234 = vmatprep.subr.bf16.mxu0 0
        %7235 = vmatpush1.bf16.msra.mxu0 %v6995
        %7236 = vmatprep.subr.bf16.mxu0 0
        %7237 = vmatpush1.bf16.msra.mxu0 %v6996
        %7238 = vmatprep.subr.bf16.mxu0 0
        %7239 = vmatpush1.bf16.msra.mxu0 0
        %7240 = vmatprep.subr.bf16.mxu0 0
        %7241 = vmatpush1.bf16.msra.mxu0 0
        %7242 = vmatprep.subr.bf16.mxu0 0
        %7243 = vmatpush1.bf16.msra.mxu0 0
        %7244 = vmatprep.subr.bf16.mxu0 0
        %7245 = vmatpush1.bf16.msra.mxu0 0
        %7246 = vmatprep.subr.bf16.mxu0 0
        %7247 = vmatpush1.bf16.msra.mxu0 0
        %7248 = vmatprep.subr.bf16.mxu0 0
        %7249 = vmatpush1.bf16.msra.mxu0 0
        %7250 = vmatprep.subr.bf16.mxu0 0
        %7251 = vmatpush1.bf16.msra.mxu0 0
        %7252 = vmatprep.subr.bf16.mxu0 0
        %7253 = vmatpush1.bf16.msra.mxu0 0
        %7254 = vmatprep.mubr.bf16.mxu0 0
        %7255 = vmatmul.mubr.bf16.gmra.mrb[0].mxu0 %v6854
        %v7256 = vpop.f32.mrb[0].mxu0
        %v7257 = vadd.f32 %v7032, %v7256
        %v7258 = vpop.f32.mrb[0].mxu0
        %v7259 = vpop.f32.mrb[0].mxu0
        %v7260 = vadd.f32 %v7035, %v7259
        %v7261 = vpop.f32.mrb[0].mxu0
        %7262 = vmatprep.mubr.bf16.mxu0 0
        %7263 = vmatmul.mubr.bf16.gmra.mrb[0].mxu0 %v6857
        %v7264 = vpop.f32.mrb[0].mxu0
        %v7265 = vadd.f32 %v7040, %v7264
        %v7266 = vpop.f32.mrb[0].mxu0
        %v7267 = vpop.f32.mrb[0].mxu0
        %v7268 = vadd.f32 %v7043, %v7267
        %v7269 = vpop.f32.mrb[0].mxu0
        %7270 = vmatprep.mubr.bf16.mxu0 0
        %7271 = vmatmul.mubr.bf16.gmra.mrb[0].mxu0 %v6860
        %v7272 = vpop.f32.mrb[0].mxu0
        %v7273 = vadd.f32 %v7048, %v7272
        %v7274 = vpop.f32.mrb[0].mxu0
        %v7275 = vpop.f32.mrb[0].mxu0
        %v7276 = vadd.f32 %v7051, %v7275
        %v7277 = vpop.f32.mrb[0].mxu0
        %7278 = vmatprep.mubr.bf16.mxu0 0
        %7279 = vmatmul.mubr.bf16.gmra.mrb[0].mxu0 %v6863
        %v7280 = vpop.f32.mrb[0].mxu0
        %v7281 = vadd.f32 %v7056, %v7280
        %v7282 = vpop.f32.mrb[0].mxu0
        %v7283 = vpop.f32.mrb[0].mxu0
        %v7284 = vadd.f32 %v7059, %v7283
        %v7285 = vpop.f32.mrb[0].mxu0
        %7286 = vmatprep.mubr.bf16.mxu0 0
        %7287 = vmatmul.mubr.bf16.gmra.mrb[0].mxu0 %v6866
        %v7288 = vpop.f32.mrb[0].mxu0
        %v7289 = vadd.f32 %v7064, %v7288
        %v7290 = vpop.f32.mrb[0].mxu0
        %v7291 = vpop.f32.mrb[0].mxu0
        %v7292 = vadd.f32 %v7067, %v7291
        %v7293 = vpop.f32.mrb[0].mxu0
        %7294 = vmatprep.mubr.bf16.mxu0 0
        %7295 = vmatmul.mubr.bf16.gmra.mrb[0].mxu0 %v6869
        %v7296 = vpop.f32.mrb[0].mxu0
        %v7297 = vadd.f32 %v7072, %v7296
        %v7298 = vpop.f32.mrb[0].mxu0
        %v7299 = vpop.f32.mrb[0].mxu0
        %v7300 = vadd.f32 %v7075, %v7299
        %v7301 = vpop.f32.mrb[0].mxu0
        %7302 = vmatprep.mubr.bf16.mxu0 0
        %7303 = vmatmul.mubr.bf16.gmra.mrb[0].mxu0 %v6872
        %v7304 = vpop.f32.mrb[0].mxu0
        %v7305 = vadd.f32 %v7080, %v7304
        %v7306 = vpop.f32.mrb[0].mxu0
        %v7307 = vpop.f32.mrb[0].mxu0
        %v7308 = vadd.f32 %v7083, %v7307
        %v7309 = vpop.f32.mrb[0].mxu0
        %7310 = vmatprep.mubr.bf16.mxu0 0
        %7311 = vmatmul.mubr.bf16.gmra.mrb[0].mxu0 %v6875
        %v7312 = vpop.f32.mrb[0].mxu0
        %v7313 = vadd.f32 %v7088, %v7312
        %v7314 = vpop.f32.mrb[0].mxu0
        %v7315 = vpop.f32.mrb[0].mxu0
        %v7316 = vadd.f32 %v7091, %v7315
        %v7317 = vpop.f32.mrb[0].mxu0
        %7318 = vmatprep.mubr.bf16.mxu0 0
        %7319 = vmatmul.mubr.bf16.gmra.mrb[0].mxu0 %v6878
        %v7320 = vpop.f32.mrb[0].mxu0
        %v7321 = vadd.f32 %v7096, %v7320
        %v7322 = vpop.f32.mrb[0].mxu0
        %v7323 = vpop.f32.mrb[0].mxu0
        %v7324 = vadd.f32 %v7099, %v7323
        %v7325 = vpop.f32.mrb[0].mxu0
        %7326 = vmatprep.mubr.bf16.mxu0 0
        %7327 = vmatmul.mubr.bf16.gmra.mrb[0].mxu0 %v6881
        %v7328 = vpop.f32.mrb[0].mxu0
        %v7329 = vadd.f32 %v7104, %v7328
        %v7330 = vpop.f32.mrb[0].mxu0
        %v7331 = vpop.f32.mrb[0].mxu0
        %v7332 = vadd.f32 %v7107, %v7331
        %v7333 = vpop.f32.mrb[0].mxu0
        %7334 = vmatprep.mubr.bf16.mxu0 0
        %7335 = vmatmul.mubr.bf16.gmra.mrb[0].mxu0 %v6884
        %v7336 = vpop.f32.mrb[0].mxu0
        %v7337 = vadd.f32 %v7112, %v7336
        %v7338 = vpop.f32.mrb[0].mxu0
        %v7339 = vpop.f32.mrb[0].mxu0
        %v7340 = vadd.f32 %v7115, %v7339
        %v7341 = vpop.f32.mrb[0].mxu0
        %7342 = vmatprep.mubr.bf16.mxu0 0
        %7343 = vmatmul.mubr.bf16.gmra.mrb[0].mxu0 %v6887
        %v7344 = vpop.f32.mrb[0].mxu0
        %v7345 = vadd.f32 %v7120, %v7344
        %v7346 = vpop.f32.mrb[0].mxu0
        %v7347 = vpop.f32.mrb[0].mxu0
        %v7348 = vadd.f32 %v7123, %v7347
        %v7349 = vpop.f32.mrb[0].mxu0
        %7350 = vmatprep.mubr.bf16.mxu0 0
        %7351 = vmatmul.mubr.bf16.gmra.mrb[0].mxu0 %v6890
        %v7352 = vpop.f32.mrb[0].mxu0
        %v7353 = vadd.f32 %v7128, %v7352
        %v7354 = vpop.f32.mrb[0].mxu0
        %v7355 = vpop.f32.mrb[0].mxu0
        %v7356 = vadd.f32 %v7131, %v7355
        %v7357 = vpop.f32.mrb[0].mxu0
        %7358 = vmatprep.mubr.bf16.mxu0 0
        %7359 = vmatmul.mubr.bf16.gmra.mrb[0].mxu0 %v6893
        %v7360 = vpop.f32.mrb[0].mxu0
        %v7361 = vadd.f32 %v7136, %v7360
        %v7362 = vpop.f32.mrb[0].mxu0
        %v7363 = vpop.f32.mrb[0].mxu0
        %v7364 = vadd.f32 %v7139, %v7363
        %v7365 = vpop.f32.mrb[0].mxu0
        %7366 = vmatprep.mubr.bf16.mxu0 0
        %7367 = vmatmul.mubr.bf16.gmra.mrb[0].mxu0 %v6896
        %v7368 = vpop.f32.mrb[0].mxu0
        %v7369 = vadd.f32 %v7144, %v7368
        %v7370 = vpop.f32.mrb[0].mxu0
        %v7371 = vpop.f32.mrb[0].mxu0
        %v7372 = vadd.f32 %v7147, %v7371
        %v7373 = vpop.f32.mrb[0].mxu0
        %7374 = vmatprep.mubr.bf16.mxu0 0
        %7375 = vmatmul.mubr.bf16.gmra.mrb[0].mxu0 %v6899
        %v7376 = vpop.f32.mrb[0].mxu0
        %v7377 = vadd.f32 %v7152, %v7376
        %v7378 = vpop.f32.mrb[0].mxu0
        %v7379 = vpop.f32.mrb[0].mxu0
        %v7380 = vadd.f32 %v7155, %v7379
        %v7381 = vpop.f32.mrb[0].mxu0
        %7382 = vmatprep.mubr.bf16.mxu0 0
        %7383 = vmatmul.mubr.bf16.gmra.mrb[0].mxu0 %v6902
        %v7384 = vpop.f32.mrb[0].mxu0
        %v7385 = vadd.f32 %v7160, %v7384
        %v7386 = vpop.f32.mrb[0].mxu0
        %v7387 = vpop.f32.mrb[0].mxu0
        %v7388 = vadd.f32 %v7163, %v7387
        %v7389 = vpop.f32.mrb[0].mxu0
        %7390 = vmatprep.mubr.bf16.mxu0 0
        %7391 = vmatmul.mubr.bf16.gmra.mrb[0].mxu0 %v6905
        %v7392 = vpop.f32.mrb[0].mxu0
        %v7393 = vadd.f32 %v7168, %v7392
        %v7394 = vpop.f32.mrb[0].mxu0
        %v7395 = vpop.f32.mrb[0].mxu0
        %v7396 = vadd.f32 %v7171, %v7395
        %v7397 = vpop.f32.mrb[0].mxu0
        %7398 = vmatprep.mubr.bf16.mxu0 0
        %7399 = vmatmul.mubr.bf16.gmra.mrb[0].mxu0 %v6908
        %v7400 = vpop.f32.mrb[0].mxu0
        %v7401 = vadd.f32 %v7176, %v7400
        %v7402 = vpop.f32.mrb[0].mxu0
        %v7403 = vpop.f32.mrb[0].mxu0
        %v7404 = vadd.f32 %v7179, %v7403
        %v7405 = vpop.f32.mrb[0].mxu0
        %7406 = vmatprep.mubr.bf16.mxu0 0
        %7407 = vmatmul.mubr.bf16.gmra.mrb[0].mxu0 %v6911
        %v7408 = vpop.f32.mrb[0].mxu0
        %v7409 = vadd.f32 %v7184, %v7408
        %v7410 = vpop.f32.mrb[0].mxu0
        %v7411 = vpop.f32.mrb[0].mxu0
        %v7412 = vadd.f32 %v7187, %v7411
        %v7413 = vpop.f32.mrb[0].mxu0
        %7414 = vmatprep.mubr.bf16.mxu0 0
        %7415 = vmatmul.mubr.bf16.gmra.mrb[0].mxu0 %v6914
        %v7416 = vpop.f32.mrb[0].mxu0
        %v7417 = vadd.f32 %v7192, %v7416
        %v7418 = vpop.f32.mrb[0].mxu0
        %v7419 = vpop.f32.mrb[0].mxu0
        %v7420 = vadd.f32 %v7195, %v7419
        %v7421 = vpop.f32.mrb[0].mxu0
        %7422 = vmatprep.mubr.bf16.mxu0 0
        %7423 = vmatmul.mubr.bf16.gmra.mrb[0].mxu0 %v6917
        %v7424 = vpop.f32.mrb[0].mxu0
        %v7425 = vadd.f32 %v7200, %v7424
        %v7426 = vpop.f32.mrb[0].mxu0
        %v7427 = vpop.f32.mrb[0].mxu0
        %v7428 = vadd.f32 %v7203, %v7427
        %v7429 = vpop.f32.mrb[0].mxu0
        %7430 = vmatprep.mubr.bf16.mxu0 0
        %7431 = vmatmul.mubr.bf16.gmra.mrb[0].mxu0 %v6920
        %v7432 = vpop.f32.mrb[0].mxu0
        %v7433 = vadd.f32 %v7208, %v7432
        %v7434 = vpop.f32.mrb[0].mxu0
        %v7435 = vpop.f32.mrb[0].mxu0
        %v7436 = vadd.f32 %v7211, %v7435
        %v7437 = vpop.f32.mrb[0].mxu0
        %7438 = vmatprep.mubr.bf16.mxu0 0
        %7439 = vmatmul.mubr.bf16.gmra.mrb[0].mxu0 %v6923
        %v7440 = vpop.f32.mrb[0].mxu0
        %v7441 = vadd.f32 %v7216, %v7440
        %v7442 = vpop.f32.mrb[0].mxu0
        %v7443 = vpop.f32.mrb[0].mxu0
        %v7444 = vadd.f32 %v7219, %v7443
        %v7445 = vpop.f32.mrb[0].mxu0
        %7446 = vdwg.mxu0
        %v7447 = vrcp.pop %v4787
        %v7448 = vrcp.pop %v4791
        %v7449 = vrcp.pop %v4795
        %v7450 = vrcp.pop %v4799
        %v7451 = vrcp.pop %v4803
        %v7452 = vrcp.pop %v4807
        %v7453 = vrcp.pop %v4811
        %v7454 = vrcp.pop %v4815
        %v7455 = vrcp.pop %v4819
        %v7456 = vrcp.pop %v4823
        %v7457 = vrcp.pop %v4827
        %v7458 = vrcp.pop %v4831
        %v7459 = vrcp.pop %v4835
        %v7460 = vrcp.pop %v4839
        %v7461 = vrcp.pop %v4843
        %v7462 = vrcp.pop %v4847
        %v7463 = vrcp.pop %v4851
        %v7464 = vrcp.pop %v4855
        %v7465 = vrcp.pop %v4859
        %v7466 = vrcp.pop %v4863
        %v7467 = vrcp.pop %v4867
        %v7468 = vrcp.pop %v4871
        %v7469 = vrcp.pop %v4875
        %v7470 = vrcp.pop %v4879
        %v7471 = vrcp.pop %v4883
        %v7472 = vrcp.pop %v4887
        %v7473 = vrcp.pop %v4891
        %v7474 = vrcp.pop %v4895
        %v7475 = vrcp.pop %v4899
        %v7476 = vrcp.pop %v4903
        %v7477 = vrcp.pop %v4907
        %v7478 = vrcp.pop %v4911
        %v7479 = vrcp.pop %v4915
        %v7480 = vrcp.pop %v4919
        %v7481 = vrcp.pop %v4923
        %v7482 = vrcp.pop %v4927
        %v7483 = vrcp.pop %v4931
        %v7484 = vrcp.pop %v4935
        %v7485 = vrcp.pop %v4939
        %v7486 = vrcp.pop %v4943
        %v7487 = vrcp.pop %v4947
        %v7488 = vrcp.pop %v4951
        %v7489 = vrcp.pop %v4955
        %v7490 = vrcp.pop %v4959
        %v7491 = vrcp.pop %v4963
        %v7492 = vrcp.pop %v4967
        %v7493 = vrcp.pop %v4971
        %v7494 = vrcp.pop %v4975
        %v7495 = vmul.f32 %v7257, %v7447
        %v7496 = vmul.f32 %v7260, %v7448
        %v7497 = vmul.f32 %v7265, %v7449
        %v7498 = vmul.f32 %v7268, %v7450
        %v7499 = vmul.f32 %v7273, %v7451
        %v7500 = vmul.f32 %v7276, %v7452
        %v7501 = vmul.f32 %v7281, %v7453
        %v7502 = vmul.f32 %v7284, %v7454
        %v7503 = vmul.f32 %v7289, %v7455
        %v7504 = vmul.f32 %v7292, %v7456
        %v7505 = vmul.f32 %v7297, %v7457
        %v7506 = vmul.f32 %v7300, %v7458
        %v7507 = vmul.f32 %v7305, %v7459
        %v7508 = vmul.f32 %v7308, %v7460
        %v7509 = vmul.f32 %v7313, %v7461
        %v7510 = vmul.f32 %v7316, %v7462
        %v7511 = vmul.f32 %v7321, %v7463
        %v7512 = vmul.f32 %v7324, %v7464
        %v7513 = vmul.f32 %v7329, %v7465
        %v7514 = vmul.f32 %v7332, %v7466
        %v7515 = vmul.f32 %v7337, %v7467
        %v7516 = vmul.f32 %v7340, %v7468
        %v7517 = vmul.f32 %v7345, %v7469
        %v7518 = vmul.f32 %v7348, %v7470
        %v7519 = vmul.f32 %v7353, %v7471
        %v7520 = vmul.f32 %v7356, %v7472
        %v7521 = vmul.f32 %v7361, %v7473
        %v7522 = vmul.f32 %v7364, %v7474
        %v7523 = vmul.f32 %v7369, %v7475
        %v7524 = vmul.f32 %v7372, %v7476
        %v7525 = vmul.f32 %v7377, %v7477
        %v7526 = vmul.f32 %v7380, %v7478
        %v7527 = vmul.f32 %v7385, %v7479
        %v7528 = vmul.f32 %v7388, %v7480
        %v7529 = vmul.f32 %v7393, %v7481
        %v7530 = vmul.f32 %v7396, %v7482
        %v7531 = vmul.f32 %v7401, %v7483
        %v7532 = vmul.f32 %v7404, %v7484
        %v7533 = vmul.f32 %v7409, %v7485
        %v7534 = vmul.f32 %v7412, %v7486
        %v7535 = vmul.f32 %v7417, %v7487
        %v7536 = vmul.f32 %v7420, %v7488
        %v7537 = vmul.f32 %v7425, %v7489
        %v7538 = vmul.f32 %v7428, %v7490
        %v7539 = vmul.f32 %v7433, %v7491
        %v7540 = vmul.f32 %v7436, %v7492
        %v7541 = vmul.f32 %v7441, %v7493
        %v7542 = vmul.f32 %v7444, %v7494
        %s7543 = scalar_lea.vmem %s192, 384
        %7544 = vst.msk [vmem:[%s7543] sm:$0xff] %vm3966, %v7495
        %7545 = vst.msk [vmem:[%s7543 + $0x8] sm:$0xff] %vm3966, %v7496
        %7546 = vst.msk [vmem:[%s7543 + $0x10] sm:$0xff] %vm3966, %v7497
        %7547 = vst.msk [vmem:[%s7543 + $0x18] sm:$0xff] %vm3966, %v7498
        %7548 = vst.msk [vmem:[%s7543 + $0x20] sm:$0xff] %vm3966, %v7499
        %7549 = vst.msk [vmem:[%s7543 + $0x28] sm:$0xff] %vm3966, %v7500
        %7550 = vst.msk [vmem:[%s7543 + $0x30] sm:$0xff] %vm3966, %v7501
        %7551 = vst.msk [vmem:[%s7543 + $0x38] sm:$0xff] %vm3966, %v7502
        %7552 = vst.msk [vmem:[%s7543 + $0x40] sm:$0xff] %vm3966, %v7503
        %7553 = vst.msk [vmem:[%s7543 + $0x48] sm:$0xff] %vm3966, %v7504
        %7554 = vst.msk [vmem:[%s7543 + $0x50] sm:$0xff] %vm3966, %v7505
        %7555 = vst.msk [vmem:[%s7543 + $0x58] sm:$0xff] %vm3966, %v7506
        %7556 = vst.msk [vmem:[%s7543 + $0x60] sm:$0xff] %vm3966, %v7507
        %7557 = vst.msk [vmem:[%s7543 + $0x68] sm:$0xff] %vm3966, %v7508
        %7558 = vst.msk [vmem:[%s7543 + $0x70] sm:$0xff] %vm3966, %v7509
        %7559 = vst.msk [vmem:[%s7543 + $0x78] sm:$0xff] %vm3966, %v7510
        %7560 = vst.msk [vmem:[%s7543 + $0x80] sm:$0xff] %vm3966, %v7511
        %7561 = vst.msk [vmem:[%s7543 + $0x88] sm:$0xff] %vm3966, %v7512
        %7562 = vst.msk [vmem:[%s7543 + $0x90] sm:$0xff] %vm3966, %v7513
        %7563 = vst.msk [vmem:[%s7543 + $0x98] sm:$0xff] %vm3966, %v7514
        %7564 = vst.msk [vmem:[%s7543 + $0xa0] sm:$0xff] %vm3966, %v7515
        %7565 = vst.msk [vmem:[%s7543 + $0xa8] sm:$0xff] %vm3966, %v7516
        %7566 = vst.msk [vmem:[%s7543 + $0xb0] sm:$0xff] %vm3966, %v7517
        %7567 = vst.msk [vmem:[%s7543 + $0xb8] sm:$0xff] %vm3966, %v7518
        %7568 = vst.msk [vmem:[%s7543 + $0xc0] sm:$0xff] %vm3966, %v7519
        %7569 = vst.msk [vmem:[%s7543 + $0xc8] sm:$0xff] %vm3966, %v7520
        %7570 = vst.msk [vmem:[%s7543 + $0xd0] sm:$0xff] %vm3966, %v7521
        %7571 = vst.msk [vmem:[%s7543 + $0xd8] sm:$0xff] %vm3966, %v7522
        %7572 = vst.msk [vmem:[%s7543 + $0xe0] sm:$0xff] %vm3966, %v7523
        %7573 = vst.msk [vmem:[%s7543 + $0xe8] sm:$0xff] %vm3966, %v7524
        %7574 = vst.msk [vmem:[%s7543 + $0xf0] sm:$0xff] %vm3966, %v7525
        %7575 = vst.msk [vmem:[%s7543 + $0xf8] sm:$0xff] %vm3966, %v7526
        %7576 = vst.msk [vmem:[%s7543 + $0x100] sm:$0xff] %vm3966, %v7527
        %7577 = vst.msk [vmem:[%s7543 + $0x108] sm:$0xff] %vm3966, %v7528
        %7578 = vst.msk [vmem:[%s7543 + $0x110] sm:$0xff] %vm3966, %v7529
        %7579 = vst.msk [vmem:[%s7543 + $0x118] sm:$0xff] %vm3966, %v7530
        %7580 = vst.msk [vmem:[%s7543 + $0x120] sm:$0xff] %vm3966, %v7531
        %7581 = vst.msk [vmem:[%s7543 + $0x128] sm:$0xff] %vm3966, %v7532
        %7582 = vst.msk [vmem:[%s7543 + $0x130] sm:$0xff] %vm3966, %v7533
        %7583 = vst.msk [vmem:[%s7543 + $0x138] sm:$0xff] %vm3966, %v7534
        %7584 = vst.msk [vmem:[%s7543 + $0x140] sm:$0xff] %vm3966, %v7535
        %7585 = vst.msk [vmem:[%s7543 + $0x148] sm:$0xff] %vm3966, %v7536
        %7586 = vst.msk [vmem:[%s7543 + $0x150] sm:$0xff] %vm3966, %v7537
        %7587 = vst.msk [vmem:[%s7543 + $0x158] sm:$0xff] %vm3966, %v7538
        %7588 = vst.msk [vmem:[%s7543 + $0x160] sm:$0xff] %vm3966, %v7539
        %7589 = vst.msk [vmem:[%s7543 + $0x168] sm:$0xff] %vm3966, %v7540
        %7590 = vst.msk [vmem:[%s7543 + $0x170] sm:$0xff] %vm3966, %v7541
        %7591 = vst.msk [vmem:[%s7543 + $0x178] sm:$0xff] %vm3966, %v7542
        %s7592 = smul.u32 2, %s16
        %p7593 = scmp.lt.s32.totalorder %s7592, 3
        %s7594 = scalar_select %p7593, %s7592, 3
        %s7595 = smul.addr %s7594, 48
        %s7596 = smul.addr %s7595, 8
        %s7597 = scalar_lea.vmem %s2, %s7596
        // Predicated region
        $region33: #{tpu_custom_call.1} parent=27 // pred_check
          %p7598 = pneg %p86
        $region34: #{tpu_custom_call.1} parent=27 // pred_check_branch
          %7600 = sbr.rel (%p7598) target = $region36
        $region35: #{tpu_custom_call.1} parent=27 // pred_region
          %s7601 = smul.u32 2, %s16
        $region36: #{tpu_custom_call.1} parent=27 // pred_fallthru
          _
      $region28: #{tpu_custom_call.1} parent=5 // pred_fallthru
        _
      %p7602 = scmp.le.s32.totalorder 2, %s11
      // Predicated region
      $region37: #{tpu_custom_call.1} parent=5 // pred_check
        %p7603 = pneg %p7602
      $region38: #{tpu_custom_call.1} parent=5 // pred_check_branch
        %7605 = sbr.rel (%p7603) target = $region40
      $region39: #{tpu_custom_call.1} parent=5 // pred_region
        %s7606 = ssub.s32 %s11, 2
        // Predicated region
        $region41: #{tpu_custom_call.1} parent=39 // pred_check
          %p7607 = pneg %p92
        $region42: #{tpu_custom_call.1} parent=39 // pred_check_branch
          %7609 = sbr.rel (%p7607) target = $region44
        $region43: #{tpu_custom_call.1} parent=39 // pred_region
          %s7610 = smul.u32 2, %s17
          %p7611 = scmp.lt.s32.totalorder %s7610, 3
          %s7612 = scalar_select %p7611, %s7610, 3
          %s7613 = smul.addr %s7612, 48
          %s7614 = smul.addr %s7613, 8
          %s7615 = scalar_lea.vmem %s2, %s7614
        $region44: #{tpu_custom_call.1} parent=39 // pred_fallthru
          _
      $region40: #{tpu_custom_call.1} parent=5 // pred_fallthru
        _
    $region6: #{tpu_custom_call.1} parent=1 // loop_footer
      %s15 = sadd.s32 1, %s11
    $region7: #{tpu_custom_call.1} parent=1 // loop_footer_branch
      %10 = sbr.rel target = $region3
    $region8: #{tpu_custom_call.1} parent=1 // loop_exit
      _
    %7616 = vsyncpa [#allocation3], 1
    %s7617 = scalar_lea.sflag [#allocation3], 1
    %7618 = vsyncpa %s7617, 1

</llo_original>
